<compile_context>
chip_gen: v5e
topology: v5e:2x2
jax: 0.10.0
libtpu: 0.0.40
codegen_flags: <defaults>
</compile_context>

<pallas_src>
import jax
import jax.numpy as jnp
from jax.experimental import pallas as pl
from jax.experimental.pallas import tpu as pltpu

CONST_RANK_DENOMINATOR = 2
BN_EPS = 1e-5


# ------------------------------ fused kernel -------------------------------- #

def _make_block_kernel(*, stride, H, W, Ho, Wo, Cin, R, P, identity_sc):
    """Build the fused block kernel for one image per grid step."""
    s = stride
    hs = s * (Ho - 1) + 1          # spatial extent read per tap (before stride)
    ws = s * (Wo - 1) + 1

    def body(x_ref, w1u_ref, w1v_ref, b1_ref, w2u_ref, w2v_ref, b2_ref,
             wsc_ref, bsc_ref, o_ref, xpad_ref, acc_ref, h1pad_ref):
        # ---- stage the input into a zero-haloed VMEM slab (pad=1) ----------
        xpad_ref[...] = jnp.zeros_like(xpad_ref)
        xpad_ref[1:H + 1, 1:W + 1, :] = x_ref[0]

        # ---- conv1_u: 3x3 stride-s as 9 shifted matmuls, VMEM accumulator --
        acc_ref[...] = jnp.zeros_like(acc_ref)
        for kh in range(3):
            for kw in range(3):
                slab = xpad_ref[kh:kh + hs, kw:kw + ws, :]
                if s > 1:
                    # TODO(synk): stride>1 taps use value-level strided slices;
                    # not exercised by the demo (stride==1) — verify lowering.
                    slab = slab[::s, ::s, :]
                acc_ref[...] += jnp.dot(slab.reshape(Ho * Wo, Cin),
                                        w1u_ref[kh * 3 + kw],
                                        preferred_element_type=jnp.float32)

        # ---- conv1_v (bn1 scale folded into weights) + bias + relu ---------
        h1 = jnp.dot(acc_ref[...], w1v_ref[...],
                     preferred_element_type=jnp.float32) + b1_ref[...]
        h1 = jnp.maximum(h1, 0.0)

        # stage the intermediate into a zero-haloed VMEM slab (never hits HBM)
        h1pad_ref[...] = jnp.zeros_like(h1pad_ref)
        h1pad_ref[1:Ho + 1, 1:Wo + 1, :] = h1.reshape(Ho, Wo, P)

        # ---- conv2_u: 3x3 stride-1, same 9-tap accumulation -----------------
        acc_ref[...] = jnp.zeros_like(acc_ref)
        for kh in range(3):
            for kw in range(3):
                slab = h1pad_ref[kh:kh + Ho, kw:kw + Wo, :]
                acc_ref[...] += jnp.dot(slab.reshape(Ho * Wo, P),
                                        w2u_ref[kh * 3 + kw],
                                        preferred_element_type=jnp.float32)

        # ---- conv2_v (bn2 scale folded) + bias (no relu yet) ----------------
        main = jnp.dot(acc_ref[...], w2v_ref[...],
                       preferred_element_type=jnp.float32) + b2_ref[...]

        # ---- shortcut branch (1x1 stride-s conv + bn, or identity) ----------
        xs = x_ref[0]
        if s > 1:
            xs = xs[::s, ::s, :]
        xs2d = xs.reshape(Ho * Wo, Cin)
        if identity_sc:
            sc = xs2d                      # stride==1 and Cin==P guaranteed
        else:
            sc = jnp.dot(xs2d, wsc_ref[...],
                         preferred_element_type=jnp.float32) + bsc_ref[...]

        # ---- residual add + relu; the only HBM store of the whole block -----
        out = jnp.maximum(main + sc, 0.0)
        o_ref[...] = out.reshape(1, Ho, Wo, P).astype(o_ref.dtype)

    if identity_sc:
        # no shortcut-conv operands in the signature
        def kernel(x_ref, w1u_ref, w1v_ref, b1_ref, w2u_ref, w2v_ref, b2_ref,
                   o_ref, xpad_ref, acc_ref, h1pad_ref):
            body(x_ref, w1u_ref, w1v_ref, b1_ref, w2u_ref, w2v_ref, b2_ref,
                 None, None, o_ref, xpad_ref, acc_ref, h1pad_ref)
        return kernel
    return body


# ------------------------------- wrapper ------------------------------------ #

def _bn_fold(bn):
    scale = bn["gamma"] / jnp.sqrt(bn["var"] + BN_EPS)
    bias = bn["beta"] - bn["mean"] * scale
    return scale, bias


def low_rank_block_forward(x_nchw, params, stride):
    """Exact LowRankBasicBlock3.forward (inference-mode BN). NCHW in / NCHW out."""
    x = jnp.transpose(x_nchw, (0, 2, 3, 1))                 # -> NHWC (C on lanes)
    N, H, W, Cin = x.shape
    P = params["bn1"]["gamma"].shape[0]                     # planes
    R = params["conv1_u_w"].shape[0]                        # low rank = planes // 2
    Ho = (H + 2 - 3) // stride + 1
    Wo = (W + 2 - 3) // stride + 1

    # 3x3 weights as (tap, Cin, Cout); 1x1 weights as (Cin, Cout) with the
    # following BN scale folded in (review item: fold scale, keep only bias).
    w1u = jnp.transpose(params["conv1_u_w"], (2, 3, 1, 0)).reshape(9, Cin, R)
    w2u = jnp.transpose(params["conv2_u_w"], (2, 3, 1, 0)).reshape(9, P, R)
    s1, b1 = _bn_fold(params["bn1"])
    s2, b2 = _bn_fold(params["bn2"])
    w1v = params["conv1_v_w"].reshape(P, R).T * s1[None, :]
    w2v = params["conv2_v_w"].reshape(P, R).T * s2[None, :]

    identity_sc = (stride == 1 and Cin == P)                # expansion == 1

    inputs = [x, w1u, w1v, b1.reshape(1, P), w2u, w2v, b2.reshape(1, P)]
    in_specs = [
        pl.BlockSpec((1, H, W, Cin), lambda n: (n, 0, 0, 0)),
        pl.BlockSpec((9, Cin, R), lambda n: (0, 0, 0)),
        pl.BlockSpec((R, P), lambda n: (0, 0)),
        pl.BlockSpec((1, P), lambda n: (0, 0)),
        pl.BlockSpec((9, P, R), lambda n: (0, 0, 0)),
        pl.BlockSpec((R, P), lambda n: (0, 0)),
        pl.BlockSpec((1, P), lambda n: (0, 0)),
    ]
    if not identity_sc:
        ssc, bsc = _bn_fold(params["bn_sc"])
        wsc = params["sc_w"].reshape(P, Cin).T * ssc[None, :]
        inputs += [wsc, bsc.reshape(1, P)]
        in_specs += [pl.BlockSpec((Cin, P), lambda n: (0, 0)),
                     pl.BlockSpec((1, P), lambda n: (0, 0))]

    kernel = _make_block_kernel(stride=stride, H=H, W=W, Ho=Ho, Wo=Wo,
                                Cin=Cin, R=R, P=P, identity_sc=identity_sc)

    out = pl.pallas_call(
        kernel,
        out_shape=jax.ShapeDtypeStruct((N, Ho, Wo, P), x.dtype),
        grid=(N,),
        in_specs=in_specs,
        out_specs=pl.BlockSpec((1, Ho, Wo, P), lambda n: (n, 0, 0, 0)),
        scratch_shapes=[
            pltpu.VMEM((H + 2, W + 2, Cin), jnp.float32),    # zero-haloed input
            pltpu.VMEM((Ho * Wo, R), jnp.float32),           # 3x3 conv accumulator
            pltpu.VMEM((Ho + 2, Wo + 2, P), jnp.float32),    # zero-haloed intermediate
        ],
        compiler_params=pltpu.CompilerParams(
            dimension_semantics=("parallel",)),
    )(*inputs)

    return jnp.transpose(out, (0, 3, 1, 2))                  # -> NCHW


# --------------------------- pure-JAX reference ------------------------------ #

def _ref_forward(x, params, stride):
    def conv(x, w, s=1, pad="VALID"):
        return jax.lax.conv_general_dilated(
            x, w, (s, s), pad, dimension_numbers=("NCHW", "OIHW", "NCHW"))

    def bn(x, p):
        sc = p["gamma"] / jnp.sqrt(p["var"] + BN_EPS)
        bi = p["beta"] - p["mean"] * sc
        return x * sc[None, :, None, None] + bi[None, :, None, None]

    out = conv(x, params["conv1_u_w"], stride, ((1, 1), (1, 1)))
    out = jax.nn.relu(bn(conv(out, params["conv1_v_w"]), params["bn1"]))
    out = conv(out, params["conv2_u_w"], 1, ((1, 1), (1, 1)))
    out = bn(conv(out, params["conv2_v_w"]), params["bn2"])
    if "sc_w" in params:
        sc = bn(conv(x, params["sc_w"], stride), params["bn_sc"])
    else:
        sc = x
    return jax.nn.relu(out + sc)


# -------------------------------- main --------------------------------------- #

def _init_params(key, in_planes, planes, stride):
    rank = planes // CONST_RANK_DENOMINATOR        # int(planes / 2)
    ks = jax.random.split(key, 8)

    def bn_params(k, c):
        k1, k2, k3, k4 = jax.random.split(k, 4)
        return {
            "gamma": jax.random.uniform(k1, (c,), jnp.float32, 0.5, 1.5),
            "beta": 0.1 * jax.random.normal(k2, (c,), jnp.float32),
            "mean": 0.1 * jax.random.normal(k3, (c,), jnp.float32),
            "var": jax.random.uniform(k4, (c,), jnp.float32, 0.5, 1.5),
        }

    params = {
        "conv1_u_w": 0.2 * jax.random.normal(ks[0], (rank, in_planes, 3, 3), jnp.float32),
        "conv1_v_w": 0.2 * jax.random.normal(ks[1], (planes, rank, 1, 1), jnp.float32),
        "bn1": bn_params(ks[2], planes),
        "conv2_u_w": 0.2 * jax.random.normal(ks[3], (rank, planes, 3, 3), jnp.float32),
        "conv2_v_w": 0.2 * jax.random.normal(ks[4], (planes, rank, 1, 1), jnp.float32),
        "bn2": bn_params(ks[5], planes),
    }
    if stride != 1 or in_planes != planes:          # expansion == 1
        params["sc_w"] = 0.2 * jax.random.normal(
            ks[6], (planes, in_planes, 1, 1), jnp.float32)
        params["bn_sc"] = bn_params(ks[7], planes)
    return params


if __name__ == "__main__":
    key = jax.random.PRNGKey(0)
    in_planes, planes, stride = 4, 8, 1            # 4 != 8 -> conv shortcut branch
    N, H, W = 2, 16, 16

    kx, kp = jax.random.split(key)
    x = jax.random.normal(kx, (N, in_planes, H, W), jnp.float32)
    params = _init_params(kp, in_planes, planes, stride)

    out = jax.block_until_ready(low_rank_block_forward(x, params, stride))
    ref = jax.block_until_ready(_ref_forward(x, params, stride))

    assert out.shape == (N, planes, H // stride, W // stride), out.shape
    max_err = float(jnp.abs(out - ref).max())
    assert jnp.allclose(out, ref, rtol=1e-4, atol=1e-4), max_err
    print("KERNEL_OK")
</pallas_src>

<mosaic_0001>
module attributes {stable_mosaic.version = 11 : i64} {
  func.func @body(%arg0: i32, %arg1: memref<1x16x16x4xf32, #tpu.memory_space<vmem>>, %arg2: memref<9x4x4xf32, #tpu.memory_space<vmem>>, %arg3: memref<4x8xf32, #tpu.memory_space<vmem>>, %arg4: memref<1x8xf32, #tpu.memory_space<vmem>>, %arg5: memref<9x8x4xf32, #tpu.memory_space<vmem>>, %arg6: memref<4x8xf32, #tpu.memory_space<vmem>>, %arg7: memref<1x8xf32, #tpu.memory_space<vmem>>, %arg8: memref<4x8xf32, #tpu.memory_space<vmem>>, %arg9: memref<1x8xf32, #tpu.memory_space<vmem>>, %arg10: memref<1x16x16x8xf32, #tpu.memory_space<vmem>>, %arg11: memref<18x18x4xf32, #tpu.memory_space<vmem>>, %arg12: memref<256x4xf32, #tpu.memory_space<vmem>>, %arg13: memref<18x18x8xf32, #tpu.memory_space<vmem>>) attributes {dimension_semantics = [#tpu.dimension_semantics<parallel>], iteration_bounds = array<i64: 2>, scalar_prefetch = 0 : i64, scratch_operands = 3 : i64, tpu.core_type = #tpu.core_type<tc>, window_params = [{transform_indices = @transform_0, window_bounds = array<i64: 1, 16, 16, 4>}, {pipeline_mode = #tpu.pipeline_mode<synchronous>, transform_indices = @transform_1, window_bounds = array<i64: 9, 4, 4>}, {pipeline_mode = #tpu.pipeline_mode<synchronous>, transform_indices = @transform_2, window_bounds = array<i64: 4, 8>}, {pipeline_mode = #tpu.pipeline_mode<synchronous>, transform_indices = @transform_3, window_bounds = array<i64: 1, 8>}, {pipeline_mode = #tpu.pipeline_mode<synchronous>, transform_indices = @transform_4, window_bounds = array<i64: 9, 8, 4>}, {pipeline_mode = #tpu.pipeline_mode<synchronous>, transform_indices = @transform_5, window_bounds = array<i64: 4, 8>}, {pipeline_mode = #tpu.pipeline_mode<synchronous>, transform_indices = @transform_6, window_bounds = array<i64: 1, 8>}, {pipeline_mode = #tpu.pipeline_mode<synchronous>, transform_indices = @transform_7, window_bounds = array<i64: 4, 8>}, {pipeline_mode = #tpu.pipeline_mode<synchronous>, transform_indices = @transform_8, window_bounds = array<i64: 1, 8>}, {transform_indices = @transform_9, window_bounds = array<i64: 1, 16, 16, 8>}]} {
    %cst = arith.constant 0.000000e+00 : f32
    %0 = vector.broadcast %cst : f32 to vector<18x18x4xf32>
    %c0 = arith.constant 0 : index
    %c0_0 = arith.constant 0 : index
    %c0_1 = arith.constant 0 : index
    %1 = vector.load %arg11[%c0, %c0_0, %c0_1] : memref<18x18x4xf32, #tpu.memory_space<vmem>>, vector<18x18x4xf32>
    tpu.vector_store %arg11[%c0, %c0_0, %c0_1], %0 {strides = array<i32>} : memref<18x18x4xf32, #tpu.memory_space<vmem>>, vector<18x18x4xf32>,
    %c0_2 = arith.constant 0 : index
    %c0_3 = arith.constant 0 : index
    %c0_4 = arith.constant 0 : index
    %c0_5 = arith.constant 0 : index
    %2 = vector.load %arg1[%c0_2, %c0_3, %c0_4, %c0_5] : memref<1x16x16x4xf32, #tpu.memory_space<vmem>>, vector<1x16x16x4xf32>
    %3 = vector.shape_cast %2 : vector<1x16x16x4xf32> to vector<16x16x4xf32>
    %c1 = arith.constant 1 : index
    %c1_6 = arith.constant 1 : index
    %c0_7 = arith.constant 0 : index
    %4 = vector.load %arg11[%c1, %c1_6, %c0_7] : memref<18x18x4xf32, #tpu.memory_space<vmem>>, vector<16x16x4xf32>
    tpu.vector_store %arg11[%c1, %c1_6, %c0_7], %3 {strides = array<i32>} : memref<18x18x4xf32, #tpu.memory_space<vmem>>, vector<16x16x4xf32>,
    %cst_8 = arith.constant 0.000000e+00 : f32
    %5 = vector.broadcast %cst_8 : f32 to vector<256x4xf32>
    %c0_9 = arith.constant 0 : index
    %c0_10 = arith.constant 0 : index
    %6 = vector.load %arg12[%c0_9, %c0_10] : memref<256x4xf32, #tpu.memory_space<vmem>>, vector<256x4xf32>
    tpu.vector_store %arg12[%c0_9, %c0_10], %5 {strides = array<i32>} : memref<256x4xf32, #tpu.memory_space<vmem>>, vector<256x4xf32>,
    %c0_11 = arith.constant 0 : index
    %c0_12 = arith.constant 0 : index
    %c0_13 = arith.constant 0 : index
    %7 = vector.load %arg11[%c0_11, %c0_12, %c0_13] : memref<18x18x4xf32, #tpu.memory_space<vmem>>, vector<16x16x4xf32>
    %c0_14 = arith.constant 0 : index
    %c0_15 = arith.constant 0 : index
    %8 = vector.load %arg12[%c0_14, %c0_15] : memref<256x4xf32, #tpu.memory_space<vmem>>, vector<256x4xf32>
    %9 = vector.shape_cast %7 : vector<16x16x4xf32> to vector<256x4xf32>
    %c0_16 = arith.constant 0 : index
    %c0_17 = arith.constant 0 : index
    %c0_18 = arith.constant 0 : index
    %10 = vector.load %arg2[%c0_16, %c0_17, %c0_18] : memref<9x4x4xf32, #tpu.memory_space<vmem>>, vector<1x4x4xf32>
    %11 = vector.shape_cast %10 : vector<1x4x4xf32> to vector<4x4xf32>
    %cst_19 = arith.constant dense<0.000000e+00> : vector<256x4xf32>
    %12 = tpu.matmul %9, %11, %cst_19 {dimension_numbers = #tpu.dot_dimension_numbers<[1], [0], [0], [1], [0, 0, 1, 1], [], []>} : vector<256x4xf32>, vector<4x4xf32>, vector<256x4xf32> -> vector<256x4xf32>
    %13 = arith.addf %8, %12 : vector<256x4xf32>
    %c0_20 = arith.constant 0 : index
    %c0_21 = arith.constant 0 : index
    %14 = vector.load %arg12[%c0_20, %c0_21] : memref<256x4xf32, #tpu.memory_space<vmem>>, vector<256x4xf32>
    tpu.vector_store %arg12[%c0_20, %c0_21], %13 {strides = array<i32>} : memref<256x4xf32, #tpu.memory_space<vmem>>, vector<256x4xf32>,
    %c0_22 = arith.constant 0 : index
    %c1_23 = arith.constant 1 : index
    %c0_24 = arith.constant 0 : index
    %15 = vector.load %arg11[%c0_22, %c1_23, %c0_24] : memref<18x18x4xf32, #tpu.memory_space<vmem>>, vector<16x16x4xf32>
    %c0_25 = arith.constant 0 : index
    %c0_26 = arith.constant 0 : index
    %16 = vector.load %arg12[%c0_25, %c0_26] : memref<256x4xf32, #tpu.memory_space<vmem>>, vector<256x4xf32>
    %17 = vector.shape_cast %15 : vector<16x16x4xf32> to vector<256x4xf32>
    %c1_27 = arith.constant 1 : index
    %c0_28 = arith.constant 0 : index
    %c0_29 = arith.constant 0 : index
    %18 = vector.load %arg2[%c1_27, %c0_28, %c0_29] : memref<9x4x4xf32, #tpu.memory_space<vmem>>, vector<1x4x4xf32>
    %19 = vector.shape_cast %18 : vector<1x4x4xf32> to vector<4x4xf32>
    %cst_30 = arith.constant dense<0.000000e+00> : vector<256x4xf32>
    %20 = tpu.matmul %17, %19, %cst_30 {dimension_numbers = #tpu.dot_dimension_numbers<[1], [0], [0], [1], [0, 0, 1, 1], [], []>} : vector<256x4xf32>, vector<4x4xf32>, vector<256x4xf32> -> vector<256x4xf32>
    %21 = arith.addf %16, %20 : vector<256x4xf32>
    %c0_31 = arith.constant 0 : index
    %c0_32 = arith.constant 0 : index
    %22 = vector.load %arg12[%c0_31, %c0_32] : memref<256x4xf32, #tpu.memory_space<vmem>>, vector<256x4xf32>
    tpu.vector_store %arg12[%c0_31, %c0_32], %21 {strides = array<i32>} : memref<256x4xf32, #tpu.memory_space<vmem>>, vector<256x4xf32>,
    %c0_33 = arith.constant 0 : index
    %c2 = arith.constant 2 : index
    %c0_34 = arith.constant 0 : index
    %23 = vector.load %arg11[%c0_33, %c2, %c0_34] : memref<18x18x4xf32, #tpu.memory_space<vmem>>, vector<16x16x4xf32>
    %c0_35 = arith.constant 0 : index
    %c0_36 = arith.constant 0 : index
    %24 = vector.load %arg12[%c0_35, %c0_36] : memref<256x4xf32, #tpu.memory_space<vmem>>, vector<256x4xf32>
    %25 = vector.shape_cast %23 : vector<16x16x4xf32> to vector<256x4xf32>
    %c2_37 = arith.constant 2 : index
    %c0_38 = arith.constant 0 : index
    %c0_39 = arith.constant 0 : index
    %26 = vector.load %arg2[%c2_37, %c0_38, %c0_39] : memref<9x4x4xf32, #tpu.memory_space<vmem>>, vector<1x4x4xf32>
    %27 = vector.shape_cast %26 : vector<1x4x4xf32> to vector<4x4xf32>
    %cst_40 = arith.constant dense<0.000000e+00> : vector<256x4xf32>
    %28 = tpu.matmul %25, %27, %cst_40 {dimension_numbers = #tpu.dot_dimension_numbers<[1], [0], [0], [1], [0, 0, 1, 1], [], []>} : vector<256x4xf32>, vector<4x4xf32>, vector<256x4xf32> -> vector<256x4xf32>
    %29 = arith.addf %24, %28 : vector<256x4xf32>
    %c0_41 = arith.constant 0 : index
    %c0_42 = arith.constant 0 : index
    %30 = vector.load %arg12[%c0_41, %c0_42] : memref<256x4xf32, #tpu.memory_space<vmem>>, vector<256x4xf32>
    tpu.vector_store %arg12[%c0_41, %c0_42], %29 {strides = array<i32>} : memref<256x4xf32, #tpu.memory_space<vmem>>, vector<256x4xf32>,
    %c1_43 = arith.constant 1 : index
    %c0_44 = arith.constant 0 : index
    %c0_45 = arith.constant 0 : index
    %31 = vector.load %arg11[%c1_43, %c0_44, %c0_45] : memref<18x18x4xf32, #tpu.memory_space<vmem>>, vector<16x16x4xf32>
    %c0_46 = arith.constant 0 : index
    %c0_47 = arith.constant 0 : index
    %32 = vector.load %arg12[%c0_46, %c0_47] : memref<256x4xf32, #tpu.memory_space<vmem>>, vector<256x4xf32>
    %33 = vector.shape_cast %31 : vector<16x16x4xf32> to vector<256x4xf32>
    %c3 = arith.constant 3 : index
    %c0_48 = arith.constant 0 : index
    %c0_49 = arith.constant 0 : index
    %34 = vector.load %arg2[%c3, %c0_48, %c0_49] : memref<9x4x4xf32, #tpu.memory_space<vmem>>, vector<1x4x4xf32>
    %35 = vector.shape_cast %34 : vector<1x4x4xf32> to vector<4x4xf32>
    %cst_50 = arith.constant dense<0.000000e+00> : vector<256x4xf32>
    %36 = tpu.matmul %33, %35, %cst_50 {dimension_numbers = #tpu.dot_dimension_numbers<[1], [0], [0], [1], [0, 0, 1, 1], [], []>} : vector<256x4xf32>, vector<4x4xf32>, vector<256x4xf32> -> vector<256x4xf32>
    %37 = arith.addf %32, %36 : vector<256x4xf32>
    %c0_51 = arith.constant 0 : index
    %c0_52 = arith.constant 0 : index
    %38 = vector.load %arg12[%c0_51, %c0_52] : memref<256x4xf32, #tpu.memory_space<vmem>>, vector<256x4xf32>
    tpu.vector_store %arg12[%c0_51, %c0_52], %37 {strides = array<i32>} : memref<256x4xf32, #tpu.memory_space<vmem>>, vector<256x4xf32>,
    %c1_53 = arith.constant 1 : index
    %c1_54 = arith.constant 1 : index
    %c0_55 = arith.constant 0 : index
    %39 = vector.load %arg11[%c1_53, %c1_54, %c0_55] : memref<18x18x4xf32, #tpu.memory_space<vmem>>, vector<16x16x4xf32>
    %c0_56 = arith.constant 0 : index
    %c0_57 = arith.constant 0 : index
    %40 = vector.load %arg12[%c0_56, %c0_57] : memref<256x4xf32, #tpu.memory_space<vmem>>, vector<256x4xf32>
    %41 = vector.shape_cast %39 : vector<16x16x4xf32> to vector<256x4xf32>
    %c4 = arith.constant 4 : index
    %c0_58 = arith.constant 0 : index
    %c0_59 = arith.constant 0 : index
    %42 = vector.load %arg2[%c4, %c0_58, %c0_59] : memref<9x4x4xf32, #tpu.memory_space<vmem>>, vector<1x4x4xf32>
    %43 = vector.shape_cast %42 : vector<1x4x4xf32> to vector<4x4xf32>
    %cst_60 = arith.constant dense<0.000000e+00> : vector<256x4xf32>
    %44 = tpu.matmul %41, %43, %cst_60 {dimension_numbers = #tpu.dot_dimension_numbers<[1], [0], [0], [1], [0, 0, 1, 1], [], []>} : vector<256x4xf32>, vector<4x4xf32>, vector<256x4xf32> -> vector<256x4xf32>
    %45 = arith.addf %40, %44 : vector<256x4xf32>
    %c0_61 = arith.constant 0 : index
    %c0_62 = arith.constant 0 : index
    %46 = vector.load %arg12[%c0_61, %c0_62] : memref<256x4xf32, #tpu.memory_space<vmem>>, vector<256x4xf32>
    tpu.vector_store %arg12[%c0_61, %c0_62], %45 {strides = array<i32>} : memref<256x4xf32, #tpu.memory_space<vmem>>, vector<256x4xf32>,
    %c1_63 = arith.constant 1 : index
    %c2_64 = arith.constant 2 : index
    %c0_65 = arith.constant 0 : index
    %47 = vector.load %arg11[%c1_63, %c2_64, %c0_65] : memref<18x18x4xf32, #tpu.memory_space<vmem>>, vector<16x16x4xf32>
    %c0_66 = arith.constant 0 : index
    %c0_67 = arith.constant 0 : index
    %48 = vector.load %arg12[%c0_66, %c0_67] : memref<256x4xf32, #tpu.memory_space<vmem>>, vector<256x4xf32>
    %49 = vector.shape_cast %47 : vector<16x16x4xf32> to vector<256x4xf32>
    %c5 = arith.constant 5 : index
    %c0_68 = arith.constant 0 : index
    %c0_69 = arith.constant 0 : index
    %50 = vector.load %arg2[%c5, %c0_68, %c0_69] : memref<9x4x4xf32, #tpu.memory_space<vmem>>, vector<1x4x4xf32>
    %51 = vector.shape_cast %50 : vector<1x4x4xf32> to vector<4x4xf32>
    %cst_70 = arith.constant dense<0.000000e+00> : vector<256x4xf32>
    %52 = tpu.matmul %49, %51, %cst_70 {dimension_numbers = #tpu.dot_dimension_numbers<[1], [0], [0], [1], [0, 0, 1, 1], [], []>} : vector<256x4xf32>, vector<4x4xf32>, vector<256x4xf32> -> vector<256x4xf32>
    %53 = arith.addf %48, %52 : vector<256x4xf32>
    %c0_71 = arith.constant 0 : index
    %c0_72 = arith.constant 0 : index
    %54 = vector.load %arg12[%c0_71, %c0_72] : memref<256x4xf32, #tpu.memory_space<vmem>>, vector<256x4xf32>
    tpu.vector_store %arg12[%c0_71, %c0_72], %53 {strides = array<i32>} : memref<256x4xf32, #tpu.memory_space<vmem>>, vector<256x4xf32>,
    %c2_73 = arith.constant 2 : index
    %c0_74 = arith.constant 0 : index
    %c0_75 = arith.constant 0 : index
    %55 = vector.load %arg11[%c2_73, %c0_74, %c0_75] : memref<18x18x4xf32, #tpu.memory_space<vmem>>, vector<16x16x4xf32>
    %c0_76 = arith.constant 0 : index
    %c0_77 = arith.constant 0 : index
    %56 = vector.load %arg12[%c0_76, %c0_77] : memref<256x4xf32, #tpu.memory_space<vmem>>, vector<256x4xf32>
    %57 = vector.shape_cast %55 : vector<16x16x4xf32> to vector<256x4xf32>
    %c6 = arith.constant 6 : index
    %c0_78 = arith.constant 0 : index
    %c0_79 = arith.constant 0 : index
    %58 = vector.load %arg2[%c6, %c0_78, %c0_79] : memref<9x4x4xf32, #tpu.memory_space<vmem>>, vector<1x4x4xf32>
    %59 = vector.shape_cast %58 : vector<1x4x4xf32> to vector<4x4xf32>
    %cst_80 = arith.constant dense<0.000000e+00> : vector<256x4xf32>
    %60 = tpu.matmul %57, %59, %cst_80 {dimension_numbers = #tpu.dot_dimension_numbers<[1], [0], [0], [1], [0, 0, 1, 1], [], []>} : vector<256x4xf32>, vector<4x4xf32>, vector<256x4xf32> -> vector<256x4xf32>
    %61 = arith.addf %56, %60 : vector<256x4xf32>
    %c0_81 = arith.constant 0 : index
    %c0_82 = arith.constant 0 : index
    %62 = vector.load %arg12[%c0_81, %c0_82] : memref<256x4xf32, #tpu.memory_space<vmem>>, vector<256x4xf32>
    tpu.vector_store %arg12[%c0_81, %c0_82], %61 {strides = array<i32>} : memref<256x4xf32, #tpu.memory_space<vmem>>, vector<256x4xf32>,
    %c2_83 = arith.constant 2 : index
    %c1_84 = arith.constant 1 : index
    %c0_85 = arith.constant 0 : index
    %63 = vector.load %arg11[%c2_83, %c1_84, %c0_85] : memref<18x18x4xf32, #tpu.memory_space<vmem>>, vector<16x16x4xf32>
    %c0_86 = arith.constant 0 : index
    %c0_87 = arith.constant 0 : index
    %64 = vector.load %arg12[%c0_86, %c0_87] : memref<256x4xf32, #tpu.memory_space<vmem>>, vector<256x4xf32>
    %65 = vector.shape_cast %63 : vector<16x16x4xf32> to vector<256x4xf32>
    %c7 = arith.constant 7 : index
    %c0_88 = arith.constant 0 : index
    %c0_89 = arith.constant 0 : index
    %66 = vector.load %arg2[%c7, %c0_88, %c0_89] : memref<9x4x4xf32, #tpu.memory_space<vmem>>, vector<1x4x4xf32>
    %67 = vector.shape_cast %66 : vector<1x4x4xf32> to vector<4x4xf32>
    %cst_90 = arith.constant dense<0.000000e+00> : vector<256x4xf32>
    %68 = tpu.matmul %65, %67, %cst_90 {dimension_numbers = #tpu.dot_dimension_numbers<[1], [0], [0], [1], [0, 0, 1, 1], [], []>} : vector<256x4xf32>, vector<4x4xf32>, vector<256x4xf32> -> vector<256x4xf32>
    %69 = arith.addf %64, %68 : vector<256x4xf32>
    %c0_91 = arith.constant 0 : index
    %c0_92 = arith.constant 0 : index
    %70 = vector.load %arg12[%c0_91, %c0_92] : memref<256x4xf32, #tpu.memory_space<vmem>>, vector<256x4xf32>
    tpu.vector_store %arg12[%c0_91, %c0_92], %69 {strides = array<i32>} : memref<256x4xf32, #tpu.memory_space<vmem>>, vector<256x4xf32>,
    %c2_93 = arith.constant 2 : index
    %c2_94 = arith.constant 2 : index
    %c0_95 = arith.constant 0 : index
    %71 = vector.load %arg11[%c2_93, %c2_94, %c0_95] : memref<18x18x4xf32, #tpu.memory_space<vmem>>, vector<16x16x4xf32>
    %c0_96 = arith.constant 0 : index
    %c0_97 = arith.constant 0 : index
    %72 = vector.load %arg12[%c0_96, %c0_97] : memref<256x4xf32, #tpu.memory_space<vmem>>, vector<256x4xf32>
    %73 = vector.shape_cast %71 : vector<16x16x4xf32> to vector<256x4xf32>
    %c8 = arith.constant 8 : index
    %c0_98 = arith.constant 0 : index
    %c0_99 = arith.constant 0 : index
    %74 = vector.load %arg2[%c8, %c0_98, %c0_99] : memref<9x4x4xf32, #tpu.memory_space<vmem>>, vector<1x4x4xf32>
    %75 = vector.shape_cast %74 : vector<1x4x4xf32> to vector<4x4xf32>
    %cst_100 = arith.constant dense<0.000000e+00> : vector<256x4xf32>
    %76 = tpu.matmul %73, %75, %cst_100 {dimension_numbers = #tpu.dot_dimension_numbers<[1], [0], [0], [1], [0, 0, 1, 1], [], []>} : vector<256x4xf32>, vector<4x4xf32>, vector<256x4xf32> -> vector<256x4xf32>
    %77 = arith.addf %72, %76 : vector<256x4xf32>
    %c0_101 = arith.constant 0 : index
    %c0_102 = arith.constant 0 : index
    %78 = vector.load %arg12[%c0_101, %c0_102] : memref<256x4xf32, #tpu.memory_space<vmem>>, vector<256x4xf32>
    tpu.vector_store %arg12[%c0_101, %c0_102], %77 {strides = array<i32>} : memref<256x4xf32, #tpu.memory_space<vmem>>, vector<256x4xf32>,
    %c0_103 = arith.constant 0 : index
    %c0_104 = arith.constant 0 : index
    %79 = vector.load %arg12[%c0_103, %c0_104] : memref<256x4xf32, #tpu.memory_space<vmem>>, vector<256x4xf32>
    %c0_105 = arith.constant 0 : index
    %c0_106 = arith.constant 0 : index
    %80 = vector.load %arg3[%c0_105, %c0_106] : memref<4x8xf32, #tpu.memory_space<vmem>>, vector<4x8xf32>
    %cst_107 = arith.constant dense<0.000000e+00> : vector<256x8xf32>
    %81 = tpu.matmul %79, %80, %cst_107 {dimension_numbers = #tpu.dot_dimension_numbers<[1], [0], [0], [1], [0, 0, 1, 1], [], []>} : vector<256x4xf32>, vector<4x8xf32>, vector<256x8xf32> -> vector<256x8xf32>
    %c0_108 = arith.constant 0 : index
    %c0_109 = arith.constant 0 : index
    %82 = vector.load %arg4[%c0_108, %c0_109] : memref<1x8xf32, #tpu.memory_space<vmem>>, vector<1x8xf32>
    %83 = vector.broadcast %82 : vector<1x8xf32> to vector<256x8xf32>
    %84 = arith.addf %81, %83 : vector<256x8xf32>
    %cst_110 = arith.constant 0.000000e+00 : f32
    %85 = vector.broadcast %cst_110 : f32 to vector<256x8xf32>
    %86 = arith.maximumf %84, %85 : vector<256x8xf32>
    %cst_111 = arith.constant 0.000000e+00 : f32
    %87 = vector.broadcast %cst_111 : f32 to vector<18x18x8xf32>
    %c0_112 = arith.constant 0 : index
    %c0_113 = arith.constant 0 : index
    %c0_114 = arith.constant 0 : index
    %88 = vector.load %arg13[%c0_112, %c0_113, %c0_114] : memref<18x18x8xf32, #tpu.memory_space<vmem>>, vector<18x18x8xf32>
    tpu.vector_store %arg13[%c0_112, %c0_113, %c0_114], %87 {strides = array<i32>} : memref<18x18x8xf32, #tpu.memory_space<vmem>>, vector<18x18x8xf32>,
    %89 = vector.shape_cast %86 : vector<256x8xf32> to vector<16x16x8xf32>
    %c1_115 = arith.constant 1 : index
    %c1_116 = arith.constant 1 : index
    %c0_117 = arith.constant 0 : index
    %90 = vector.load %arg13[%c1_115, %c1_116, %c0_117] : memref<18x18x8xf32, #tpu.memory_space<vmem>>, vector<16x16x8xf32>
    tpu.vector_store %arg13[%c1_115, %c1_116, %c0_117], %89 {strides = array<i32>} : memref<18x18x8xf32, #tpu.memory_space<vmem>>, vector<16x16x8xf32>,
    %cst_118 = arith.constant 0.000000e+00 : f32
    %91 = vector.broadcast %cst_118 : f32 to vector<256x4xf32>
    %c0_119 = arith.constant 0 : index
    %c0_120 = arith.constant 0 : index
    %92 = vector.load %arg12[%c0_119, %c0_120] : memref<256x4xf32, #tpu.memory_space<vmem>>, vector<256x4xf32>
    tpu.vector_store %arg12[%c0_119, %c0_120], %91 {strides = array<i32>} : memref<256x4xf32, #tpu.memory_space<vmem>>, vector<256x4xf32>,
    %c0_121 = arith.constant 0 : index
    %c0_122 = arith.constant 0 : index
    %c0_123 = arith.constant 0 : index
    %93 = vector.load %arg13[%c0_121, %c0_122, %c0_123] : memref<18x18x8xf32, #tpu.memory_space<vmem>>, vector<16x16x8xf32>
    %c0_124 = arith.constant 0 : index
    %c0_125 = arith.constant 0 : index
    %94 = vector.load %arg12[%c0_124, %c0_125] : memref<256x4xf32, #tpu.memory_space<vmem>>, vector<256x4xf32>
    %95 = vector.shape_cast %93 : vector<16x16x8xf32> to vector<256x8xf32>
    %c0_126 = arith.constant 0 : index
    %c0_127 = arith.constant 0 : index
    %c0_128 = arith.constant 0 : index
    %96 = vector.load %arg5[%c0_126, %c0_127, %c0_128] : memref<9x8x4xf32, #tpu.memory_space<vmem>>, vector<1x8x4xf32>
    %97 = vector.shape_cast %96 : vector<1x8x4xf32> to vector<8x4xf32>
    %cst_129 = arith.constant dense<0.000000e+00> : vector<256x4xf32>
    %98 = tpu.matmul %95, %97, %cst_129 {dimension_numbers = #tpu.dot_dimension_numbers<[1], [0], [0], [1], [0, 0, 1, 1], [], []>} : vector<256x8xf32>, vector<8x4xf32>, vector<256x4xf32> -> vector<256x4xf32>
    %99 = arith.addf %94, %98 : vector<256x4xf32>
    %c0_130 = arith.constant 0 : index
    %c0_131 = arith.constant 0 : index
    %100 = vector.load %arg12[%c0_130, %c0_131] : memref<256x4xf32, #tpu.memory_space<vmem>>, vector<256x4xf32>
    tpu.vector_store %arg12[%c0_130, %c0_131], %99 {strides = array<i32>} : memref<256x4xf32, #tpu.memory_space<vmem>>, vector<256x4xf32>,
    %c0_132 = arith.constant 0 : index
    %c1_133 = arith.constant 1 : index
    %c0_134 = arith.constant 0 : index
    %101 = vector.load %arg13[%c0_132, %c1_133, %c0_134] : memref<18x18x8xf32, #tpu.memory_space<vmem>>, vector<16x16x8xf32>
    %c0_135 = arith.constant 0 : index
    %c0_136 = arith.constant 0 : index
    %102 = vector.load %arg12[%c0_135, %c0_136] : memref<256x4xf32, #tpu.memory_space<vmem>>, vector<256x4xf32>
    %103 = vector.shape_cast %101 : vector<16x16x8xf32> to vector<256x8xf32>
    %c1_137 = arith.constant 1 : index
    %c0_138 = arith.constant 0 : index
    %c0_139 = arith.constant 0 : index
    %104 = vector.load %arg5[%c1_137, %c0_138, %c0_139] : memref<9x8x4xf32, #tpu.memory_space<vmem>>, vector<1x8x4xf32>
    %105 = vector.shape_cast %104 : vector<1x8x4xf32> to vector<8x4xf32>
    %cst_140 = arith.constant dense<0.000000e+00> : vector<256x4xf32>
    %106 = tpu.matmul %103, %105, %cst_140 {dimension_numbers = #tpu.dot_dimension_numbers<[1], [0], [0], [1], [0, 0, 1, 1], [], []>} : vector<256x8xf32>, vector<8x4xf32>, vector<256x4xf32> -> vector<256x4xf32>
    %107 = arith.addf %102, %106 : vector<256x4xf32>
    %c0_141 = arith.constant 0 : index
    %c0_142 = arith.constant 0 : index
    %108 = vector.load %arg12[%c0_141, %c0_142] : memref<256x4xf32, #tpu.memory_space<vmem>>, vector<256x4xf32>
    tpu.vector_store %arg12[%c0_141, %c0_142], %107 {strides = array<i32>} : memref<256x4xf32, #tpu.memory_space<vmem>>, vector<256x4xf32>,
    %c0_143 = arith.constant 0 : index
    %c2_144 = arith.constant 2 : index
    %c0_145 = arith.constant 0 : index
    %109 = vector.load %arg13[%c0_143, %c2_144, %c0_145] : memref<18x18x8xf32, #tpu.memory_space<vmem>>, vector<16x16x8xf32>
    %c0_146 = arith.constant 0 : index
    %c0_147 = arith.constant 0 : index
    %110 = vector.load %arg12[%c0_146, %c0_147] : memref<256x4xf32, #tpu.memory_space<vmem>>, vector<256x4xf32>
    %111 = vector.shape_cast %109 : vector<16x16x8xf32> to vector<256x8xf32>
    %c2_148 = arith.constant 2 : index
    %c0_149 = arith.constant 0 : index
    %c0_150 = arith.constant 0 : index
    %112 = vector.load %arg5[%c2_148, %c0_149, %c0_150] : memref<9x8x4xf32, #tpu.memory_space<vmem>>, vector<1x8x4xf32>
    %113 = vector.shape_cast %112 : vector<1x8x4xf32> to vector<8x4xf32>
    %cst_151 = arith.constant dense<0.000000e+00> : vector<256x4xf32>
    %114 = tpu.matmul %111, %113, %cst_151 {dimension_numbers = #tpu.dot_dimension_numbers<[1], [0], [0], [1], [0, 0, 1, 1], [], []>} : vector<256x8xf32>, vector<8x4xf32>, vector<256x4xf32> -> vector<256x4xf32>
    %115 = arith.addf %110, %114 : vector<256x4xf32>
    %c0_152 = arith.constant 0 : index
    %c0_153 = arith.constant 0 : index
    %116 = vector.load %arg12[%c0_152, %c0_153] : memref<256x4xf32, #tpu.memory_space<vmem>>, vector<256x4xf32>
    tpu.vector_store %arg12[%c0_152, %c0_153], %115 {strides = array<i32>} : memref<256x4xf32, #tpu.memory_space<vmem>>, vector<256x4xf32>,
    %c1_154 = arith.constant 1 : index
    %c0_155 = arith.constant 0 : index
    %c0_156 = arith.constant 0 : index
    %117 = vector.load %arg13[%c1_154, %c0_155, %c0_156] : memref<18x18x8xf32, #tpu.memory_space<vmem>>, vector<16x16x8xf32>
    %c0_157 = arith.constant 0 : index
    %c0_158 = arith.constant 0 : index
    %118 = vector.load %arg12[%c0_157, %c0_158] : memref<256x4xf32, #tpu.memory_space<vmem>>, vector<256x4xf32>
    %119 = vector.shape_cast %117 : vector<16x16x8xf32> to vector<256x8xf32>
    %c3_159 = arith.constant 3 : index
    %c0_160 = arith.constant 0 : index
    %c0_161 = arith.constant 0 : index
    %120 = vector.load %arg5[%c3_159, %c0_160, %c0_161] : memref<9x8x4xf32, #tpu.memory_space<vmem>>, vector<1x8x4xf32>
    %121 = vector.shape_cast %120 : vector<1x8x4xf32> to vector<8x4xf32>
    %cst_162 = arith.constant dense<0.000000e+00> : vector<256x4xf32>
    %122 = tpu.matmul %119, %121, %cst_162 {dimension_numbers = #tpu.dot_dimension_numbers<[1], [0], [0], [1], [0, 0, 1, 1], [], []>} : vector<256x8xf32>, vector<8x4xf32>, vector<256x4xf32> -> vector<256x4xf32>
    %123 = arith.addf %118, %122 : vector<256x4xf32>
    %c0_163 = arith.constant 0 : index
    %c0_164 = arith.constant 0 : index
    %124 = vector.load %arg12[%c0_163, %c0_164] : memref<256x4xf32, #tpu.memory_space<vmem>>, vector<256x4xf32>
    tpu.vector_store %arg12[%c0_163, %c0_164], %123 {strides = array<i32>} : memref<256x4xf32, #tpu.memory_space<vmem>>, vector<256x4xf32>,
    %c1_165 = arith.constant 1 : index
    %c1_166 = arith.constant 1 : index
    %c0_167 = arith.constant 0 : index
    %125 = vector.load %arg13[%c1_165, %c1_166, %c0_167] : memref<18x18x8xf32, #tpu.memory_space<vmem>>, vector<16x16x8xf32>
    %c0_168 = arith.constant 0 : index
    %c0_169 = arith.constant 0 : index
    %126 = vector.load %arg12[%c0_168, %c0_169] : memref<256x4xf32, #tpu.memory_space<vmem>>, vector<256x4xf32>
    %127 = vector.shape_cast %125 : vector<16x16x8xf32> to vector<256x8xf32>
    %c4_170 = arith.constant 4 : index
    %c0_171 = arith.constant 0 : index
    %c0_172 = arith.constant 0 : index
    %128 = vector.load %arg5[%c4_170, %c0_171, %c0_172] : memref<9x8x4xf32, #tpu.memory_space<vmem>>, vector<1x8x4xf32>
    %129 = vector.shape_cast %128 : vector<1x8x4xf32> to vector<8x4xf32>
    %cst_173 = arith.constant dense<0.000000e+00> : vector<256x4xf32>
    %130 = tpu.matmul %127, %129, %cst_173 {dimension_numbers = #tpu.dot_dimension_numbers<[1], [0], [0], [1], [0, 0, 1, 1], [], []>} : vector<256x8xf32>, vector<8x4xf32>, vector<256x4xf32> -> vector<256x4xf32>
    %131 = arith.addf %126, %130 : vector<256x4xf32>
    %c0_174 = arith.constant 0 : index
    %c0_175 = arith.constant 0 : index
    %132 = vector.load %arg12[%c0_174, %c0_175] : memref<256x4xf32, #tpu.memory_space<vmem>>, vector<256x4xf32>
    tpu.vector_store %arg12[%c0_174, %c0_175], %131 {strides = array<i32>} : memref<256x4xf32, #tpu.memory_space<vmem>>, vector<256x4xf32>,
    %c1_176 = arith.constant 1 : index
    %c2_177 = arith.constant 2 : index
    %c0_178 = arith.constant 0 : index
    %133 = vector.load %arg13[%c1_176, %c2_177, %c0_178] : memref<18x18x8xf32, #tpu.memory_space<vmem>>, vector<16x16x8xf32>
    %c0_179 = arith.constant 0 : index
    %c0_180 = arith.constant 0 : index
    %134 = vector.load %arg12[%c0_179, %c0_180] : memref<256x4xf32, #tpu.memory_space<vmem>>, vector<256x4xf32>
    %135 = vector.shape_cast %133 : vector<16x16x8xf32> to vector<256x8xf32>
    %c5_181 = arith.constant 5 : index
    %c0_182 = arith.constant 0 : index
    %c0_183 = arith.constant 0 : index
    %136 = vector.load %arg5[%c5_181, %c0_182, %c0_183] : memref<9x8x4xf32, #tpu.memory_space<vmem>>, vector<1x8x4xf32>
    %137 = vector.shape_cast %136 : vector<1x8x4xf32> to vector<8x4xf32>
    %cst_184 = arith.constant dense<0.000000e+00> : vector<256x4xf32>
    %138 = tpu.matmul %135, %137, %cst_184 {dimension_numbers = #tpu.dot_dimension_numbers<[1], [0], [0], [1], [0, 0, 1, 1], [], []>} : vector<256x8xf32>, vector<8x4xf32>, vector<256x4xf32> -> vector<256x4xf32>
    %139 = arith.addf %134, %138 : vector<256x4xf32>
    %c0_185 = arith.constant 0 : index
    %c0_186 = arith.constant 0 : index
    %140 = vector.load %arg12[%c0_185, %c0_186] : memref<256x4xf32, #tpu.memory_space<vmem>>, vector<256x4xf32>
    tpu.vector_store %arg12[%c0_185, %c0_186], %139 {strides = array<i32>} : memref<256x4xf32, #tpu.memory_space<vmem>>, vector<256x4xf32>,
    %c2_187 = arith.constant 2 : index
    %c0_188 = arith.constant 0 : index
    %c0_189 = arith.constant 0 : index
    %141 = vector.load %arg13[%c2_187, %c0_188, %c0_189] : memref<18x18x8xf32, #tpu.memory_space<vmem>>, vector<16x16x8xf32>
    %c0_190 = arith.constant 0 : index
    %c0_191 = arith.constant 0 : index
    %142 = vector.load %arg12[%c0_190, %c0_191] : memref<256x4xf32, #tpu.memory_space<vmem>>, vector<256x4xf32>
    %143 = vector.shape_cast %141 : vector<16x16x8xf32> to vector<256x8xf32>
    %c6_192 = arith.constant 6 : index
    %c0_193 = arith.constant 0 : index
    %c0_194 = arith.constant 0 : index
    %144 = vector.load %arg5[%c6_192, %c0_193, %c0_194] : memref<9x8x4xf32, #tpu.memory_space<vmem>>, vector<1x8x4xf32>
    %145 = vector.shape_cast %144 : vector<1x8x4xf32> to vector<8x4xf32>
    %cst_195 = arith.constant dense<0.000000e+00> : vector<256x4xf32>
    %146 = tpu.matmul %143, %145, %cst_195 {dimension_numbers = #tpu.dot_dimension_numbers<[1], [0], [0], [1], [0, 0, 1, 1], [], []>} : vector<256x8xf32>, vector<8x4xf32>, vector<256x4xf32> -> vector<256x4xf32>
    %147 = arith.addf %142, %146 : vector<256x4xf32>
    %c0_196 = arith.constant 0 : index
    %c0_197 = arith.constant 0 : index
    %148 = vector.load %arg12[%c0_196, %c0_197] : memref<256x4xf32, #tpu.memory_space<vmem>>, vector<256x4xf32>
    tpu.vector_store %arg12[%c0_196, %c0_197], %147 {strides = array<i32>} : memref<256x4xf32, #tpu.memory_space<vmem>>, vector<256x4xf32>,
    %c2_198 = arith.constant 2 : index
    %c1_199 = arith.constant 1 : index
    %c0_200 = arith.constant 0 : index
    %149 = vector.load %arg13[%c2_198, %c1_199, %c0_200] : memref<18x18x8xf32, #tpu.memory_space<vmem>>, vector<16x16x8xf32>
    %c0_201 = arith.constant 0 : index
    %c0_202 = arith.constant 0 : index
    %150 = vector.load %arg12[%c0_201, %c0_202] : memref<256x4xf32, #tpu.memory_space<vmem>>, vector<256x4xf32>
    %151 = vector.shape_cast %149 : vector<16x16x8xf32> to vector<256x8xf32>
    %c7_203 = arith.constant 7 : index
    %c0_204 = arith.constant 0 : index
    %c0_205 = arith.constant 0 : index
    %152 = vector.load %arg5[%c7_203, %c0_204, %c0_205] : memref<9x8x4xf32, #tpu.memory_space<vmem>>, vector<1x8x4xf32>
    %153 = vector.shape_cast %152 : vector<1x8x4xf32> to vector<8x4xf32>
    %cst_206 = arith.constant dense<0.000000e+00> : vector<256x4xf32>
    %154 = tpu.matmul %151, %153, %cst_206 {dimension_numbers = #tpu.dot_dimension_numbers<[1], [0], [0], [1], [0, 0, 1, 1], [], []>} : vector<256x8xf32>, vector<8x4xf32>, vector<256x4xf32> -> vector<256x4xf32>
    %155 = arith.addf %150, %154 : vector<256x4xf32>
    %c0_207 = arith.constant 0 : index
    %c0_208 = arith.constant 0 : index
    %156 = vector.load %arg12[%c0_207, %c0_208] : memref<256x4xf32, #tpu.memory_space<vmem>>, vector<256x4xf32>
    tpu.vector_store %arg12[%c0_207, %c0_208], %155 {strides = array<i32>} : memref<256x4xf32, #tpu.memory_space<vmem>>, vector<256x4xf32>,
    %c2_209 = arith.constant 2 : index
    %c2_210 = arith.constant 2 : index
    %c0_211 = arith.constant 0 : index
    %157 = vector.load %arg13[%c2_209, %c2_210, %c0_211] : memref<18x18x8xf32, #tpu.memory_space<vmem>>, vector<16x16x8xf32>
    %c0_212 = arith.constant 0 : index
    %c0_213 = arith.constant 0 : index
    %158 = vector.load %arg12[%c0_212, %c0_213] : memref<256x4xf32, #tpu.memory_space<vmem>>, vector<256x4xf32>
    %159 = vector.shape_cast %157 : vector<16x16x8xf32> to vector<256x8xf32>
    %c8_214 = arith.constant 8 : index
    %c0_215 = arith.constant 0 : index
    %c0_216 = arith.constant 0 : index
    %160 = vector.load %arg5[%c8_214, %c0_215, %c0_216] : memref<9x8x4xf32, #tpu.memory_space<vmem>>, vector<1x8x4xf32>
    %161 = vector.shape_cast %160 : vector<1x8x4xf32> to vector<8x4xf32>
    %cst_217 = arith.constant dense<0.000000e+00> : vector<256x4xf32>
    %162 = tpu.matmul %159, %161, %cst_217 {dimension_numbers = #tpu.dot_dimension_numbers<[1], [0], [0], [1], [0, 0, 1, 1], [], []>} : vector<256x8xf32>, vector<8x4xf32>, vector<256x4xf32> -> vector<256x4xf32>
    %163 = arith.addf %158, %162 : vector<256x4xf32>
    %c0_218 = arith.constant 0 : index
    %c0_219 = arith.constant 0 : index
    %164 = vector.load %arg12[%c0_218, %c0_219] : memref<256x4xf32, #tpu.memory_space<vmem>>, vector<256x4xf32>
    tpu.vector_store %arg12[%c0_218, %c0_219], %163 {strides = array<i32>} : memref<256x4xf32, #tpu.memory_space<vmem>>, vector<256x4xf32>,
    %c0_220 = arith.constant 0 : index
    %c0_221 = arith.constant 0 : index
    %165 = vector.load %arg12[%c0_220, %c0_221] : memref<256x4xf32, #tpu.memory_space<vmem>>, vector<256x4xf32>
    %c0_222 = arith.constant 0 : index
    %c0_223 = arith.constant 0 : index
    %166 = vector.load %arg6[%c0_222, %c0_223] : memref<4x8xf32, #tpu.memory_space<vmem>>, vector<4x8xf32>
    %cst_224 = arith.constant dense<0.000000e+00> : vector<256x8xf32>
    %167 = tpu.matmul %165, %166, %cst_224 {dimension_numbers = #tpu.dot_dimension_numbers<[1], [0], [0], [1], [0, 0, 1, 1], [], []>} : vector<256x4xf32>, vector<4x8xf32>, vector<256x8xf32> -> vector<256x8xf32>
    %c0_225 = arith.constant 0 : index
    %c0_226 = arith.constant 0 : index
    %168 = vector.load %arg7[%c0_225, %c0_226] : memref<1x8xf32, #tpu.memory_space<vmem>>, vector<1x8xf32>
    %169 = vector.broadcast %168 : vector<1x8xf32> to vector<256x8xf32>
    %170 = arith.addf %167, %169 : vector<256x8xf32>
    %c0_227 = arith.constant 0 : index
    %c0_228 = arith.constant 0 : index
    %c0_229 = arith.constant 0 : index
    %c0_230 = arith.constant 0 : index
    %171 = vector.load %arg1[%c0_227, %c0_228, %c0_229, %c0_230] : memref<1x16x16x4xf32, #tpu.memory_space<vmem>>, vector<1x16x16x4xf32>
    %172 = vector.shape_cast %171 : vector<1x16x16x4xf32> to vector<16x16x4xf32>
    %173 = vector.shape_cast %172 : vector<16x16x4xf32> to vector<256x4xf32>
    %c0_231 = arith.constant 0 : index
    %c0_232 = arith.constant 0 : index
    %174 = vector.load %arg8[%c0_231, %c0_232] : memref<4x8xf32, #tpu.memory_space<vmem>>, vector<4x8xf32>
    %cst_233 = arith.constant dense<0.000000e+00> : vector<256x8xf32>
    %175 = tpu.matmul %173, %174, %cst_233 {dimension_numbers = #tpu.dot_dimension_numbers<[1], [0], [0], [1], [0, 0, 1, 1], [], []>} : vector<256x4xf32>, vector<4x8xf32>, vector<256x8xf32> -> vector<256x8xf32>
    %c0_234 = arith.constant 0 : index
    %c0_235 = arith.constant 0 : index
    %176 = vector.load %arg9[%c0_234, %c0_235] : memref<1x8xf32, #tpu.memory_space<vmem>>, vector<1x8xf32>
    %177 = vector.broadcast %176 : vector<1x8xf32> to vector<256x8xf32>
    %178 = arith.addf %175, %177 : vector<256x8xf32>
    %179 = arith.addf %170, %178 : vector<256x8xf32>
    %cst_236 = arith.constant 0.000000e+00 : f32
    %180 = vector.broadcast %cst_236 : f32 to vector<256x8xf32>
    %181 = arith.maximumf %179, %180 : vector<256x8xf32>
    %182 = vector.shape_cast %181 : vector<256x8xf32> to vector<1x16x16x8xf32>
    %c0_237 = arith.constant 0 : index
    %c0_238 = arith.constant 0 : index
    %c0_239 = arith.constant 0 : index
    %c0_240 = arith.constant 0 : index
    %183 = vector.load %arg10[%c0_237, %c0_238, %c0_239, %c0_240] : memref<1x16x16x8xf32, #tpu.memory_space<vmem>>, vector<1x16x16x8xf32>
    tpu.vector_store %arg10[%c0_237, %c0_238, %c0_239, %c0_240], %182 {strides = array<i32>} : memref<1x16x16x8xf32, #tpu.memory_space<vmem>>, vector<1x16x16x8xf32>,
    return
  }
  func.func @transform_0(%arg0: i32) -> (i32, i32, i32, i32) {
    %c0_i32 = arith.constant 0 : i32
    %c0_i32_0 = arith.constant 0 : i32
    %c0_i32_1 = arith.constant 0 : i32
    %c0_i32_2 = arith.constant 0 : i32
    return %arg0, %c0_i32, %c0_i32_0, %c0_i32_1 : i32, i32, i32, i32
  }
  func.func @transform_1(%arg0: i32) -> (i32, i32, i32) {
    %c0_i32 = arith.constant 0 : i32
    %c0_i32_0 = arith.constant 0 : i32
    %c0_i32_1 = arith.constant 0 : i32
    %c0_i32_2 = arith.constant 0 : i32
    return %c0_i32, %c0_i32_0, %c0_i32_1 : i32, i32, i32
  }
  func.func @transform_2(%arg0: i32) -> (i32, i32) {
    %c0_i32 = arith.constant 0 : i32
    %c0_i32_0 = arith.constant 0 : i32
    %c0_i32_1 = arith.constant 0 : i32
    return %c0_i32, %c0_i32_0 : i32, i32
  }
  func.func @transform_3(%arg0: i32) -> (i32, i32) {
    %c0_i32 = arith.constant 0 : i32
    %c0_i32_0 = arith.constant 0 : i32
    %c0_i32_1 = arith.constant 0 : i32
    return %c0_i32, %c0_i32_0 : i32, i32
  }
  func.func @transform_4(%arg0: i32) -> (i32, i32, i32) {
    %c0_i32 = arith.constant 0 : i32
    %c0_i32_0 = arith.constant 0 : i32
    %c0_i32_1 = arith.constant 0 : i32
    %c0_i32_2 = arith.constant 0 : i32
    return %c0_i32, %c0_i32_0, %c0_i32_1 : i32, i32, i32
  }
  func.func @transform_5(%arg0: i32) -> (i32, i32) {
    %c0_i32 = arith.constant 0 : i32
    %c0_i32_0 = arith.constant 0 : i32
    %c0_i32_1 = arith.constant 0 : i32
    return %c0_i32, %c0_i32_0 : i32, i32
  }
  func.func @transform_6(%arg0: i32) -> (i32, i32) {
    %c0_i32 = arith.constant 0 : i32
    %c0_i32_0 = arith.constant 0 : i32
    %c0_i32_1 = arith.constant 0 : i32
    return %c0_i32, %c0_i32_0 : i32, i32
  }
  func.func @transform_7(%arg0: i32) -> (i32, i32) {
    %c0_i32 = arith.constant 0 : i32
    %c0_i32_0 = arith.constant 0 : i32
    %c0_i32_1 = arith.constant 0 : i32
    return %c0_i32, %c0_i32_0 : i32, i32
  }
  func.func @transform_8(%arg0: i32) -> (i32, i32) {
    %c0_i32 = arith.constant 0 : i32
    %c0_i32_0 = arith.constant 0 : i32
    %c0_i32_1 = arith.constant 0 : i32
    return %c0_i32, %c0_i32_0 : i32, i32
  }
  func.func @transform_9(%arg0: i32) -> (i32, i32, i32, i32) {
    %c0_i32 = arith.constant 0 : i32
    %c0_i32_0 = arith.constant 0 : i32
    %c0_i32_1 = arith.constant 0 : i32
    %c0_i32_2 = arith.constant 0 : i32
    return %arg0, %c0_i32, %c0_i32_0, %c0_i32_1 : i32, i32, i32, i32
  }
}

</mosaic_0001>

<llo_original>
// kernel: tpu_custom_call.1
$region0: #{tpu_custom_call.1}
  #allocation0 [shape = 'u32[]', space=smem, size = 0x4, offset = 0x4, fixed_abs, tag = 'smem constant byte address 0x4 - core index']
  #allocation1 [shape = 'u32[72,128]{1,0:T(1,128)}', space=vmem, size = 0x9000, scoped, tag = 'internal scratch']
  #allocation2 [shape = 'f32[18,18,4]{2,1,0:T(8,128)}', space=vmem, size = 0x36000, scoped, tag = 'scratch operand']
  #allocation3 [shape = 'f32[256,4]{1,0:T(8,128)}', space=vmem, size = 0x20000, scoped, tag = 'scratch operand']
  #allocation4 [shape = 'f32[18,18,8]{2,1,0:T(8,128)}', space=vmem, size = 0x36000, scoped, tag = 'scratch operand']
  %s0 = inlined_call_operand.vmem [shape: f32[2,16,16,4], index: 0, kind: input, shape index: {}]
  %s1 = inlined_call_operand.vmem [shape: f32[9,4,4], index: 1, kind: input, shape index: {}]
  %s2 = inlined_call_operand.vmem [shape: f32[4,8], index: 2, kind: input, shape index: {}]
  %s3 = inlined_call_operand.vmem [shape: f32[1,8], index: 3, kind: input, shape index: {}]
  %s4 = inlined_call_operand.vmem [shape: f32[9,8,4], index: 4, kind: input, shape index: {}]
  %s5 = inlined_call_operand.vmem [shape: f32[4,8], index: 5, kind: input, shape index: {}]
  %s6 = inlined_call_operand.vmem [shape: f32[1,8], index: 6, kind: input, shape index: {}]
  %s7 = inlined_call_operand.vmem [shape: f32[4,8], index: 7, kind: input, shape index: {}]
  %s8 = inlined_call_operand.vmem [shape: f32[1,8], index: 8, kind: input, shape index: {}]
  %s9 = inlined_call_operand.vmem [shape: f32[2,16,16,8], index: 9, kind: output, shape index: {}]
  %s10 = sld [smem:[#allocation0]]
  $region69: #{tpu_custom_call.1} parent=0
    _
  %s12 = ssub.s32 1, %s10
  %s13 = scalar_select 0, %s12, %s10
  loop: start=0, step=1, limit=4
  $region2: #{tpu_custom_call.1} parent=0 // loop_pre_header
    _
  $region3: #{tpu_custom_call.1} parent=0 // loop_header
    %s15 = sphi 0, %s19
    %p16 = scmp.ge.s32.totalorder %s15, 4
    %s25 = sphi 0, %s27
    %s28 = sphi 0, %s25
    %s29 = sphi 0, %s28
    %s45 = sphi 0, %s29
    %s49 = sphi 0, %s49
    %s51 = sphi 0, %s49
    %s52 = sphi 0, %s51
    %s66 = sphi 0, %s52
    %s70 = sphi 0, %s70
    %s72 = sphi 0, %s70
    %s73 = sphi 0, %s72
    %s87 = sphi 0, %s73
    %s91 = sphi 0, %s91
    %s93 = sphi 0, %s91
    %s94 = sphi 0, %s93
    %s108 = sphi 0, %s94
    %s112 = sphi 0, %s112
    %s114 = sphi 0, %s112
    %s115 = sphi 0, %s114
    %s129 = sphi 0, %s115
    %s133 = sphi 0, %s133
    %s135 = sphi 0, %s133
    %s136 = sphi 0, %s135
    %s150 = sphi 0, %s136
    %s154 = sphi 0, %s154
    %s156 = sphi 0, %s154
    %s157 = sphi 0, %s156
    %s171 = sphi 0, %s157
    %s175 = sphi 0, %s175
    %s177 = sphi 0, %s175
    %s178 = sphi 0, %s177
    %s192 = sphi 0, %s178
    %s196 = sphi 0, %s196
    %s198 = sphi 0, %s196
    %s199 = sphi 0, %s198
    %s213 = sphi 0, %s199
    %s219 = sphi 0, %s221
    %s222 = sphi 0, %s219
    %s223 = sphi 0, %s222
    %s239 = sphi 0, %s223
  $region4: #{tpu_custom_call.1} parent=0 // loop_header_branch
    %18 = sbr.rel (%p16) target = $region8
  $region5: #{tpu_custom_call.1} parent=0 // loop_body
    %s20 = ssub.s32 %s15, 1
    %s21 = ssub.s32 %s15, 2
    %s22 = sadd.s32 %s15, 1
    %s23 = ssub.s32 %s15, %s22
    %p24 = scmp.eq.s32.totalorder %s23, 0
    %s26 = sadd.s32 %s25, 1
    %s27 = scalar_select %p24, %s25, %s26
    %p30 = pneg %p24
    %p31 = scmp.eq.s32.totalorder %s15, 1
    %p32 = por %p30, %p31
    %p33 = scmp.ne.s32.totalorder %s25, %s28
    %p34 = scmp.eq.s32.totalorder %s15, 0
    %p35 = por %p33, %p34
    %p36 = scmp.ne.s32.totalorder %s25, %s28
    %p37 = scmp.eq.s32.totalorder %s20, 1
    %p38 = por %p36, %p37
    %p39 = scmp.ne.s32.totalorder %s28, %s29
    %p40 = scmp.eq.s32.totalorder %s20, 0
    %p41 = por %p39, %p40
    %p42 = scmp.ne.s32.totalorder %s28, %s29
    %p43 = scmp.eq.s32.totalorder %s21, 1
    %p44 = por %p42, %p43
    %p46 = scmp.ne.s32.totalorder %s29, %s45
    %p47 = scmp.eq.s32.totalorder %s21, 0
    %p48 = por %p46, %p47
    %s50 = sadd.s32 %s49, 1
    %p53 = scmp.eq.s32.totalorder %s15, 1
    %p54 = scmp.ne.s32.totalorder %s49, %s51
    %p55 = scmp.eq.s32.totalorder %s15, 0
    %p56 = por %p54, %p55
    %p57 = scmp.ne.s32.totalorder %s49, %s51
    %p58 = scmp.eq.s32.totalorder %s20, 1
    %p59 = por %p57, %p58
    %p60 = scmp.ne.s32.totalorder %s51, %s52
    %p61 = scmp.eq.s32.totalorder %s20, 0
    %p62 = por %p60, %p61
    %p63 = scmp.ne.s32.totalorder %s51, %s52
    %p64 = scmp.eq.s32.totalorder %s21, 1
    %p65 = por %p63, %p64
    %p67 = scmp.ne.s32.totalorder %s52, %s66
    %p68 = scmp.eq.s32.totalorder %s21, 0
    %p69 = por %p67, %p68
    %s71 = sadd.s32 %s70, 1
    %p74 = scmp.eq.s32.totalorder %s15, 1
    %p75 = scmp.ne.s32.totalorder %s70, %s72
    %p76 = scmp.eq.s32.totalorder %s15, 0
    %p77 = por %p75, %p76
    %p78 = scmp.ne.s32.totalorder %s70, %s72
    %p79 = scmp.eq.s32.totalorder %s20, 1
    %p80 = por %p78, %p79
    %p81 = scmp.ne.s32.totalorder %s72, %s73
    %p82 = scmp.eq.s32.totalorder %s20, 0
    %p83 = por %p81, %p82
    %p84 = scmp.ne.s32.totalorder %s72, %s73
    %p85 = scmp.eq.s32.totalorder %s21, 1
    %p86 = por %p84, %p85
    %p88 = scmp.ne.s32.totalorder %s73, %s87
    %p89 = scmp.eq.s32.totalorder %s21, 0
    %p90 = por %p88, %p89
    %s92 = sadd.s32 %s91, 1
    %p95 = scmp.eq.s32.totalorder %s15, 1
    %p96 = scmp.ne.s32.totalorder %s91, %s93
    %p97 = scmp.eq.s32.totalorder %s15, 0
    %p98 = por %p96, %p97
    %p99 = scmp.ne.s32.totalorder %s91, %s93
    %p100 = scmp.eq.s32.totalorder %s20, 1
    %p101 = por %p99, %p100
    %p102 = scmp.ne.s32.totalorder %s93, %s94
    %p103 = scmp.eq.s32.totalorder %s20, 0
    %p104 = por %p102, %p103
    %p105 = scmp.ne.s32.totalorder %s93, %s94
    %p106 = scmp.eq.s32.totalorder %s21, 1
    %p107 = por %p105, %p106
    %p109 = scmp.ne.s32.totalorder %s94, %s108
    %p110 = scmp.eq.s32.totalorder %s21, 0
    %p111 = por %p109, %p110
    %s113 = sadd.s32 %s112, 1
    %p116 = scmp.eq.s32.totalorder %s15, 1
    %p117 = scmp.ne.s32.totalorder %s112, %s114
    %p118 = scmp.eq.s32.totalorder %s15, 0
    %p119 = por %p117, %p118
    %p120 = scmp.ne.s32.totalorder %s112, %s114
    %p121 = scmp.eq.s32.totalorder %s20, 1
    %p122 = por %p120, %p121
    %p123 = scmp.ne.s32.totalorder %s114, %s115
    %p124 = scmp.eq.s32.totalorder %s20, 0
    %p125 = por %p123, %p124
    %p126 = scmp.ne.s32.totalorder %s114, %s115
    %p127 = scmp.eq.s32.totalorder %s21, 1
    %p128 = por %p126, %p127
    %p130 = scmp.ne.s32.totalorder %s115, %s129
    %p131 = scmp.eq.s32.totalorder %s21, 0
    %p132 = por %p130, %p131
    %s134 = sadd.s32 %s133, 1
    %p137 = scmp.eq.s32.totalorder %s15, 1
    %p138 = scmp.ne.s32.totalorder %s133, %s135
    %p139 = scmp.eq.s32.totalorder %s15, 0
    %p140 = por %p138, %p139
    %p141 = scmp.ne.s32.totalorder %s133, %s135
    %p142 = scmp.eq.s32.totalorder %s20, 1
    %p143 = por %p141, %p142
    %p144 = scmp.ne.s32.totalorder %s135, %s136
    %p145 = scmp.eq.s32.totalorder %s20, 0
    %p146 = por %p144, %p145
    %p147 = scmp.ne.s32.totalorder %s135, %s136
    %p148 = scmp.eq.s32.totalorder %s21, 1
    %p149 = por %p147, %p148
    %p151 = scmp.ne.s32.totalorder %s136, %s150
    %p152 = scmp.eq.s32.totalorder %s21, 0
    %p153 = por %p151, %p152
    %s155 = sadd.s32 %s154, 1
    %p158 = scmp.eq.s32.totalorder %s15, 1
    %p159 = scmp.ne.s32.totalorder %s154, %s156
    %p160 = scmp.eq.s32.totalorder %s15, 0
    %p161 = por %p159, %p160
    %p162 = scmp.ne.s32.totalorder %s154, %s156
    %p163 = scmp.eq.s32.totalorder %s20, 1
    %p164 = por %p162, %p163
    %p165 = scmp.ne.s32.totalorder %s156, %s157
    %p166 = scmp.eq.s32.totalorder %s20, 0
    %p167 = por %p165, %p166
    %p168 = scmp.ne.s32.totalorder %s156, %s157
    %p169 = scmp.eq.s32.totalorder %s21, 1
    %p170 = por %p168, %p169
    %p172 = scmp.ne.s32.totalorder %s157, %s171
    %p173 = scmp.eq.s32.totalorder %s21, 0
    %p174 = por %p172, %p173
    %s176 = sadd.s32 %s175, 1
    %p179 = scmp.eq.s32.totalorder %s15, 1
    %p180 = scmp.ne.s32.totalorder %s175, %s177
    %p181 = scmp.eq.s32.totalorder %s15, 0
    %p182 = por %p180, %p181
    %p183 = scmp.ne.s32.totalorder %s175, %s177
    %p184 = scmp.eq.s32.totalorder %s20, 1
    %p185 = por %p183, %p184
    %p186 = scmp.ne.s32.totalorder %s177, %s178
    %p187 = scmp.eq.s32.totalorder %s20, 0
    %p188 = por %p186, %p187
    %p189 = scmp.ne.s32.totalorder %s177, %s178
    %p190 = scmp.eq.s32.totalorder %s21, 1
    %p191 = por %p189, %p190
    %p193 = scmp.ne.s32.totalorder %s178, %s192
    %p194 = scmp.eq.s32.totalorder %s21, 0
    %p195 = por %p193, %p194
    %s197 = sadd.s32 %s196, 1
    %p200 = scmp.eq.s32.totalorder %s15, 1
    %p201 = scmp.ne.s32.totalorder %s196, %s198
    %p202 = scmp.eq.s32.totalorder %s15, 0
    %p203 = por %p201, %p202
    %p204 = scmp.ne.s32.totalorder %s196, %s198
    %p205 = scmp.eq.s32.totalorder %s20, 1
    %p206 = por %p204, %p205
    %p207 = scmp.ne.s32.totalorder %s198, %s199
    %p208 = scmp.eq.s32.totalorder %s20, 0
    %p209 = por %p207, %p208
    %p210 = scmp.ne.s32.totalorder %s198, %s199
    %p211 = scmp.eq.s32.totalorder %s21, 1
    %p212 = por %p210, %p211
    %p214 = scmp.ne.s32.totalorder %s199, %s213
    %p215 = scmp.eq.s32.totalorder %s21, 0
    %p216 = por %p214, %p215
    %s217 = ssub.s32 %s15, %s22
    %p218 = scmp.eq.s32.totalorder %s217, 0
    %s220 = sadd.s32 %s219, 1
    %s221 = scalar_select %p218, %s219, %s220
    %p224 = pneg %p218
    %p225 = scmp.eq.s32.totalorder %s15, 1
    %p226 = por %p224, %p225
    %p227 = scmp.ne.s32.totalorder %s219, %s222
    %p228 = scmp.eq.s32.totalorder %s15, 0
    %p229 = por %p227, %p228
    %p230 = scmp.ne.s32.totalorder %s219, %s222
    %p231 = scmp.eq.s32.totalorder %s20, 1
    %p232 = por %p230, %p231
    %p233 = scmp.ne.s32.totalorder %s222, %s223
    %p234 = scmp.eq.s32.totalorder %s20, 0
    %p235 = por %p233, %p234
    %p236 = scmp.ne.s32.totalorder %s222, %s223
    %p237 = scmp.eq.s32.totalorder %s21, 1
    %p238 = por %p236, %p237
    %p240 = scmp.ne.s32.totalorder %s223, %s239
    %p241 = scmp.eq.s32.totalorder %s21, 0
    %p242 = por %p240, %p241
    %p243 = scmp.le.s32.totalorder 1, %s15
    %p244 = scmp.lt.s32.totalorder %s15, 3
    %p245 = pnand %p243, %p244
    %p246 = pneg %p245
    // Predicated region
    $region9: #{tpu_custom_call.1} parent=5 // pred_check
      _
    $region10: #{tpu_custom_call.1} parent=5 // pred_check_branch
      %248 = sbr.rel (%p245) target = $region12
    $region11: #{tpu_custom_call.1} parent=5 // pred_region
      %s249 = ssub.s32 %s15, 1
      // Predicated region
      $region13: #{tpu_custom_call.1} parent=11 // pred_check
        %p250 = pneg %p62
      $region14: #{tpu_custom_call.1} parent=11 // pred_check_branch
        %252 = sbr.rel (%p250) target = $region16
      $region15: #{tpu_custom_call.1} parent=11 // pred_region
        _
      $region16: #{tpu_custom_call.1} parent=11 // pred_fallthru
        _
      // Predicated region
      $region17: #{tpu_custom_call.1} parent=11 // pred_check
        %p253 = pneg %p83
      $region18: #{tpu_custom_call.1} parent=11 // pred_check_branch
        %255 = sbr.rel (%p253) target = $region20
      $region19: #{tpu_custom_call.1} parent=11 // pred_region
        _
      $region20: #{tpu_custom_call.1} parent=11 // pred_fallthru
        _
      // Predicated region
      $region21: #{tpu_custom_call.1} parent=11 // pred_check
        %p256 = pneg %p104
      $region22: #{tpu_custom_call.1} parent=11 // pred_check_branch
        %258 = sbr.rel (%p256) target = $region24
      $region23: #{tpu_custom_call.1} parent=11 // pred_region
        _
      $region24: #{tpu_custom_call.1} parent=11 // pred_fallthru
        _
      // Predicated region
      $region25: #{tpu_custom_call.1} parent=11 // pred_check
        %p259 = pneg %p125
      $region26: #{tpu_custom_call.1} parent=11 // pred_check_branch
        %261 = sbr.rel (%p259) target = $region28
      $region27: #{tpu_custom_call.1} parent=11 // pred_region
        _
      $region28: #{tpu_custom_call.1} parent=11 // pred_fallthru
        _
      // Predicated region
      $region29: #{tpu_custom_call.1} parent=11 // pred_check
        %p262 = pneg %p146
      $region30: #{tpu_custom_call.1} parent=11 // pred_check_branch
        %264 = sbr.rel (%p262) target = $region32
      $region31: #{tpu_custom_call.1} parent=11 // pred_region
        _
      $region32: #{tpu_custom_call.1} parent=11 // pred_fallthru
        _
      // Predicated region
      $region33: #{tpu_custom_call.1} parent=11 // pred_check
        %p265 = pneg %p167
      $region34: #{tpu_custom_call.1} parent=11 // pred_check_branch
        %267 = sbr.rel (%p265) target = $region36
      $region35: #{tpu_custom_call.1} parent=11 // pred_region
        _
      $region36: #{tpu_custom_call.1} parent=11 // pred_fallthru
        _
      // Predicated region
      $region37: #{tpu_custom_call.1} parent=11 // pred_check
        %p268 = pneg %p188
      $region38: #{tpu_custom_call.1} parent=11 // pred_check_branch
        %270 = sbr.rel (%p268) target = $region40
      $region39: #{tpu_custom_call.1} parent=11 // pred_region
        _
      $region40: #{tpu_custom_call.1} parent=11 // pred_fallthru
        _
      // Predicated region
      $region41: #{tpu_custom_call.1} parent=11 // pred_check
        %p271 = pneg %p209
      $region42: #{tpu_custom_call.1} parent=11 // pred_check_branch
        %273 = sbr.rel (%p271) target = $region44
      $region43: #{tpu_custom_call.1} parent=11 // pred_region
        _
      $region44: #{tpu_custom_call.1} parent=11 // pred_fallthru
        _
    $region12: #{tpu_custom_call.1} parent=5 // pred_fallthru
      _
    %p274 = scmp.lt.s32.totalorder %s15, 2
    // Predicated region
    $region45: #{tpu_custom_call.1} parent=5 // pred_check
      %p275 = pneg %p274
    $region46: #{tpu_custom_call.1} parent=5 // pred_check_branch
      %277 = sbr.rel (%p275) target = $region48
    $region47: #{tpu_custom_call.1} parent=5 // pred_region
      // Predicated region
      $region49: #{tpu_custom_call.1} parent=47 // pred_check
        %p278 = pneg %p35
      $region50: #{tpu_custom_call.1} parent=47 // pred_check_branch
        %280 = sbr.rel (%p278) target = $region52
      $region51: #{tpu_custom_call.1} parent=47 // pred_region
        %p281 = scmp.lt.s32.totalorder %s15, 1
        %s282 = scalar_select %p281, %s15, 1
        %s283 = smul.addr %s282, 32
        %s284 = smul.addr %s283, 8
        %s285 = scalar_lea.vmem %s0, %s284
      $region52: #{tpu_custom_call.1} parent=47 // pred_fallthru
        _
    $region48: #{tpu_custom_call.1} parent=5 // pred_fallthru
      _
    %p286 = scmp.le.s32.totalorder 1, %s15
    %p287 = scmp.lt.s32.totalorder %s15, 3
    %p288 = pnand %p286, %p287
    %p289 = pneg %p288
    // Predicated region
    $region53: #{tpu_custom_call.1} parent=5 // pred_check
      _
    $region54: #{tpu_custom_call.1} parent=5 // pred_check_branch
      %291 = sbr.rel (%p288) target = $region56
    $region55: #{tpu_custom_call.1} parent=5 // pred_region
      %s292 = ssub.s32 %s15, 1
      %p293 = scmp.lt.s32.totalorder %s20, 1
      %s294 = scalar_select %p293, %s20, 1
      %s295 = smul.addr %s294, 32
      %s296 = smul.addr %s295, 8
      %s297 = scalar_lea.vmem %s0, %s296
      %p298 = pneg %p41
      %p299 = pneg %p38
      %p300 = pneg %p62
      %p301 = pneg %p59
      %p302 = pneg %p83
      %p303 = pneg %p80
      %p304 = pneg %p104
      %p305 = pneg %p101
      %p306 = pneg %p125
      %p307 = pneg %p122
      %p308 = pneg %p146
      %p309 = pneg %p143
      %p310 = pneg %p167
      %p311 = pneg %p164
      %p312 = pneg %p188
      %p313 = pneg %p185
      %p314 = pneg %p209
      %p315 = pneg %p206
      %p316 = pneg %p235
      %p317 = pneg %p232
      %p318 = scmp.lt.s32.totalorder %s20, 1
      %s319 = scalar_select %p318, %s20, 1
      %s320 = smul.addr %s319, 32
      %s321 = smul.addr %s320, 8
      %s322 = scalar_lea.vmem %s9, %s321
      %p323 = scmp.lt.s32.totalorder %s20, 1
      %s324 = scalar_select %p323, %s20, 1
      %s325 = smul.addr %s324, 32
      %s326 = smul.addr %s325, 8
      %s327 = scalar_lea.vmem %s0, %s326
      %p328 = scmp.lt.s32.totalorder %s20, 1
      %s329 = scalar_select %p328, %s20, 1
      %s330 = smul.addr %s329, 32
      %s331 = smul.addr %s330, 8
      %s332 = scalar_lea.vmem %s9, %s331
      %vm333 = vcmask 31744
      %334 = vst.msk [vmem:[#allocation2] sm:$0xff] %vm333, 0.0
      %335 = vst.msk [vmem:[#allocation2 + $0x8] sm:$0xff] %vm333, 0.0
      %vm336 = vcmask 25600
      %337 = vst.msk [vmem:[#allocation2 + $0x10] sm:$0x3] %vm336, 0.0
      %338 = vst.msk [vmem:[#allocation2 + $0x18] sm:$0xff] %vm333, 0.0
      %339 = vst.msk [vmem:[#allocation2 + $0x20] sm:$0xff] %vm333, 0.0
      %340 = vst.msk [vmem:[#allocation2 + $0x28] sm:$0x3] %vm336, 0.0
      %341 = vst.msk [vmem:[#allocation2 + $0x30] sm:$0xff] %vm333, 0.0
      %342 = vst.msk [vmem:[#allocation2 + $0x38] sm:$0xff] %vm333, 0.0
      %343 = vst.msk [vmem:[#allocation2 + $0x40] sm:$0x3] %vm336, 0.0
      %344 = vst.msk [vmem:[#allocation2 + $0x48] sm:$0xff] %vm333, 0.0
      %345 = vst.msk [vmem:[#allocation2 + $0x50] sm:$0xff] %vm333, 0.0
      %346 = vst.msk [vmem:[#allocation2 + $0x58] sm:$0x3] %vm336, 0.0
      %347 = vst.msk [vmem:[#allocation2 + $0x60] sm:$0xff] %vm333, 0.0
      %348 = vst.msk [vmem:[#allocation2 + $0x68] sm:$0xff] %vm333, 0.0
      %349 = vst.msk [vmem:[#allocation2 + $0x70] sm:$0x3] %vm336, 0.0
      %350 = vst.msk [vmem:[#allocation2 + $0x78] sm:$0xff] %vm333, 0.0
      %351 = vst.msk [vmem:[#allocation2 + $0x80] sm:$0xff] %vm333, 0.0
      %352 = vst.msk [vmem:[#allocation2 + $0x88] sm:$0x3] %vm336, 0.0
      %353 = vst.msk [vmem:[#allocation2 + $0x90] sm:$0xff] %vm333, 0.0
      %354 = vst.msk [vmem:[#allocation2 + $0x98] sm:$0xff] %vm333, 0.0
      %355 = vst.msk [vmem:[#allocation2 + $0xa0] sm:$0x3] %vm336, 0.0
      %356 = vst.msk [vmem:[#allocation2 + $0xa8] sm:$0xff] %vm333, 0.0
      %357 = vst.msk [vmem:[#allocation2 + $0xb0] sm:$0xff] %vm333, 0.0
      %358 = vst.msk [vmem:[#allocation2 + $0xb8] sm:$0x3] %vm336, 0.0
      %359 = vst.msk [vmem:[#allocation2 + $0xc0] sm:$0xff] %vm333, 0.0
      %360 = vst.msk [vmem:[#allocation2 + $0xc8] sm:$0xff] %vm333, 0.0
      %361 = vst.msk [vmem:[#allocation2 + $0xd0] sm:$0x3] %vm336, 0.0
      %362 = vst.msk [vmem:[#allocation2 + $0xd8] sm:$0xff] %vm333, 0.0
      %363 = vst.msk [vmem:[#allocation2 + $0xe0] sm:$0xff] %vm333, 0.0
      %364 = vst.msk [vmem:[#allocation2 + $0xe8] sm:$0x3] %vm336, 0.0
      %365 = vst.msk [vmem:[#allocation2 + $0xf0] sm:$0xff] %vm333, 0.0
      %366 = vst.msk [vmem:[#allocation2 + $0xf8] sm:$0xff] %vm333, 0.0
      %367 = vst.msk [vmem:[#allocation2 + $0x100] sm:$0x3] %vm336, 0.0
      %368 = vst.msk [vmem:[#allocation2 + $0x108] sm:$0xff] %vm333, 0.0
      %369 = vst.msk [vmem:[#allocation2 + $0x110] sm:$0xff] %vm333, 0.0
      %370 = vst.msk [vmem:[#allocation2 + $0x118] sm:$0x3] %vm336, 0.0
      %371 = vst.msk [vmem:[#allocation2 + $0x120] sm:$0xff] %vm333, 0.0
      %372 = vst.msk [vmem:[#allocation2 + $0x128] sm:$0xff] %vm333, 0.0
      %373 = vst.msk [vmem:[#allocation2 + $0x130] sm:$0x3] %vm336, 0.0
      %374 = vst.msk [vmem:[#allocation2 + $0x138] sm:$0xff] %vm333, 0.0
      %375 = vst.msk [vmem:[#allocation2 + $0x140] sm:$0xff] %vm333, 0.0
      %376 = vst.msk [vmem:[#allocation2 + $0x148] sm:$0x3] %vm336, 0.0
      %377 = vst.msk [vmem:[#allocation2 + $0x150] sm:$0xff] %vm333, 0.0
      %378 = vst.msk [vmem:[#allocation2 + $0x158] sm:$0xff] %vm333, 0.0
      %379 = vst.msk [vmem:[#allocation2 + $0x160] sm:$0x3] %vm336, 0.0
      %380 = vst.msk [vmem:[#allocation2 + $0x168] sm:$0xff] %vm333, 0.0
      %381 = vst.msk [vmem:[#allocation2 + $0x170] sm:$0xff] %vm333, 0.0
      %382 = vst.msk [vmem:[#allocation2 + $0x178] sm:$0x3] %vm336, 0.0
      %383 = vst.msk [vmem:[#allocation2 + $0x180] sm:$0xff] %vm333, 0.0
      %384 = vst.msk [vmem:[#allocation2 + $0x188] sm:$0xff] %vm333, 0.0
      %385 = vst.msk [vmem:[#allocation2 + $0x190] sm:$0x3] %vm336, 0.0
      %386 = vst.msk [vmem:[#allocation2 + $0x198] sm:$0xff] %vm333, 0.0
      %387 = vst.msk [vmem:[#allocation2 + $0x1a0] sm:$0xff] %vm333, 0.0
      %388 = vst.msk [vmem:[#allocation2 + $0x1a8] sm:$0x3] %vm336, 0.0
      %v389 = vld [vmem:[%s327] sm:$0xff]
      %v390 = vld [vmem:[%s327 + $0x8] sm:$0xff]
      %v391 = vld [vmem:[%s327 + $0x10] sm:$0xff]
      %v392 = vld [vmem:[%s327 + $0x18] sm:$0xff]
      %v393 = vld [vmem:[%s327 + $0x20] sm:$0xff]
      %v394 = vld [vmem:[%s327 + $0x28] sm:$0xff]
      %v395 = vld [vmem:[%s327 + $0x30] sm:$0xff]
      %v396 = vld [vmem:[%s327 + $0x38] sm:$0xff]
      %v397 = vld [vmem:[%s327 + $0x40] sm:$0xff]
      %v398 = vld [vmem:[%s327 + $0x48] sm:$0xff]
      %v399 = vld [vmem:[%s327 + $0x50] sm:$0xff]
      %v400 = vld [vmem:[%s327 + $0x58] sm:$0xff]
      %v401 = vld [vmem:[%s327 + $0x60] sm:$0xff]
      %v402 = vld [vmem:[%s327 + $0x68] sm:$0xff]
      %v403 = vld [vmem:[%s327 + $0x70] sm:$0xff]
      %v404 = vld [vmem:[%s327 + $0x78] sm:$0xff]
      %v405 = vld [vmem:[%s327 + $0x80] sm:$0xff]
      %v406 = vld [vmem:[%s327 + $0x88] sm:$0xff]
      %v407 = vld [vmem:[%s327 + $0x90] sm:$0xff]
      %v408 = vld [vmem:[%s327 + $0x98] sm:$0xff]
      %v409 = vld [vmem:[%s327 + $0xa0] sm:$0xff]
      %v410 = vld [vmem:[%s327 + $0xa8] sm:$0xff]
      %v411 = vld [vmem:[%s327 + $0xb0] sm:$0xff]
      %v412 = vld [vmem:[%s327 + $0xb8] sm:$0xff]
      %v413 = vld [vmem:[%s327 + $0xc0] sm:$0xff]
      %v414 = vld [vmem:[%s327 + $0xc8] sm:$0xff]
      %v415 = vld [vmem:[%s327 + $0xd0] sm:$0xff]
      %v416 = vld [vmem:[%s327 + $0xd8] sm:$0xff]
      %v417 = vld [vmem:[%s327 + $0xe0] sm:$0xff]
      %v418 = vld [vmem:[%s327 + $0xe8] sm:$0xff]
      %v419 = vld [vmem:[%s327 + $0xf0] sm:$0xff]
      %v420 = vld [vmem:[%s327 + $0xf8] sm:$0xff]
      %s421 = scalar_lea.vmem [#allocation2], 24
      %422 = vst.msk [vmem:[%s421 + $0x1] sm:$0xff] %vm333, %v389
      %423 = vst.msk [vmem:[%s421 + $0x9] sm:$0xff] %vm333, %v390
      %424 = vst.msk [vmem:[%s421 + $0x19] sm:$0xff] %vm333, %v391
      %425 = vst.msk [vmem:[%s421 + $0x21] sm:$0xff] %vm333, %v392
      %426 = vst.msk [vmem:[%s421 + $0x31] sm:$0xff] %vm333, %v393
      %427 = vst.msk [vmem:[%s421 + $0x39] sm:$0xff] %vm333, %v394
      %428 = vst.msk [vmem:[%s421 + $0x49] sm:$0xff] %vm333, %v395
      %429 = vst.msk [vmem:[%s421 + $0x51] sm:$0xff] %vm333, %v396
      %430 = vst.msk [vmem:[%s421 + $0x61] sm:$0xff] %vm333, %v397
      %431 = vst.msk [vmem:[%s421 + $0x69] sm:$0xff] %vm333, %v398
      %432 = vst.msk [vmem:[%s421 + $0x79] sm:$0xff] %vm333, %v399
      %433 = vst.msk [vmem:[%s421 + $0x81] sm:$0xff] %vm333, %v400
      %434 = vst.msk [vmem:[%s421 + $0x91] sm:$0xff] %vm333, %v401
      %435 = vst.msk [vmem:[%s421 + $0x99] sm:$0xff] %vm333, %v402
      %436 = vst.msk [vmem:[%s421 + $0xa9] sm:$0xff] %vm333, %v403
      %437 = vst.msk [vmem:[%s421 + $0xb1] sm:$0xff] %vm333, %v404
      %438 = vst.msk [vmem:[%s421 + $0xc1] sm:$0xff] %vm333, %v405
      %439 = vst.msk [vmem:[%s421 + $0xc9] sm:$0xff] %vm333, %v406
      %440 = vst.msk [vmem:[%s421 + $0xd9] sm:$0xff] %vm333, %v407
      %441 = vst.msk [vmem:[%s421 + $0xe1] sm:$0xff] %vm333, %v408
      %442 = vst.msk [vmem:[%s421 + $0xf1] sm:$0xff] %vm333, %v409
      %443 = vst.msk [vmem:[%s421 + $0xf9] sm:$0xff] %vm333, %v410
      %444 = vst.msk [vmem:[%s421 + $0x109] sm:$0xff] %vm333, %v411
      %445 = vst.msk [vmem:[%s421 + $0x111] sm:$0xff] %vm333, %v412
      %446 = vst.msk [vmem:[%s421 + $0x121] sm:$0xff] %vm333, %v413
      %447 = vst.msk [vmem:[%s421 + $0x129] sm:$0xff] %vm333, %v414
      %448 = vst.msk [vmem:[%s421 + $0x139] sm:$0xff] %vm333, %v415
      %449 = vst.msk [vmem:[%s421 + $0x141] sm:$0xff] %vm333, %v416
      %450 = vst.msk [vmem:[%s421 + $0x151] sm:$0xff] %vm333, %v417
      %451 = vst.msk [vmem:[%s421 + $0x159] sm:$0xff] %vm333, %v418
      %452 = vst.msk [vmem:[%s421 + $0x169] sm:$0xff] %vm333, %v419
      %453 = vst.msk [vmem:[%s421 + $0x171] sm:$0xff] %vm333, %v420
      %454 = vst.msk [vmem:[#allocation3] sm:$0xff] %vm333, 0.0
      %455 = vst.msk [vmem:[#allocation3 + $0x8] sm:$0xff] %vm333, 0.0
      %456 = vst.msk [vmem:[#allocation3 + $0x10] sm:$0xff] %vm333, 0.0
      %457 = vst.msk [vmem:[#allocation3 + $0x18] sm:$0xff] %vm333, 0.0
      %458 = vst.msk [vmem:[#allocation3 + $0x20] sm:$0xff] %vm333, 0.0
      %459 = vst.msk [vmem:[#allocation3 + $0x28] sm:$0xff] %vm333, 0.0
      %460 = vst.msk [vmem:[#allocation3 + $0x30] sm:$0xff] %vm333, 0.0
      %461 = vst.msk [vmem:[#allocation3 + $0x38] sm:$0xff] %vm333, 0.0
      %462 = vst.msk [vmem:[#allocation3 + $0x40] sm:$0xff] %vm333, 0.0
      %463 = vst.msk [vmem:[#allocation3 + $0x48] sm:$0xff] %vm333, 0.0
      %464 = vst.msk [vmem:[#allocation3 + $0x50] sm:$0xff] %vm333, 0.0
      %465 = vst.msk [vmem:[#allocation3 + $0x58] sm:$0xff] %vm333, 0.0
      %466 = vst.msk [vmem:[#allocation3 + $0x60] sm:$0xff] %vm333, 0.0
      %467 = vst.msk [vmem:[#allocation3 + $0x68] sm:$0xff] %vm333, 0.0
      %468 = vst.msk [vmem:[#allocation3 + $0x70] sm:$0xff] %vm333, 0.0
      %469 = vst.msk [vmem:[#allocation3 + $0x78] sm:$0xff] %vm333, 0.0
      %470 = vst.msk [vmem:[#allocation3 + $0x80] sm:$0xff] %vm333, 0.0
      %471 = vst.msk [vmem:[#allocation3 + $0x88] sm:$0xff] %vm333, 0.0
      %472 = vst.msk [vmem:[#allocation3 + $0x90] sm:$0xff] %vm333, 0.0
      %473 = vst.msk [vmem:[#allocation3 + $0x98] sm:$0xff] %vm333, 0.0
      %474 = vst.msk [vmem:[#allocation3 + $0xa0] sm:$0xff] %vm333, 0.0
      %475 = vst.msk [vmem:[#allocation3 + $0xa8] sm:$0xff] %vm333, 0.0
      %476 = vst.msk [vmem:[#allocation3 + $0xb0] sm:$0xff] %vm333, 0.0
      %477 = vst.msk [vmem:[#allocation3 + $0xb8] sm:$0xff] %vm333, 0.0
      %478 = vst.msk [vmem:[#allocation3 + $0xc0] sm:$0xff] %vm333, 0.0
      %479 = vst.msk [vmem:[#allocation3 + $0xc8] sm:$0xff] %vm333, 0.0
      %480 = vst.msk [vmem:[#allocation3 + $0xd0] sm:$0xff] %vm333, 0.0
      %481 = vst.msk [vmem:[#allocation3 + $0xd8] sm:$0xff] %vm333, 0.0
      %482 = vst.msk [vmem:[#allocation3 + $0xe0] sm:$0xff] %vm333, 0.0
      %483 = vst.msk [vmem:[#allocation3 + $0xe8] sm:$0xff] %vm333, 0.0
      %484 = vst.msk [vmem:[#allocation3 + $0xf0] sm:$0xff] %vm333, 0.0
      %485 = vst.msk [vmem:[#allocation3 + $0xf8] sm:$0xff] %vm333, 0.0
      %v486 = vld [vmem:[#allocation2] sm:$0xff]
      %v487 = vld [vmem:[#allocation2 + $0x8] sm:$0xff]
      %v488 = vld [vmem:[#allocation2 + $0x18] sm:$0xff]
      %v489 = vld [vmem:[#allocation2 + $0x20] sm:$0xff]
      %v490 = vld [vmem:[#allocation2 + $0x30] sm:$0xff]
      %v491 = vld [vmem:[#allocation2 + $0x38] sm:$0xff]
      %v492 = vld [vmem:[#allocation2 + $0x48] sm:$0xff]
      %v493 = vld [vmem:[#allocation2 + $0x50] sm:$0xff]
      %v494 = vld [vmem:[#allocation2 + $0x60] sm:$0xff]
      %v495 = vld [vmem:[#allocation2 + $0x68] sm:$0xff]
      %v496 = vld [vmem:[#allocation2 + $0x78] sm:$0xff]
      %v497 = vld [vmem:[#allocation2 + $0x80] sm:$0xff]
      %v498 = vld [vmem:[#allocation2 + $0x90] sm:$0xff]
      %v499 = vld [vmem:[#allocation2 + $0x98] sm:$0xff]
      %v500 = vld [vmem:[#allocation2 + $0xa8] sm:$0xff]
      %v501 = vld [vmem:[#allocation2 + $0xb0] sm:$0xff]
      %v502 = vld [vmem:[#allocation2 + $0xc0] sm:$0xff]
      %v503 = vld [vmem:[#allocation2 + $0xc8] sm:$0xff]
      %v504 = vld [vmem:[#allocation2 + $0xd8] sm:$0xff]
      %v505 = vld [vmem:[#allocation2 + $0xe0] sm:$0xff]
      %v506 = vld [vmem:[#allocation2 + $0xf0] sm:$0xff]
      %v507 = vld [vmem:[#allocation2 + $0xf8] sm:$0xff]
      %v508 = vld [vmem:[#allocation2 + $0x108] sm:$0xff]
      %v509 = vld [vmem:[#allocation2 + $0x110] sm:$0xff]
      %v510 = vld [vmem:[#allocation2 + $0x120] sm:$0xff]
      %v511 = vld [vmem:[#allocation2 + $0x128] sm:$0xff]
      %v512 = vld [vmem:[#allocation2 + $0x138] sm:$0xff]
      %v513 = vld [vmem:[#allocation2 + $0x140] sm:$0xff]
      %v514 = vld [vmem:[#allocation2 + $0x150] sm:$0xff]
      %v515 = vld [vmem:[#allocation2 + $0x158] sm:$0xff]
      %v516 = vld [vmem:[#allocation2 + $0x168] sm:$0xff]
      %v517 = vld [vmem:[#allocation2 + $0x170] sm:$0xff]
      %v518 = vld [vmem:[#allocation3] sm:$0xff]
      %v519 = vld [vmem:[#allocation3 + $0x8] sm:$0xff]
      %v520 = vld [vmem:[#allocation3 + $0x10] sm:$0xff]
      %v521 = vld [vmem:[#allocation3 + $0x18] sm:$0xff]
      %v522 = vld [vmem:[#allocation3 + $0x20] sm:$0xff]
      %v523 = vld [vmem:[#allocation3 + $0x28] sm:$0xff]
      %v524 = vld [vmem:[#allocation3 + $0x30] sm:$0xff]
      %v525 = vld [vmem:[#allocation3 + $0x38] sm:$0xff]
      %v526 = vld [vmem:[#allocation3 + $0x40] sm:$0xff]
      %v527 = vld [vmem:[#allocation3 + $0x48] sm:$0xff]
      %v528 = vld [vmem:[#allocation3 + $0x50] sm:$0xff]
      %v529 = vld [vmem:[#allocation3 + $0x58] sm:$0xff]
      %v530 = vld [vmem:[#allocation3 + $0x60] sm:$0xff]
      %v531 = vld [vmem:[#allocation3 + $0x68] sm:$0xff]
      %v532 = vld [vmem:[#allocation3 + $0x70] sm:$0xff]
      %v533 = vld [vmem:[#allocation3 + $0x78] sm:$0xff]
      %v534 = vld [vmem:[#allocation3 + $0x80] sm:$0xff]
      %v535 = vld [vmem:[#allocation3 + $0x88] sm:$0xff]
      %v536 = vld [vmem:[#allocation3 + $0x90] sm:$0xff]
      %v537 = vld [vmem:[#allocation3 + $0x98] sm:$0xff]
      %v538 = vld [vmem:[#allocation3 + $0xa0] sm:$0xff]
      %v539 = vld [vmem:[#allocation3 + $0xa8] sm:$0xff]
      %v540 = vld [vmem:[#allocation3 + $0xb0] sm:$0xff]
      %v541 = vld [vmem:[#allocation3 + $0xb8] sm:$0xff]
      %v542 = vld [vmem:[#allocation3 + $0xc0] sm:$0xff]
      %v543 = vld [vmem:[#allocation3 + $0xc8] sm:$0xff]
      %v544 = vld [vmem:[#allocation3 + $0xd0] sm:$0xff]
      %v545 = vld [vmem:[#allocation3 + $0xd8] sm:$0xff]
      %v546 = vld [vmem:[#allocation3 + $0xe0] sm:$0xff]
      %v547 = vld [vmem:[#allocation3 + $0xe8] sm:$0xff]
      %v548 = vld [vmem:[#allocation3 + $0xf0] sm:$0xff]
      %v549 = vld [vmem:[#allocation3 + $0xf8] sm:$0xff]
      %v550 = vld [vmem:[%s1] sm:$0xf]
      %v552 = vsel %vm333, %v486, 0
      %v555 = vsel %vm333, %v487, 0
      %v558 = vsel %vm333, %v488, 0
      %v561 = vsel %vm333, %v489, 0
      %v564 = vsel %vm333, %v490, 0
      %v567 = vsel %vm333, %v491, 0
      %v570 = vsel %vm333, %v492, 0
      %v573 = vsel %vm333, %v493, 0
      %v576 = vsel %vm333, %v494, 0
      %v579 = vsel %vm333, %v495, 0
      %v582 = vsel %vm333, %v496, 0
      %v585 = vsel %vm333, %v497, 0
      %v588 = vsel %vm333, %v498, 0
      %v591 = vsel %vm333, %v499, 0
      %v594 = vsel %vm333, %v500, 0
      %v597 = vsel %vm333, %v501, 0
      %v600 = vsel %vm333, %v502, 0
      %v603 = vsel %vm333, %v503, 0
      %v606 = vsel %vm333, %v504, 0
      %v609 = vsel %vm333, %v505, 0
      %v612 = vsel %vm333, %v506, 0
      %v615 = vsel %vm333, %v507, 0
      %v618 = vsel %vm333, %v508, 0
      %v621 = vsel %vm333, %v509, 0
      %v624 = vsel %vm333, %v510, 0
      %v627 = vsel %vm333, %v511, 0
      %v630 = vsel %vm333, %v512, 0
      %v633 = vsel %vm333, %v513, 0
      %v636 = vsel %vm333, %v514, 0
      %v639 = vsel %vm333, %v515, 0
      %v642 = vsel %vm333, %v516, 0
      %v645 = vsel %vm333, %v517, 0
      %vm647 = vcmask 1043456
      %v649 = vsel %vm647, %v550, 0
      %651 = vmatpush.msra.mxu0 0.0
      %652 = vmatpush.msra.mxu0 0.0
      %653 = vmatpush.msra.mxu0 0.0
      %654 = vmatpush.msra.mxu0 0.0
      %655 = vmatpush.msra.mxu0 0.0
      %656 = vmatpush.msra.mxu0 0.0
      %657 = vmatpush.msra.mxu0 0.0
      %658 = vmatpush.msra.mxu0 0.0
      %659 = vmatpush.msra.mxu0 0.0
      %660 = vmatpush.msra.mxu0 0.0
      %661 = vmatpush.msra.mxu0 0.0
      %662 = vmatpush.msra.mxu0 0.0
      %663 = vmatpush.msra.mxu0 0.0
      %664 = vmatpush.msra.mxu0 0.0
      %665 = vmatpush.msra.mxu0 0.0
      %666 = vmatpush.msra.mxu0 %v649
      %667 = vmatmul.f32.gmra.mxu0 %v552
      %v668 = vpop.f32.mrf.mxu0
      %v669 = vadd.f32 0.0, %v668
      %670 = vmatmul.f32.gmra.mxu0 %v555
      %v671 = vpop.f32.mrf.mxu0
      %v672 = vadd.f32 0.0, %v671
      %673 = vmatmul.f32.gmra.mxu0 %v558
      %v674 = vpop.f32.mrf.mxu0
      %v675 = vadd.f32 0.0, %v674
      %676 = vmatmul.f32.gmra.mxu0 %v561
      %v677 = vpop.f32.mrf.mxu0
      %v678 = vadd.f32 0.0, %v677
      %679 = vmatmul.f32.gmra.mxu0 %v564
      %v680 = vpop.f32.mrf.mxu0
      %v681 = vadd.f32 0.0, %v680
      %682 = vmatmul.f32.gmra.mxu0 %v567
      %v683 = vpop.f32.mrf.mxu0
      %v684 = vadd.f32 0.0, %v683
      %685 = vmatmul.f32.gmra.mxu0 %v570
      %v686 = vpop.f32.mrf.mxu0
      %v687 = vadd.f32 0.0, %v686
      %688 = vmatmul.f32.gmra.mxu0 %v573
      %v689 = vpop.f32.mrf.mxu0
      %v690 = vadd.f32 0.0, %v689
      %691 = vmatmul.f32.gmra.mxu0 %v576
      %v692 = vpop.f32.mrf.mxu0
      %v693 = vadd.f32 0.0, %v692
      %694 = vmatmul.f32.gmra.mxu0 %v579
      %v695 = vpop.f32.mrf.mxu0
      %v696 = vadd.f32 0.0, %v695
      %697 = vmatmul.f32.gmra.mxu0 %v582
      %v698 = vpop.f32.mrf.mxu0
      %v699 = vadd.f32 0.0, %v698
      %700 = vmatmul.f32.gmra.mxu0 %v585
      %v701 = vpop.f32.mrf.mxu0
      %v702 = vadd.f32 0.0, %v701
      %703 = vmatmul.f32.gmra.mxu0 %v588
      %v704 = vpop.f32.mrf.mxu0
      %v705 = vadd.f32 0.0, %v704
      %706 = vmatmul.f32.gmra.mxu0 %v591
      %v707 = vpop.f32.mrf.mxu0
      %v708 = vadd.f32 0.0, %v707
      %709 = vmatmul.f32.gmra.mxu0 %v594
      %v710 = vpop.f32.mrf.mxu0
      %v711 = vadd.f32 0.0, %v710
      %712 = vmatmul.f32.gmra.mxu0 %v597
      %v713 = vpop.f32.mrf.mxu0
      %v714 = vadd.f32 0.0, %v713
      %715 = vmatmul.f32.gmra.mxu0 %v600
      %v716 = vpop.f32.mrf.mxu0
      %v717 = vadd.f32 0.0, %v716
      %718 = vmatmul.f32.gmra.mxu0 %v603
      %v719 = vpop.f32.mrf.mxu0
      %v720 = vadd.f32 0.0, %v719
      %721 = vmatmul.f32.gmra.mxu0 %v606
      %v722 = vpop.f32.mrf.mxu0
      %v723 = vadd.f32 0.0, %v722
      %724 = vmatmul.f32.gmra.mxu0 %v609
      %v725 = vpop.f32.mrf.mxu0
      %v726 = vadd.f32 0.0, %v725
      %727 = vmatmul.f32.gmra.mxu0 %v612
      %v728 = vpop.f32.mrf.mxu0
      %v729 = vadd.f32 0.0, %v728
      %730 = vmatmul.f32.gmra.mxu0 %v615
      %v731 = vpop.f32.mrf.mxu0
      %v732 = vadd.f32 0.0, %v731
      %733 = vmatmul.f32.gmra.mxu0 %v618
      %v734 = vpop.f32.mrf.mxu0
      %v735 = vadd.f32 0.0, %v734
      %736 = vmatmul.f32.gmra.mxu0 %v621
      %v737 = vpop.f32.mrf.mxu0
      %v738 = vadd.f32 0.0, %v737
      %739 = vmatmul.f32.gmra.mxu0 %v624
      %v740 = vpop.f32.mrf.mxu0
      %v741 = vadd.f32 0.0, %v740
      %742 = vmatmul.f32.gmra.mxu0 %v627
      %v743 = vpop.f32.mrf.mxu0
      %v744 = vadd.f32 0.0, %v743
      %745 = vmatmul.f32.gmra.mxu0 %v630
      %v746 = vpop.f32.mrf.mxu0
      %v747 = vadd.f32 0.0, %v746
      %748 = vmatmul.f32.gmra.mxu0 %v633
      %v749 = vpop.f32.mrf.mxu0
      %v750 = vadd.f32 0.0, %v749
      %751 = vmatmul.f32.gmra.mxu0 %v636
      %v752 = vpop.f32.mrf.mxu0
      %v753 = vadd.f32 0.0, %v752
      %754 = vmatmul.f32.gmra.mxu0 %v639
      %v755 = vpop.f32.mrf.mxu0
      %v756 = vadd.f32 0.0, %v755
      %757 = vmatmul.f32.gmra.mxu0 %v642
      %v758 = vpop.f32.mrf.mxu0
      %v759 = vadd.f32 0.0, %v758
      %760 = vmatmul.f32.gmra.mxu0 %v645
      %v761 = vpop.f32.mrf.mxu0
      %v762 = vadd.f32 0.0, %v761
      %763 = vdwg.mxu0
      %v764 = vadd.f32 %v518, %v669
      %v765 = vadd.f32 %v519, %v672
      %v766 = vadd.f32 %v520, %v675
      %v767 = vadd.f32 %v521, %v678
      %v768 = vadd.f32 %v522, %v681
      %v769 = vadd.f32 %v523, %v684
      %v770 = vadd.f32 %v524, %v687
      %v771 = vadd.f32 %v525, %v690
      %v772 = vadd.f32 %v526, %v693
      %v773 = vadd.f32 %v527, %v696
      %v774 = vadd.f32 %v528, %v699
      %v775 = vadd.f32 %v529, %v702
      %v776 = vadd.f32 %v530, %v705
      %v777 = vadd.f32 %v531, %v708
      %v778 = vadd.f32 %v532, %v711
      %v779 = vadd.f32 %v533, %v714
      %v780 = vadd.f32 %v534, %v717
      %v781 = vadd.f32 %v535, %v720
      %v782 = vadd.f32 %v536, %v723
      %v783 = vadd.f32 %v537, %v726
      %v784 = vadd.f32 %v538, %v729
      %v785 = vadd.f32 %v539, %v732
      %v786 = vadd.f32 %v540, %v735
      %v787 = vadd.f32 %v541, %v738
      %v788 = vadd.f32 %v542, %v741
      %v789 = vadd.f32 %v543, %v744
      %v790 = vadd.f32 %v544, %v747
      %v791 = vadd.f32 %v545, %v750
      %v792 = vadd.f32 %v546, %v753
      %v793 = vadd.f32 %v547, %v756
      %v794 = vadd.f32 %v548, %v759
      %v795 = vadd.f32 %v549, %v762
      %796 = vst.msk [vmem:[#allocation3] sm:$0xff] %vm333, %v764
      %797 = vst.msk [vmem:[#allocation3 + $0x8] sm:$0xff] %vm333, %v765
      %798 = vst.msk [vmem:[#allocation3 + $0x10] sm:$0xff] %vm333, %v766
      %799 = vst.msk [vmem:[#allocation3 + $0x18] sm:$0xff] %vm333, %v767
      %800 = vst.msk [vmem:[#allocation3 + $0x20] sm:$0xff] %vm333, %v768
      %801 = vst.msk [vmem:[#allocation3 + $0x28] sm:$0xff] %vm333, %v769
      %802 = vst.msk [vmem:[#allocation3 + $0x30] sm:$0xff] %vm333, %v770
      %803 = vst.msk [vmem:[#allocation3 + $0x38] sm:$0xff] %vm333, %v771
      %804 = vst.msk [vmem:[#allocation3 + $0x40] sm:$0xff] %vm333, %v772
      %805 = vst.msk [vmem:[#allocation3 + $0x48] sm:$0xff] %vm333, %v773
      %806 = vst.msk [vmem:[#allocation3 + $0x50] sm:$0xff] %vm333, %v774
      %807 = vst.msk [vmem:[#allocation3 + $0x58] sm:$0xff] %vm333, %v775
      %808 = vst.msk [vmem:[#allocation3 + $0x60] sm:$0xff] %vm333, %v776
      %809 = vst.msk [vmem:[#allocation3 + $0x68] sm:$0xff] %vm333, %v777
      %810 = vst.msk [vmem:[#allocation3 + $0x70] sm:$0xff] %vm333, %v778
      %811 = vst.msk [vmem:[#allocation3 + $0x78] sm:$0xff] %vm333, %v779
      %812 = vst.msk [vmem:[#allocation3 + $0x80] sm:$0xff] %vm333, %v780
      %813 = vst.msk [vmem:[#allocation3 + $0x88] sm:$0xff] %vm333, %v781
      %814 = vst.msk [vmem:[#allocation3 + $0x90] sm:$0xff] %vm333, %v782
      %815 = vst.msk [vmem:[#allocation3 + $0x98] sm:$0xff] %vm333, %v783
      %816 = vst.msk [vmem:[#allocation3 + $0xa0] sm:$0xff] %vm333, %v784
      %817 = vst.msk [vmem:[#allocation3 + $0xa8] sm:$0xff] %vm333, %v785
      %818 = vst.msk [vmem:[#allocation3 + $0xb0] sm:$0xff] %vm333, %v786
      %819 = vst.msk [vmem:[#allocation3 + $0xb8] sm:$0xff] %vm333, %v787
      %820 = vst.msk [vmem:[#allocation3 + $0xc0] sm:$0xff] %vm333, %v788
      %821 = vst.msk [vmem:[#allocation3 + $0xc8] sm:$0xff] %vm333, %v789
      %822 = vst.msk [vmem:[#allocation3 + $0xd0] sm:$0xff] %vm333, %v790
      %823 = vst.msk [vmem:[#allocation3 + $0xd8] sm:$0xff] %vm333, %v791
      %824 = vst.msk [vmem:[#allocation3 + $0xe0] sm:$0xff] %vm333, %v792
      %825 = vst.msk [vmem:[#allocation3 + $0xe8] sm:$0xff] %vm333, %v793
      %826 = vst.msk [vmem:[#allocation3 + $0xf0] sm:$0xff] %vm333, %v794
      %827 = vst.msk [vmem:[#allocation3 + $0xf8] sm:$0xff] %vm333, %v795
      %v828 = vld [vmem:[#allocation2 + $0x1] sm:$0xff]
      %v829 = vld [vmem:[#allocation2 + $0x9] sm:$0xff]
      %v830 = vld [vmem:[#allocation2 + $0x19] sm:$0xff]
      %v831 = vld [vmem:[#allocation2 + $0x21] sm:$0xff]
      %v832 = vld [vmem:[#allocation2 + $0x31] sm:$0xff]
      %v833 = vld [vmem:[#allocation2 + $0x39] sm:$0xff]
      %v834 = vld [vmem:[#allocation2 + $0x49] sm:$0xff]
      %v835 = vld [vmem:[#allocation2 + $0x51] sm:$0xff]
      %v836 = vld [vmem:[#allocation2 + $0x61] sm:$0xff]
      %v837 = vld [vmem:[#allocation2 + $0x69] sm:$0xff]
      %v838 = vld [vmem:[#allocation2 + $0x79] sm:$0xff]
      %v839 = vld [vmem:[#allocation2 + $0x81] sm:$0xff]
      %v840 = vld [vmem:[#allocation2 + $0x91] sm:$0xff]
      %v841 = vld [vmem:[#allocation2 + $0x99] sm:$0xff]
      %v842 = vld [vmem:[#allocation2 + $0xa9] sm:$0xff]
      %v843 = vld [vmem:[#allocation2 + $0xb1] sm:$0xff]
      %v844 = vld [vmem:[#allocation2 + $0xc1] sm:$0xff]
      %v845 = vld [vmem:[#allocation2 + $0xc9] sm:$0xff]
      %v846 = vld [vmem:[#allocation2 + $0xd9] sm:$0xff]
      %v847 = vld [vmem:[#allocation2 + $0xe1] sm:$0xff]
      %v848 = vld [vmem:[#allocation2 + $0xf1] sm:$0xff]
      %v849 = vld [vmem:[#allocation2 + $0xf9] sm:$0xff]
      %v850 = vld [vmem:[#allocation2 + $0x109] sm:$0xff]
      %v851 = vld [vmem:[#allocation2 + $0x111] sm:$0xff]
      %v852 = vld [vmem:[#allocation2 + $0x121] sm:$0xff]
      %v853 = vld [vmem:[#allocation2 + $0x129] sm:$0xff]
      %v854 = vld [vmem:[#allocation2 + $0x139] sm:$0xff]
      %v855 = vld [vmem:[#allocation2 + $0x141] sm:$0xff]
      %v856 = vld [vmem:[#allocation2 + $0x151] sm:$0xff]
      %v857 = vld [vmem:[#allocation2 + $0x159] sm:$0xff]
      %v858 = vld [vmem:[#allocation2 + $0x169] sm:$0xff]
      %v859 = vld [vmem:[#allocation2 + $0x171] sm:$0xff]
      %v860 = vld [vmem:[#allocation3] sm:$0xff]
      %v861 = vld [vmem:[#allocation3 + $0x8] sm:$0xff]
      %v862 = vld [vmem:[#allocation3 + $0x10] sm:$0xff]
      %v863 = vld [vmem:[#allocation3 + $0x18] sm:$0xff]
      %v864 = vld [vmem:[#allocation3 + $0x20] sm:$0xff]
      %v865 = vld [vmem:[#allocation3 + $0x28] sm:$0xff]
      %v866 = vld [vmem:[#allocation3 + $0x30] sm:$0xff]
      %v867 = vld [vmem:[#allocation3 + $0x38] sm:$0xff]
      %v868 = vld [vmem:[#allocation3 + $0x40] sm:$0xff]
      %v869 = vld [vmem:[#allocation3 + $0x48] sm:$0xff]
      %v870 = vld [vmem:[#allocation3 + $0x50] sm:$0xff]
      %v871 = vld [vmem:[#allocation3 + $0x58] sm:$0xff]
      %v872 = vld [vmem:[#allocation3 + $0x60] sm:$0xff]
      %v873 = vld [vmem:[#allocation3 + $0x68] sm:$0xff]
      %v874 = vld [vmem:[#allocation3 + $0x70] sm:$0xff]
      %v875 = vld [vmem:[#allocation3 + $0x78] sm:$0xff]
      %v876 = vld [vmem:[#allocation3 + $0x80] sm:$0xff]
      %v877 = vld [vmem:[#allocation3 + $0x88] sm:$0xff]
      %v878 = vld [vmem:[#allocation3 + $0x90] sm:$0xff]
      %v879 = vld [vmem:[#allocation3 + $0x98] sm:$0xff]
      %v880 = vld [vmem:[#allocation3 + $0xa0] sm:$0xff]
      %v881 = vld [vmem:[#allocation3 + $0xa8] sm:$0xff]
      %v882 = vld [vmem:[#allocation3 + $0xb0] sm:$0xff]
      %v883 = vld [vmem:[#allocation3 + $0xb8] sm:$0xff]
      %v884 = vld [vmem:[#allocation3 + $0xc0] sm:$0xff]
      %v885 = vld [vmem:[#allocation3 + $0xc8] sm:$0xff]
      %v886 = vld [vmem:[#allocation3 + $0xd0] sm:$0xff]
      %v887 = vld [vmem:[#allocation3 + $0xd8] sm:$0xff]
      %v888 = vld [vmem:[#allocation3 + $0xe0] sm:$0xff]
      %v889 = vld [vmem:[#allocation3 + $0xe8] sm:$0xff]
      %v890 = vld [vmem:[#allocation3 + $0xf0] sm:$0xff]
      %v891 = vld [vmem:[#allocation3 + $0xf8] sm:$0xff]
      %s892 = scalar_lea.vmem %s1, 4
      %v893 = vld [vmem:[%s892] sm:$0xf]
      %v895 = vsel %vm333, %v828, 0
      %v898 = vsel %vm333, %v829, 0
      %v901 = vsel %vm333, %v830, 0
      %v904 = vsel %vm333, %v831, 0
      %v907 = vsel %vm333, %v832, 0
      %v910 = vsel %vm333, %v833, 0
      %v913 = vsel %vm333, %v834, 0
      %v916 = vsel %vm333, %v835, 0
      %v919 = vsel %vm333, %v836, 0
      %v922 = vsel %vm333, %v837, 0
      %v925 = vsel %vm333, %v838, 0
      %v928 = vsel %vm333, %v839, 0
      %v931 = vsel %vm333, %v840, 0
      %v934 = vsel %vm333, %v841, 0
      %v937 = vsel %vm333, %v842, 0
      %v940 = vsel %vm333, %v843, 0
      %v943 = vsel %vm333, %v844, 0
      %v946 = vsel %vm333, %v845, 0
      %v949 = vsel %vm333, %v846, 0
      %v952 = vsel %vm333, %v847, 0
      %v955 = vsel %vm333, %v848, 0
      %v958 = vsel %vm333, %v849, 0
      %v961 = vsel %vm333, %v850, 0
      %v964 = vsel %vm333, %v851, 0
      %v967 = vsel %vm333, %v852, 0
      %v970 = vsel %vm333, %v853, 0
      %v973 = vsel %vm333, %v854, 0
      %v976 = vsel %vm333, %v855, 0
      %v979 = vsel %vm333, %v856, 0
      %v982 = vsel %vm333, %v857, 0
      %v985 = vsel %vm333, %v858, 0
      %v988 = vsel %vm333, %v859, 0
      %v991 = vsel %vm647, %v893, 0
      %993 = vmatpush.msra.mxu0 0.0
      %994 = vmatpush.msra.mxu0 0.0
      %995 = vmatpush.msra.mxu0 0.0
      %996 = vmatpush.msra.mxu0 0.0
      %997 = vmatpush.msra.mxu0 0.0
      %998 = vmatpush.msra.mxu0 0.0
      %999 = vmatpush.msra.mxu0 0.0
      %1000 = vmatpush.msra.mxu0 0.0
      %1001 = vmatpush.msra.mxu0 0.0
      %1002 = vmatpush.msra.mxu0 0.0
      %1003 = vmatpush.msra.mxu0 0.0
      %1004 = vmatpush.msra.mxu0 0.0
      %1005 = vmatpush.msra.mxu0 0.0
      %1006 = vmatpush.msra.mxu0 0.0
      %1007 = vmatpush.msra.mxu0 0.0
      %1008 = vmatpush.msra.mxu0 %v991
      %1009 = vmatmul.f32.gmra.mxu0 %v895
      %v1010 = vpop.f32.mrf.mxu0
      %v1011 = vadd.f32 0.0, %v1010
      %1012 = vmatmul.f32.gmra.mxu0 %v898
      %v1013 = vpop.f32.mrf.mxu0
      %v1014 = vadd.f32 0.0, %v1013
      %1015 = vmatmul.f32.gmra.mxu0 %v901
      %v1016 = vpop.f32.mrf.mxu0
      %v1017 = vadd.f32 0.0, %v1016
      %1018 = vmatmul.f32.gmra.mxu0 %v904
      %v1019 = vpop.f32.mrf.mxu0
      %v1020 = vadd.f32 0.0, %v1019
      %1021 = vmatmul.f32.gmra.mxu0 %v907
      %v1022 = vpop.f32.mrf.mxu0
      %v1023 = vadd.f32 0.0, %v1022
      %1024 = vmatmul.f32.gmra.mxu0 %v910
      %v1025 = vpop.f32.mrf.mxu0
      %v1026 = vadd.f32 0.0, %v1025
      %1027 = vmatmul.f32.gmra.mxu0 %v913
      %v1028 = vpop.f32.mrf.mxu0
      %v1029 = vadd.f32 0.0, %v1028
      %1030 = vmatmul.f32.gmra.mxu0 %v916
      %v1031 = vpop.f32.mrf.mxu0
      %v1032 = vadd.f32 0.0, %v1031
      %1033 = vmatmul.f32.gmra.mxu0 %v919
      %v1034 = vpop.f32.mrf.mxu0
      %v1035 = vadd.f32 0.0, %v1034
      %1036 = vmatmul.f32.gmra.mxu0 %v922
      %v1037 = vpop.f32.mrf.mxu0
      %v1038 = vadd.f32 0.0, %v1037
      %1039 = vmatmul.f32.gmra.mxu0 %v925
      %v1040 = vpop.f32.mrf.mxu0
      %v1041 = vadd.f32 0.0, %v1040
      %1042 = vmatmul.f32.gmra.mxu0 %v928
      %v1043 = vpop.f32.mrf.mxu0
      %v1044 = vadd.f32 0.0, %v1043
      %1045 = vmatmul.f32.gmra.mxu0 %v931
      %v1046 = vpop.f32.mrf.mxu0
      %v1047 = vadd.f32 0.0, %v1046
      %1048 = vmatmul.f32.gmra.mxu0 %v934
      %v1049 = vpop.f32.mrf.mxu0
      %v1050 = vadd.f32 0.0, %v1049
      %1051 = vmatmul.f32.gmra.mxu0 %v937
      %v1052 = vpop.f32.mrf.mxu0
      %v1053 = vadd.f32 0.0, %v1052
      %1054 = vmatmul.f32.gmra.mxu0 %v940
      %v1055 = vpop.f32.mrf.mxu0
      %v1056 = vadd.f32 0.0, %v1055
      %1057 = vmatmul.f32.gmra.mxu0 %v943
      %v1058 = vpop.f32.mrf.mxu0
      %v1059 = vadd.f32 0.0, %v1058
      %1060 = vmatmul.f32.gmra.mxu0 %v946
      %v1061 = vpop.f32.mrf.mxu0
      %v1062 = vadd.f32 0.0, %v1061
      %1063 = vmatmul.f32.gmra.mxu0 %v949
      %v1064 = vpop.f32.mrf.mxu0
      %v1065 = vadd.f32 0.0, %v1064
      %1066 = vmatmul.f32.gmra.mxu0 %v952
      %v1067 = vpop.f32.mrf.mxu0
      %v1068 = vadd.f32 0.0, %v1067
      %1069 = vmatmul.f32.gmra.mxu0 %v955
      %v1070 = vpop.f32.mrf.mxu0
      %v1071 = vadd.f32 0.0, %v1070
      %1072 = vmatmul.f32.gmra.mxu0 %v958
      %v1073 = vpop.f32.mrf.mxu0
      %v1074 = vadd.f32 0.0, %v1073
      %1075 = vmatmul.f32.gmra.mxu0 %v961
      %v1076 = vpop.f32.mrf.mxu0
      %v1077 = vadd.f32 0.0, %v1076
      %1078 = vmatmul.f32.gmra.mxu0 %v964
      %v1079 = vpop.f32.mrf.mxu0
      %v1080 = vadd.f32 0.0, %v1079
      %1081 = vmatmul.f32.gmra.mxu0 %v967
      %v1082 = vpop.f32.mrf.mxu0
      %v1083 = vadd.f32 0.0, %v1082
      %1084 = vmatmul.f32.gmra.mxu0 %v970
      %v1085 = vpop.f32.mrf.mxu0
      %v1086 = vadd.f32 0.0, %v1085
      %1087 = vmatmul.f32.gmra.mxu0 %v973
      %v1088 = vpop.f32.mrf.mxu0
      %v1089 = vadd.f32 0.0, %v1088
      %1090 = vmatmul.f32.gmra.mxu0 %v976
      %v1091 = vpop.f32.mrf.mxu0
      %v1092 = vadd.f32 0.0, %v1091
      %1093 = vmatmul.f32.gmra.mxu0 %v979
      %v1094 = vpop.f32.mrf.mxu0
      %v1095 = vadd.f32 0.0, %v1094
      %1096 = vmatmul.f32.gmra.mxu0 %v982
      %v1097 = vpop.f32.mrf.mxu0
      %v1098 = vadd.f32 0.0, %v1097
      %1099 = vmatmul.f32.gmra.mxu0 %v985
      %v1100 = vpop.f32.mrf.mxu0
      %v1101 = vadd.f32 0.0, %v1100
      %1102 = vmatmul.f32.gmra.mxu0 %v988
      %v1103 = vpop.f32.mrf.mxu0
      %v1104 = vadd.f32 0.0, %v1103
      %1105 = vdwg.mxu0
      %v1106 = vadd.f32 %v860, %v1011
      %v1107 = vadd.f32 %v861, %v1014
      %v1108 = vadd.f32 %v862, %v1017
      %v1109 = vadd.f32 %v863, %v1020
      %v1110 = vadd.f32 %v864, %v1023
      %v1111 = vadd.f32 %v865, %v1026
      %v1112 = vadd.f32 %v866, %v1029
      %v1113 = vadd.f32 %v867, %v1032
      %v1114 = vadd.f32 %v868, %v1035
      %v1115 = vadd.f32 %v869, %v1038
      %v1116 = vadd.f32 %v870, %v1041
      %v1117 = vadd.f32 %v871, %v1044
      %v1118 = vadd.f32 %v872, %v1047
      %v1119 = vadd.f32 %v873, %v1050
      %v1120 = vadd.f32 %v874, %v1053
      %v1121 = vadd.f32 %v875, %v1056
      %v1122 = vadd.f32 %v876, %v1059
      %v1123 = vadd.f32 %v877, %v1062
      %v1124 = vadd.f32 %v878, %v1065
      %v1125 = vadd.f32 %v879, %v1068
      %v1126 = vadd.f32 %v880, %v1071
      %v1127 = vadd.f32 %v881, %v1074
      %v1128 = vadd.f32 %v882, %v1077
      %v1129 = vadd.f32 %v883, %v1080
      %v1130 = vadd.f32 %v884, %v1083
      %v1131 = vadd.f32 %v885, %v1086
      %v1132 = vadd.f32 %v886, %v1089
      %v1133 = vadd.f32 %v887, %v1092
      %v1134 = vadd.f32 %v888, %v1095
      %v1135 = vadd.f32 %v889, %v1098
      %v1136 = vadd.f32 %v890, %v1101
      %v1137 = vadd.f32 %v891, %v1104
      %1138 = vst.msk [vmem:[#allocation3] sm:$0xff] %vm333, %v1106
      %1139 = vst.msk [vmem:[#allocation3 + $0x8] sm:$0xff] %vm333, %v1107
      %1140 = vst.msk [vmem:[#allocation3 + $0x10] sm:$0xff] %vm333, %v1108
      %1141 = vst.msk [vmem:[#allocation3 + $0x18] sm:$0xff] %vm333, %v1109
      %1142 = vst.msk [vmem:[#allocation3 + $0x20] sm:$0xff] %vm333, %v1110
      %1143 = vst.msk [vmem:[#allocation3 + $0x28] sm:$0xff] %vm333, %v1111
      %1144 = vst.msk [vmem:[#allocation3 + $0x30] sm:$0xff] %vm333, %v1112
      %1145 = vst.msk [vmem:[#allocation3 + $0x38] sm:$0xff] %vm333, %v1113
      %1146 = vst.msk [vmem:[#allocation3 + $0x40] sm:$0xff] %vm333, %v1114
      %1147 = vst.msk [vmem:[#allocation3 + $0x48] sm:$0xff] %vm333, %v1115
      %1148 = vst.msk [vmem:[#allocation3 + $0x50] sm:$0xff] %vm333, %v1116
      %1149 = vst.msk [vmem:[#allocation3 + $0x58] sm:$0xff] %vm333, %v1117
      %1150 = vst.msk [vmem:[#allocation3 + $0x60] sm:$0xff] %vm333, %v1118
      %1151 = vst.msk [vmem:[#allocation3 + $0x68] sm:$0xff] %vm333, %v1119
      %1152 = vst.msk [vmem:[#allocation3 + $0x70] sm:$0xff] %vm333, %v1120
      %1153 = vst.msk [vmem:[#allocation3 + $0x78] sm:$0xff] %vm333, %v1121
      %1154 = vst.msk [vmem:[#allocation3 + $0x80] sm:$0xff] %vm333, %v1122
      %1155 = vst.msk [vmem:[#allocation3 + $0x88] sm:$0xff] %vm333, %v1123
      %1156 = vst.msk [vmem:[#allocation3 + $0x90] sm:$0xff] %vm333, %v1124
      %1157 = vst.msk [vmem:[#allocation3 + $0x98] sm:$0xff] %vm333, %v1125
      %1158 = vst.msk [vmem:[#allocation3 + $0xa0] sm:$0xff] %vm333, %v1126
      %1159 = vst.msk [vmem:[#allocation3 + $0xa8] sm:$0xff] %vm333, %v1127
      %1160 = vst.msk [vmem:[#allocation3 + $0xb0] sm:$0xff] %vm333, %v1128
      %1161 = vst.msk [vmem:[#allocation3 + $0xb8] sm:$0xff] %vm333, %v1129
      %1162 = vst.msk [vmem:[#allocation3 + $0xc0] sm:$0xff] %vm333, %v1130
      %1163 = vst.msk [vmem:[#allocation3 + $0xc8] sm:$0xff] %vm333, %v1131
      %1164 = vst.msk [vmem:[#allocation3 + $0xd0] sm:$0xff] %vm333, %v1132
      %1165 = vst.msk [vmem:[#allocation3 + $0xd8] sm:$0xff] %vm333, %v1133
      %1166 = vst.msk [vmem:[#allocation3 + $0xe0] sm:$0xff] %vm333, %v1134
      %1167 = vst.msk [vmem:[#allocation3 + $0xe8] sm:$0xff] %vm333, %v1135
      %1168 = vst.msk [vmem:[#allocation3 + $0xf0] sm:$0xff] %vm333, %v1136
      %1169 = vst.msk [vmem:[#allocation3 + $0xf8] sm:$0xff] %vm333, %v1137
      %v1170 = vld [vmem:[#allocation2 + $0x2] sm:$0xff]
      %v1171 = vld [vmem:[#allocation2 + $0xa] sm:$0xff]
      %v1172 = vld [vmem:[#allocation2 + $0x1a] sm:$0xff]
      %v1173 = vld [vmem:[#allocation2 + $0x22] sm:$0xff]
      %v1174 = vld [vmem:[#allocation2 + $0x32] sm:$0xff]
      %v1175 = vld [vmem:[#allocation2 + $0x3a] sm:$0xff]
      %v1176 = vld [vmem:[#allocation2 + $0x4a] sm:$0xff]
      %v1177 = vld [vmem:[#allocation2 + $0x52] sm:$0xff]
      %v1178 = vld [vmem:[#allocation2 + $0x62] sm:$0xff]
      %v1179 = vld [vmem:[#allocation2 + $0x6a] sm:$0xff]
      %v1180 = vld [vmem:[#allocation2 + $0x7a] sm:$0xff]
      %v1181 = vld [vmem:[#allocation2 + $0x82] sm:$0xff]
      %v1182 = vld [vmem:[#allocation2 + $0x92] sm:$0xff]
      %v1183 = vld [vmem:[#allocation2 + $0x9a] sm:$0xff]
      %v1184 = vld [vmem:[#allocation2 + $0xaa] sm:$0xff]
      %v1185 = vld [vmem:[#allocation2 + $0xb2] sm:$0xff]
      %v1186 = vld [vmem:[#allocation2 + $0xc2] sm:$0xff]
      %v1187 = vld [vmem:[#allocation2 + $0xca] sm:$0xff]
      %v1188 = vld [vmem:[#allocation2 + $0xda] sm:$0xff]
      %v1189 = vld [vmem:[#allocation2 + $0xe2] sm:$0xff]
      %v1190 = vld [vmem:[#allocation2 + $0xf2] sm:$0xff]
      %v1191 = vld [vmem:[#allocation2 + $0xfa] sm:$0xff]
      %v1192 = vld [vmem:[#allocation2 + $0x10a] sm:$0xff]
      %v1193 = vld [vmem:[#allocation2 + $0x112] sm:$0xff]
      %v1194 = vld [vmem:[#allocation2 + $0x122] sm:$0xff]
      %v1195 = vld [vmem:[#allocation2 + $0x12a] sm:$0xff]
      %v1196 = vld [vmem:[#allocation2 + $0x13a] sm:$0xff]
      %v1197 = vld [vmem:[#allocation2 + $0x142] sm:$0xff]
      %v1198 = vld [vmem:[#allocation2 + $0x152] sm:$0xff]
      %v1199 = vld [vmem:[#allocation2 + $0x15a] sm:$0xff]
      %v1200 = vld [vmem:[#allocation2 + $0x16a] sm:$0xff]
      %v1201 = vld [vmem:[#allocation2 + $0x172] sm:$0xff]
      %v1202 = vld [vmem:[#allocation3] sm:$0xff]
      %v1203 = vld [vmem:[#allocation3 + $0x8] sm:$0xff]
      %v1204 = vld [vmem:[#allocation3 + $0x10] sm:$0xff]
      %v1205 = vld [vmem:[#allocation3 + $0x18] sm:$0xff]
      %v1206 = vld [vmem:[#allocation3 + $0x20] sm:$0xff]
      %v1207 = vld [vmem:[#allocation3 + $0x28] sm:$0xff]
      %v1208 = vld [vmem:[#allocation3 + $0x30] sm:$0xff]
      %v1209 = vld [vmem:[#allocation3 + $0x38] sm:$0xff]
      %v1210 = vld [vmem:[#allocation3 + $0x40] sm:$0xff]
      %v1211 = vld [vmem:[#allocation3 + $0x48] sm:$0xff]
      %v1212 = vld [vmem:[#allocation3 + $0x50] sm:$0xff]
      %v1213 = vld [vmem:[#allocation3 + $0x58] sm:$0xff]
      %v1214 = vld [vmem:[#allocation3 + $0x60] sm:$0xff]
      %v1215 = vld [vmem:[#allocation3 + $0x68] sm:$0xff]
      %v1216 = vld [vmem:[#allocation3 + $0x70] sm:$0xff]
      %v1217 = vld [vmem:[#allocation3 + $0x78] sm:$0xff]
      %v1218 = vld [vmem:[#allocation3 + $0x80] sm:$0xff]
      %v1219 = vld [vmem:[#allocation3 + $0x88] sm:$0xff]
      %v1220 = vld [vmem:[#allocation3 + $0x90] sm:$0xff]
      %v1221 = vld [vmem:[#allocation3 + $0x98] sm:$0xff]
      %v1222 = vld [vmem:[#allocation3 + $0xa0] sm:$0xff]
      %v1223 = vld [vmem:[#allocation3 + $0xa8] sm:$0xff]
      %v1224 = vld [vmem:[#allocation3 + $0xb0] sm:$0xff]
      %v1225 = vld [vmem:[#allocation3 + $0xb8] sm:$0xff]
      %v1226 = vld [vmem:[#allocation3 + $0xc0] sm:$0xff]
      %v1227 = vld [vmem:[#allocation3 + $0xc8] sm:$0xff]
      %v1228 = vld [vmem:[#allocation3 + $0xd0] sm:$0xff]
      %v1229 = vld [vmem:[#allocation3 + $0xd8] sm:$0xff]
      %v1230 = vld [vmem:[#allocation3 + $0xe0] sm:$0xff]
      %v1231 = vld [vmem:[#allocation3 + $0xe8] sm:$0xff]
      %v1232 = vld [vmem:[#allocation3 + $0xf0] sm:$0xff]
      %v1233 = vld [vmem:[#allocation3 + $0xf8] sm:$0xff]
      %s1234 = scalar_lea.vmem %s1, 8
      %v1235 = vld [vmem:[%s1234] sm:$0xf]
      %v1237 = vsel %vm333, %v1170, 0
      %v1240 = vsel %vm333, %v1171, 0
      %v1243 = vsel %vm333, %v1172, 0
      %v1246 = vsel %vm333, %v1173, 0
      %v1249 = vsel %vm333, %v1174, 0
      %v1252 = vsel %vm333, %v1175, 0
      %v1255 = vsel %vm333, %v1176, 0
      %v1258 = vsel %vm333, %v1177, 0
      %v1261 = vsel %vm333, %v1178, 0
      %v1264 = vsel %vm333, %v1179, 0
      %v1267 = vsel %vm333, %v1180, 0
      %v1270 = vsel %vm333, %v1181, 0
      %v1273 = vsel %vm333, %v1182, 0
      %v1276 = vsel %vm333, %v1183, 0
      %v1279 = vsel %vm333, %v1184, 0
      %v1282 = vsel %vm333, %v1185, 0
      %v1285 = vsel %vm333, %v1186, 0
      %v1288 = vsel %vm333, %v1187, 0
      %v1291 = vsel %vm333, %v1188, 0
      %v1294 = vsel %vm333, %v1189, 0
      %v1297 = vsel %vm333, %v1190, 0
      %v1300 = vsel %vm333, %v1191, 0
      %v1303 = vsel %vm333, %v1192, 0
      %v1306 = vsel %vm333, %v1193, 0
      %v1309 = vsel %vm333, %v1194, 0
      %v1312 = vsel %vm333, %v1195, 0
      %v1315 = vsel %vm333, %v1196, 0
      %v1318 = vsel %vm333, %v1197, 0
      %v1321 = vsel %vm333, %v1198, 0
      %v1324 = vsel %vm333, %v1199, 0
      %v1327 = vsel %vm333, %v1200, 0
      %v1330 = vsel %vm333, %v1201, 0
      %v1333 = vsel %vm647, %v1235, 0
      %1335 = vmatpush.msra.mxu0 0.0
      %1336 = vmatpush.msra.mxu0 0.0
      %1337 = vmatpush.msra.mxu0 0.0
      %1338 = vmatpush.msra.mxu0 0.0
      %1339 = vmatpush.msra.mxu0 0.0
      %1340 = vmatpush.msra.mxu0 0.0
      %1341 = vmatpush.msra.mxu0 0.0
      %1342 = vmatpush.msra.mxu0 0.0
      %1343 = vmatpush.msra.mxu0 0.0
      %1344 = vmatpush.msra.mxu0 0.0
      %1345 = vmatpush.msra.mxu0 0.0
      %1346 = vmatpush.msra.mxu0 0.0
      %1347 = vmatpush.msra.mxu0 0.0
      %1348 = vmatpush.msra.mxu0 0.0
      %1349 = vmatpush.msra.mxu0 0.0
      %1350 = vmatpush.msra.mxu0 %v1333
      %1351 = vmatmul.f32.gmra.mxu0 %v1237
      %v1352 = vpop.f32.mrf.mxu0
      %v1353 = vadd.f32 0.0, %v1352
      %1354 = vmatmul.f32.gmra.mxu0 %v1240
      %v1355 = vpop.f32.mrf.mxu0
      %v1356 = vadd.f32 0.0, %v1355
      %1357 = vmatmul.f32.gmra.mxu0 %v1243
      %v1358 = vpop.f32.mrf.mxu0
      %v1359 = vadd.f32 0.0, %v1358
      %1360 = vmatmul.f32.gmra.mxu0 %v1246
      %v1361 = vpop.f32.mrf.mxu0
      %v1362 = vadd.f32 0.0, %v1361
      %1363 = vmatmul.f32.gmra.mxu0 %v1249
      %v1364 = vpop.f32.mrf.mxu0
      %v1365 = vadd.f32 0.0, %v1364
      %1366 = vmatmul.f32.gmra.mxu0 %v1252
      %v1367 = vpop.f32.mrf.mxu0
      %v1368 = vadd.f32 0.0, %v1367
      %1369 = vmatmul.f32.gmra.mxu0 %v1255
      %v1370 = vpop.f32.mrf.mxu0
      %v1371 = vadd.f32 0.0, %v1370
      %1372 = vmatmul.f32.gmra.mxu0 %v1258
      %v1373 = vpop.f32.mrf.mxu0
      %v1374 = vadd.f32 0.0, %v1373
      %1375 = vmatmul.f32.gmra.mxu0 %v1261
      %v1376 = vpop.f32.mrf.mxu0
      %v1377 = vadd.f32 0.0, %v1376
      %1378 = vmatmul.f32.gmra.mxu0 %v1264
      %v1379 = vpop.f32.mrf.mxu0
      %v1380 = vadd.f32 0.0, %v1379
      %1381 = vmatmul.f32.gmra.mxu0 %v1267
      %v1382 = vpop.f32.mrf.mxu0
      %v1383 = vadd.f32 0.0, %v1382
      %1384 = vmatmul.f32.gmra.mxu0 %v1270
      %v1385 = vpop.f32.mrf.mxu0
      %v1386 = vadd.f32 0.0, %v1385
      %1387 = vmatmul.f32.gmra.mxu0 %v1273
      %v1388 = vpop.f32.mrf.mxu0
      %v1389 = vadd.f32 0.0, %v1388
      %1390 = vmatmul.f32.gmra.mxu0 %v1276
      %v1391 = vpop.f32.mrf.mxu0
      %v1392 = vadd.f32 0.0, %v1391
      %1393 = vmatmul.f32.gmra.mxu0 %v1279
      %v1394 = vpop.f32.mrf.mxu0
      %v1395 = vadd.f32 0.0, %v1394
      %1396 = vmatmul.f32.gmra.mxu0 %v1282
      %v1397 = vpop.f32.mrf.mxu0
      %v1398 = vadd.f32 0.0, %v1397
      %1399 = vmatmul.f32.gmra.mxu0 %v1285
      %v1400 = vpop.f32.mrf.mxu0
      %v1401 = vadd.f32 0.0, %v1400
      %1402 = vmatmul.f32.gmra.mxu0 %v1288
      %v1403 = vpop.f32.mrf.mxu0
      %v1404 = vadd.f32 0.0, %v1403
      %1405 = vmatmul.f32.gmra.mxu0 %v1291
      %v1406 = vpop.f32.mrf.mxu0
      %v1407 = vadd.f32 0.0, %v1406
      %1408 = vmatmul.f32.gmra.mxu0 %v1294
      %v1409 = vpop.f32.mrf.mxu0
      %v1410 = vadd.f32 0.0, %v1409
      %1411 = vmatmul.f32.gmra.mxu0 %v1297
      %v1412 = vpop.f32.mrf.mxu0
      %v1413 = vadd.f32 0.0, %v1412
      %1414 = vmatmul.f32.gmra.mxu0 %v1300
      %v1415 = vpop.f32.mrf.mxu0
      %v1416 = vadd.f32 0.0, %v1415
      %1417 = vmatmul.f32.gmra.mxu0 %v1303
      %v1418 = vpop.f32.mrf.mxu0
      %v1419 = vadd.f32 0.0, %v1418
      %1420 = vmatmul.f32.gmra.mxu0 %v1306
      %v1421 = vpop.f32.mrf.mxu0
      %v1422 = vadd.f32 0.0, %v1421
      %1423 = vmatmul.f32.gmra.mxu0 %v1309
      %v1424 = vpop.f32.mrf.mxu0
      %v1425 = vadd.f32 0.0, %v1424
      %1426 = vmatmul.f32.gmra.mxu0 %v1312
      %v1427 = vpop.f32.mrf.mxu0
      %v1428 = vadd.f32 0.0, %v1427
      %1429 = vmatmul.f32.gmra.mxu0 %v1315
      %v1430 = vpop.f32.mrf.mxu0
      %v1431 = vadd.f32 0.0, %v1430
      %1432 = vmatmul.f32.gmra.mxu0 %v1318
      %v1433 = vpop.f32.mrf.mxu0
      %v1434 = vadd.f32 0.0, %v1433
      %1435 = vmatmul.f32.gmra.mxu0 %v1321
      %v1436 = vpop.f32.mrf.mxu0
      %v1437 = vadd.f32 0.0, %v1436
      %1438 = vmatmul.f32.gmra.mxu0 %v1324
      %v1439 = vpop.f32.mrf.mxu0
      %v1440 = vadd.f32 0.0, %v1439
      %1441 = vmatmul.f32.gmra.mxu0 %v1327
      %v1442 = vpop.f32.mrf.mxu0
      %v1443 = vadd.f32 0.0, %v1442
      %1444 = vmatmul.f32.gmra.mxu0 %v1330
      %v1445 = vpop.f32.mrf.mxu0
      %v1446 = vadd.f32 0.0, %v1445
      %1447 = vdwg.mxu0
      %v1448 = vadd.f32 %v1202, %v1353
      %v1449 = vadd.f32 %v1203, %v1356
      %v1450 = vadd.f32 %v1204, %v1359
      %v1451 = vadd.f32 %v1205, %v1362
      %v1452 = vadd.f32 %v1206, %v1365
      %v1453 = vadd.f32 %v1207, %v1368
      %v1454 = vadd.f32 %v1208, %v1371
      %v1455 = vadd.f32 %v1209, %v1374
      %v1456 = vadd.f32 %v1210, %v1377
      %v1457 = vadd.f32 %v1211, %v1380
      %v1458 = vadd.f32 %v1212, %v1383
      %v1459 = vadd.f32 %v1213, %v1386
      %v1460 = vadd.f32 %v1214, %v1389
      %v1461 = vadd.f32 %v1215, %v1392
      %v1462 = vadd.f32 %v1216, %v1395
      %v1463 = vadd.f32 %v1217, %v1398
      %v1464 = vadd.f32 %v1218, %v1401
      %v1465 = vadd.f32 %v1219, %v1404
      %v1466 = vadd.f32 %v1220, %v1407
      %v1467 = vadd.f32 %v1221, %v1410
      %v1468 = vadd.f32 %v1222, %v1413
      %v1469 = vadd.f32 %v1223, %v1416
      %v1470 = vadd.f32 %v1224, %v1419
      %v1471 = vadd.f32 %v1225, %v1422
      %v1472 = vadd.f32 %v1226, %v1425
      %v1473 = vadd.f32 %v1227, %v1428
      %v1474 = vadd.f32 %v1228, %v1431
      %v1475 = vadd.f32 %v1229, %v1434
      %v1476 = vadd.f32 %v1230, %v1437
      %v1477 = vadd.f32 %v1231, %v1440
      %v1478 = vadd.f32 %v1232, %v1443
      %v1479 = vadd.f32 %v1233, %v1446
      %1480 = vst.msk [vmem:[#allocation3] sm:$0xff] %vm333, %v1448
      %1481 = vst.msk [vmem:[#allocation3 + $0x8] sm:$0xff] %vm333, %v1449
      %1482 = vst.msk [vmem:[#allocation3 + $0x10] sm:$0xff] %vm333, %v1450
      %1483 = vst.msk [vmem:[#allocation3 + $0x18] sm:$0xff] %vm333, %v1451
      %1484 = vst.msk [vmem:[#allocation3 + $0x20] sm:$0xff] %vm333, %v1452
      %1485 = vst.msk [vmem:[#allocation3 + $0x28] sm:$0xff] %vm333, %v1453
      %1486 = vst.msk [vmem:[#allocation3 + $0x30] sm:$0xff] %vm333, %v1454
      %1487 = vst.msk [vmem:[#allocation3 + $0x38] sm:$0xff] %vm333, %v1455
      %1488 = vst.msk [vmem:[#allocation3 + $0x40] sm:$0xff] %vm333, %v1456
      %1489 = vst.msk [vmem:[#allocation3 + $0x48] sm:$0xff] %vm333, %v1457
      %1490 = vst.msk [vmem:[#allocation3 + $0x50] sm:$0xff] %vm333, %v1458
      %1491 = vst.msk [vmem:[#allocation3 + $0x58] sm:$0xff] %vm333, %v1459
      %1492 = vst.msk [vmem:[#allocation3 + $0x60] sm:$0xff] %vm333, %v1460
      %1493 = vst.msk [vmem:[#allocation3 + $0x68] sm:$0xff] %vm333, %v1461
      %1494 = vst.msk [vmem:[#allocation3 + $0x70] sm:$0xff] %vm333, %v1462
      %1495 = vst.msk [vmem:[#allocation3 + $0x78] sm:$0xff] %vm333, %v1463
      %1496 = vst.msk [vmem:[#allocation3 + $0x80] sm:$0xff] %vm333, %v1464
      %1497 = vst.msk [vmem:[#allocation3 + $0x88] sm:$0xff] %vm333, %v1465
      %1498 = vst.msk [vmem:[#allocation3 + $0x90] sm:$0xff] %vm333, %v1466
      %1499 = vst.msk [vmem:[#allocation3 + $0x98] sm:$0xff] %vm333, %v1467
      %1500 = vst.msk [vmem:[#allocation3 + $0xa0] sm:$0xff] %vm333, %v1468
      %1501 = vst.msk [vmem:[#allocation3 + $0xa8] sm:$0xff] %vm333, %v1469
      %1502 = vst.msk [vmem:[#allocation3 + $0xb0] sm:$0xff] %vm333, %v1470
      %1503 = vst.msk [vmem:[#allocation3 + $0xb8] sm:$0xff] %vm333, %v1471
      %1504 = vst.msk [vmem:[#allocation3 + $0xc0] sm:$0xff] %vm333, %v1472
      %1505 = vst.msk [vmem:[#allocation3 + $0xc8] sm:$0xff] %vm333, %v1473
      %1506 = vst.msk [vmem:[#allocation3 + $0xd0] sm:$0xff] %vm333, %v1474
      %1507 = vst.msk [vmem:[#allocation3 + $0xd8] sm:$0xff] %vm333, %v1475
      %1508 = vst.msk [vmem:[#allocation3 + $0xe0] sm:$0xff] %vm333, %v1476
      %1509 = vst.msk [vmem:[#allocation3 + $0xe8] sm:$0xff] %vm333, %v1477
      %1510 = vst.msk [vmem:[#allocation3 + $0xf0] sm:$0xff] %vm333, %v1478
      %1511 = vst.msk [vmem:[#allocation3 + $0xf8] sm:$0xff] %vm333, %v1479
      %v1512 = vld [vmem:[%s421] sm:$0xff]
      %v1513 = vld [vmem:[%s421 + $0x8] sm:$0xff]
      %v1514 = vld [vmem:[%s421 + $0x18] sm:$0xff]
      %v1515 = vld [vmem:[%s421 + $0x20] sm:$0xff]
      %v1516 = vld [vmem:[%s421 + $0x30] sm:$0xff]
      %v1517 = vld [vmem:[%s421 + $0x38] sm:$0xff]
      %v1518 = vld [vmem:[%s421 + $0x48] sm:$0xff]
      %v1519 = vld [vmem:[%s421 + $0x50] sm:$0xff]
      %v1520 = vld [vmem:[%s421 + $0x60] sm:$0xff]
      %v1521 = vld [vmem:[%s421 + $0x68] sm:$0xff]
      %v1522 = vld [vmem:[%s421 + $0x78] sm:$0xff]
      %v1523 = vld [vmem:[%s421 + $0x80] sm:$0xff]
      %v1524 = vld [vmem:[%s421 + $0x90] sm:$0xff]
      %v1525 = vld [vmem:[%s421 + $0x98] sm:$0xff]
      %v1526 = vld [vmem:[%s421 + $0xa8] sm:$0xff]
      %v1527 = vld [vmem:[%s421 + $0xb0] sm:$0xff]
      %v1528 = vld [vmem:[%s421 + $0xc0] sm:$0xff]
      %v1529 = vld [vmem:[%s421 + $0xc8] sm:$0xff]
      %v1530 = vld [vmem:[%s421 + $0xd8] sm:$0xff]
      %v1531 = vld [vmem:[%s421 + $0xe0] sm:$0xff]
      %v1532 = vld [vmem:[%s421 + $0xf0] sm:$0xff]
      %v1533 = vld [vmem:[%s421 + $0xf8] sm:$0xff]
      %v1534 = vld [vmem:[%s421 + $0x108] sm:$0xff]
      %v1535 = vld [vmem:[%s421 + $0x110] sm:$0xff]
      %v1536 = vld [vmem:[%s421 + $0x120] sm:$0xff]
      %v1537 = vld [vmem:[%s421 + $0x128] sm:$0xff]
      %v1538 = vld [vmem:[%s421 + $0x138] sm:$0xff]
      %v1539 = vld [vmem:[%s421 + $0x140] sm:$0xff]
      %v1540 = vld [vmem:[%s421 + $0x150] sm:$0xff]
      %v1541 = vld [vmem:[%s421 + $0x158] sm:$0xff]
      %v1542 = vld [vmem:[%s421 + $0x168] sm:$0xff]
      %v1543 = vld [vmem:[%s421 + $0x170] sm:$0xff]
      %v1544 = vld [vmem:[#allocation3] sm:$0xff]
      %v1545 = vld [vmem:[#allocation3 + $0x8] sm:$0xff]
      %v1546 = vld [vmem:[#allocation3 + $0x10] sm:$0xff]
      %v1547 = vld [vmem:[#allocation3 + $0x18] sm:$0xff]
      %v1548 = vld [vmem:[#allocation3 + $0x20] sm:$0xff]
      %v1549 = vld [vmem:[#allocation3 + $0x28] sm:$0xff]
      %v1550 = vld [vmem:[#allocation3 + $0x30] sm:$0xff]
      %v1551 = vld [vmem:[#allocation3 + $0x38] sm:$0xff]
      %v1552 = vld [vmem:[#allocation3 + $0x40] sm:$0xff]
      %v1553 = vld [vmem:[#allocation3 + $0x48] sm:$0xff]
      %v1554 = vld [vmem:[#allocation3 + $0x50] sm:$0xff]
      %v1555 = vld [vmem:[#allocation3 + $0x58] sm:$0xff]
      %v1556 = vld [vmem:[#allocation3 + $0x60] sm:$0xff]
      %v1557 = vld [vmem:[#allocation3 + $0x68] sm:$0xff]
      %v1558 = vld [vmem:[#allocation3 + $0x70] sm:$0xff]
      %v1559 = vld [vmem:[#allocation3 + $0x78] sm:$0xff]
      %v1560 = vld [vmem:[#allocation3 + $0x80] sm:$0xff]
      %v1561 = vld [vmem:[#allocation3 + $0x88] sm:$0xff]
      %v1562 = vld [vmem:[#allocation3 + $0x90] sm:$0xff]
      %v1563 = vld [vmem:[#allocation3 + $0x98] sm:$0xff]
      %v1564 = vld [vmem:[#allocation3 + $0xa0] sm:$0xff]
      %v1565 = vld [vmem:[#allocation3 + $0xa8] sm:$0xff]
      %v1566 = vld [vmem:[#allocation3 + $0xb0] sm:$0xff]
      %v1567 = vld [vmem:[#allocation3 + $0xb8] sm:$0xff]
      %v1568 = vld [vmem:[#allocation3 + $0xc0] sm:$0xff]
      %v1569 = vld [vmem:[#allocation3 + $0xc8] sm:$0xff]
      %v1570 = vld [vmem:[#allocation3 + $0xd0] sm:$0xff]
      %v1571 = vld [vmem:[#allocation3 + $0xd8] sm:$0xff]
      %v1572 = vld [vmem:[#allocation3 + $0xe0] sm:$0xff]
      %v1573 = vld [vmem:[#allocation3 + $0xe8] sm:$0xff]
      %v1574 = vld [vmem:[#allocation3 + $0xf0] sm:$0xff]
      %v1575 = vld [vmem:[#allocation3 + $0xf8] sm:$0xff]
      %s1576 = scalar_lea.vmem %s1, 12
      %v1577 = vld [vmem:[%s1576] sm:$0xf]
      %v1579 = vsel %vm333, %v1512, 0
      %v1582 = vsel %vm333, %v1513, 0
      %v1585 = vsel %vm333, %v1514, 0
      %v1588 = vsel %vm333, %v1515, 0
      %v1591 = vsel %vm333, %v1516, 0
      %v1594 = vsel %vm333, %v1517, 0
      %v1597 = vsel %vm333, %v1518, 0
      %v1600 = vsel %vm333, %v1519, 0
      %v1603 = vsel %vm333, %v1520, 0
      %v1606 = vsel %vm333, %v1521, 0
      %v1609 = vsel %vm333, %v1522, 0
      %v1612 = vsel %vm333, %v1523, 0
      %v1615 = vsel %vm333, %v1524, 0
      %v1618 = vsel %vm333, %v1525, 0
      %v1621 = vsel %vm333, %v1526, 0
      %v1624 = vsel %vm333, %v1527, 0
      %v1627 = vsel %vm333, %v1528, 0
      %v1630 = vsel %vm333, %v1529, 0
      %v1633 = vsel %vm333, %v1530, 0
      %v1636 = vsel %vm333, %v1531, 0
      %v1639 = vsel %vm333, %v1532, 0
      %v1642 = vsel %vm333, %v1533, 0
      %v1645 = vsel %vm333, %v1534, 0
      %v1648 = vsel %vm333, %v1535, 0
      %v1651 = vsel %vm333, %v1536, 0
      %v1654 = vsel %vm333, %v1537, 0
      %v1657 = vsel %vm333, %v1538, 0
      %v1660 = vsel %vm333, %v1539, 0
      %v1663 = vsel %vm333, %v1540, 0
      %v1666 = vsel %vm333, %v1541, 0
      %v1669 = vsel %vm333, %v1542, 0
      %v1672 = vsel %vm333, %v1543, 0
      %v1675 = vsel %vm647, %v1577, 0
      %1677 = vmatpush.msra.mxu0 0.0
      %1678 = vmatpush.msra.mxu0 0.0
      %1679 = vmatpush.msra.mxu0 0.0
      %1680 = vmatpush.msra.mxu0 0.0
      %1681 = vmatpush.msra.mxu0 0.0
      %1682 = vmatpush.msra.mxu0 0.0
      %1683 = vmatpush.msra.mxu0 0.0
      %1684 = vmatpush.msra.mxu0 0.0
      %1685 = vmatpush.msra.mxu0 0.0
      %1686 = vmatpush.msra.mxu0 0.0
      %1687 = vmatpush.msra.mxu0 0.0
      %1688 = vmatpush.msra.mxu0 0.0
      %1689 = vmatpush.msra.mxu0 0.0
      %1690 = vmatpush.msra.mxu0 0.0
      %1691 = vmatpush.msra.mxu0 0.0
      %1692 = vmatpush.msra.mxu0 %v1675
      %1693 = vmatmul.f32.gmra.mxu0 %v1579
      %v1694 = vpop.f32.mrf.mxu0
      %v1695 = vadd.f32 0.0, %v1694
      %1696 = vmatmul.f32.gmra.mxu0 %v1582
      %v1697 = vpop.f32.mrf.mxu0
      %v1698 = vadd.f32 0.0, %v1697
      %1699 = vmatmul.f32.gmra.mxu0 %v1585
      %v1700 = vpop.f32.mrf.mxu0
      %v1701 = vadd.f32 0.0, %v1700
      %1702 = vmatmul.f32.gmra.mxu0 %v1588
      %v1703 = vpop.f32.mrf.mxu0
      %v1704 = vadd.f32 0.0, %v1703
      %1705 = vmatmul.f32.gmra.mxu0 %v1591
      %v1706 = vpop.f32.mrf.mxu0
      %v1707 = vadd.f32 0.0, %v1706
      %1708 = vmatmul.f32.gmra.mxu0 %v1594
      %v1709 = vpop.f32.mrf.mxu0
      %v1710 = vadd.f32 0.0, %v1709
      %1711 = vmatmul.f32.gmra.mxu0 %v1597
      %v1712 = vpop.f32.mrf.mxu0
      %v1713 = vadd.f32 0.0, %v1712
      %1714 = vmatmul.f32.gmra.mxu0 %v1600
      %v1715 = vpop.f32.mrf.mxu0
      %v1716 = vadd.f32 0.0, %v1715
      %1717 = vmatmul.f32.gmra.mxu0 %v1603
      %v1718 = vpop.f32.mrf.mxu0
      %v1719 = vadd.f32 0.0, %v1718
      %1720 = vmatmul.f32.gmra.mxu0 %v1606
      %v1721 = vpop.f32.mrf.mxu0
      %v1722 = vadd.f32 0.0, %v1721
      %1723 = vmatmul.f32.gmra.mxu0 %v1609
      %v1724 = vpop.f32.mrf.mxu0
      %v1725 = vadd.f32 0.0, %v1724
      %1726 = vmatmul.f32.gmra.mxu0 %v1612
      %v1727 = vpop.f32.mrf.mxu0
      %v1728 = vadd.f32 0.0, %v1727
      %1729 = vmatmul.f32.gmra.mxu0 %v1615
      %v1730 = vpop.f32.mrf.mxu0
      %v1731 = vadd.f32 0.0, %v1730
      %1732 = vmatmul.f32.gmra.mxu0 %v1618
      %v1733 = vpop.f32.mrf.mxu0
      %v1734 = vadd.f32 0.0, %v1733
      %1735 = vmatmul.f32.gmra.mxu0 %v1621
      %v1736 = vpop.f32.mrf.mxu0
      %v1737 = vadd.f32 0.0, %v1736
      %1738 = vmatmul.f32.gmra.mxu0 %v1624
      %v1739 = vpop.f32.mrf.mxu0
      %v1740 = vadd.f32 0.0, %v1739
      %1741 = vmatmul.f32.gmra.mxu0 %v1627
      %v1742 = vpop.f32.mrf.mxu0
      %v1743 = vadd.f32 0.0, %v1742
      %1744 = vmatmul.f32.gmra.mxu0 %v1630
      %v1745 = vpop.f32.mrf.mxu0
      %v1746 = vadd.f32 0.0, %v1745
      %1747 = vmatmul.f32.gmra.mxu0 %v1633
      %v1748 = vpop.f32.mrf.mxu0
      %v1749 = vadd.f32 0.0, %v1748
      %1750 = vmatmul.f32.gmra.mxu0 %v1636
      %v1751 = vpop.f32.mrf.mxu0
      %v1752 = vadd.f32 0.0, %v1751
      %1753 = vmatmul.f32.gmra.mxu0 %v1639
      %v1754 = vpop.f32.mrf.mxu0
      %v1755 = vadd.f32 0.0, %v1754
      %1756 = vmatmul.f32.gmra.mxu0 %v1642
      %v1757 = vpop.f32.mrf.mxu0
      %v1758 = vadd.f32 0.0, %v1757
      %1759 = vmatmul.f32.gmra.mxu0 %v1645
      %v1760 = vpop.f32.mrf.mxu0
      %v1761 = vadd.f32 0.0, %v1760
      %1762 = vmatmul.f32.gmra.mxu0 %v1648
      %v1763 = vpop.f32.mrf.mxu0
      %v1764 = vadd.f32 0.0, %v1763
      %1765 = vmatmul.f32.gmra.mxu0 %v1651
      %v1766 = vpop.f32.mrf.mxu0
      %v1767 = vadd.f32 0.0, %v1766
      %1768 = vmatmul.f32.gmra.mxu0 %v1654
      %v1769 = vpop.f32.mrf.mxu0
      %v1770 = vadd.f32 0.0, %v1769
      %1771 = vmatmul.f32.gmra.mxu0 %v1657
      %v1772 = vpop.f32.mrf.mxu0
      %v1773 = vadd.f32 0.0, %v1772
      %1774 = vmatmul.f32.gmra.mxu0 %v1660
      %v1775 = vpop.f32.mrf.mxu0
      %v1776 = vadd.f32 0.0, %v1775
      %1777 = vmatmul.f32.gmra.mxu0 %v1663
      %v1778 = vpop.f32.mrf.mxu0
      %v1779 = vadd.f32 0.0, %v1778
      %1780 = vmatmul.f32.gmra.mxu0 %v1666
      %v1781 = vpop.f32.mrf.mxu0
      %v1782 = vadd.f32 0.0, %v1781
      %1783 = vmatmul.f32.gmra.mxu0 %v1669
      %v1784 = vpop.f32.mrf.mxu0
      %v1785 = vadd.f32 0.0, %v1784
      %1786 = vmatmul.f32.gmra.mxu0 %v1672
      %v1787 = vpop.f32.mrf.mxu0
      %v1788 = vadd.f32 0.0, %v1787
      %1789 = vdwg.mxu0
      %v1790 = vadd.f32 %v1544, %v1695
      %v1791 = vadd.f32 %v1545, %v1698
      %v1792 = vadd.f32 %v1546, %v1701
      %v1793 = vadd.f32 %v1547, %v1704
      %v1794 = vadd.f32 %v1548, %v1707
      %v1795 = vadd.f32 %v1549, %v1710
      %v1796 = vadd.f32 %v1550, %v1713
      %v1797 = vadd.f32 %v1551, %v1716
      %v1798 = vadd.f32 %v1552, %v1719
      %v1799 = vadd.f32 %v1553, %v1722
      %v1800 = vadd.f32 %v1554, %v1725
      %v1801 = vadd.f32 %v1555, %v1728
      %v1802 = vadd.f32 %v1556, %v1731
      %v1803 = vadd.f32 %v1557, %v1734
      %v1804 = vadd.f32 %v1558, %v1737
      %v1805 = vadd.f32 %v1559, %v1740
      %v1806 = vadd.f32 %v1560, %v1743
      %v1807 = vadd.f32 %v1561, %v1746
      %v1808 = vadd.f32 %v1562, %v1749
      %v1809 = vadd.f32 %v1563, %v1752
      %v1810 = vadd.f32 %v1564, %v1755
      %v1811 = vadd.f32 %v1565, %v1758
      %v1812 = vadd.f32 %v1566, %v1761
      %v1813 = vadd.f32 %v1567, %v1764
      %v1814 = vadd.f32 %v1568, %v1767
      %v1815 = vadd.f32 %v1569, %v1770
      %v1816 = vadd.f32 %v1570, %v1773
      %v1817 = vadd.f32 %v1571, %v1776
      %v1818 = vadd.f32 %v1572, %v1779
      %v1819 = vadd.f32 %v1573, %v1782
      %v1820 = vadd.f32 %v1574, %v1785
      %v1821 = vadd.f32 %v1575, %v1788
      %1822 = vst.msk [vmem:[#allocation3] sm:$0xff] %vm333, %v1790
      %1823 = vst.msk [vmem:[#allocation3 + $0x8] sm:$0xff] %vm333, %v1791
      %1824 = vst.msk [vmem:[#allocation3 + $0x10] sm:$0xff] %vm333, %v1792
      %1825 = vst.msk [vmem:[#allocation3 + $0x18] sm:$0xff] %vm333, %v1793
      %1826 = vst.msk [vmem:[#allocation3 + $0x20] sm:$0xff] %vm333, %v1794
      %1827 = vst.msk [vmem:[#allocation3 + $0x28] sm:$0xff] %vm333, %v1795
      %1828 = vst.msk [vmem:[#allocation3 + $0x30] sm:$0xff] %vm333, %v1796
      %1829 = vst.msk [vmem:[#allocation3 + $0x38] sm:$0xff] %vm333, %v1797
      %1830 = vst.msk [vmem:[#allocation3 + $0x40] sm:$0xff] %vm333, %v1798
      %1831 = vst.msk [vmem:[#allocation3 + $0x48] sm:$0xff] %vm333, %v1799
      %1832 = vst.msk [vmem:[#allocation3 + $0x50] sm:$0xff] %vm333, %v1800
      %1833 = vst.msk [vmem:[#allocation3 + $0x58] sm:$0xff] %vm333, %v1801
      %1834 = vst.msk [vmem:[#allocation3 + $0x60] sm:$0xff] %vm333, %v1802
      %1835 = vst.msk [vmem:[#allocation3 + $0x68] sm:$0xff] %vm333, %v1803
      %1836 = vst.msk [vmem:[#allocation3 + $0x70] sm:$0xff] %vm333, %v1804
      %1837 = vst.msk [vmem:[#allocation3 + $0x78] sm:$0xff] %vm333, %v1805
      %1838 = vst.msk [vmem:[#allocation3 + $0x80] sm:$0xff] %vm333, %v1806
      %1839 = vst.msk [vmem:[#allocation3 + $0x88] sm:$0xff] %vm333, %v1807
      %1840 = vst.msk [vmem:[#allocation3 + $0x90] sm:$0xff] %vm333, %v1808
      %1841 = vst.msk [vmem:[#allocation3 + $0x98] sm:$0xff] %vm333, %v1809
      %1842 = vst.msk [vmem:[#allocation3 + $0xa0] sm:$0xff] %vm333, %v1810
      %1843 = vst.msk [vmem:[#allocation3 + $0xa8] sm:$0xff] %vm333, %v1811
      %1844 = vst.msk [vmem:[#allocation3 + $0xb0] sm:$0xff] %vm333, %v1812
      %1845 = vst.msk [vmem:[#allocation3 + $0xb8] sm:$0xff] %vm333, %v1813
      %1846 = vst.msk [vmem:[#allocation3 + $0xc0] sm:$0xff] %vm333, %v1814
      %1847 = vst.msk [vmem:[#allocation3 + $0xc8] sm:$0xff] %vm333, %v1815
      %1848 = vst.msk [vmem:[#allocation3 + $0xd0] sm:$0xff] %vm333, %v1816
      %1849 = vst.msk [vmem:[#allocation3 + $0xd8] sm:$0xff] %vm333, %v1817
      %1850 = vst.msk [vmem:[#allocation3 + $0xe0] sm:$0xff] %vm333, %v1818
      %1851 = vst.msk [vmem:[#allocation3 + $0xe8] sm:$0xff] %vm333, %v1819
      %1852 = vst.msk [vmem:[#allocation3 + $0xf0] sm:$0xff] %vm333, %v1820
      %1853 = vst.msk [vmem:[#allocation3 + $0xf8] sm:$0xff] %vm333, %v1821
      %v1854 = vld [vmem:[%s421 + $0x1] sm:$0xff]
      %v1855 = vld [vmem:[%s421 + $0x9] sm:$0xff]
      %v1856 = vld [vmem:[%s421 + $0x19] sm:$0xff]
      %v1857 = vld [vmem:[%s421 + $0x21] sm:$0xff]
      %v1858 = vld [vmem:[%s421 + $0x31] sm:$0xff]
      %v1859 = vld [vmem:[%s421 + $0x39] sm:$0xff]
      %v1860 = vld [vmem:[%s421 + $0x49] sm:$0xff]
      %v1861 = vld [vmem:[%s421 + $0x51] sm:$0xff]
      %v1862 = vld [vmem:[%s421 + $0x61] sm:$0xff]
      %v1863 = vld [vmem:[%s421 + $0x69] sm:$0xff]
      %v1864 = vld [vmem:[%s421 + $0x79] sm:$0xff]
      %v1865 = vld [vmem:[%s421 + $0x81] sm:$0xff]
      %v1866 = vld [vmem:[%s421 + $0x91] sm:$0xff]
      %v1867 = vld [vmem:[%s421 + $0x99] sm:$0xff]
      %v1868 = vld [vmem:[%s421 + $0xa9] sm:$0xff]
      %v1869 = vld [vmem:[%s421 + $0xb1] sm:$0xff]
      %v1870 = vld [vmem:[%s421 + $0xc1] sm:$0xff]
      %v1871 = vld [vmem:[%s421 + $0xc9] sm:$0xff]
      %v1872 = vld [vmem:[%s421 + $0xd9] sm:$0xff]
      %v1873 = vld [vmem:[%s421 + $0xe1] sm:$0xff]
      %v1874 = vld [vmem:[%s421 + $0xf1] sm:$0xff]
      %v1875 = vld [vmem:[%s421 + $0xf9] sm:$0xff]
      %v1876 = vld [vmem:[%s421 + $0x109] sm:$0xff]
      %v1877 = vld [vmem:[%s421 + $0x111] sm:$0xff]
      %v1878 = vld [vmem:[%s421 + $0x121] sm:$0xff]
      %v1879 = vld [vmem:[%s421 + $0x129] sm:$0xff]
      %v1880 = vld [vmem:[%s421 + $0x139] sm:$0xff]
      %v1881 = vld [vmem:[%s421 + $0x141] sm:$0xff]
      %v1882 = vld [vmem:[%s421 + $0x151] sm:$0xff]
      %v1883 = vld [vmem:[%s421 + $0x159] sm:$0xff]
      %v1884 = vld [vmem:[%s421 + $0x169] sm:$0xff]
      %v1885 = vld [vmem:[%s421 + $0x171] sm:$0xff]
      %v1886 = vld [vmem:[#allocation3] sm:$0xff]
      %v1887 = vld [vmem:[#allocation3 + $0x8] sm:$0xff]
      %v1888 = vld [vmem:[#allocation3 + $0x10] sm:$0xff]
      %v1889 = vld [vmem:[#allocation3 + $0x18] sm:$0xff]
      %v1890 = vld [vmem:[#allocation3 + $0x20] sm:$0xff]
      %v1891 = vld [vmem:[#allocation3 + $0x28] sm:$0xff]
      %v1892 = vld [vmem:[#allocation3 + $0x30] sm:$0xff]
      %v1893 = vld [vmem:[#allocation3 + $0x38] sm:$0xff]
      %v1894 = vld [vmem:[#allocation3 + $0x40] sm:$0xff]
      %v1895 = vld [vmem:[#allocation3 + $0x48] sm:$0xff]
      %v1896 = vld [vmem:[#allocation3 + $0x50] sm:$0xff]
      %v1897 = vld [vmem:[#allocation3 + $0x58] sm:$0xff]
      %v1898 = vld [vmem:[#allocation3 + $0x60] sm:$0xff]
      %v1899 = vld [vmem:[#allocation3 + $0x68] sm:$0xff]
      %v1900 = vld [vmem:[#allocation3 + $0x70] sm:$0xff]
      %v1901 = vld [vmem:[#allocation3 + $0x78] sm:$0xff]
      %v1902 = vld [vmem:[#allocation3 + $0x80] sm:$0xff]
      %v1903 = vld [vmem:[#allocation3 + $0x88] sm:$0xff]
      %v1904 = vld [vmem:[#allocation3 + $0x90] sm:$0xff]
      %v1905 = vld [vmem:[#allocation3 + $0x98] sm:$0xff]
      %v1906 = vld [vmem:[#allocation3 + $0xa0] sm:$0xff]
      %v1907 = vld [vmem:[#allocation3 + $0xa8] sm:$0xff]
      %v1908 = vld [vmem:[#allocation3 + $0xb0] sm:$0xff]
      %v1909 = vld [vmem:[#allocation3 + $0xb8] sm:$0xff]
      %v1910 = vld [vmem:[#allocation3 + $0xc0] sm:$0xff]
      %v1911 = vld [vmem:[#allocation3 + $0xc8] sm:$0xff]
      %v1912 = vld [vmem:[#allocation3 + $0xd0] sm:$0xff]
      %v1913 = vld [vmem:[#allocation3 + $0xd8] sm:$0xff]
      %v1914 = vld [vmem:[#allocation3 + $0xe0] sm:$0xff]
      %v1915 = vld [vmem:[#allocation3 + $0xe8] sm:$0xff]
      %v1916 = vld [vmem:[#allocation3 + $0xf0] sm:$0xff]
      %v1917 = vld [vmem:[#allocation3 + $0xf8] sm:$0xff]
      %s1918 = scalar_lea.vmem %s1, 16
      %v1919 = vld [vmem:[%s1918] sm:$0xf]
      %v1921 = vsel %vm333, %v1854, 0
      %v1924 = vsel %vm333, %v1855, 0
      %v1927 = vsel %vm333, %v1856, 0
      %v1930 = vsel %vm333, %v1857, 0
      %v1933 = vsel %vm333, %v1858, 0
      %v1936 = vsel %vm333, %v1859, 0
      %v1939 = vsel %vm333, %v1860, 0
      %v1942 = vsel %vm333, %v1861, 0
      %v1945 = vsel %vm333, %v1862, 0
      %v1948 = vsel %vm333, %v1863, 0
      %v1951 = vsel %vm333, %v1864, 0
      %v1954 = vsel %vm333, %v1865, 0
      %v1957 = vsel %vm333, %v1866, 0
      %v1960 = vsel %vm333, %v1867, 0
      %v1963 = vsel %vm333, %v1868, 0
      %v1966 = vsel %vm333, %v1869, 0
      %v1969 = vsel %vm333, %v1870, 0
      %v1972 = vsel %vm333, %v1871, 0
      %v1975 = vsel %vm333, %v1872, 0
      %v1978 = vsel %vm333, %v1873, 0
      %v1981 = vsel %vm333, %v1874, 0
      %v1984 = vsel %vm333, %v1875, 0
      %v1987 = vsel %vm333, %v1876, 0
      %v1990 = vsel %vm333, %v1877, 0
      %v1993 = vsel %vm333, %v1878, 0
      %v1996 = vsel %vm333, %v1879, 0
      %v1999 = vsel %vm333, %v1880, 0
      %v2002 = vsel %vm333, %v1881, 0
      %v2005 = vsel %vm333, %v1882, 0
      %v2008 = vsel %vm333, %v1883, 0
      %v2011 = vsel %vm333, %v1884, 0
      %v2014 = vsel %vm333, %v1885, 0
      %v2017 = vsel %vm647, %v1919, 0
      %2019 = vmatpush.msra.mxu0 0.0
      %2020 = vmatpush.msra.mxu0 0.0
      %2021 = vmatpush.msra.mxu0 0.0
      %2022 = vmatpush.msra.mxu0 0.0
      %2023 = vmatpush.msra.mxu0 0.0
      %2024 = vmatpush.msra.mxu0 0.0
      %2025 = vmatpush.msra.mxu0 0.0
      %2026 = vmatpush.msra.mxu0 0.0
      %2027 = vmatpush.msra.mxu0 0.0
      %2028 = vmatpush.msra.mxu0 0.0
      %2029 = vmatpush.msra.mxu0 0.0
      %2030 = vmatpush.msra.mxu0 0.0
      %2031 = vmatpush.msra.mxu0 0.0
      %2032 = vmatpush.msra.mxu0 0.0
      %2033 = vmatpush.msra.mxu0 0.0
      %2034 = vmatpush.msra.mxu0 %v2017
      %2035 = vmatmul.f32.gmra.mxu0 %v1921
      %v2036 = vpop.f32.mrf.mxu0
      %v2037 = vadd.f32 0.0, %v2036
      %2038 = vmatmul.f32.gmra.mxu0 %v1924
      %v2039 = vpop.f32.mrf.mxu0
      %v2040 = vadd.f32 0.0, %v2039
      %2041 = vmatmul.f32.gmra.mxu0 %v1927
      %v2042 = vpop.f32.mrf.mxu0
      %v2043 = vadd.f32 0.0, %v2042
      %2044 = vmatmul.f32.gmra.mxu0 %v1930
      %v2045 = vpop.f32.mrf.mxu0
      %v2046 = vadd.f32 0.0, %v2045
      %2047 = vmatmul.f32.gmra.mxu0 %v1933
      %v2048 = vpop.f32.mrf.mxu0
      %v2049 = vadd.f32 0.0, %v2048
      %2050 = vmatmul.f32.gmra.mxu0 %v1936
      %v2051 = vpop.f32.mrf.mxu0
      %v2052 = vadd.f32 0.0, %v2051
      %2053 = vmatmul.f32.gmra.mxu0 %v1939
      %v2054 = vpop.f32.mrf.mxu0
      %v2055 = vadd.f32 0.0, %v2054
      %2056 = vmatmul.f32.gmra.mxu0 %v1942
      %v2057 = vpop.f32.mrf.mxu0
      %v2058 = vadd.f32 0.0, %v2057
      %2059 = vmatmul.f32.gmra.mxu0 %v1945
      %v2060 = vpop.f32.mrf.mxu0
      %v2061 = vadd.f32 0.0, %v2060
      %2062 = vmatmul.f32.gmra.mxu0 %v1948
      %v2063 = vpop.f32.mrf.mxu0
      %v2064 = vadd.f32 0.0, %v2063
      %2065 = vmatmul.f32.gmra.mxu0 %v1951
      %v2066 = vpop.f32.mrf.mxu0
      %v2067 = vadd.f32 0.0, %v2066
      %2068 = vmatmul.f32.gmra.mxu0 %v1954
      %v2069 = vpop.f32.mrf.mxu0
      %v2070 = vadd.f32 0.0, %v2069
      %2071 = vmatmul.f32.gmra.mxu0 %v1957
      %v2072 = vpop.f32.mrf.mxu0
      %v2073 = vadd.f32 0.0, %v2072
      %2074 = vmatmul.f32.gmra.mxu0 %v1960
      %v2075 = vpop.f32.mrf.mxu0
      %v2076 = vadd.f32 0.0, %v2075
      %2077 = vmatmul.f32.gmra.mxu0 %v1963
      %v2078 = vpop.f32.mrf.mxu0
      %v2079 = vadd.f32 0.0, %v2078
      %2080 = vmatmul.f32.gmra.mxu0 %v1966
      %v2081 = vpop.f32.mrf.mxu0
      %v2082 = vadd.f32 0.0, %v2081
      %2083 = vmatmul.f32.gmra.mxu0 %v1969
      %v2084 = vpop.f32.mrf.mxu0
      %v2085 = vadd.f32 0.0, %v2084
      %2086 = vmatmul.f32.gmra.mxu0 %v1972
      %v2087 = vpop.f32.mrf.mxu0
      %v2088 = vadd.f32 0.0, %v2087
      %2089 = vmatmul.f32.gmra.mxu0 %v1975
      %v2090 = vpop.f32.mrf.mxu0
      %v2091 = vadd.f32 0.0, %v2090
      %2092 = vmatmul.f32.gmra.mxu0 %v1978
      %v2093 = vpop.f32.mrf.mxu0
      %v2094 = vadd.f32 0.0, %v2093
      %2095 = vmatmul.f32.gmra.mxu0 %v1981
      %v2096 = vpop.f32.mrf.mxu0
      %v2097 = vadd.f32 0.0, %v2096
      %2098 = vmatmul.f32.gmra.mxu0 %v1984
      %v2099 = vpop.f32.mrf.mxu0
      %v2100 = vadd.f32 0.0, %v2099
      %2101 = vmatmul.f32.gmra.mxu0 %v1987
      %v2102 = vpop.f32.mrf.mxu0
      %v2103 = vadd.f32 0.0, %v2102
      %2104 = vmatmul.f32.gmra.mxu0 %v1990
      %v2105 = vpop.f32.mrf.mxu0
      %v2106 = vadd.f32 0.0, %v2105
      %2107 = vmatmul.f32.gmra.mxu0 %v1993
      %v2108 = vpop.f32.mrf.mxu0
      %v2109 = vadd.f32 0.0, %v2108
      %2110 = vmatmul.f32.gmra.mxu0 %v1996
      %v2111 = vpop.f32.mrf.mxu0
      %v2112 = vadd.f32 0.0, %v2111
      %2113 = vmatmul.f32.gmra.mxu0 %v1999
      %v2114 = vpop.f32.mrf.mxu0
      %v2115 = vadd.f32 0.0, %v2114
      %2116 = vmatmul.f32.gmra.mxu0 %v2002
      %v2117 = vpop.f32.mrf.mxu0
      %v2118 = vadd.f32 0.0, %v2117
      %2119 = vmatmul.f32.gmra.mxu0 %v2005
      %v2120 = vpop.f32.mrf.mxu0
      %v2121 = vadd.f32 0.0, %v2120
      %2122 = vmatmul.f32.gmra.mxu0 %v2008
      %v2123 = vpop.f32.mrf.mxu0
      %v2124 = vadd.f32 0.0, %v2123
      %2125 = vmatmul.f32.gmra.mxu0 %v2011
      %v2126 = vpop.f32.mrf.mxu0
      %v2127 = vadd.f32 0.0, %v2126
      %2128 = vmatmul.f32.gmra.mxu0 %v2014
      %v2129 = vpop.f32.mrf.mxu0
      %v2130 = vadd.f32 0.0, %v2129
      %2131 = vdwg.mxu0
      %v2132 = vadd.f32 %v1886, %v2037
      %v2133 = vadd.f32 %v1887, %v2040
      %v2134 = vadd.f32 %v1888, %v2043
      %v2135 = vadd.f32 %v1889, %v2046
      %v2136 = vadd.f32 %v1890, %v2049
      %v2137 = vadd.f32 %v1891, %v2052
      %v2138 = vadd.f32 %v1892, %v2055
      %v2139 = vadd.f32 %v1893, %v2058
      %v2140 = vadd.f32 %v1894, %v2061
      %v2141 = vadd.f32 %v1895, %v2064
      %v2142 = vadd.f32 %v1896, %v2067
      %v2143 = vadd.f32 %v1897, %v2070
      %v2144 = vadd.f32 %v1898, %v2073
      %v2145 = vadd.f32 %v1899, %v2076
      %v2146 = vadd.f32 %v1900, %v2079
      %v2147 = vadd.f32 %v1901, %v2082
      %v2148 = vadd.f32 %v1902, %v2085
      %v2149 = vadd.f32 %v1903, %v2088
      %v2150 = vadd.f32 %v1904, %v2091
      %v2151 = vadd.f32 %v1905, %v2094
      %v2152 = vadd.f32 %v1906, %v2097
      %v2153 = vadd.f32 %v1907, %v2100
      %v2154 = vadd.f32 %v1908, %v2103
      %v2155 = vadd.f32 %v1909, %v2106
      %v2156 = vadd.f32 %v1910, %v2109
      %v2157 = vadd.f32 %v1911, %v2112
      %v2158 = vadd.f32 %v1912, %v2115
      %v2159 = vadd.f32 %v1913, %v2118
      %v2160 = vadd.f32 %v1914, %v2121
      %v2161 = vadd.f32 %v1915, %v2124
      %v2162 = vadd.f32 %v1916, %v2127
      %v2163 = vadd.f32 %v1917, %v2130
      %2164 = vst.msk [vmem:[#allocation3] sm:$0xff] %vm333, %v2132
      %2165 = vst.msk [vmem:[#allocation3 + $0x8] sm:$0xff] %vm333, %v2133
      %2166 = vst.msk [vmem:[#allocation3 + $0x10] sm:$0xff] %vm333, %v2134
      %2167 = vst.msk [vmem:[#allocation3 + $0x18] sm:$0xff] %vm333, %v2135
      %2168 = vst.msk [vmem:[#allocation3 + $0x20] sm:$0xff] %vm333, %v2136
      %2169 = vst.msk [vmem:[#allocation3 + $0x28] sm:$0xff] %vm333, %v2137
      %2170 = vst.msk [vmem:[#allocation3 + $0x30] sm:$0xff] %vm333, %v2138
      %2171 = vst.msk [vmem:[#allocation3 + $0x38] sm:$0xff] %vm333, %v2139
      %2172 = vst.msk [vmem:[#allocation3 + $0x40] sm:$0xff] %vm333, %v2140
      %2173 = vst.msk [vmem:[#allocation3 + $0x48] sm:$0xff] %vm333, %v2141
      %2174 = vst.msk [vmem:[#allocation3 + $0x50] sm:$0xff] %vm333, %v2142
      %2175 = vst.msk [vmem:[#allocation3 + $0x58] sm:$0xff] %vm333, %v2143
      %2176 = vst.msk [vmem:[#allocation3 + $0x60] sm:$0xff] %vm333, %v2144
      %2177 = vst.msk [vmem:[#allocation3 + $0x68] sm:$0xff] %vm333, %v2145
      %2178 = vst.msk [vmem:[#allocation3 + $0x70] sm:$0xff] %vm333, %v2146
      %2179 = vst.msk [vmem:[#allocation3 + $0x78] sm:$0xff] %vm333, %v2147
      %2180 = vst.msk [vmem:[#allocation3 + $0x80] sm:$0xff] %vm333, %v2148
      %2181 = vst.msk [vmem:[#allocation3 + $0x88] sm:$0xff] %vm333, %v2149
      %2182 = vst.msk [vmem:[#allocation3 + $0x90] sm:$0xff] %vm333, %v2150
      %2183 = vst.msk [vmem:[#allocation3 + $0x98] sm:$0xff] %vm333, %v2151
      %2184 = vst.msk [vmem:[#allocation3 + $0xa0] sm:$0xff] %vm333, %v2152
      %2185 = vst.msk [vmem:[#allocation3 + $0xa8] sm:$0xff] %vm333, %v2153
      %2186 = vst.msk [vmem:[#allocation3 + $0xb0] sm:$0xff] %vm333, %v2154
      %2187 = vst.msk [vmem:[#allocation3 + $0xb8] sm:$0xff] %vm333, %v2155
      %2188 = vst.msk [vmem:[#allocation3 + $0xc0] sm:$0xff] %vm333, %v2156
      %2189 = vst.msk [vmem:[#allocation3 + $0xc8] sm:$0xff] %vm333, %v2157
      %2190 = vst.msk [vmem:[#allocation3 + $0xd0] sm:$0xff] %vm333, %v2158
      %2191 = vst.msk [vmem:[#allocation3 + $0xd8] sm:$0xff] %vm333, %v2159
      %2192 = vst.msk [vmem:[#allocation3 + $0xe0] sm:$0xff] %vm333, %v2160
      %2193 = vst.msk [vmem:[#allocation3 + $0xe8] sm:$0xff] %vm333, %v2161
      %2194 = vst.msk [vmem:[#allocation3 + $0xf0] sm:$0xff] %vm333, %v2162
      %2195 = vst.msk [vmem:[#allocation3 + $0xf8] sm:$0xff] %vm333, %v2163
      %v2196 = vld [vmem:[%s421 + $0x2] sm:$0xff]
      %v2197 = vld [vmem:[%s421 + $0xa] sm:$0xff]
      %v2198 = vld [vmem:[%s421 + $0x1a] sm:$0xff]
      %v2199 = vld [vmem:[%s421 + $0x22] sm:$0xff]
      %v2200 = vld [vmem:[%s421 + $0x32] sm:$0xff]
      %v2201 = vld [vmem:[%s421 + $0x3a] sm:$0xff]
      %v2202 = vld [vmem:[%s421 + $0x4a] sm:$0xff]
      %v2203 = vld [vmem:[%s421 + $0x52] sm:$0xff]
      %v2204 = vld [vmem:[%s421 + $0x62] sm:$0xff]
      %v2205 = vld [vmem:[%s421 + $0x6a] sm:$0xff]
      %v2206 = vld [vmem:[%s421 + $0x7a] sm:$0xff]
      %v2207 = vld [vmem:[%s421 + $0x82] sm:$0xff]
      %v2208 = vld [vmem:[%s421 + $0x92] sm:$0xff]
      %v2209 = vld [vmem:[%s421 + $0x9a] sm:$0xff]
      %v2210 = vld [vmem:[%s421 + $0xaa] sm:$0xff]
      %v2211 = vld [vmem:[%s421 + $0xb2] sm:$0xff]
      %v2212 = vld [vmem:[%s421 + $0xc2] sm:$0xff]
      %v2213 = vld [vmem:[%s421 + $0xca] sm:$0xff]
      %v2214 = vld [vmem:[%s421 + $0xda] sm:$0xff]
      %v2215 = vld [vmem:[%s421 + $0xe2] sm:$0xff]
      %v2216 = vld [vmem:[%s421 + $0xf2] sm:$0xff]
      %v2217 = vld [vmem:[%s421 + $0xfa] sm:$0xff]
      %v2218 = vld [vmem:[%s421 + $0x10a] sm:$0xff]
      %v2219 = vld [vmem:[%s421 + $0x112] sm:$0xff]
      %v2220 = vld [vmem:[%s421 + $0x122] sm:$0xff]
      %v2221 = vld [vmem:[%s421 + $0x12a] sm:$0xff]
      %v2222 = vld [vmem:[%s421 + $0x13a] sm:$0xff]
      %v2223 = vld [vmem:[%s421 + $0x142] sm:$0xff]
      %v2224 = vld [vmem:[%s421 + $0x152] sm:$0xff]
      %v2225 = vld [vmem:[%s421 + $0x15a] sm:$0xff]
      %v2226 = vld [vmem:[%s421 + $0x16a] sm:$0xff]
      %v2227 = vld [vmem:[%s421 + $0x172] sm:$0xff]
      %v2228 = vld [vmem:[#allocation3] sm:$0xff]
      %v2229 = vld [vmem:[#allocation3 + $0x8] sm:$0xff]
      %v2230 = vld [vmem:[#allocation3 + $0x10] sm:$0xff]
      %v2231 = vld [vmem:[#allocation3 + $0x18] sm:$0xff]
      %v2232 = vld [vmem:[#allocation3 + $0x20] sm:$0xff]
      %v2233 = vld [vmem:[#allocation3 + $0x28] sm:$0xff]
      %v2234 = vld [vmem:[#allocation3 + $0x30] sm:$0xff]
      %v2235 = vld [vmem:[#allocation3 + $0x38] sm:$0xff]
      %v2236 = vld [vmem:[#allocation3 + $0x40] sm:$0xff]
      %v2237 = vld [vmem:[#allocation3 + $0x48] sm:$0xff]
      %v2238 = vld [vmem:[#allocation3 + $0x50] sm:$0xff]
      %v2239 = vld [vmem:[#allocation3 + $0x58] sm:$0xff]
      %v2240 = vld [vmem:[#allocation3 + $0x60] sm:$0xff]
      %v2241 = vld [vmem:[#allocation3 + $0x68] sm:$0xff]
      %v2242 = vld [vmem:[#allocation3 + $0x70] sm:$0xff]
      %v2243 = vld [vmem:[#allocation3 + $0x78] sm:$0xff]
      %v2244 = vld [vmem:[#allocation3 + $0x80] sm:$0xff]
      %v2245 = vld [vmem:[#allocation3 + $0x88] sm:$0xff]
      %v2246 = vld [vmem:[#allocation3 + $0x90] sm:$0xff]
      %v2247 = vld [vmem:[#allocation3 + $0x98] sm:$0xff]
      %v2248 = vld [vmem:[#allocation3 + $0xa0] sm:$0xff]
      %v2249 = vld [vmem:[#allocation3 + $0xa8] sm:$0xff]
      %v2250 = vld [vmem:[#allocation3 + $0xb0] sm:$0xff]
      %v2251 = vld [vmem:[#allocation3 + $0xb8] sm:$0xff]
      %v2252 = vld [vmem:[#allocation3 + $0xc0] sm:$0xff]
      %v2253 = vld [vmem:[#allocation3 + $0xc8] sm:$0xff]
      %v2254 = vld [vmem:[#allocation3 + $0xd0] sm:$0xff]
      %v2255 = vld [vmem:[#allocation3 + $0xd8] sm:$0xff]
      %v2256 = vld [vmem:[#allocation3 + $0xe0] sm:$0xff]
      %v2257 = vld [vmem:[#allocation3 + $0xe8] sm:$0xff]
      %v2258 = vld [vmem:[#allocation3 + $0xf0] sm:$0xff]
      %v2259 = vld [vmem:[#allocation3 + $0xf8] sm:$0xff]
      %s2260 = scalar_lea.vmem %s1, 20
      %v2261 = vld [vmem:[%s2260] sm:$0xf]
      %v2263 = vsel %vm333, %v2196, 0
      %v2266 = vsel %vm333, %v2197, 0
      %v2269 = vsel %vm333, %v2198, 0
      %v2272 = vsel %vm333, %v2199, 0
      %v2275 = vsel %vm333, %v2200, 0
      %v2278 = vsel %vm333, %v2201, 0
      %v2281 = vsel %vm333, %v2202, 0
      %v2284 = vsel %vm333, %v2203, 0
      %v2287 = vsel %vm333, %v2204, 0
      %v2290 = vsel %vm333, %v2205, 0
      %v2293 = vsel %vm333, %v2206, 0
      %v2296 = vsel %vm333, %v2207, 0
      %v2299 = vsel %vm333, %v2208, 0
      %v2302 = vsel %vm333, %v2209, 0
      %v2305 = vsel %vm333, %v2210, 0
      %v2308 = vsel %vm333, %v2211, 0
      %v2311 = vsel %vm333, %v2212, 0
      %v2314 = vsel %vm333, %v2213, 0
      %v2317 = vsel %vm333, %v2214, 0
      %v2320 = vsel %vm333, %v2215, 0
      %v2323 = vsel %vm333, %v2216, 0
      %v2326 = vsel %vm333, %v2217, 0
      %v2329 = vsel %vm333, %v2218, 0
      %v2332 = vsel %vm333, %v2219, 0
      %v2335 = vsel %vm333, %v2220, 0
      %v2338 = vsel %vm333, %v2221, 0
      %v2341 = vsel %vm333, %v2222, 0
      %v2344 = vsel %vm333, %v2223, 0
      %v2347 = vsel %vm333, %v2224, 0
      %v2350 = vsel %vm333, %v2225, 0
      %v2353 = vsel %vm333, %v2226, 0
      %v2356 = vsel %vm333, %v2227, 0
      %v2359 = vsel %vm647, %v2261, 0
      %2361 = vmatpush.msra.mxu0 0.0
      %2362 = vmatpush.msra.mxu0 0.0
      %2363 = vmatpush.msra.mxu0 0.0
      %2364 = vmatpush.msra.mxu0 0.0
      %2365 = vmatpush.msra.mxu0 0.0
      %2366 = vmatpush.msra.mxu0 0.0
      %2367 = vmatpush.msra.mxu0 0.0
      %2368 = vmatpush.msra.mxu0 0.0
      %2369 = vmatpush.msra.mxu0 0.0
      %2370 = vmatpush.msra.mxu0 0.0
      %2371 = vmatpush.msra.mxu0 0.0
      %2372 = vmatpush.msra.mxu0 0.0
      %2373 = vmatpush.msra.mxu0 0.0
      %2374 = vmatpush.msra.mxu0 0.0
      %2375 = vmatpush.msra.mxu0 0.0
      %2376 = vmatpush.msra.mxu0 %v2359
      %2377 = vmatmul.f32.gmra.mxu0 %v2263
      %v2378 = vpop.f32.mrf.mxu0
      %v2379 = vadd.f32 0.0, %v2378
      %2380 = vmatmul.f32.gmra.mxu0 %v2266
      %v2381 = vpop.f32.mrf.mxu0
      %v2382 = vadd.f32 0.0, %v2381
      %2383 = vmatmul.f32.gmra.mxu0 %v2269
      %v2384 = vpop.f32.mrf.mxu0
      %v2385 = vadd.f32 0.0, %v2384
      %2386 = vmatmul.f32.gmra.mxu0 %v2272
      %v2387 = vpop.f32.mrf.mxu0
      %v2388 = vadd.f32 0.0, %v2387
      %2389 = vmatmul.f32.gmra.mxu0 %v2275
      %v2390 = vpop.f32.mrf.mxu0
      %v2391 = vadd.f32 0.0, %v2390
      %2392 = vmatmul.f32.gmra.mxu0 %v2278
      %v2393 = vpop.f32.mrf.mxu0
      %v2394 = vadd.f32 0.0, %v2393
      %2395 = vmatmul.f32.gmra.mxu0 %v2281
      %v2396 = vpop.f32.mrf.mxu0
      %v2397 = vadd.f32 0.0, %v2396
      %2398 = vmatmul.f32.gmra.mxu0 %v2284
      %v2399 = vpop.f32.mrf.mxu0
      %v2400 = vadd.f32 0.0, %v2399
      %2401 = vmatmul.f32.gmra.mxu0 %v2287
      %v2402 = vpop.f32.mrf.mxu0
      %v2403 = vadd.f32 0.0, %v2402
      %2404 = vmatmul.f32.gmra.mxu0 %v2290
      %v2405 = vpop.f32.mrf.mxu0
      %v2406 = vadd.f32 0.0, %v2405
      %2407 = vmatmul.f32.gmra.mxu0 %v2293
      %v2408 = vpop.f32.mrf.mxu0
      %v2409 = vadd.f32 0.0, %v2408
      %2410 = vmatmul.f32.gmra.mxu0 %v2296
      %v2411 = vpop.f32.mrf.mxu0
      %v2412 = vadd.f32 0.0, %v2411
      %2413 = vmatmul.f32.gmra.mxu0 %v2299
      %v2414 = vpop.f32.mrf.mxu0
      %v2415 = vadd.f32 0.0, %v2414
      %2416 = vmatmul.f32.gmra.mxu0 %v2302
      %v2417 = vpop.f32.mrf.mxu0
      %v2418 = vadd.f32 0.0, %v2417
      %2419 = vmatmul.f32.gmra.mxu0 %v2305
      %v2420 = vpop.f32.mrf.mxu0
      %v2421 = vadd.f32 0.0, %v2420
      %2422 = vmatmul.f32.gmra.mxu0 %v2308
      %v2423 = vpop.f32.mrf.mxu0
      %v2424 = vadd.f32 0.0, %v2423
      %2425 = vmatmul.f32.gmra.mxu0 %v2311
      %v2426 = vpop.f32.mrf.mxu0
      %v2427 = vadd.f32 0.0, %v2426
      %2428 = vmatmul.f32.gmra.mxu0 %v2314
      %v2429 = vpop.f32.mrf.mxu0
      %v2430 = vadd.f32 0.0, %v2429
      %2431 = vmatmul.f32.gmra.mxu0 %v2317
      %v2432 = vpop.f32.mrf.mxu0
      %v2433 = vadd.f32 0.0, %v2432
      %2434 = vmatmul.f32.gmra.mxu0 %v2320
      %v2435 = vpop.f32.mrf.mxu0
      %v2436 = vadd.f32 0.0, %v2435
      %2437 = vmatmul.f32.gmra.mxu0 %v2323
      %v2438 = vpop.f32.mrf.mxu0
      %v2439 = vadd.f32 0.0, %v2438
      %2440 = vmatmul.f32.gmra.mxu0 %v2326
      %v2441 = vpop.f32.mrf.mxu0
      %v2442 = vadd.f32 0.0, %v2441
      %2443 = vmatmul.f32.gmra.mxu0 %v2329
      %v2444 = vpop.f32.mrf.mxu0
      %v2445 = vadd.f32 0.0, %v2444
      %2446 = vmatmul.f32.gmra.mxu0 %v2332
      %v2447 = vpop.f32.mrf.mxu0
      %v2448 = vadd.f32 0.0, %v2447
      %2449 = vmatmul.f32.gmra.mxu0 %v2335
      %v2450 = vpop.f32.mrf.mxu0
      %v2451 = vadd.f32 0.0, %v2450
      %2452 = vmatmul.f32.gmra.mxu0 %v2338
      %v2453 = vpop.f32.mrf.mxu0
      %v2454 = vadd.f32 0.0, %v2453
      %2455 = vmatmul.f32.gmra.mxu0 %v2341
      %v2456 = vpop.f32.mrf.mxu0
      %v2457 = vadd.f32 0.0, %v2456
      %2458 = vmatmul.f32.gmra.mxu0 %v2344
      %v2459 = vpop.f32.mrf.mxu0
      %v2460 = vadd.f32 0.0, %v2459
      %2461 = vmatmul.f32.gmra.mxu0 %v2347
      %v2462 = vpop.f32.mrf.mxu0
      %v2463 = vadd.f32 0.0, %v2462
      %2464 = vmatmul.f32.gmra.mxu0 %v2350
      %v2465 = vpop.f32.mrf.mxu0
      %v2466 = vadd.f32 0.0, %v2465
      %2467 = vmatmul.f32.gmra.mxu0 %v2353
      %v2468 = vpop.f32.mrf.mxu0
      %v2469 = vadd.f32 0.0, %v2468
      %2470 = vmatmul.f32.gmra.mxu0 %v2356
      %v2471 = vpop.f32.mrf.mxu0
      %v2472 = vadd.f32 0.0, %v2471
      %2473 = vdwg.mxu0
      %v2474 = vadd.f32 %v2228, %v2379
      %v2475 = vadd.f32 %v2229, %v2382
      %v2476 = vadd.f32 %v2230, %v2385
      %v2477 = vadd.f32 %v2231, %v2388
      %v2478 = vadd.f32 %v2232, %v2391
      %v2479 = vadd.f32 %v2233, %v2394
      %v2480 = vadd.f32 %v2234, %v2397
      %v2481 = vadd.f32 %v2235, %v2400
      %v2482 = vadd.f32 %v2236, %v2403
      %v2483 = vadd.f32 %v2237, %v2406
      %v2484 = vadd.f32 %v2238, %v2409
      %v2485 = vadd.f32 %v2239, %v2412
      %v2486 = vadd.f32 %v2240, %v2415
      %v2487 = vadd.f32 %v2241, %v2418
      %v2488 = vadd.f32 %v2242, %v2421
      %v2489 = vadd.f32 %v2243, %v2424
      %v2490 = vadd.f32 %v2244, %v2427
      %v2491 = vadd.f32 %v2245, %v2430
      %v2492 = vadd.f32 %v2246, %v2433
      %v2493 = vadd.f32 %v2247, %v2436
      %v2494 = vadd.f32 %v2248, %v2439
      %v2495 = vadd.f32 %v2249, %v2442
      %v2496 = vadd.f32 %v2250, %v2445
      %v2497 = vadd.f32 %v2251, %v2448
      %v2498 = vadd.f32 %v2252, %v2451
      %v2499 = vadd.f32 %v2253, %v2454
      %v2500 = vadd.f32 %v2254, %v2457
      %v2501 = vadd.f32 %v2255, %v2460
      %v2502 = vadd.f32 %v2256, %v2463
      %v2503 = vadd.f32 %v2257, %v2466
      %v2504 = vadd.f32 %v2258, %v2469
      %v2505 = vadd.f32 %v2259, %v2472
      %2506 = vst.msk [vmem:[#allocation3] sm:$0xff] %vm333, %v2474
      %2507 = vst.msk [vmem:[#allocation3 + $0x8] sm:$0xff] %vm333, %v2475
      %2508 = vst.msk [vmem:[#allocation3 + $0x10] sm:$0xff] %vm333, %v2476
      %2509 = vst.msk [vmem:[#allocation3 + $0x18] sm:$0xff] %vm333, %v2477
      %2510 = vst.msk [vmem:[#allocation3 + $0x20] sm:$0xff] %vm333, %v2478
      %2511 = vst.msk [vmem:[#allocation3 + $0x28] sm:$0xff] %vm333, %v2479
      %2512 = vst.msk [vmem:[#allocation3 + $0x30] sm:$0xff] %vm333, %v2480
      %2513 = vst.msk [vmem:[#allocation3 + $0x38] sm:$0xff] %vm333, %v2481
      %2514 = vst.msk [vmem:[#allocation3 + $0x40] sm:$0xff] %vm333, %v2482
      %2515 = vst.msk [vmem:[#allocation3 + $0x48] sm:$0xff] %vm333, %v2483
      %2516 = vst.msk [vmem:[#allocation3 + $0x50] sm:$0xff] %vm333, %v2484
      %2517 = vst.msk [vmem:[#allocation3 + $0x58] sm:$0xff] %vm333, %v2485
      %2518 = vst.msk [vmem:[#allocation3 + $0x60] sm:$0xff] %vm333, %v2486
      %2519 = vst.msk [vmem:[#allocation3 + $0x68] sm:$0xff] %vm333, %v2487
      %2520 = vst.msk [vmem:[#allocation3 + $0x70] sm:$0xff] %vm333, %v2488
      %2521 = vst.msk [vmem:[#allocation3 + $0x78] sm:$0xff] %vm333, %v2489
      %2522 = vst.msk [vmem:[#allocation3 + $0x80] sm:$0xff] %vm333, %v2490
      %2523 = vst.msk [vmem:[#allocation3 + $0x88] sm:$0xff] %vm333, %v2491
      %2524 = vst.msk [vmem:[#allocation3 + $0x90] sm:$0xff] %vm333, %v2492
      %2525 = vst.msk [vmem:[#allocation3 + $0x98] sm:$0xff] %vm333, %v2493
      %2526 = vst.msk [vmem:[#allocation3 + $0xa0] sm:$0xff] %vm333, %v2494
      %2527 = vst.msk [vmem:[#allocation3 + $0xa8] sm:$0xff] %vm333, %v2495
      %2528 = vst.msk [vmem:[#allocation3 + $0xb0] sm:$0xff] %vm333, %v2496
      %2529 = vst.msk [vmem:[#allocation3 + $0xb8] sm:$0xff] %vm333, %v2497
      %2530 = vst.msk [vmem:[#allocation3 + $0xc0] sm:$0xff] %vm333, %v2498
      %2531 = vst.msk [vmem:[#allocation3 + $0xc8] sm:$0xff] %vm333, %v2499
      %2532 = vst.msk [vmem:[#allocation3 + $0xd0] sm:$0xff] %vm333, %v2500
      %2533 = vst.msk [vmem:[#allocation3 + $0xd8] sm:$0xff] %vm333, %v2501
      %2534 = vst.msk [vmem:[#allocation3 + $0xe0] sm:$0xff] %vm333, %v2502
      %2535 = vst.msk [vmem:[#allocation3 + $0xe8] sm:$0xff] %vm333, %v2503
      %2536 = vst.msk [vmem:[#allocation3 + $0xf0] sm:$0xff] %vm333, %v2504
      %2537 = vst.msk [vmem:[#allocation3 + $0xf8] sm:$0xff] %vm333, %v2505
      %s2538 = scalar_lea.vmem [#allocation2], 48
      %v2539 = vld [vmem:[%s2538] sm:$0xff]
      %v2540 = vld [vmem:[%s2538 + $0x8] sm:$0xff]
      %v2541 = vld [vmem:[%s2538 + $0x18] sm:$0xff]
      %v2542 = vld [vmem:[%s2538 + $0x20] sm:$0xff]
      %v2543 = vld [vmem:[%s2538 + $0x30] sm:$0xff]
      %v2544 = vld [vmem:[%s2538 + $0x38] sm:$0xff]
      %v2545 = vld [vmem:[%s2538 + $0x48] sm:$0xff]
      %v2546 = vld [vmem:[%s2538 + $0x50] sm:$0xff]
      %v2547 = vld [vmem:[%s2538 + $0x60] sm:$0xff]
      %v2548 = vld [vmem:[%s2538 + $0x68] sm:$0xff]
      %v2549 = vld [vmem:[%s2538 + $0x78] sm:$0xff]
      %v2550 = vld [vmem:[%s2538 + $0x80] sm:$0xff]
      %v2551 = vld [vmem:[%s2538 + $0x90] sm:$0xff]
      %v2552 = vld [vmem:[%s2538 + $0x98] sm:$0xff]
      %v2553 = vld [vmem:[%s2538 + $0xa8] sm:$0xff]
      %v2554 = vld [vmem:[%s2538 + $0xb0] sm:$0xff]
      %v2555 = vld [vmem:[%s2538 + $0xc0] sm:$0xff]
      %v2556 = vld [vmem:[%s2538 + $0xc8] sm:$0xff]
      %v2557 = vld [vmem:[%s2538 + $0xd8] sm:$0xff]
      %v2558 = vld [vmem:[%s2538 + $0xe0] sm:$0xff]
      %v2559 = vld [vmem:[%s2538 + $0xf0] sm:$0xff]
      %v2560 = vld [vmem:[%s2538 + $0xf8] sm:$0xff]
      %v2561 = vld [vmem:[%s2538 + $0x108] sm:$0xff]
      %v2562 = vld [vmem:[%s2538 + $0x110] sm:$0xff]
      %v2563 = vld [vmem:[%s2538 + $0x120] sm:$0xff]
      %v2564 = vld [vmem:[%s2538 + $0x128] sm:$0xff]
      %v2565 = vld [vmem:[%s2538 + $0x138] sm:$0xff]
      %v2566 = vld [vmem:[%s2538 + $0x140] sm:$0xff]
      %v2567 = vld [vmem:[%s2538 + $0x150] sm:$0xff]
      %v2568 = vld [vmem:[%s2538 + $0x158] sm:$0xff]
      %v2569 = vld [vmem:[%s2538 + $0x168] sm:$0xff]
      %v2570 = vld [vmem:[%s2538 + $0x170] sm:$0xff]
      %v2571 = vld [vmem:[#allocation3] sm:$0xff]
      %v2572 = vld [vmem:[#allocation3 + $0x8] sm:$0xff]
      %v2573 = vld [vmem:[#allocation3 + $0x10] sm:$0xff]
      %v2574 = vld [vmem:[#allocation3 + $0x18] sm:$0xff]
      %v2575 = vld [vmem:[#allocation3 + $0x20] sm:$0xff]
      %v2576 = vld [vmem:[#allocation3 + $0x28] sm:$0xff]
      %v2577 = vld [vmem:[#allocation3 + $0x30] sm:$0xff]
      %v2578 = vld [vmem:[#allocation3 + $0x38] sm:$0xff]
      %v2579 = vld [vmem:[#allocation3 + $0x40] sm:$0xff]
      %v2580 = vld [vmem:[#allocation3 + $0x48] sm:$0xff]
      %v2581 = vld [vmem:[#allocation3 + $0x50] sm:$0xff]
      %v2582 = vld [vmem:[#allocation3 + $0x58] sm:$0xff]
      %v2583 = vld [vmem:[#allocation3 + $0x60] sm:$0xff]
      %v2584 = vld [vmem:[#allocation3 + $0x68] sm:$0xff]
      %v2585 = vld [vmem:[#allocation3 + $0x70] sm:$0xff]
      %v2586 = vld [vmem:[#allocation3 + $0x78] sm:$0xff]
      %v2587 = vld [vmem:[#allocation3 + $0x80] sm:$0xff]
      %v2588 = vld [vmem:[#allocation3 + $0x88] sm:$0xff]
      %v2589 = vld [vmem:[#allocation3 + $0x90] sm:$0xff]
      %v2590 = vld [vmem:[#allocation3 + $0x98] sm:$0xff]
      %v2591 = vld [vmem:[#allocation3 + $0xa0] sm:$0xff]
      %v2592 = vld [vmem:[#allocation3 + $0xa8] sm:$0xff]
      %v2593 = vld [vmem:[#allocation3 + $0xb0] sm:$0xff]
      %v2594 = vld [vmem:[#allocation3 + $0xb8] sm:$0xff]
      %v2595 = vld [vmem:[#allocation3 + $0xc0] sm:$0xff]
      %v2596 = vld [vmem:[#allocation3 + $0xc8] sm:$0xff]
      %v2597 = vld [vmem:[#allocation3 + $0xd0] sm:$0xff]
      %v2598 = vld [vmem:[#allocation3 + $0xd8] sm:$0xff]
      %v2599 = vld [vmem:[#allocation3 + $0xe0] sm:$0xff]
      %v2600 = vld [vmem:[#allocation3 + $0xe8] sm:$0xff]
      %v2601 = vld [vmem:[#allocation3 + $0xf0] sm:$0xff]
      %v2602 = vld [vmem:[#allocation3 + $0xf8] sm:$0xff]
      %s2603 = scalar_lea.vmem %s1, 24
      %v2604 = vld [vmem:[%s2603] sm:$0xf]
      %v2606 = vsel %vm333, %v2539, 0
      %v2609 = vsel %vm333, %v2540, 0
      %v2612 = vsel %vm333, %v2541, 0
      %v2615 = vsel %vm333, %v2542, 0
      %v2618 = vsel %vm333, %v2543, 0
      %v2621 = vsel %vm333, %v2544, 0
      %v2624 = vsel %vm333, %v2545, 0
      %v2627 = vsel %vm333, %v2546, 0
      %v2630 = vsel %vm333, %v2547, 0
      %v2633 = vsel %vm333, %v2548, 0
      %v2636 = vsel %vm333, %v2549, 0
      %v2639 = vsel %vm333, %v2550, 0
      %v2642 = vsel %vm333, %v2551, 0
      %v2645 = vsel %vm333, %v2552, 0
      %v2648 = vsel %vm333, %v2553, 0
      %v2651 = vsel %vm333, %v2554, 0
      %v2654 = vsel %vm333, %v2555, 0
      %v2657 = vsel %vm333, %v2556, 0
      %v2660 = vsel %vm333, %v2557, 0
      %v2663 = vsel %vm333, %v2558, 0
      %v2666 = vsel %vm333, %v2559, 0
      %v2669 = vsel %vm333, %v2560, 0
      %v2672 = vsel %vm333, %v2561, 0
      %v2675 = vsel %vm333, %v2562, 0
      %v2678 = vsel %vm333, %v2563, 0
      %v2681 = vsel %vm333, %v2564, 0
      %v2684 = vsel %vm333, %v2565, 0
      %v2687 = vsel %vm333, %v2566, 0
      %v2690 = vsel %vm333, %v2567, 0
      %v2693 = vsel %vm333, %v2568, 0
      %v2696 = vsel %vm333, %v2569, 0
      %v2699 = vsel %vm333, %v2570, 0
      %v2702 = vsel %vm647, %v2604, 0
      %2704 = vmatpush.msra.mxu0 0.0
      %2705 = vmatpush.msra.mxu0 0.0
      %2706 = vmatpush.msra.mxu0 0.0
      %2707 = vmatpush.msra.mxu0 0.0
      %2708 = vmatpush.msra.mxu0 0.0
      %2709 = vmatpush.msra.mxu0 0.0
      %2710 = vmatpush.msra.mxu0 0.0
      %2711 = vmatpush.msra.mxu0 0.0
      %2712 = vmatpush.msra.mxu0 0.0
      %2713 = vmatpush.msra.mxu0 0.0
      %2714 = vmatpush.msra.mxu0 0.0
      %2715 = vmatpush.msra.mxu0 0.0
      %2716 = vmatpush.msra.mxu0 0.0
      %2717 = vmatpush.msra.mxu0 0.0
      %2718 = vmatpush.msra.mxu0 0.0
      %2719 = vmatpush.msra.mxu0 %v2702
      %2720 = vmatmul.f32.gmra.mxu0 %v2606
      %v2721 = vpop.f32.mrf.mxu0
      %v2722 = vadd.f32 0.0, %v2721
      %2723 = vmatmul.f32.gmra.mxu0 %v2609
      %v2724 = vpop.f32.mrf.mxu0
      %v2725 = vadd.f32 0.0, %v2724
      %2726 = vmatmul.f32.gmra.mxu0 %v2612
      %v2727 = vpop.f32.mrf.mxu0
      %v2728 = vadd.f32 0.0, %v2727
      %2729 = vmatmul.f32.gmra.mxu0 %v2615
      %v2730 = vpop.f32.mrf.mxu0
      %v2731 = vadd.f32 0.0, %v2730
      %2732 = vmatmul.f32.gmra.mxu0 %v2618
      %v2733 = vpop.f32.mrf.mxu0
      %v2734 = vadd.f32 0.0, %v2733
      %2735 = vmatmul.f32.gmra.mxu0 %v2621
      %v2736 = vpop.f32.mrf.mxu0
      %v2737 = vadd.f32 0.0, %v2736
      %2738 = vmatmul.f32.gmra.mxu0 %v2624
      %v2739 = vpop.f32.mrf.mxu0
      %v2740 = vadd.f32 0.0, %v2739
      %2741 = vmatmul.f32.gmra.mxu0 %v2627
      %v2742 = vpop.f32.mrf.mxu0
      %v2743 = vadd.f32 0.0, %v2742
      %2744 = vmatmul.f32.gmra.mxu0 %v2630
      %v2745 = vpop.f32.mrf.mxu0
      %v2746 = vadd.f32 0.0, %v2745
      %2747 = vmatmul.f32.gmra.mxu0 %v2633
      %v2748 = vpop.f32.mrf.mxu0
      %v2749 = vadd.f32 0.0, %v2748
      %2750 = vmatmul.f32.gmra.mxu0 %v2636
      %v2751 = vpop.f32.mrf.mxu0
      %v2752 = vadd.f32 0.0, %v2751
      %2753 = vmatmul.f32.gmra.mxu0 %v2639
      %v2754 = vpop.f32.mrf.mxu0
      %v2755 = vadd.f32 0.0, %v2754
      %2756 = vmatmul.f32.gmra.mxu0 %v2642
      %v2757 = vpop.f32.mrf.mxu0
      %v2758 = vadd.f32 0.0, %v2757
      %2759 = vmatmul.f32.gmra.mxu0 %v2645
      %v2760 = vpop.f32.mrf.mxu0
      %v2761 = vadd.f32 0.0, %v2760
      %2762 = vmatmul.f32.gmra.mxu0 %v2648
      %v2763 = vpop.f32.mrf.mxu0
      %v2764 = vadd.f32 0.0, %v2763
      %2765 = vmatmul.f32.gmra.mxu0 %v2651
      %v2766 = vpop.f32.mrf.mxu0
      %v2767 = vadd.f32 0.0, %v2766
      %2768 = vmatmul.f32.gmra.mxu0 %v2654
      %v2769 = vpop.f32.mrf.mxu0
      %v2770 = vadd.f32 0.0, %v2769
      %2771 = vmatmul.f32.gmra.mxu0 %v2657
      %v2772 = vpop.f32.mrf.mxu0
      %v2773 = vadd.f32 0.0, %v2772
      %2774 = vmatmul.f32.gmra.mxu0 %v2660
      %v2775 = vpop.f32.mrf.mxu0
      %v2776 = vadd.f32 0.0, %v2775
      %2777 = vmatmul.f32.gmra.mxu0 %v2663
      %v2778 = vpop.f32.mrf.mxu0
      %v2779 = vadd.f32 0.0, %v2778
      %2780 = vmatmul.f32.gmra.mxu0 %v2666
      %v2781 = vpop.f32.mrf.mxu0
      %v2782 = vadd.f32 0.0, %v2781
      %2783 = vmatmul.f32.gmra.mxu0 %v2669
      %v2784 = vpop.f32.mrf.mxu0
      %v2785 = vadd.f32 0.0, %v2784
      %2786 = vmatmul.f32.gmra.mxu0 %v2672
      %v2787 = vpop.f32.mrf.mxu0
      %v2788 = vadd.f32 0.0, %v2787
      %2789 = vmatmul.f32.gmra.mxu0 %v2675
      %v2790 = vpop.f32.mrf.mxu0
      %v2791 = vadd.f32 0.0, %v2790
      %2792 = vmatmul.f32.gmra.mxu0 %v2678
      %v2793 = vpop.f32.mrf.mxu0
      %v2794 = vadd.f32 0.0, %v2793
      %2795 = vmatmul.f32.gmra.mxu0 %v2681
      %v2796 = vpop.f32.mrf.mxu0
      %v2797 = vadd.f32 0.0, %v2796
      %2798 = vmatmul.f32.gmra.mxu0 %v2684
      %v2799 = vpop.f32.mrf.mxu0
      %v2800 = vadd.f32 0.0, %v2799
      %2801 = vmatmul.f32.gmra.mxu0 %v2687
      %v2802 = vpop.f32.mrf.mxu0
      %v2803 = vadd.f32 0.0, %v2802
      %2804 = vmatmul.f32.gmra.mxu0 %v2690
      %v2805 = vpop.f32.mrf.mxu0
      %v2806 = vadd.f32 0.0, %v2805
      %2807 = vmatmul.f32.gmra.mxu0 %v2693
      %v2808 = vpop.f32.mrf.mxu0
      %v2809 = vadd.f32 0.0, %v2808
      %2810 = vmatmul.f32.gmra.mxu0 %v2696
      %v2811 = vpop.f32.mrf.mxu0
      %v2812 = vadd.f32 0.0, %v2811
      %2813 = vmatmul.f32.gmra.mxu0 %v2699
      %v2814 = vpop.f32.mrf.mxu0
      %v2815 = vadd.f32 0.0, %v2814
      %2816 = vdwg.mxu0
      %v2817 = vadd.f32 %v2571, %v2722
      %v2818 = vadd.f32 %v2572, %v2725
      %v2819 = vadd.f32 %v2573, %v2728
      %v2820 = vadd.f32 %v2574, %v2731
      %v2821 = vadd.f32 %v2575, %v2734
      %v2822 = vadd.f32 %v2576, %v2737
      %v2823 = vadd.f32 %v2577, %v2740
      %v2824 = vadd.f32 %v2578, %v2743
      %v2825 = vadd.f32 %v2579, %v2746
      %v2826 = vadd.f32 %v2580, %v2749
      %v2827 = vadd.f32 %v2581, %v2752
      %v2828 = vadd.f32 %v2582, %v2755
      %v2829 = vadd.f32 %v2583, %v2758
      %v2830 = vadd.f32 %v2584, %v2761
      %v2831 = vadd.f32 %v2585, %v2764
      %v2832 = vadd.f32 %v2586, %v2767
      %v2833 = vadd.f32 %v2587, %v2770
      %v2834 = vadd.f32 %v2588, %v2773
      %v2835 = vadd.f32 %v2589, %v2776
      %v2836 = vadd.f32 %v2590, %v2779
      %v2837 = vadd.f32 %v2591, %v2782
      %v2838 = vadd.f32 %v2592, %v2785
      %v2839 = vadd.f32 %v2593, %v2788
      %v2840 = vadd.f32 %v2594, %v2791
      %v2841 = vadd.f32 %v2595, %v2794
      %v2842 = vadd.f32 %v2596, %v2797
      %v2843 = vadd.f32 %v2597, %v2800
      %v2844 = vadd.f32 %v2598, %v2803
      %v2845 = vadd.f32 %v2599, %v2806
      %v2846 = vadd.f32 %v2600, %v2809
      %v2847 = vadd.f32 %v2601, %v2812
      %v2848 = vadd.f32 %v2602, %v2815
      %2849 = vst.msk [vmem:[#allocation3] sm:$0xff] %vm333, %v2817
      %2850 = vst.msk [vmem:[#allocation3 + $0x8] sm:$0xff] %vm333, %v2818
      %2851 = vst.msk [vmem:[#allocation3 + $0x10] sm:$0xff] %vm333, %v2819
      %2852 = vst.msk [vmem:[#allocation3 + $0x18] sm:$0xff] %vm333, %v2820
      %2853 = vst.msk [vmem:[#allocation3 + $0x20] sm:$0xff] %vm333, %v2821
      %2854 = vst.msk [vmem:[#allocation3 + $0x28] sm:$0xff] %vm333, %v2822
      %2855 = vst.msk [vmem:[#allocation3 + $0x30] sm:$0xff] %vm333, %v2823
      %2856 = vst.msk [vmem:[#allocation3 + $0x38] sm:$0xff] %vm333, %v2824
      %2857 = vst.msk [vmem:[#allocation3 + $0x40] sm:$0xff] %vm333, %v2825
      %2858 = vst.msk [vmem:[#allocation3 + $0x48] sm:$0xff] %vm333, %v2826
      %2859 = vst.msk [vmem:[#allocation3 + $0x50] sm:$0xff] %vm333, %v2827
      %2860 = vst.msk [vmem:[#allocation3 + $0x58] sm:$0xff] %vm333, %v2828
      %2861 = vst.msk [vmem:[#allocation3 + $0x60] sm:$0xff] %vm333, %v2829
      %2862 = vst.msk [vmem:[#allocation3 + $0x68] sm:$0xff] %vm333, %v2830
      %2863 = vst.msk [vmem:[#allocation3 + $0x70] sm:$0xff] %vm333, %v2831
      %2864 = vst.msk [vmem:[#allocation3 + $0x78] sm:$0xff] %vm333, %v2832
      %2865 = vst.msk [vmem:[#allocation3 + $0x80] sm:$0xff] %vm333, %v2833
      %2866 = vst.msk [vmem:[#allocation3 + $0x88] sm:$0xff] %vm333, %v2834
      %2867 = vst.msk [vmem:[#allocation3 + $0x90] sm:$0xff] %vm333, %v2835
      %2868 = vst.msk [vmem:[#allocation3 + $0x98] sm:$0xff] %vm333, %v2836
      %2869 = vst.msk [vmem:[#allocation3 + $0xa0] sm:$0xff] %vm333, %v2837
      %2870 = vst.msk [vmem:[#allocation3 + $0xa8] sm:$0xff] %vm333, %v2838
      %2871 = vst.msk [vmem:[#allocation3 + $0xb0] sm:$0xff] %vm333, %v2839
      %2872 = vst.msk [vmem:[#allocation3 + $0xb8] sm:$0xff] %vm333, %v2840
      %2873 = vst.msk [vmem:[#allocation3 + $0xc0] sm:$0xff] %vm333, %v2841
      %2874 = vst.msk [vmem:[#allocation3 + $0xc8] sm:$0xff] %vm333, %v2842
      %2875 = vst.msk [vmem:[#allocation3 + $0xd0] sm:$0xff] %vm333, %v2843
      %2876 = vst.msk [vmem:[#allocation3 + $0xd8] sm:$0xff] %vm333, %v2844
      %2877 = vst.msk [vmem:[#allocation3 + $0xe0] sm:$0xff] %vm333, %v2845
      %2878 = vst.msk [vmem:[#allocation3 + $0xe8] sm:$0xff] %vm333, %v2846
      %2879 = vst.msk [vmem:[#allocation3 + $0xf0] sm:$0xff] %vm333, %v2847
      %2880 = vst.msk [vmem:[#allocation3 + $0xf8] sm:$0xff] %vm333, %v2848
      %v2881 = vld [vmem:[%s2538 + $0x1] sm:$0xff]
      %v2882 = vld [vmem:[%s2538 + $0x9] sm:$0xff]
      %v2883 = vld [vmem:[%s2538 + $0x19] sm:$0xff]
      %v2884 = vld [vmem:[%s2538 + $0x21] sm:$0xff]
      %v2885 = vld [vmem:[%s2538 + $0x31] sm:$0xff]
      %v2886 = vld [vmem:[%s2538 + $0x39] sm:$0xff]
      %v2887 = vld [vmem:[%s2538 + $0x49] sm:$0xff]
      %v2888 = vld [vmem:[%s2538 + $0x51] sm:$0xff]
      %v2889 = vld [vmem:[%s2538 + $0x61] sm:$0xff]
      %v2890 = vld [vmem:[%s2538 + $0x69] sm:$0xff]
      %v2891 = vld [vmem:[%s2538 + $0x79] sm:$0xff]
      %v2892 = vld [vmem:[%s2538 + $0x81] sm:$0xff]
      %v2893 = vld [vmem:[%s2538 + $0x91] sm:$0xff]
      %v2894 = vld [vmem:[%s2538 + $0x99] sm:$0xff]
      %v2895 = vld [vmem:[%s2538 + $0xa9] sm:$0xff]
      %v2896 = vld [vmem:[%s2538 + $0xb1] sm:$0xff]
      %v2897 = vld [vmem:[%s2538 + $0xc1] sm:$0xff]
      %v2898 = vld [vmem:[%s2538 + $0xc9] sm:$0xff]
      %v2899 = vld [vmem:[%s2538 + $0xd9] sm:$0xff]
      %v2900 = vld [vmem:[%s2538 + $0xe1] sm:$0xff]
      %v2901 = vld [vmem:[%s2538 + $0xf1] sm:$0xff]
      %v2902 = vld [vmem:[%s2538 + $0xf9] sm:$0xff]
      %v2903 = vld [vmem:[%s2538 + $0x109] sm:$0xff]
      %v2904 = vld [vmem:[%s2538 + $0x111] sm:$0xff]
      %v2905 = vld [vmem:[%s2538 + $0x121] sm:$0xff]
      %v2906 = vld [vmem:[%s2538 + $0x129] sm:$0xff]
      %v2907 = vld [vmem:[%s2538 + $0x139] sm:$0xff]
      %v2908 = vld [vmem:[%s2538 + $0x141] sm:$0xff]
      %v2909 = vld [vmem:[%s2538 + $0x151] sm:$0xff]
      %v2910 = vld [vmem:[%s2538 + $0x159] sm:$0xff]
      %v2911 = vld [vmem:[%s2538 + $0x169] sm:$0xff]
      %v2912 = vld [vmem:[%s2538 + $0x171] sm:$0xff]
      %v2913 = vld [vmem:[#allocation3] sm:$0xff]
      %v2914 = vld [vmem:[#allocation3 + $0x8] sm:$0xff]
      %v2915 = vld [vmem:[#allocation3 + $0x10] sm:$0xff]
      %v2916 = vld [vmem:[#allocation3 + $0x18] sm:$0xff]
      %v2917 = vld [vmem:[#allocation3 + $0x20] sm:$0xff]
      %v2918 = vld [vmem:[#allocation3 + $0x28] sm:$0xff]
      %v2919 = vld [vmem:[#allocation3 + $0x30] sm:$0xff]
      %v2920 = vld [vmem:[#allocation3 + $0x38] sm:$0xff]
      %v2921 = vld [vmem:[#allocation3 + $0x40] sm:$0xff]
      %v2922 = vld [vmem:[#allocation3 + $0x48] sm:$0xff]
      %v2923 = vld [vmem:[#allocation3 + $0x50] sm:$0xff]
      %v2924 = vld [vmem:[#allocation3 + $0x58] sm:$0xff]
      %v2925 = vld [vmem:[#allocation3 + $0x60] sm:$0xff]
      %v2926 = vld [vmem:[#allocation3 + $0x68] sm:$0xff]
      %v2927 = vld [vmem:[#allocation3 + $0x70] sm:$0xff]
      %v2928 = vld [vmem:[#allocation3 + $0x78] sm:$0xff]
      %v2929 = vld [vmem:[#allocation3 + $0x80] sm:$0xff]
      %v2930 = vld [vmem:[#allocation3 + $0x88] sm:$0xff]
      %v2931 = vld [vmem:[#allocation3 + $0x90] sm:$0xff]
      %v2932 = vld [vmem:[#allocation3 + $0x98] sm:$0xff]
      %v2933 = vld [vmem:[#allocation3 + $0xa0] sm:$0xff]
      %v2934 = vld [vmem:[#allocation3 + $0xa8] sm:$0xff]
      %v2935 = vld [vmem:[#allocation3 + $0xb0] sm:$0xff]
      %v2936 = vld [vmem:[#allocation3 + $0xb8] sm:$0xff]
      %v2937 = vld [vmem:[#allocation3 + $0xc0] sm:$0xff]
      %v2938 = vld [vmem:[#allocation3 + $0xc8] sm:$0xff]
      %v2939 = vld [vmem:[#allocation3 + $0xd0] sm:$0xff]
      %v2940 = vld [vmem:[#allocation3 + $0xd8] sm:$0xff]
      %v2941 = vld [vmem:[#allocation3 + $0xe0] sm:$0xff]
      %v2942 = vld [vmem:[#allocation3 + $0xe8] sm:$0xff]
      %v2943 = vld [vmem:[#allocation3 + $0xf0] sm:$0xff]
      %v2944 = vld [vmem:[#allocation3 + $0xf8] sm:$0xff]
      %s2945 = scalar_lea.vmem %s1, 28
      %v2946 = vld [vmem:[%s2945] sm:$0xf]
      %v2948 = vsel %vm333, %v2881, 0
      %v2951 = vsel %vm333, %v2882, 0
      %v2954 = vsel %vm333, %v2883, 0
      %v2957 = vsel %vm333, %v2884, 0
      %v2960 = vsel %vm333, %v2885, 0
      %v2963 = vsel %vm333, %v2886, 0
      %v2966 = vsel %vm333, %v2887, 0
      %v2969 = vsel %vm333, %v2888, 0
      %v2972 = vsel %vm333, %v2889, 0
      %v2975 = vsel %vm333, %v2890, 0
      %v2978 = vsel %vm333, %v2891, 0
      %v2981 = vsel %vm333, %v2892, 0
      %v2984 = vsel %vm333, %v2893, 0
      %v2987 = vsel %vm333, %v2894, 0
      %v2990 = vsel %vm333, %v2895, 0
      %v2993 = vsel %vm333, %v2896, 0
      %v2996 = vsel %vm333, %v2897, 0
      %v2999 = vsel %vm333, %v2898, 0
      %v3002 = vsel %vm333, %v2899, 0
      %v3005 = vsel %vm333, %v2900, 0
      %v3008 = vsel %vm333, %v2901, 0
      %v3011 = vsel %vm333, %v2902, 0
      %v3014 = vsel %vm333, %v2903, 0
      %v3017 = vsel %vm333, %v2904, 0
      %v3020 = vsel %vm333, %v2905, 0
      %v3023 = vsel %vm333, %v2906, 0
      %v3026 = vsel %vm333, %v2907, 0
      %v3029 = vsel %vm333, %v2908, 0
      %v3032 = vsel %vm333, %v2909, 0
      %v3035 = vsel %vm333, %v2910, 0
      %v3038 = vsel %vm333, %v2911, 0
      %v3041 = vsel %vm333, %v2912, 0
      %v3044 = vsel %vm647, %v2946, 0
      %3046 = vmatpush.msra.mxu0 0.0
      %3047 = vmatpush.msra.mxu0 0.0
      %3048 = vmatpush.msra.mxu0 0.0
      %3049 = vmatpush.msra.mxu0 0.0
      %3050 = vmatpush.msra.mxu0 0.0
      %3051 = vmatpush.msra.mxu0 0.0
      %3052 = vmatpush.msra.mxu0 0.0
      %3053 = vmatpush.msra.mxu0 0.0
      %3054 = vmatpush.msra.mxu0 0.0
      %3055 = vmatpush.msra.mxu0 0.0
      %3056 = vmatpush.msra.mxu0 0.0
      %3057 = vmatpush.msra.mxu0 0.0
      %3058 = vmatpush.msra.mxu0 0.0
      %3059 = vmatpush.msra.mxu0 0.0
      %3060 = vmatpush.msra.mxu0 0.0
      %3061 = vmatpush.msra.mxu0 %v3044
      %3062 = vmatmul.f32.gmra.mxu0 %v2948
      %v3063 = vpop.f32.mrf.mxu0
      %v3064 = vadd.f32 0.0, %v3063
      %3065 = vmatmul.f32.gmra.mxu0 %v2951
      %v3066 = vpop.f32.mrf.mxu0
      %v3067 = vadd.f32 0.0, %v3066
      %3068 = vmatmul.f32.gmra.mxu0 %v2954
      %v3069 = vpop.f32.mrf.mxu0
      %v3070 = vadd.f32 0.0, %v3069
      %3071 = vmatmul.f32.gmra.mxu0 %v2957
      %v3072 = vpop.f32.mrf.mxu0
      %v3073 = vadd.f32 0.0, %v3072
      %3074 = vmatmul.f32.gmra.mxu0 %v2960
      %v3075 = vpop.f32.mrf.mxu0
      %v3076 = vadd.f32 0.0, %v3075
      %3077 = vmatmul.f32.gmra.mxu0 %v2963
      %v3078 = vpop.f32.mrf.mxu0
      %v3079 = vadd.f32 0.0, %v3078
      %3080 = vmatmul.f32.gmra.mxu0 %v2966
      %v3081 = vpop.f32.mrf.mxu0
      %v3082 = vadd.f32 0.0, %v3081
      %3083 = vmatmul.f32.gmra.mxu0 %v2969
      %v3084 = vpop.f32.mrf.mxu0
      %v3085 = vadd.f32 0.0, %v3084
      %3086 = vmatmul.f32.gmra.mxu0 %v2972
      %v3087 = vpop.f32.mrf.mxu0
      %v3088 = vadd.f32 0.0, %v3087
      %3089 = vmatmul.f32.gmra.mxu0 %v2975
      %v3090 = vpop.f32.mrf.mxu0
      %v3091 = vadd.f32 0.0, %v3090
      %3092 = vmatmul.f32.gmra.mxu0 %v2978
      %v3093 = vpop.f32.mrf.mxu0
      %v3094 = vadd.f32 0.0, %v3093
      %3095 = vmatmul.f32.gmra.mxu0 %v2981
      %v3096 = vpop.f32.mrf.mxu0
      %v3097 = vadd.f32 0.0, %v3096
      %3098 = vmatmul.f32.gmra.mxu0 %v2984
      %v3099 = vpop.f32.mrf.mxu0
      %v3100 = vadd.f32 0.0, %v3099
      %3101 = vmatmul.f32.gmra.mxu0 %v2987
      %v3102 = vpop.f32.mrf.mxu0
      %v3103 = vadd.f32 0.0, %v3102
      %3104 = vmatmul.f32.gmra.mxu0 %v2990
      %v3105 = vpop.f32.mrf.mxu0
      %v3106 = vadd.f32 0.0, %v3105
      %3107 = vmatmul.f32.gmra.mxu0 %v2993
      %v3108 = vpop.f32.mrf.mxu0
      %v3109 = vadd.f32 0.0, %v3108
      %3110 = vmatmul.f32.gmra.mxu0 %v2996
      %v3111 = vpop.f32.mrf.mxu0
      %v3112 = vadd.f32 0.0, %v3111
      %3113 = vmatmul.f32.gmra.mxu0 %v2999
      %v3114 = vpop.f32.mrf.mxu0
      %v3115 = vadd.f32 0.0, %v3114
      %3116 = vmatmul.f32.gmra.mxu0 %v3002
      %v3117 = vpop.f32.mrf.mxu0
      %v3118 = vadd.f32 0.0, %v3117
      %3119 = vmatmul.f32.gmra.mxu0 %v3005
      %v3120 = vpop.f32.mrf.mxu0
      %v3121 = vadd.f32 0.0, %v3120
      %3122 = vmatmul.f32.gmra.mxu0 %v3008
      %v3123 = vpop.f32.mrf.mxu0
      %v3124 = vadd.f32 0.0, %v3123
      %3125 = vmatmul.f32.gmra.mxu0 %v3011
      %v3126 = vpop.f32.mrf.mxu0
      %v3127 = vadd.f32 0.0, %v3126
      %3128 = vmatmul.f32.gmra.mxu0 %v3014
      %v3129 = vpop.f32.mrf.mxu0
      %v3130 = vadd.f32 0.0, %v3129
      %3131 = vmatmul.f32.gmra.mxu0 %v3017
      %v3132 = vpop.f32.mrf.mxu0
      %v3133 = vadd.f32 0.0, %v3132
      %3134 = vmatmul.f32.gmra.mxu0 %v3020
      %v3135 = vpop.f32.mrf.mxu0
      %v3136 = vadd.f32 0.0, %v3135
      %3137 = vmatmul.f32.gmra.mxu0 %v3023
      %v3138 = vpop.f32.mrf.mxu0
      %v3139 = vadd.f32 0.0, %v3138
      %3140 = vmatmul.f32.gmra.mxu0 %v3026
      %v3141 = vpop.f32.mrf.mxu0
      %v3142 = vadd.f32 0.0, %v3141
      %3143 = vmatmul.f32.gmra.mxu0 %v3029
      %v3144 = vpop.f32.mrf.mxu0
      %v3145 = vadd.f32 0.0, %v3144
      %3146 = vmatmul.f32.gmra.mxu0 %v3032
      %v3147 = vpop.f32.mrf.mxu0
      %v3148 = vadd.f32 0.0, %v3147
      %3149 = vmatmul.f32.gmra.mxu0 %v3035
      %v3150 = vpop.f32.mrf.mxu0
      %v3151 = vadd.f32 0.0, %v3150
      %3152 = vmatmul.f32.gmra.mxu0 %v3038
      %v3153 = vpop.f32.mrf.mxu0
      %v3154 = vadd.f32 0.0, %v3153
      %3155 = vmatmul.f32.gmra.mxu0 %v3041
      %v3156 = vpop.f32.mrf.mxu0
      %v3157 = vadd.f32 0.0, %v3156
      %3158 = vdwg.mxu0
      %v3159 = vadd.f32 %v2913, %v3064
      %v3160 = vadd.f32 %v2914, %v3067
      %v3161 = vadd.f32 %v2915, %v3070
      %v3162 = vadd.f32 %v2916, %v3073
      %v3163 = vadd.f32 %v2917, %v3076
      %v3164 = vadd.f32 %v2918, %v3079
      %v3165 = vadd.f32 %v2919, %v3082
      %v3166 = vadd.f32 %v2920, %v3085
      %v3167 = vadd.f32 %v2921, %v3088
      %v3168 = vadd.f32 %v2922, %v3091
      %v3169 = vadd.f32 %v2923, %v3094
      %v3170 = vadd.f32 %v2924, %v3097
      %v3171 = vadd.f32 %v2925, %v3100
      %v3172 = vadd.f32 %v2926, %v3103
      %v3173 = vadd.f32 %v2927, %v3106
      %v3174 = vadd.f32 %v2928, %v3109
      %v3175 = vadd.f32 %v2929, %v3112
      %v3176 = vadd.f32 %v2930, %v3115
      %v3177 = vadd.f32 %v2931, %v3118
      %v3178 = vadd.f32 %v2932, %v3121
      %v3179 = vadd.f32 %v2933, %v3124
      %v3180 = vadd.f32 %v2934, %v3127
      %v3181 = vadd.f32 %v2935, %v3130
      %v3182 = vadd.f32 %v2936, %v3133
      %v3183 = vadd.f32 %v2937, %v3136
      %v3184 = vadd.f32 %v2938, %v3139
      %v3185 = vadd.f32 %v2939, %v3142
      %v3186 = vadd.f32 %v2940, %v3145
      %v3187 = vadd.f32 %v2941, %v3148
      %v3188 = vadd.f32 %v2942, %v3151
      %v3189 = vadd.f32 %v2943, %v3154
      %v3190 = vadd.f32 %v2944, %v3157
      %3191 = vst.msk [vmem:[#allocation3] sm:$0xff] %vm333, %v3159
      %3192 = vst.msk [vmem:[#allocation3 + $0x8] sm:$0xff] %vm333, %v3160
      %3193 = vst.msk [vmem:[#allocation3 + $0x10] sm:$0xff] %vm333, %v3161
      %3194 = vst.msk [vmem:[#allocation3 + $0x18] sm:$0xff] %vm333, %v3162
      %3195 = vst.msk [vmem:[#allocation3 + $0x20] sm:$0xff] %vm333, %v3163
      %3196 = vst.msk [vmem:[#allocation3 + $0x28] sm:$0xff] %vm333, %v3164
      %3197 = vst.msk [vmem:[#allocation3 + $0x30] sm:$0xff] %vm333, %v3165
      %3198 = vst.msk [vmem:[#allocation3 + $0x38] sm:$0xff] %vm333, %v3166
      %3199 = vst.msk [vmem:[#allocation3 + $0x40] sm:$0xff] %vm333, %v3167
      %3200 = vst.msk [vmem:[#allocation3 + $0x48] sm:$0xff] %vm333, %v3168
      %3201 = vst.msk [vmem:[#allocation3 + $0x50] sm:$0xff] %vm333, %v3169
      %3202 = vst.msk [vmem:[#allocation3 + $0x58] sm:$0xff] %vm333, %v3170
      %3203 = vst.msk [vmem:[#allocation3 + $0x60] sm:$0xff] %vm333, %v3171
      %3204 = vst.msk [vmem:[#allocation3 + $0x68] sm:$0xff] %vm333, %v3172
      %3205 = vst.msk [vmem:[#allocation3 + $0x70] sm:$0xff] %vm333, %v3173
      %3206 = vst.msk [vmem:[#allocation3 + $0x78] sm:$0xff] %vm333, %v3174
      %3207 = vst.msk [vmem:[#allocation3 + $0x80] sm:$0xff] %vm333, %v3175
      %3208 = vst.msk [vmem:[#allocation3 + $0x88] sm:$0xff] %vm333, %v3176
      %3209 = vst.msk [vmem:[#allocation3 + $0x90] sm:$0xff] %vm333, %v3177
      %3210 = vst.msk [vmem:[#allocation3 + $0x98] sm:$0xff] %vm333, %v3178
      %3211 = vst.msk [vmem:[#allocation3 + $0xa0] sm:$0xff] %vm333, %v3179
      %3212 = vst.msk [vmem:[#allocation3 + $0xa8] sm:$0xff] %vm333, %v3180
      %3213 = vst.msk [vmem:[#allocation3 + $0xb0] sm:$0xff] %vm333, %v3181
      %3214 = vst.msk [vmem:[#allocation3 + $0xb8] sm:$0xff] %vm333, %v3182
      %3215 = vst.msk [vmem:[#allocation3 + $0xc0] sm:$0xff] %vm333, %v3183
      %3216 = vst.msk [vmem:[#allocation3 + $0xc8] sm:$0xff] %vm333, %v3184
      %3217 = vst.msk [vmem:[#allocation3 + $0xd0] sm:$0xff] %vm333, %v3185
      %3218 = vst.msk [vmem:[#allocation3 + $0xd8] sm:$0xff] %vm333, %v3186
      %3219 = vst.msk [vmem:[#allocation3 + $0xe0] sm:$0xff] %vm333, %v3187
      %3220 = vst.msk [vmem:[#allocation3 + $0xe8] sm:$0xff] %vm333, %v3188
      %3221 = vst.msk [vmem:[#allocation3 + $0xf0] sm:$0xff] %vm333, %v3189
      %3222 = vst.msk [vmem:[#allocation3 + $0xf8] sm:$0xff] %vm333, %v3190
      %v3223 = vld [vmem:[%s2538 + $0x2] sm:$0xff]
      %v3224 = vld [vmem:[%s2538 + $0xa] sm:$0xff]
      %v3225 = vld [vmem:[%s2538 + $0x1a] sm:$0xff]
      %v3226 = vld [vmem:[%s2538 + $0x22] sm:$0xff]
      %v3227 = vld [vmem:[%s2538 + $0x32] sm:$0xff]
      %v3228 = vld [vmem:[%s2538 + $0x3a] sm:$0xff]
      %v3229 = vld [vmem:[%s2538 + $0x4a] sm:$0xff]
      %v3230 = vld [vmem:[%s2538 + $0x52] sm:$0xff]
      %v3231 = vld [vmem:[%s2538 + $0x62] sm:$0xff]
      %v3232 = vld [vmem:[%s2538 + $0x6a] sm:$0xff]
      %v3233 = vld [vmem:[%s2538 + $0x7a] sm:$0xff]
      %v3234 = vld [vmem:[%s2538 + $0x82] sm:$0xff]
      %v3235 = vld [vmem:[%s2538 + $0x92] sm:$0xff]
      %v3236 = vld [vmem:[%s2538 + $0x9a] sm:$0xff]
      %v3237 = vld [vmem:[%s2538 + $0xaa] sm:$0xff]
      %v3238 = vld [vmem:[%s2538 + $0xb2] sm:$0xff]
      %v3239 = vld [vmem:[%s2538 + $0xc2] sm:$0xff]
      %v3240 = vld [vmem:[%s2538 + $0xca] sm:$0xff]
      %v3241 = vld [vmem:[%s2538 + $0xda] sm:$0xff]
      %v3242 = vld [vmem:[%s2538 + $0xe2] sm:$0xff]
      %v3243 = vld [vmem:[%s2538 + $0xf2] sm:$0xff]
      %v3244 = vld [vmem:[%s2538 + $0xfa] sm:$0xff]
      %v3245 = vld [vmem:[%s2538 + $0x10a] sm:$0xff]
      %v3246 = vld [vmem:[%s2538 + $0x112] sm:$0xff]
      %v3247 = vld [vmem:[%s2538 + $0x122] sm:$0xff]
      %v3248 = vld [vmem:[%s2538 + $0x12a] sm:$0xff]
      %v3249 = vld [vmem:[%s2538 + $0x13a] sm:$0xff]
      %v3250 = vld [vmem:[%s2538 + $0x142] sm:$0xff]
      %v3251 = vld [vmem:[%s2538 + $0x152] sm:$0xff]
      %v3252 = vld [vmem:[%s2538 + $0x15a] sm:$0xff]
      %v3253 = vld [vmem:[%s2538 + $0x16a] sm:$0xff]
      %v3254 = vld [vmem:[%s2538 + $0x172] sm:$0xff]
      %v3255 = vld [vmem:[#allocation3] sm:$0xff]
      %v3256 = vld [vmem:[#allocation3 + $0x8] sm:$0xff]
      %v3257 = vld [vmem:[#allocation3 + $0x10] sm:$0xff]
      %v3258 = vld [vmem:[#allocation3 + $0x18] sm:$0xff]
      %v3259 = vld [vmem:[#allocation3 + $0x20] sm:$0xff]
      %v3260 = vld [vmem:[#allocation3 + $0x28] sm:$0xff]
      %v3261 = vld [vmem:[#allocation3 + $0x30] sm:$0xff]
      %v3262 = vld [vmem:[#allocation3 + $0x38] sm:$0xff]
      %v3263 = vld [vmem:[#allocation3 + $0x40] sm:$0xff]
      %v3264 = vld [vmem:[#allocation3 + $0x48] sm:$0xff]
      %v3265 = vld [vmem:[#allocation3 + $0x50] sm:$0xff]
      %v3266 = vld [vmem:[#allocation3 + $0x58] sm:$0xff]
      %v3267 = vld [vmem:[#allocation3 + $0x60] sm:$0xff]
      %v3268 = vld [vmem:[#allocation3 + $0x68] sm:$0xff]
      %v3269 = vld [vmem:[#allocation3 + $0x70] sm:$0xff]
      %v3270 = vld [vmem:[#allocation3 + $0x78] sm:$0xff]
      %v3271 = vld [vmem:[#allocation3 + $0x80] sm:$0xff]
      %v3272 = vld [vmem:[#allocation3 + $0x88] sm:$0xff]
      %v3273 = vld [vmem:[#allocation3 + $0x90] sm:$0xff]
      %v3274 = vld [vmem:[#allocation3 + $0x98] sm:$0xff]
      %v3275 = vld [vmem:[#allocation3 + $0xa0] sm:$0xff]
      %v3276 = vld [vmem:[#allocation3 + $0xa8] sm:$0xff]
      %v3277 = vld [vmem:[#allocation3 + $0xb0] sm:$0xff]
      %v3278 = vld [vmem:[#allocation3 + $0xb8] sm:$0xff]
      %v3279 = vld [vmem:[#allocation3 + $0xc0] sm:$0xff]
      %v3280 = vld [vmem:[#allocation3 + $0xc8] sm:$0xff]
      %v3281 = vld [vmem:[#allocation3 + $0xd0] sm:$0xff]
      %v3282 = vld [vmem:[#allocation3 + $0xd8] sm:$0xff]
      %v3283 = vld [vmem:[#allocation3 + $0xe0] sm:$0xff]
      %v3284 = vld [vmem:[#allocation3 + $0xe8] sm:$0xff]
      %v3285 = vld [vmem:[#allocation3 + $0xf0] sm:$0xff]
      %v3286 = vld [vmem:[#allocation3 + $0xf8] sm:$0xff]
      %s3287 = scalar_lea.vmem %s1, 32
      %v3288 = vld [vmem:[%s3287] sm:$0xf]
      %v3290 = vsel %vm333, %v3223, 0
      %v3293 = vsel %vm333, %v3224, 0
      %v3296 = vsel %vm333, %v3225, 0
      %v3299 = vsel %vm333, %v3226, 0
      %v3302 = vsel %vm333, %v3227, 0
      %v3305 = vsel %vm333, %v3228, 0
      %v3308 = vsel %vm333, %v3229, 0
      %v3311 = vsel %vm333, %v3230, 0
      %v3314 = vsel %vm333, %v3231, 0
      %v3317 = vsel %vm333, %v3232, 0
      %v3320 = vsel %vm333, %v3233, 0
      %v3323 = vsel %vm333, %v3234, 0
      %v3326 = vsel %vm333, %v3235, 0
      %v3329 = vsel %vm333, %v3236, 0
      %v3332 = vsel %vm333, %v3237, 0
      %v3335 = vsel %vm333, %v3238, 0
      %v3338 = vsel %vm333, %v3239, 0
      %v3341 = vsel %vm333, %v3240, 0
      %v3344 = vsel %vm333, %v3241, 0
      %v3347 = vsel %vm333, %v3242, 0
      %v3350 = vsel %vm333, %v3243, 0
      %v3353 = vsel %vm333, %v3244, 0
      %v3356 = vsel %vm333, %v3245, 0
      %v3359 = vsel %vm333, %v3246, 0
      %v3362 = vsel %vm333, %v3247, 0
      %v3365 = vsel %vm333, %v3248, 0
      %v3368 = vsel %vm333, %v3249, 0
      %v3371 = vsel %vm333, %v3250, 0
      %v3374 = vsel %vm333, %v3251, 0
      %v3377 = vsel %vm333, %v3252, 0
      %v3380 = vsel %vm333, %v3253, 0
      %v3383 = vsel %vm333, %v3254, 0
      %v3386 = vsel %vm647, %v3288, 0
      %3388 = vmatpush.msra.mxu0 0.0
      %3389 = vmatpush.msra.mxu0 0.0
      %3390 = vmatpush.msra.mxu0 0.0
      %3391 = vmatpush.msra.mxu0 0.0
      %3392 = vmatpush.msra.mxu0 0.0
      %3393 = vmatpush.msra.mxu0 0.0
      %3394 = vmatpush.msra.mxu0 0.0
      %3395 = vmatpush.msra.mxu0 0.0
      %3396 = vmatpush.msra.mxu0 0.0
      %3397 = vmatpush.msra.mxu0 0.0
      %3398 = vmatpush.msra.mxu0 0.0
      %3399 = vmatpush.msra.mxu0 0.0
      %3400 = vmatpush.msra.mxu0 0.0
      %3401 = vmatpush.msra.mxu0 0.0
      %3402 = vmatpush.msra.mxu0 0.0
      %3403 = vmatpush.msra.mxu0 %v3386
      %3404 = vmatmul.f32.gmra.mxu0 %v3290
      %v3405 = vpop.f32.mrf.mxu0
      %v3406 = vadd.f32 0.0, %v3405
      %3407 = vmatmul.f32.gmra.mxu0 %v3293
      %v3408 = vpop.f32.mrf.mxu0
      %v3409 = vadd.f32 0.0, %v3408
      %3410 = vmatmul.f32.gmra.mxu0 %v3296
      %v3411 = vpop.f32.mrf.mxu0
      %v3412 = vadd.f32 0.0, %v3411
      %3413 = vmatmul.f32.gmra.mxu0 %v3299
      %v3414 = vpop.f32.mrf.mxu0
      %v3415 = vadd.f32 0.0, %v3414
      %3416 = vmatmul.f32.gmra.mxu0 %v3302
      %v3417 = vpop.f32.mrf.mxu0
      %v3418 = vadd.f32 0.0, %v3417
      %3419 = vmatmul.f32.gmra.mxu0 %v3305
      %v3420 = vpop.f32.mrf.mxu0
      %v3421 = vadd.f32 0.0, %v3420
      %3422 = vmatmul.f32.gmra.mxu0 %v3308
      %v3423 = vpop.f32.mrf.mxu0
      %v3424 = vadd.f32 0.0, %v3423
      %3425 = vmatmul.f32.gmra.mxu0 %v3311
      %v3426 = vpop.f32.mrf.mxu0
      %v3427 = vadd.f32 0.0, %v3426
      %3428 = vmatmul.f32.gmra.mxu0 %v3314
      %v3429 = vpop.f32.mrf.mxu0
      %v3430 = vadd.f32 0.0, %v3429
      %3431 = vmatmul.f32.gmra.mxu0 %v3317
      %v3432 = vpop.f32.mrf.mxu0
      %v3433 = vadd.f32 0.0, %v3432
      %3434 = vmatmul.f32.gmra.mxu0 %v3320
      %v3435 = vpop.f32.mrf.mxu0
      %v3436 = vadd.f32 0.0, %v3435
      %3437 = vmatmul.f32.gmra.mxu0 %v3323
      %v3438 = vpop.f32.mrf.mxu0
      %v3439 = vadd.f32 0.0, %v3438
      %3440 = vmatmul.f32.gmra.mxu0 %v3326
      %v3441 = vpop.f32.mrf.mxu0
      %v3442 = vadd.f32 0.0, %v3441
      %3443 = vmatmul.f32.gmra.mxu0 %v3329
      %v3444 = vpop.f32.mrf.mxu0
      %v3445 = vadd.f32 0.0, %v3444
      %3446 = vmatmul.f32.gmra.mxu0 %v3332
      %v3447 = vpop.f32.mrf.mxu0
      %v3448 = vadd.f32 0.0, %v3447
      %3449 = vmatmul.f32.gmra.mxu0 %v3335
      %v3450 = vpop.f32.mrf.mxu0
      %v3451 = vadd.f32 0.0, %v3450
      %3452 = vmatmul.f32.gmra.mxu0 %v3338
      %v3453 = vpop.f32.mrf.mxu0
      %v3454 = vadd.f32 0.0, %v3453
      %3455 = vmatmul.f32.gmra.mxu0 %v3341
      %v3456 = vpop.f32.mrf.mxu0
      %v3457 = vadd.f32 0.0, %v3456
      %3458 = vmatmul.f32.gmra.mxu0 %v3344
      %v3459 = vpop.f32.mrf.mxu0
      %v3460 = vadd.f32 0.0, %v3459
      %3461 = vmatmul.f32.gmra.mxu0 %v3347
      %v3462 = vpop.f32.mrf.mxu0
      %v3463 = vadd.f32 0.0, %v3462
      %3464 = vmatmul.f32.gmra.mxu0 %v3350
      %v3465 = vpop.f32.mrf.mxu0
      %v3466 = vadd.f32 0.0, %v3465
      %3467 = vmatmul.f32.gmra.mxu0 %v3353
      %v3468 = vpop.f32.mrf.mxu0
      %v3469 = vadd.f32 0.0, %v3468
      %3470 = vmatmul.f32.gmra.mxu0 %v3356
      %v3471 = vpop.f32.mrf.mxu0
      %v3472 = vadd.f32 0.0, %v3471
      %3473 = vmatmul.f32.gmra.mxu0 %v3359
      %v3474 = vpop.f32.mrf.mxu0
      %v3475 = vadd.f32 0.0, %v3474
      %3476 = vmatmul.f32.gmra.mxu0 %v3362
      %v3477 = vpop.f32.mrf.mxu0
      %v3478 = vadd.f32 0.0, %v3477
      %3479 = vmatmul.f32.gmra.mxu0 %v3365
      %v3480 = vpop.f32.mrf.mxu0
      %v3481 = vadd.f32 0.0, %v3480
      %3482 = vmatmul.f32.gmra.mxu0 %v3368
      %v3483 = vpop.f32.mrf.mxu0
      %v3484 = vadd.f32 0.0, %v3483
      %3485 = vmatmul.f32.gmra.mxu0 %v3371
      %v3486 = vpop.f32.mrf.mxu0
      %v3487 = vadd.f32 0.0, %v3486
      %3488 = vmatmul.f32.gmra.mxu0 %v3374
      %v3489 = vpop.f32.mrf.mxu0
      %v3490 = vadd.f32 0.0, %v3489
      %3491 = vmatmul.f32.gmra.mxu0 %v3377
      %v3492 = vpop.f32.mrf.mxu0
      %v3493 = vadd.f32 0.0, %v3492
      %3494 = vmatmul.f32.gmra.mxu0 %v3380
      %v3495 = vpop.f32.mrf.mxu0
      %v3496 = vadd.f32 0.0, %v3495
      %3497 = vmatmul.f32.gmra.mxu0 %v3383
      %v3498 = vpop.f32.mrf.mxu0
      %v3499 = vadd.f32 0.0, %v3498
      %3500 = vdwg.mxu0
      %v3501 = vadd.f32 %v3255, %v3406
      %v3502 = vadd.f32 %v3256, %v3409
      %v3503 = vadd.f32 %v3257, %v3412
      %v3504 = vadd.f32 %v3258, %v3415
      %v3505 = vadd.f32 %v3259, %v3418
      %v3506 = vadd.f32 %v3260, %v3421
      %v3507 = vadd.f32 %v3261, %v3424
      %v3508 = vadd.f32 %v3262, %v3427
      %v3509 = vadd.f32 %v3263, %v3430
      %v3510 = vadd.f32 %v3264, %v3433
      %v3511 = vadd.f32 %v3265, %v3436
      %v3512 = vadd.f32 %v3266, %v3439
      %v3513 = vadd.f32 %v3267, %v3442
      %v3514 = vadd.f32 %v3268, %v3445
      %v3515 = vadd.f32 %v3269, %v3448
      %v3516 = vadd.f32 %v3270, %v3451
      %v3517 = vadd.f32 %v3271, %v3454
      %v3518 = vadd.f32 %v3272, %v3457
      %v3519 = vadd.f32 %v3273, %v3460
      %v3520 = vadd.f32 %v3274, %v3463
      %v3521 = vadd.f32 %v3275, %v3466
      %v3522 = vadd.f32 %v3276, %v3469
      %v3523 = vadd.f32 %v3277, %v3472
      %v3524 = vadd.f32 %v3278, %v3475
      %v3525 = vadd.f32 %v3279, %v3478
      %v3526 = vadd.f32 %v3280, %v3481
      %v3527 = vadd.f32 %v3281, %v3484
      %v3528 = vadd.f32 %v3282, %v3487
      %v3529 = vadd.f32 %v3283, %v3490
      %v3530 = vadd.f32 %v3284, %v3493
      %v3531 = vadd.f32 %v3285, %v3496
      %v3532 = vadd.f32 %v3286, %v3499
      %3533 = vst.msk [vmem:[#allocation3] sm:$0xff] %vm333, %v3501
      %3534 = vst.msk [vmem:[#allocation3 + $0x8] sm:$0xff] %vm333, %v3502
      %3535 = vst.msk [vmem:[#allocation3 + $0x10] sm:$0xff] %vm333, %v3503
      %3536 = vst.msk [vmem:[#allocation3 + $0x18] sm:$0xff] %vm333, %v3504
      %3537 = vst.msk [vmem:[#allocation3 + $0x20] sm:$0xff] %vm333, %v3505
      %3538 = vst.msk [vmem:[#allocation3 + $0x28] sm:$0xff] %vm333, %v3506
      %3539 = vst.msk [vmem:[#allocation3 + $0x30] sm:$0xff] %vm333, %v3507
      %3540 = vst.msk [vmem:[#allocation3 + $0x38] sm:$0xff] %vm333, %v3508
      %3541 = vst.msk [vmem:[#allocation3 + $0x40] sm:$0xff] %vm333, %v3509
      %3542 = vst.msk [vmem:[#allocation3 + $0x48] sm:$0xff] %vm333, %v3510
      %3543 = vst.msk [vmem:[#allocation3 + $0x50] sm:$0xff] %vm333, %v3511
      %3544 = vst.msk [vmem:[#allocation3 + $0x58] sm:$0xff] %vm333, %v3512
      %3545 = vst.msk [vmem:[#allocation3 + $0x60] sm:$0xff] %vm333, %v3513
      %3546 = vst.msk [vmem:[#allocation3 + $0x68] sm:$0xff] %vm333, %v3514
      %3547 = vst.msk [vmem:[#allocation3 + $0x70] sm:$0xff] %vm333, %v3515
      %3548 = vst.msk [vmem:[#allocation3 + $0x78] sm:$0xff] %vm333, %v3516
      %3549 = vst.msk [vmem:[#allocation3 + $0x80] sm:$0xff] %vm333, %v3517
      %3550 = vst.msk [vmem:[#allocation3 + $0x88] sm:$0xff] %vm333, %v3518
      %3551 = vst.msk [vmem:[#allocation3 + $0x90] sm:$0xff] %vm333, %v3519
      %3552 = vst.msk [vmem:[#allocation3 + $0x98] sm:$0xff] %vm333, %v3520
      %3553 = vst.msk [vmem:[#allocation3 + $0xa0] sm:$0xff] %vm333, %v3521
      %3554 = vst.msk [vmem:[#allocation3 + $0xa8] sm:$0xff] %vm333, %v3522
      %3555 = vst.msk [vmem:[#allocation3 + $0xb0] sm:$0xff] %vm333, %v3523
      %3556 = vst.msk [vmem:[#allocation3 + $0xb8] sm:$0xff] %vm333, %v3524
      %3557 = vst.msk [vmem:[#allocation3 + $0xc0] sm:$0xff] %vm333, %v3525
      %3558 = vst.msk [vmem:[#allocation3 + $0xc8] sm:$0xff] %vm333, %v3526
      %3559 = vst.msk [vmem:[#allocation3 + $0xd0] sm:$0xff] %vm333, %v3527
      %3560 = vst.msk [vmem:[#allocation3 + $0xd8] sm:$0xff] %vm333, %v3528
      %3561 = vst.msk [vmem:[#allocation3 + $0xe0] sm:$0xff] %vm333, %v3529
      %3562 = vst.msk [vmem:[#allocation3 + $0xe8] sm:$0xff] %vm333, %v3530
      %3563 = vst.msk [vmem:[#allocation3 + $0xf0] sm:$0xff] %vm333, %v3531
      %3564 = vst.msk [vmem:[#allocation3 + $0xf8] sm:$0xff] %vm333, %v3532
      %v3565 = vld [vmem:[#allocation3] sm:$0xff]
      %v3566 = vld [vmem:[#allocation3 + $0x8] sm:$0xff]
      %v3567 = vld [vmem:[#allocation3 + $0x10] sm:$0xff]
      %v3568 = vld [vmem:[#allocation3 + $0x18] sm:$0xff]
      %v3569 = vld [vmem:[#allocation3 + $0x20] sm:$0xff]
      %v3570 = vld [vmem:[#allocation3 + $0x28] sm:$0xff]
      %v3571 = vld [vmem:[#allocation3 + $0x30] sm:$0xff]
      %v3572 = vld [vmem:[#allocation3 + $0x38] sm:$0xff]
      %v3573 = vld [vmem:[#allocation3 + $0x40] sm:$0xff]
      %v3574 = vld [vmem:[#allocation3 + $0x48] sm:$0xff]
      %v3575 = vld [vmem:[#allocation3 + $0x50] sm:$0xff]
      %v3576 = vld [vmem:[#allocation3 + $0x58] sm:$0xff]
      %v3577 = vld [vmem:[#allocation3 + $0x60] sm:$0xff]
      %v3578 = vld [vmem:[#allocation3 + $0x68] sm:$0xff]
      %v3579 = vld [vmem:[#allocation3 + $0x70] sm:$0xff]
      %v3580 = vld [vmem:[#allocation3 + $0x78] sm:$0xff]
      %v3581 = vld [vmem:[#allocation3 + $0x80] sm:$0xff]
      %v3582 = vld [vmem:[#allocation3 + $0x88] sm:$0xff]
      %v3583 = vld [vmem:[#allocation3 + $0x90] sm:$0xff]
      %v3584 = vld [vmem:[#allocation3 + $0x98] sm:$0xff]
      %v3585 = vld [vmem:[#allocation3 + $0xa0] sm:$0xff]
      %v3586 = vld [vmem:[#allocation3 + $0xa8] sm:$0xff]
      %v3587 = vld [vmem:[#allocation3 + $0xb0] sm:$0xff]
      %v3588 = vld [vmem:[#allocation3 + $0xb8] sm:$0xff]
      %v3589 = vld [vmem:[#allocation3 + $0xc0] sm:$0xff]
      %v3590 = vld [vmem:[#allocation3 + $0xc8] sm:$0xff]
      %v3591 = vld [vmem:[#allocation3 + $0xd0] sm:$0xff]
      %v3592 = vld [vmem:[#allocation3 + $0xd8] sm:$0xff]
      %v3593 = vld [vmem:[#allocation3 + $0xe0] sm:$0xff]
      %v3594 = vld [vmem:[#allocation3 + $0xe8] sm:$0xff]
      %v3595 = vld [vmem:[#allocation3 + $0xf0] sm:$0xff]
      %v3596 = vld [vmem:[#allocation3 + $0xf8] sm:$0xff]
      %v3597 = vld [vmem:[%s2] sm:$0xf]
      %v3598 = vld [vmem:[%s3] sm:$0x1]
      %v3600 = vperm.slane %v3598, 0
      %v3603 = vsel %vm333, %v3565, 0
      %v3606 = vsel %vm333, %v3566, 0
      %v3609 = vsel %vm333, %v3567, 0
      %v3612 = vsel %vm333, %v3568, 0
      %v3615 = vsel %vm333, %v3569, 0
      %v3618 = vsel %vm333, %v3570, 0
      %v3621 = vsel %vm333, %v3571, 0
      %v3624 = vsel %vm333, %v3572, 0
      %v3627 = vsel %vm333, %v3573, 0
      %v3630 = vsel %vm333, %v3574, 0
      %v3633 = vsel %vm333, %v3575, 0
      %v3636 = vsel %vm333, %v3576, 0
      %v3639 = vsel %vm333, %v3577, 0
      %v3642 = vsel %vm333, %v3578, 0
      %v3645 = vsel %vm333, %v3579, 0
      %v3648 = vsel %vm333, %v3580, 0
      %v3651 = vsel %vm333, %v3581, 0
      %v3654 = vsel %vm333, %v3582, 0
      %v3657 = vsel %vm333, %v3583, 0
      %v3660 = vsel %vm333, %v3584, 0
      %v3663 = vsel %vm333, %v3585, 0
      %v3666 = vsel %vm333, %v3586, 0
      %v3669 = vsel %vm333, %v3587, 0
      %v3672 = vsel %vm333, %v3588, 0
      %v3675 = vsel %vm333, %v3589, 0
      %v3678 = vsel %vm333, %v3590, 0
      %v3681 = vsel %vm333, %v3591, 0
      %v3684 = vsel %vm333, %v3592, 0
      %v3687 = vsel %vm333, %v3593, 0
      %v3690 = vsel %vm333, %v3594, 0
      %v3693 = vsel %vm333, %v3595, 0
      %v3696 = vsel %vm333, %v3596, 0
      %v3699 = vsel %vm647, %v3597, 0
      %3701 = vmatpush.msra.mxu0 0.0
      %3702 = vmatpush.msra.mxu0 0.0
      %3703 = vmatpush.msra.mxu0 0.0
      %3704 = vmatpush.msra.mxu0 0.0
      %3705 = vmatpush.msra.mxu0 0.0
      %3706 = vmatpush.msra.mxu0 0.0
      %3707 = vmatpush.msra.mxu0 0.0
      %3708 = vmatpush.msra.mxu0 0.0
      %3709 = vmatpush.msra.mxu0 0.0
      %3710 = vmatpush.msra.mxu0 0.0
      %3711 = vmatpush.msra.mxu0 0.0
      %3712 = vmatpush.msra.mxu0 0.0
      %3713 = vmatpush.msra.mxu0 0.0
      %3714 = vmatpush.msra.mxu0 0.0
      %3715 = vmatpush.msra.mxu0 0.0
      %3716 = vmatpush.msra.mxu0 %v3699
      %3717 = vmatmul.f32.gmra.mxu0 %v3603
      %v3718 = vpop.f32.mrf.mxu0
      %v3719 = vadd.f32 %v3600, %v3718
      %3720 = vmatmul.f32.gmra.mxu0 %v3606
      %v3721 = vpop.f32.mrf.mxu0
      %v3722 = vadd.f32 %v3600, %v3721
      %3723 = vmatmul.f32.gmra.mxu0 %v3609
      %v3724 = vpop.f32.mrf.mxu0
      %v3725 = vadd.f32 %v3600, %v3724
      %3726 = vmatmul.f32.gmra.mxu0 %v3612
      %v3727 = vpop.f32.mrf.mxu0
      %v3728 = vadd.f32 %v3600, %v3727
      %3729 = vmatmul.f32.gmra.mxu0 %v3615
      %v3730 = vpop.f32.mrf.mxu0
      %v3731 = vadd.f32 %v3600, %v3730
      %3732 = vmatmul.f32.gmra.mxu0 %v3618
      %v3733 = vpop.f32.mrf.mxu0
      %v3734 = vadd.f32 %v3600, %v3733
      %3735 = vmatmul.f32.gmra.mxu0 %v3621
      %v3736 = vpop.f32.mrf.mxu0
      %v3737 = vadd.f32 %v3600, %v3736
      %3738 = vmatmul.f32.gmra.mxu0 %v3624
      %v3739 = vpop.f32.mrf.mxu0
      %v3740 = vadd.f32 %v3600, %v3739
      %3741 = vmatmul.f32.gmra.mxu0 %v3627
      %v3742 = vpop.f32.mrf.mxu0
      %v3743 = vadd.f32 %v3600, %v3742
      %3744 = vmatmul.f32.gmra.mxu0 %v3630
      %v3745 = vpop.f32.mrf.mxu0
      %v3746 = vadd.f32 %v3600, %v3745
      %3747 = vmatmul.f32.gmra.mxu0 %v3633
      %v3748 = vpop.f32.mrf.mxu0
      %v3749 = vadd.f32 %v3600, %v3748
      %3750 = vmatmul.f32.gmra.mxu0 %v3636
      %v3751 = vpop.f32.mrf.mxu0
      %v3752 = vadd.f32 %v3600, %v3751
      %3753 = vmatmul.f32.gmra.mxu0 %v3639
      %v3754 = vpop.f32.mrf.mxu0
      %v3755 = vadd.f32 %v3600, %v3754
      %3756 = vmatmul.f32.gmra.mxu0 %v3642
      %v3757 = vpop.f32.mrf.mxu0
      %v3758 = vadd.f32 %v3600, %v3757
      %3759 = vmatmul.f32.gmra.mxu0 %v3645
      %v3760 = vpop.f32.mrf.mxu0
      %v3761 = vadd.f32 %v3600, %v3760
      %3762 = vmatmul.f32.gmra.mxu0 %v3648
      %v3763 = vpop.f32.mrf.mxu0
      %v3764 = vadd.f32 %v3600, %v3763
      %3765 = vmatmul.f32.gmra.mxu0 %v3651
      %v3766 = vpop.f32.mrf.mxu0
      %v3767 = vadd.f32 %v3600, %v3766
      %3768 = vmatmul.f32.gmra.mxu0 %v3654
      %v3769 = vpop.f32.mrf.mxu0
      %v3770 = vadd.f32 %v3600, %v3769
      %3771 = vmatmul.f32.gmra.mxu0 %v3657
      %v3772 = vpop.f32.mrf.mxu0
      %v3773 = vadd.f32 %v3600, %v3772
      %3774 = vmatmul.f32.gmra.mxu0 %v3660
      %v3775 = vpop.f32.mrf.mxu0
      %v3776 = vadd.f32 %v3600, %v3775
      %3777 = vmatmul.f32.gmra.mxu0 %v3663
      %v3778 = vpop.f32.mrf.mxu0
      %v3779 = vadd.f32 %v3600, %v3778
      %3780 = vmatmul.f32.gmra.mxu0 %v3666
      %v3781 = vpop.f32.mrf.mxu0
      %v3782 = vadd.f32 %v3600, %v3781
      %3783 = vmatmul.f32.gmra.mxu0 %v3669
      %v3784 = vpop.f32.mrf.mxu0
      %v3785 = vadd.f32 %v3600, %v3784
      %3786 = vmatmul.f32.gmra.mxu0 %v3672
      %v3787 = vpop.f32.mrf.mxu0
      %v3788 = vadd.f32 %v3600, %v3787
      %3789 = vmatmul.f32.gmra.mxu0 %v3675
      %v3790 = vpop.f32.mrf.mxu0
      %v3791 = vadd.f32 %v3600, %v3790
      %3792 = vmatmul.f32.gmra.mxu0 %v3678
      %v3793 = vpop.f32.mrf.mxu0
      %v3794 = vadd.f32 %v3600, %v3793
      %3795 = vmatmul.f32.gmra.mxu0 %v3681
      %v3796 = vpop.f32.mrf.mxu0
      %v3797 = vadd.f32 %v3600, %v3796
      %3798 = vmatmul.f32.gmra.mxu0 %v3684
      %v3799 = vpop.f32.mrf.mxu0
      %v3800 = vadd.f32 %v3600, %v3799
      %3801 = vmatmul.f32.gmra.mxu0 %v3687
      %v3802 = vpop.f32.mrf.mxu0
      %v3803 = vadd.f32 %v3600, %v3802
      %3804 = vmatmul.f32.gmra.mxu0 %v3690
      %v3805 = vpop.f32.mrf.mxu0
      %v3806 = vadd.f32 %v3600, %v3805
      %3807 = vmatmul.f32.gmra.mxu0 %v3693
      %v3808 = vpop.f32.mrf.mxu0
      %v3809 = vadd.f32 %v3600, %v3808
      %3810 = vmatmul.f32.gmra.mxu0 %v3696
      %v3811 = vpop.f32.mrf.mxu0
      %v3812 = vadd.f32 %v3600, %v3811
      %3813 = vdwg.mxu0
      %v3814 = vmax.f32 %v3719, 0.0
      %v3815 = vmax.f32 %v3722, 0.0
      %v3816 = vmax.f32 %v3725, 0.0
      %v3817 = vmax.f32 %v3728, 0.0
      %v3818 = vmax.f32 %v3731, 0.0
      %v3819 = vmax.f32 %v3734, 0.0
      %v3820 = vmax.f32 %v3737, 0.0
      %v3821 = vmax.f32 %v3740, 0.0
      %v3822 = vmax.f32 %v3743, 0.0
      %v3823 = vmax.f32 %v3746, 0.0
      %v3824 = vmax.f32 %v3749, 0.0
      %v3825 = vmax.f32 %v3752, 0.0
      %v3826 = vmax.f32 %v3755, 0.0
      %v3827 = vmax.f32 %v3758, 0.0
      %v3828 = vmax.f32 %v3761, 0.0
      %v3829 = vmax.f32 %v3764, 0.0
      %v3830 = vmax.f32 %v3767, 0.0
      %v3831 = vmax.f32 %v3770, 0.0
      %v3832 = vmax.f32 %v3773, 0.0
      %v3833 = vmax.f32 %v3776, 0.0
      %v3834 = vmax.f32 %v3779, 0.0
      %v3835 = vmax.f32 %v3782, 0.0
      %v3836 = vmax.f32 %v3785, 0.0
      %v3837 = vmax.f32 %v3788, 0.0
      %v3838 = vmax.f32 %v3791, 0.0
      %v3839 = vmax.f32 %v3794, 0.0
      %v3840 = vmax.f32 %v3797, 0.0
      %v3841 = vmax.f32 %v3800, 0.0
      %v3842 = vmax.f32 %v3803, 0.0
      %v3843 = vmax.f32 %v3806, 0.0
      %v3844 = vmax.f32 %v3809, 0.0
      %v3845 = vmax.f32 %v3812, 0.0
      %vm3846 = vcmask 64512
      %3847 = vst.msk [vmem:[#allocation4] sm:$0xff] %vm3846, 0.0
      %3848 = vst.msk [vmem:[#allocation4 + $0x8] sm:$0xff] %vm3846, 0.0
      %vm3849 = vcmask 58368
      %3850 = vst.msk [vmem:[#allocation4 + $0x10] sm:$0x3] %vm3849, 0.0
      %3851 = vst.msk [vmem:[#allocation4 + $0x18] sm:$0xff] %vm3846, 0.0
      %3852 = vst.msk [vmem:[#allocation4 + $0x20] sm:$0xff] %vm3846, 0.0
      %3853 = vst.msk [vmem:[#allocation4 + $0x28] sm:$0x3] %vm3849, 0.0
      %3854 = vst.msk [vmem:[#allocation4 + $0x30] sm:$0xff] %vm3846, 0.0
      %3855 = vst.msk [vmem:[#allocation4 + $0x38] sm:$0xff] %vm3846, 0.0
      %3856 = vst.msk [vmem:[#allocation4 + $0x40] sm:$0x3] %vm3849, 0.0
      %3857 = vst.msk [vmem:[#allocation4 + $0x48] sm:$0xff] %vm3846, 0.0
      %3858 = vst.msk [vmem:[#allocation4 + $0x50] sm:$0xff] %vm3846, 0.0
      %3859 = vst.msk [vmem:[#allocation4 + $0x58] sm:$0x3] %vm3849, 0.0
      %3860 = vst.msk [vmem:[#allocation4 + $0x60] sm:$0xff] %vm3846, 0.0
      %3861 = vst.msk [vmem:[#allocation4 + $0x68] sm:$0xff] %vm3846, 0.0
      %3862 = vst.msk [vmem:[#allocation4 + $0x70] sm:$0x3] %vm3849, 0.0
      %3863 = vst.msk [vmem:[#allocation4 + $0x78] sm:$0xff] %vm3846, 0.0
      %3864 = vst.msk [vmem:[#allocation4 + $0x80] sm:$0xff] %vm3846, 0.0
      %3865 = vst.msk [vmem:[#allocation4 + $0x88] sm:$0x3] %vm3849, 0.0
      %3866 = vst.msk [vmem:[#allocation4 + $0x90] sm:$0xff] %vm3846, 0.0
      %3867 = vst.msk [vmem:[#allocation4 + $0x98] sm:$0xff] %vm3846, 0.0
      %3868 = vst.msk [vmem:[#allocation4 + $0xa0] sm:$0x3] %vm3849, 0.0
      %3869 = vst.msk [vmem:[#allocation4 + $0xa8] sm:$0xff] %vm3846, 0.0
      %3870 = vst.msk [vmem:[#allocation4 + $0xb0] sm:$0xff] %vm3846, 0.0
      %3871 = vst.msk [vmem:[#allocation4 + $0xb8] sm:$0x3] %vm3849, 0.0
      %3872 = vst.msk [vmem:[#allocation4 + $0xc0] sm:$0xff] %vm3846, 0.0
      %3873 = vst.msk [vmem:[#allocation4 + $0xc8] sm:$0xff] %vm3846, 0.0
      %3874 = vst.msk [vmem:[#allocation4 + $0xd0] sm:$0x3] %vm3849, 0.0
      %3875 = vst.msk [vmem:[#allocation4 + $0xd8] sm:$0xff] %vm3846, 0.0
      %3876 = vst.msk [vmem:[#allocation4 + $0xe0] sm:$0xff] %vm3846, 0.0
      %3877 = vst.msk [vmem:[#allocation4 + $0xe8] sm:$0x3] %vm3849, 0.0
      %3878 = vst.msk [vmem:[#allocation4 + $0xf0] sm:$0xff] %vm3846, 0.0
      %3879 = vst.msk [vmem:[#allocation4 + $0xf8] sm:$0xff] %vm3846, 0.0
      %3880 = vst.msk [vmem:[#allocation4 + $0x100] sm:$0x3] %vm3849, 0.0
      %3881 = vst.msk [vmem:[#allocation4 + $0x108] sm:$0xff] %vm3846, 0.0
      %3882 = vst.msk [vmem:[#allocation4 + $0x110] sm:$0xff] %vm3846, 0.0
      %3883 = vst.msk [vmem:[#allocation4 + $0x118] sm:$0x3] %vm3849, 0.0
      %3884 = vst.msk [vmem:[#allocation4 + $0x120] sm:$0xff] %vm3846, 0.0
      %3885 = vst.msk [vmem:[#allocation4 + $0x128] sm:$0xff] %vm3846, 0.0
      %3886 = vst.msk [vmem:[#allocation4 + $0x130] sm:$0x3] %vm3849, 0.0
      %3887 = vst.msk [vmem:[#allocation4 + $0x138] sm:$0xff] %vm3846, 0.0
      %3888 = vst.msk [vmem:[#allocation4 + $0x140] sm:$0xff] %vm3846, 0.0
      %3889 = vst.msk [vmem:[#allocation4 + $0x148] sm:$0x3] %vm3849, 0.0
      %3890 = vst.msk [vmem:[#allocation4 + $0x150] sm:$0xff] %vm3846, 0.0
      %3891 = vst.msk [vmem:[#allocation4 + $0x158] sm:$0xff] %vm3846, 0.0
      %3892 = vst.msk [vmem:[#allocation4 + $0x160] sm:$0x3] %vm3849, 0.0
      %3893 = vst.msk [vmem:[#allocation4 + $0x168] sm:$0xff] %vm3846, 0.0
      %3894 = vst.msk [vmem:[#allocation4 + $0x170] sm:$0xff] %vm3846, 0.0
      %3895 = vst.msk [vmem:[#allocation4 + $0x178] sm:$0x3] %vm3849, 0.0
      %3896 = vst.msk [vmem:[#allocation4 + $0x180] sm:$0xff] %vm3846, 0.0
      %3897 = vst.msk [vmem:[#allocation4 + $0x188] sm:$0xff] %vm3846, 0.0
      %3898 = vst.msk [vmem:[#allocation4 + $0x190] sm:$0x3] %vm3849, 0.0
      %3899 = vst.msk [vmem:[#allocation4 + $0x198] sm:$0xff] %vm3846, 0.0
      %3900 = vst.msk [vmem:[#allocation4 + $0x1a0] sm:$0xff] %vm3846, 0.0
      %3901 = vst.msk [vmem:[#allocation4 + $0x1a8] sm:$0x3] %vm3849, 0.0
      %s3902 = scalar_lea.vmem [#allocation4], 24
      %3903 = vst.msk [vmem:[%s3902 + $0x1] sm:$0xff] %vm3846, %v3814
      %3904 = vst.msk [vmem:[%s3902 + $0x9] sm:$0xff] %vm3846, %v3815
      %3905 = vst.msk [vmem:[%s3902 + $0x19] sm:$0xff] %vm3846, %v3816
      %3906 = vst.msk [vmem:[%s3902 + $0x21] sm:$0xff] %vm3846, %v3817
      %3907 = vst.msk [vmem:[%s3902 + $0x31] sm:$0xff] %vm3846, %v3818
      %3908 = vst.msk [vmem:[%s3902 + $0x39] sm:$0xff] %vm3846, %v3819
      %3909 = vst.msk [vmem:[%s3902 + $0x49] sm:$0xff] %vm3846, %v3820
      %3910 = vst.msk [vmem:[%s3902 + $0x51] sm:$0xff] %vm3846, %v3821
      %3911 = vst.msk [vmem:[%s3902 + $0x61] sm:$0xff] %vm3846, %v3822
      %3912 = vst.msk [vmem:[%s3902 + $0x69] sm:$0xff] %vm3846, %v3823
      %3913 = vst.msk [vmem:[%s3902 + $0x79] sm:$0xff] %vm3846, %v3824
      %3914 = vst.msk [vmem:[%s3902 + $0x81] sm:$0xff] %vm3846, %v3825
      %3915 = vst.msk [vmem:[%s3902 + $0x91] sm:$0xff] %vm3846, %v3826
      %3916 = vst.msk [vmem:[%s3902 + $0x99] sm:$0xff] %vm3846, %v3827
      %3917 = vst.msk [vmem:[%s3902 + $0xa9] sm:$0xff] %vm3846, %v3828
      %3918 = vst.msk [vmem:[%s3902 + $0xb1] sm:$0xff] %vm3846, %v3829
      %3919 = vst.msk [vmem:[%s3902 + $0xc1] sm:$0xff] %vm3846, %v3830
      %3920 = vst.msk [vmem:[%s3902 + $0xc9] sm:$0xff] %vm3846, %v3831
      %3921 = vst.msk [vmem:[%s3902 + $0xd9] sm:$0xff] %vm3846, %v3832
      %3922 = vst.msk [vmem:[%s3902 + $0xe1] sm:$0xff] %vm3846, %v3833
      %3923 = vst.msk [vmem:[%s3902 + $0xf1] sm:$0xff] %vm3846, %v3834
      %3924 = vst.msk [vmem:[%s3902 + $0xf9] sm:$0xff] %vm3846, %v3835
      %3925 = vst.msk [vmem:[%s3902 + $0x109] sm:$0xff] %vm3846, %v3836
      %3926 = vst.msk [vmem:[%s3902 + $0x111] sm:$0xff] %vm3846, %v3837
      %3927 = vst.msk [vmem:[%s3902 + $0x121] sm:$0xff] %vm3846, %v3838
      %3928 = vst.msk [vmem:[%s3902 + $0x129] sm:$0xff] %vm3846, %v3839
      %3929 = vst.msk [vmem:[%s3902 + $0x139] sm:$0xff] %vm3846, %v3840
      %3930 = vst.msk [vmem:[%s3902 + $0x141] sm:$0xff] %vm3846, %v3841
      %3931 = vst.msk [vmem:[%s3902 + $0x151] sm:$0xff] %vm3846, %v3842
      %3932 = vst.msk [vmem:[%s3902 + $0x159] sm:$0xff] %vm3846, %v3843
      %3933 = vst.msk [vmem:[%s3902 + $0x169] sm:$0xff] %vm3846, %v3844
      %3934 = vst.msk [vmem:[%s3902 + $0x171] sm:$0xff] %vm3846, %v3845
      %3935 = vst.msk [vmem:[#allocation3] sm:$0xff] %vm333, 0.0
      %3936 = vst.msk [vmem:[#allocation3 + $0x8] sm:$0xff] %vm333, 0.0
      %3937 = vst.msk [vmem:[#allocation3 + $0x10] sm:$0xff] %vm333, 0.0
      %3938 = vst.msk [vmem:[#allocation3 + $0x18] sm:$0xff] %vm333, 0.0
      %3939 = vst.msk [vmem:[#allocation3 + $0x20] sm:$0xff] %vm333, 0.0
      %3940 = vst.msk [vmem:[#allocation3 + $0x28] sm:$0xff] %vm333, 0.0
      %3941 = vst.msk [vmem:[#allocation3 + $0x30] sm:$0xff] %vm333, 0.0
      %3942 = vst.msk [vmem:[#allocation3 + $0x38] sm:$0xff] %vm333, 0.0
      %3943 = vst.msk [vmem:[#allocation3 + $0x40] sm:$0xff] %vm333, 0.0
      %3944 = vst.msk [vmem:[#allocation3 + $0x48] sm:$0xff] %vm333, 0.0
      %3945 = vst.msk [vmem:[#allocation3 + $0x50] sm:$0xff] %vm333, 0.0
      %3946 = vst.msk [vmem:[#allocation3 + $0x58] sm:$0xff] %vm333, 0.0
      %3947 = vst.msk [vmem:[#allocation3 + $0x60] sm:$0xff] %vm333, 0.0
      %3948 = vst.msk [vmem:[#allocation3 + $0x68] sm:$0xff] %vm333, 0.0
      %3949 = vst.msk [vmem:[#allocation3 + $0x70] sm:$0xff] %vm333, 0.0
      %3950 = vst.msk [vmem:[#allocation3 + $0x78] sm:$0xff] %vm333, 0.0
      %3951 = vst.msk [vmem:[#allocation3 + $0x80] sm:$0xff] %vm333, 0.0
      %3952 = vst.msk [vmem:[#allocation3 + $0x88] sm:$0xff] %vm333, 0.0
      %3953 = vst.msk [vmem:[#allocation3 + $0x90] sm:$0xff] %vm333, 0.0
      %3954 = vst.msk [vmem:[#allocation3 + $0x98] sm:$0xff] %vm333, 0.0
      %3955 = vst.msk [vmem:[#allocation3 + $0xa0] sm:$0xff] %vm333, 0.0
      %3956 = vst.msk [vmem:[#allocation3 + $0xa8] sm:$0xff] %vm333, 0.0
      %3957 = vst.msk [vmem:[#allocation3 + $0xb0] sm:$0xff] %vm333, 0.0
      %3958 = vst.msk [vmem:[#allocation3 + $0xb8] sm:$0xff] %vm333, 0.0
      %3959 = vst.msk [vmem:[#allocation3 + $0xc0] sm:$0xff] %vm333, 0.0
      %3960 = vst.msk [vmem:[#allocation3 + $0xc8] sm:$0xff] %vm333, 0.0
      %3961 = vst.msk [vmem:[#allocation3 + $0xd0] sm:$0xff] %vm333, 0.0
      %3962 = vst.msk [vmem:[#allocation3 + $0xd8] sm:$0xff] %vm333, 0.0
      %3963 = vst.msk [vmem:[#allocation3 + $0xe0] sm:$0xff] %vm333, 0.0
      %3964 = vst.msk [vmem:[#allocation3 + $0xe8] sm:$0xff] %vm333, 0.0
      %3965 = vst.msk [vmem:[#allocation3 + $0xf0] sm:$0xff] %vm333, 0.0
      %3966 = vst.msk [vmem:[#allocation3 + $0xf8] sm:$0xff] %vm333, 0.0
      %v3967 = vld [vmem:[#allocation4] sm:$0xff]
      %v3968 = vld [vmem:[#allocation4 + $0x8] sm:$0xff]
      %v3969 = vld [vmem:[#allocation4 + $0x18] sm:$0xff]
      %v3970 = vld [vmem:[#allocation4 + $0x20] sm:$0xff]
      %v3971 = vld [vmem:[#allocation4 + $0x30] sm:$0xff]
      %v3972 = vld [vmem:[#allocation4 + $0x38] sm:$0xff]
      %v3973 = vld [vmem:[#allocation4 + $0x48] sm:$0xff]
      %v3974 = vld [vmem:[#allocation4 + $0x50] sm:$0xff]
      %v3975 = vld [vmem:[#allocation4 + $0x60] sm:$0xff]
      %v3976 = vld [vmem:[#allocation4 + $0x68] sm:$0xff]
      %v3977 = vld [vmem:[#allocation4 + $0x78] sm:$0xff]
      %v3978 = vld [vmem:[#allocation4 + $0x80] sm:$0xff]
      %v3979 = vld [vmem:[#allocation4 + $0x90] sm:$0xff]
      %v3980 = vld [vmem:[#allocation4 + $0x98] sm:$0xff]
      %v3981 = vld [vmem:[#allocation4 + $0xa8] sm:$0xff]
      %v3982 = vld [vmem:[#allocation4 + $0xb0] sm:$0xff]
      %v3983 = vld [vmem:[#allocation4 + $0xc0] sm:$0xff]
      %v3984 = vld [vmem:[#allocation4 + $0xc8] sm:$0xff]
      %v3985 = vld [vmem:[#allocation4 + $0xd8] sm:$0xff]
      %v3986 = vld [vmem:[#allocation4 + $0xe0] sm:$0xff]
      %v3987 = vld [vmem:[#allocation4 + $0xf0] sm:$0xff]
      %v3988 = vld [vmem:[#allocation4 + $0xf8] sm:$0xff]
      %v3989 = vld [vmem:[#allocation4 + $0x108] sm:$0xff]
      %v3990 = vld [vmem:[#allocation4 + $0x110] sm:$0xff]
      %v3991 = vld [vmem:[#allocation4 + $0x120] sm:$0xff]
      %v3992 = vld [vmem:[#allocation4 + $0x128] sm:$0xff]
      %v3993 = vld [vmem:[#allocation4 + $0x138] sm:$0xff]
      %v3994 = vld [vmem:[#allocation4 + $0x140] sm:$0xff]
      %v3995 = vld [vmem:[#allocation4 + $0x150] sm:$0xff]
      %v3996 = vld [vmem:[#allocation4 + $0x158] sm:$0xff]
      %v3997 = vld [vmem:[#allocation4 + $0x168] sm:$0xff]
      %v3998 = vld [vmem:[#allocation4 + $0x170] sm:$0xff]
      %v3999 = vld [vmem:[#allocation3] sm:$0xff]
      %v4000 = vld [vmem:[#allocation3 + $0x8] sm:$0xff]
      %v4001 = vld [vmem:[#allocation3 + $0x10] sm:$0xff]
      %v4002 = vld [vmem:[#allocation3 + $0x18] sm:$0xff]
      %v4003 = vld [vmem:[#allocation3 + $0x20] sm:$0xff]
      %v4004 = vld [vmem:[#allocation3 + $0x28] sm:$0xff]
      %v4005 = vld [vmem:[#allocation3 + $0x30] sm:$0xff]
      %v4006 = vld [vmem:[#allocation3 + $0x38] sm:$0xff]
      %v4007 = vld [vmem:[#allocation3 + $0x40] sm:$0xff]
      %v4008 = vld [vmem:[#allocation3 + $0x48] sm:$0xff]
      %v4009 = vld [vmem:[#allocation3 + $0x50] sm:$0xff]
      %v4010 = vld [vmem:[#allocation3 + $0x58] sm:$0xff]
      %v4011 = vld [vmem:[#allocation3 + $0x60] sm:$0xff]
      %v4012 = vld [vmem:[#allocation3 + $0x68] sm:$0xff]
      %v4013 = vld [vmem:[#allocation3 + $0x70] sm:$0xff]
      %v4014 = vld [vmem:[#allocation3 + $0x78] sm:$0xff]
      %v4015 = vld [vmem:[#allocation3 + $0x80] sm:$0xff]
      %v4016 = vld [vmem:[#allocation3 + $0x88] sm:$0xff]
      %v4017 = vld [vmem:[#allocation3 + $0x90] sm:$0xff]
      %v4018 = vld [vmem:[#allocation3 + $0x98] sm:$0xff]
      %v4019 = vld [vmem:[#allocation3 + $0xa0] sm:$0xff]
      %v4020 = vld [vmem:[#allocation3 + $0xa8] sm:$0xff]
      %v4021 = vld [vmem:[#allocation3 + $0xb0] sm:$0xff]
      %v4022 = vld [vmem:[#allocation3 + $0xb8] sm:$0xff]
      %v4023 = vld [vmem:[#allocation3 + $0xc0] sm:$0xff]
      %v4024 = vld [vmem:[#allocation3 + $0xc8] sm:$0xff]
      %v4025 = vld [vmem:[#allocation3 + $0xd0] sm:$0xff]
      %v4026 = vld [vmem:[#allocation3 + $0xd8] sm:$0xff]
      %v4027 = vld [vmem:[#allocation3 + $0xe0] sm:$0xff]
      %v4028 = vld [vmem:[#allocation3 + $0xe8] sm:$0xff]
      %v4029 = vld [vmem:[#allocation3 + $0xf0] sm:$0xff]
      %v4030 = vld [vmem:[#allocation3 + $0xf8] sm:$0xff]
      %v4031 = vld [vmem:[%s4] sm:$0xff]
      %v4033 = vsel %vm3846, %v3967, 0
      %v4036 = vsel %vm3846, %v3968, 0
      %v4039 = vsel %vm3846, %v3969, 0
      %v4042 = vsel %vm3846, %v3970, 0
      %v4045 = vsel %vm3846, %v3971, 0
      %v4048 = vsel %vm3846, %v3972, 0
      %v4051 = vsel %vm3846, %v3973, 0
      %v4054 = vsel %vm3846, %v3974, 0
      %v4057 = vsel %vm3846, %v3975, 0
      %v4060 = vsel %vm3846, %v3976, 0
      %v4063 = vsel %vm3846, %v3977, 0
      %v4066 = vsel %vm3846, %v3978, 0
      %v4069 = vsel %vm3846, %v3979, 0
      %v4072 = vsel %vm3846, %v3980, 0
      %v4075 = vsel %vm3846, %v3981, 0
      %v4078 = vsel %vm3846, %v3982, 0
      %v4081 = vsel %vm3846, %v3983, 0
      %v4084 = vsel %vm3846, %v3984, 0
      %v4087 = vsel %vm3846, %v3985, 0
      %v4090 = vsel %vm3846, %v3986, 0
      %v4093 = vsel %vm3846, %v3987, 0
      %v4096 = vsel %vm3846, %v3988, 0
      %v4099 = vsel %vm3846, %v3989, 0
      %v4102 = vsel %vm3846, %v3990, 0
      %v4105 = vsel %vm3846, %v3991, 0
      %v4108 = vsel %vm3846, %v3992, 0
      %v4111 = vsel %vm3846, %v3993, 0
      %v4114 = vsel %vm3846, %v3994, 0
      %v4117 = vsel %vm3846, %v3995, 0
      %v4120 = vsel %vm3846, %v3996, 0
      %v4123 = vsel %vm3846, %v3997, 0
      %v4126 = vsel %vm3846, %v3998, 0
      %4128 = vmatpush.msra.mxu0 0.0
      %4129 = vmatpush.msra.mxu0 0.0
      %4130 = vmatpush.msra.mxu0 0.0
      %4131 = vmatpush.msra.mxu0 0.0
      %4132 = vmatpush.msra.mxu0 0.0
      %4133 = vmatpush.msra.mxu0 0.0
      %4134 = vmatpush.msra.mxu0 0.0
      %4135 = vmatpush.msra.mxu0 0.0
      %4136 = vmatpush.msra.mxu0 0.0
      %4137 = vmatpush.msra.mxu0 0.0
      %4138 = vmatpush.msra.mxu0 0.0
      %4139 = vmatpush.msra.mxu0 0.0
      %4140 = vmatpush.msra.mxu0 0.0
      %4141 = vmatpush.msra.mxu0 0.0
      %4142 = vmatpush.msra.mxu0 0.0
      %4143 = vmatpush.msra.mxu0 %v4031
      %4144 = vmatmul.f32.gmra.mxu0 %v4033
      %v4145 = vpop.f32.mrf.mxu0
      %v4146 = vadd.f32 0.0, %v4145
      %4147 = vmatmul.f32.gmra.mxu0 %v4036
      %v4148 = vpop.f32.mrf.mxu0
      %v4149 = vadd.f32 0.0, %v4148
      %4150 = vmatmul.f32.gmra.mxu0 %v4039
      %v4151 = vpop.f32.mrf.mxu0
      %v4152 = vadd.f32 0.0, %v4151
      %4153 = vmatmul.f32.gmra.mxu0 %v4042
      %v4154 = vpop.f32.mrf.mxu0
      %v4155 = vadd.f32 0.0, %v4154
      %4156 = vmatmul.f32.gmra.mxu0 %v4045
      %v4157 = vpop.f32.mrf.mxu0
      %v4158 = vadd.f32 0.0, %v4157
      %4159 = vmatmul.f32.gmra.mxu0 %v4048
      %v4160 = vpop.f32.mrf.mxu0
      %v4161 = vadd.f32 0.0, %v4160
      %4162 = vmatmul.f32.gmra.mxu0 %v4051
      %v4163 = vpop.f32.mrf.mxu0
      %v4164 = vadd.f32 0.0, %v4163
      %4165 = vmatmul.f32.gmra.mxu0 %v4054
      %v4166 = vpop.f32.mrf.mxu0
      %v4167 = vadd.f32 0.0, %v4166
      %4168 = vmatmul.f32.gmra.mxu0 %v4057
      %v4169 = vpop.f32.mrf.mxu0
      %v4170 = vadd.f32 0.0, %v4169
      %4171 = vmatmul.f32.gmra.mxu0 %v4060
      %v4172 = vpop.f32.mrf.mxu0
      %v4173 = vadd.f32 0.0, %v4172
      %4174 = vmatmul.f32.gmra.mxu0 %v4063
      %v4175 = vpop.f32.mrf.mxu0
      %v4176 = vadd.f32 0.0, %v4175
      %4177 = vmatmul.f32.gmra.mxu0 %v4066
      %v4178 = vpop.f32.mrf.mxu0
      %v4179 = vadd.f32 0.0, %v4178
      %4180 = vmatmul.f32.gmra.mxu0 %v4069
      %v4181 = vpop.f32.mrf.mxu0
      %v4182 = vadd.f32 0.0, %v4181
      %4183 = vmatmul.f32.gmra.mxu0 %v4072
      %v4184 = vpop.f32.mrf.mxu0
      %v4185 = vadd.f32 0.0, %v4184
      %4186 = vmatmul.f32.gmra.mxu0 %v4075
      %v4187 = vpop.f32.mrf.mxu0
      %v4188 = vadd.f32 0.0, %v4187
      %4189 = vmatmul.f32.gmra.mxu0 %v4078
      %v4190 = vpop.f32.mrf.mxu0
      %v4191 = vadd.f32 0.0, %v4190
      %4192 = vmatmul.f32.gmra.mxu0 %v4081
      %v4193 = vpop.f32.mrf.mxu0
      %v4194 = vadd.f32 0.0, %v4193
      %4195 = vmatmul.f32.gmra.mxu0 %v4084
      %v4196 = vpop.f32.mrf.mxu0
      %v4197 = vadd.f32 0.0, %v4196
      %4198 = vmatmul.f32.gmra.mxu0 %v4087
      %v4199 = vpop.f32.mrf.mxu0
      %v4200 = vadd.f32 0.0, %v4199
      %4201 = vmatmul.f32.gmra.mxu0 %v4090
      %v4202 = vpop.f32.mrf.mxu0
      %v4203 = vadd.f32 0.0, %v4202
      %4204 = vmatmul.f32.gmra.mxu0 %v4093
      %v4205 = vpop.f32.mrf.mxu0
      %v4206 = vadd.f32 0.0, %v4205
      %4207 = vmatmul.f32.gmra.mxu0 %v4096
      %v4208 = vpop.f32.mrf.mxu0
      %v4209 = vadd.f32 0.0, %v4208
      %4210 = vmatmul.f32.gmra.mxu0 %v4099
      %v4211 = vpop.f32.mrf.mxu0
      %v4212 = vadd.f32 0.0, %v4211
      %4213 = vmatmul.f32.gmra.mxu0 %v4102
      %v4214 = vpop.f32.mrf.mxu0
      %v4215 = vadd.f32 0.0, %v4214
      %4216 = vmatmul.f32.gmra.mxu0 %v4105
      %v4217 = vpop.f32.mrf.mxu0
      %v4218 = vadd.f32 0.0, %v4217
      %4219 = vmatmul.f32.gmra.mxu0 %v4108
      %v4220 = vpop.f32.mrf.mxu0
      %v4221 = vadd.f32 0.0, %v4220
      %4222 = vmatmul.f32.gmra.mxu0 %v4111
      %v4223 = vpop.f32.mrf.mxu0
      %v4224 = vadd.f32 0.0, %v4223
      %4225 = vmatmul.f32.gmra.mxu0 %v4114
      %v4226 = vpop.f32.mrf.mxu0
      %v4227 = vadd.f32 0.0, %v4226
      %4228 = vmatmul.f32.gmra.mxu0 %v4117
      %v4229 = vpop.f32.mrf.mxu0
      %v4230 = vadd.f32 0.0, %v4229
      %4231 = vmatmul.f32.gmra.mxu0 %v4120
      %v4232 = vpop.f32.mrf.mxu0
      %v4233 = vadd.f32 0.0, %v4232
      %4234 = vmatmul.f32.gmra.mxu0 %v4123
      %v4235 = vpop.f32.mrf.mxu0
      %v4236 = vadd.f32 0.0, %v4235
      %4237 = vmatmul.f32.gmra.mxu0 %v4126
      %v4238 = vpop.f32.mrf.mxu0
      %v4239 = vadd.f32 0.0, %v4238
      %4240 = vdwg.mxu0
      %v4241 = vadd.f32 %v3999, %v4146
      %v4242 = vadd.f32 %v4000, %v4149
      %v4243 = vadd.f32 %v4001, %v4152
      %v4244 = vadd.f32 %v4002, %v4155
      %v4245 = vadd.f32 %v4003, %v4158
      %v4246 = vadd.f32 %v4004, %v4161
      %v4247 = vadd.f32 %v4005, %v4164
      %v4248 = vadd.f32 %v4006, %v4167
      %v4249 = vadd.f32 %v4007, %v4170
      %v4250 = vadd.f32 %v4008, %v4173
      %v4251 = vadd.f32 %v4009, %v4176
      %v4252 = vadd.f32 %v4010, %v4179
      %v4253 = vadd.f32 %v4011, %v4182
      %v4254 = vadd.f32 %v4012, %v4185
      %v4255 = vadd.f32 %v4013, %v4188
      %v4256 = vadd.f32 %v4014, %v4191
      %v4257 = vadd.f32 %v4015, %v4194
      %v4258 = vadd.f32 %v4016, %v4197
      %v4259 = vadd.f32 %v4017, %v4200
      %v4260 = vadd.f32 %v4018, %v4203
      %v4261 = vadd.f32 %v4019, %v4206
      %v4262 = vadd.f32 %v4020, %v4209
      %v4263 = vadd.f32 %v4021, %v4212
      %v4264 = vadd.f32 %v4022, %v4215
      %v4265 = vadd.f32 %v4023, %v4218
      %v4266 = vadd.f32 %v4024, %v4221
      %v4267 = vadd.f32 %v4025, %v4224
      %v4268 = vadd.f32 %v4026, %v4227
      %v4269 = vadd.f32 %v4027, %v4230
      %v4270 = vadd.f32 %v4028, %v4233
      %v4271 = vadd.f32 %v4029, %v4236
      %v4272 = vadd.f32 %v4030, %v4239
      %4273 = vst.msk [vmem:[#allocation3] sm:$0xff] %vm333, %v4241
      %4274 = vst.msk [vmem:[#allocation3 + $0x8] sm:$0xff] %vm333, %v4242
      %4275 = vst.msk [vmem:[#allocation3 + $0x10] sm:$0xff] %vm333, %v4243
      %4276 = vst.msk [vmem:[#allocation3 + $0x18] sm:$0xff] %vm333, %v4244
      %4277 = vst.msk [vmem:[#allocation3 + $0x20] sm:$0xff] %vm333, %v4245
      %4278 = vst.msk [vmem:[#allocation3 + $0x28] sm:$0xff] %vm333, %v4246
      %4279 = vst.msk [vmem:[#allocation3 + $0x30] sm:$0xff] %vm333, %v4247
      %4280 = vst.msk [vmem:[#allocation3 + $0x38] sm:$0xff] %vm333, %v4248
      %4281 = vst.msk [vmem:[#allocation3 + $0x40] sm:$0xff] %vm333, %v4249
      %4282 = vst.msk [vmem:[#allocation3 + $0x48] sm:$0xff] %vm333, %v4250
      %4283 = vst.msk [vmem:[#allocation3 + $0x50] sm:$0xff] %vm333, %v4251
      %4284 = vst.msk [vmem:[#allocation3 + $0x58] sm:$0xff] %vm333, %v4252
      %4285 = vst.msk [vmem:[#allocation3 + $0x60] sm:$0xff] %vm333, %v4253
      %4286 = vst.msk [vmem:[#allocation3 + $0x68] sm:$0xff] %vm333, %v4254
      %4287 = vst.msk [vmem:[#allocation3 + $0x70] sm:$0xff] %vm333, %v4255
      %4288 = vst.msk [vmem:[#allocation3 + $0x78] sm:$0xff] %vm333, %v4256
      %4289 = vst.msk [vmem:[#allocation3 + $0x80] sm:$0xff] %vm333, %v4257
      %4290 = vst.msk [vmem:[#allocation3 + $0x88] sm:$0xff] %vm333, %v4258
      %4291 = vst.msk [vmem:[#allocation3 + $0x90] sm:$0xff] %vm333, %v4259
      %4292 = vst.msk [vmem:[#allocation3 + $0x98] sm:$0xff] %vm333, %v4260
      %4293 = vst.msk [vmem:[#allocation3 + $0xa0] sm:$0xff] %vm333, %v4261
      %4294 = vst.msk [vmem:[#allocation3 + $0xa8] sm:$0xff] %vm333, %v4262
      %4295 = vst.msk [vmem:[#allocation3 + $0xb0] sm:$0xff] %vm333, %v4263
      %4296 = vst.msk [vmem:[#allocation3 + $0xb8] sm:$0xff] %vm333, %v4264
      %4297 = vst.msk [vmem:[#allocation3 + $0xc0] sm:$0xff] %vm333, %v4265
      %4298 = vst.msk [vmem:[#allocation3 + $0xc8] sm:$0xff] %vm333, %v4266
      %4299 = vst.msk [vmem:[#allocation3 + $0xd0] sm:$0xff] %vm333, %v4267
      %4300 = vst.msk [vmem:[#allocation3 + $0xd8] sm:$0xff] %vm333, %v4268
      %4301 = vst.msk [vmem:[#allocation3 + $0xe0] sm:$0xff] %vm333, %v4269
      %4302 = vst.msk [vmem:[#allocation3 + $0xe8] sm:$0xff] %vm333, %v4270
      %4303 = vst.msk [vmem:[#allocation3 + $0xf0] sm:$0xff] %vm333, %v4271
      %4304 = vst.msk [vmem:[#allocation3 + $0xf8] sm:$0xff] %vm333, %v4272
      %v4305 = vld [vmem:[#allocation4 + $0x1] sm:$0xff]
      %v4306 = vld [vmem:[#allocation4 + $0x9] sm:$0xff]
      %v4307 = vld [vmem:[#allocation4 + $0x19] sm:$0xff]
      %v4308 = vld [vmem:[#allocation4 + $0x21] sm:$0xff]
      %v4309 = vld [vmem:[#allocation4 + $0x31] sm:$0xff]
      %v4310 = vld [vmem:[#allocation4 + $0x39] sm:$0xff]
      %v4311 = vld [vmem:[#allocation4 + $0x49] sm:$0xff]
      %v4312 = vld [vmem:[#allocation4 + $0x51] sm:$0xff]
      %v4313 = vld [vmem:[#allocation4 + $0x61] sm:$0xff]
      %v4314 = vld [vmem:[#allocation4 + $0x69] sm:$0xff]
      %v4315 = vld [vmem:[#allocation4 + $0x79] sm:$0xff]
      %v4316 = vld [vmem:[#allocation4 + $0x81] sm:$0xff]
      %v4317 = vld [vmem:[#allocation4 + $0x91] sm:$0xff]
      %v4318 = vld [vmem:[#allocation4 + $0x99] sm:$0xff]
      %v4319 = vld [vmem:[#allocation4 + $0xa9] sm:$0xff]
      %v4320 = vld [vmem:[#allocation4 + $0xb1] sm:$0xff]
      %v4321 = vld [vmem:[#allocation4 + $0xc1] sm:$0xff]
      %v4322 = vld [vmem:[#allocation4 + $0xc9] sm:$0xff]
      %v4323 = vld [vmem:[#allocation4 + $0xd9] sm:$0xff]
      %v4324 = vld [vmem:[#allocation4 + $0xe1] sm:$0xff]
      %v4325 = vld [vmem:[#allocation4 + $0xf1] sm:$0xff]
      %v4326 = vld [vmem:[#allocation4 + $0xf9] sm:$0xff]
      %v4327 = vld [vmem:[#allocation4 + $0x109] sm:$0xff]
      %v4328 = vld [vmem:[#allocation4 + $0x111] sm:$0xff]
      %v4329 = vld [vmem:[#allocation4 + $0x121] sm:$0xff]
      %v4330 = vld [vmem:[#allocation4 + $0x129] sm:$0xff]
      %v4331 = vld [vmem:[#allocation4 + $0x139] sm:$0xff]
      %v4332 = vld [vmem:[#allocation4 + $0x141] sm:$0xff]
      %v4333 = vld [vmem:[#allocation4 + $0x151] sm:$0xff]
      %v4334 = vld [vmem:[#allocation4 + $0x159] sm:$0xff]
      %v4335 = vld [vmem:[#allocation4 + $0x169] sm:$0xff]
      %v4336 = vld [vmem:[#allocation4 + $0x171] sm:$0xff]
      %v4337 = vld [vmem:[#allocation3] sm:$0xff]
      %v4338 = vld [vmem:[#allocation3 + $0x8] sm:$0xff]
      %v4339 = vld [vmem:[#allocation3 + $0x10] sm:$0xff]
      %v4340 = vld [vmem:[#allocation3 + $0x18] sm:$0xff]
      %v4341 = vld [vmem:[#allocation3 + $0x20] sm:$0xff]
      %v4342 = vld [vmem:[#allocation3 + $0x28] sm:$0xff]
      %v4343 = vld [vmem:[#allocation3 + $0x30] sm:$0xff]
      %v4344 = vld [vmem:[#allocation3 + $0x38] sm:$0xff]
      %v4345 = vld [vmem:[#allocation3 + $0x40] sm:$0xff]
      %v4346 = vld [vmem:[#allocation3 + $0x48] sm:$0xff]
      %v4347 = vld [vmem:[#allocation3 + $0x50] sm:$0xff]
      %v4348 = vld [vmem:[#allocation3 + $0x58] sm:$0xff]
      %v4349 = vld [vmem:[#allocation3 + $0x60] sm:$0xff]
      %v4350 = vld [vmem:[#allocation3 + $0x68] sm:$0xff]
      %v4351 = vld [vmem:[#allocation3 + $0x70] sm:$0xff]
      %v4352 = vld [vmem:[#allocation3 + $0x78] sm:$0xff]
      %v4353 = vld [vmem:[#allocation3 + $0x80] sm:$0xff]
      %v4354 = vld [vmem:[#allocation3 + $0x88] sm:$0xff]
      %v4355 = vld [vmem:[#allocation3 + $0x90] sm:$0xff]
      %v4356 = vld [vmem:[#allocation3 + $0x98] sm:$0xff]
      %v4357 = vld [vmem:[#allocation3 + $0xa0] sm:$0xff]
      %v4358 = vld [vmem:[#allocation3 + $0xa8] sm:$0xff]
      %v4359 = vld [vmem:[#allocation3 + $0xb0] sm:$0xff]
      %v4360 = vld [vmem:[#allocation3 + $0xb8] sm:$0xff]
      %v4361 = vld [vmem:[#allocation3 + $0xc0] sm:$0xff]
      %v4362 = vld [vmem:[#allocation3 + $0xc8] sm:$0xff]
      %v4363 = vld [vmem:[#allocation3 + $0xd0] sm:$0xff]
      %v4364 = vld [vmem:[#allocation3 + $0xd8] sm:$0xff]
      %v4365 = vld [vmem:[#allocation3 + $0xe0] sm:$0xff]
      %v4366 = vld [vmem:[#allocation3 + $0xe8] sm:$0xff]
      %v4367 = vld [vmem:[#allocation3 + $0xf0] sm:$0xff]
      %v4368 = vld [vmem:[#allocation3 + $0xf8] sm:$0xff]
      %s4369 = scalar_lea.vmem %s4, 8
      %v4370 = vld [vmem:[%s4369] sm:$0xff]
      %v4372 = vsel %vm3846, %v4305, 0
      %v4375 = vsel %vm3846, %v4306, 0
      %v4378 = vsel %vm3846, %v4307, 0
      %v4381 = vsel %vm3846, %v4308, 0
      %v4384 = vsel %vm3846, %v4309, 0
      %v4387 = vsel %vm3846, %v4310, 0
      %v4390 = vsel %vm3846, %v4311, 0
      %v4393 = vsel %vm3846, %v4312, 0
      %v4396 = vsel %vm3846, %v4313, 0
      %v4399 = vsel %vm3846, %v4314, 0
      %v4402 = vsel %vm3846, %v4315, 0
      %v4405 = vsel %vm3846, %v4316, 0
      %v4408 = vsel %vm3846, %v4317, 0
      %v4411 = vsel %vm3846, %v4318, 0
      %v4414 = vsel %vm3846, %v4319, 0
      %v4417 = vsel %vm3846, %v4320, 0
      %v4420 = vsel %vm3846, %v4321, 0
      %v4423 = vsel %vm3846, %v4322, 0
      %v4426 = vsel %vm3846, %v4323, 0
      %v4429 = vsel %vm3846, %v4324, 0
      %v4432 = vsel %vm3846, %v4325, 0
      %v4435 = vsel %vm3846, %v4326, 0
      %v4438 = vsel %vm3846, %v4327, 0
      %v4441 = vsel %vm3846, %v4328, 0
      %v4444 = vsel %vm3846, %v4329, 0
      %v4447 = vsel %vm3846, %v4330, 0
      %v4450 = vsel %vm3846, %v4331, 0
      %v4453 = vsel %vm3846, %v4332, 0
      %v4456 = vsel %vm3846, %v4333, 0
      %v4459 = vsel %vm3846, %v4334, 0
      %v4462 = vsel %vm3846, %v4335, 0
      %v4465 = vsel %vm3846, %v4336, 0
      %4467 = vmatpush.msra.mxu0 0.0
      %4468 = vmatpush.msra.mxu0 0.0
      %4469 = vmatpush.msra.mxu0 0.0
      %4470 = vmatpush.msra.mxu0 0.0
      %4471 = vmatpush.msra.mxu0 0.0
      %4472 = vmatpush.msra.mxu0 0.0
      %4473 = vmatpush.msra.mxu0 0.0
      %4474 = vmatpush.msra.mxu0 0.0
      %4475 = vmatpush.msra.mxu0 0.0
      %4476 = vmatpush.msra.mxu0 0.0
      %4477 = vmatpush.msra.mxu0 0.0
      %4478 = vmatpush.msra.mxu0 0.0
      %4479 = vmatpush.msra.mxu0 0.0
      %4480 = vmatpush.msra.mxu0 0.0
      %4481 = vmatpush.msra.mxu0 0.0
      %4482 = vmatpush.msra.mxu0 %v4370
      %4483 = vmatmul.f32.gmra.mxu0 %v4372
      %v4484 = vpop.f32.mrf.mxu0
      %v4485 = vadd.f32 0.0, %v4484
      %4486 = vmatmul.f32.gmra.mxu0 %v4375
      %v4487 = vpop.f32.mrf.mxu0
      %v4488 = vadd.f32 0.0, %v4487
      %4489 = vmatmul.f32.gmra.mxu0 %v4378
      %v4490 = vpop.f32.mrf.mxu0
      %v4491 = vadd.f32 0.0, %v4490
      %4492 = vmatmul.f32.gmra.mxu0 %v4381
      %v4493 = vpop.f32.mrf.mxu0
      %v4494 = vadd.f32 0.0, %v4493
      %4495 = vmatmul.f32.gmra.mxu0 %v4384
      %v4496 = vpop.f32.mrf.mxu0
      %v4497 = vadd.f32 0.0, %v4496
      %4498 = vmatmul.f32.gmra.mxu0 %v4387
      %v4499 = vpop.f32.mrf.mxu0
      %v4500 = vadd.f32 0.0, %v4499
      %4501 = vmatmul.f32.gmra.mxu0 %v4390
      %v4502 = vpop.f32.mrf.mxu0
      %v4503 = vadd.f32 0.0, %v4502
      %4504 = vmatmul.f32.gmra.mxu0 %v4393
      %v4505 = vpop.f32.mrf.mxu0
      %v4506 = vadd.f32 0.0, %v4505
      %4507 = vmatmul.f32.gmra.mxu0 %v4396
      %v4508 = vpop.f32.mrf.mxu0
      %v4509 = vadd.f32 0.0, %v4508
      %4510 = vmatmul.f32.gmra.mxu0 %v4399
      %v4511 = vpop.f32.mrf.mxu0
      %v4512 = vadd.f32 0.0, %v4511
      %4513 = vmatmul.f32.gmra.mxu0 %v4402
      %v4514 = vpop.f32.mrf.mxu0
      %v4515 = vadd.f32 0.0, %v4514
      %4516 = vmatmul.f32.gmra.mxu0 %v4405
      %v4517 = vpop.f32.mrf.mxu0
      %v4518 = vadd.f32 0.0, %v4517
      %4519 = vmatmul.f32.gmra.mxu0 %v4408
      %v4520 = vpop.f32.mrf.mxu0
      %v4521 = vadd.f32 0.0, %v4520
      %4522 = vmatmul.f32.gmra.mxu0 %v4411
      %v4523 = vpop.f32.mrf.mxu0
      %v4524 = vadd.f32 0.0, %v4523
      %4525 = vmatmul.f32.gmra.mxu0 %v4414
      %v4526 = vpop.f32.mrf.mxu0
      %v4527 = vadd.f32 0.0, %v4526
      %4528 = vmatmul.f32.gmra.mxu0 %v4417
      %v4529 = vpop.f32.mrf.mxu0
      %v4530 = vadd.f32 0.0, %v4529
      %4531 = vmatmul.f32.gmra.mxu0 %v4420
      %v4532 = vpop.f32.mrf.mxu0
      %v4533 = vadd.f32 0.0, %v4532
      %4534 = vmatmul.f32.gmra.mxu0 %v4423
      %v4535 = vpop.f32.mrf.mxu0
      %v4536 = vadd.f32 0.0, %v4535
      %4537 = vmatmul.f32.gmra.mxu0 %v4426
      %v4538 = vpop.f32.mrf.mxu0
      %v4539 = vadd.f32 0.0, %v4538
      %4540 = vmatmul.f32.gmra.mxu0 %v4429
      %v4541 = vpop.f32.mrf.mxu0
      %v4542 = vadd.f32 0.0, %v4541
      %4543 = vmatmul.f32.gmra.mxu0 %v4432
      %v4544 = vpop.f32.mrf.mxu0
      %v4545 = vadd.f32 0.0, %v4544
      %4546 = vmatmul.f32.gmra.mxu0 %v4435
      %v4547 = vpop.f32.mrf.mxu0
      %v4548 = vadd.f32 0.0, %v4547
      %4549 = vmatmul.f32.gmra.mxu0 %v4438
      %v4550 = vpop.f32.mrf.mxu0
      %v4551 = vadd.f32 0.0, %v4550
      %4552 = vmatmul.f32.gmra.mxu0 %v4441
      %v4553 = vpop.f32.mrf.mxu0
      %v4554 = vadd.f32 0.0, %v4553
      %4555 = vmatmul.f32.gmra.mxu0 %v4444
      %v4556 = vpop.f32.mrf.mxu0
      %v4557 = vadd.f32 0.0, %v4556
      %4558 = vmatmul.f32.gmra.mxu0 %v4447
      %v4559 = vpop.f32.mrf.mxu0
      %v4560 = vadd.f32 0.0, %v4559
      %4561 = vmatmul.f32.gmra.mxu0 %v4450
      %v4562 = vpop.f32.mrf.mxu0
      %v4563 = vadd.f32 0.0, %v4562
      %4564 = vmatmul.f32.gmra.mxu0 %v4453
      %v4565 = vpop.f32.mrf.mxu0
      %v4566 = vadd.f32 0.0, %v4565
      %4567 = vmatmul.f32.gmra.mxu0 %v4456
      %v4568 = vpop.f32.mrf.mxu0
      %v4569 = vadd.f32 0.0, %v4568
      %4570 = vmatmul.f32.gmra.mxu0 %v4459
      %v4571 = vpop.f32.mrf.mxu0
      %v4572 = vadd.f32 0.0, %v4571
      %4573 = vmatmul.f32.gmra.mxu0 %v4462
      %v4574 = vpop.f32.mrf.mxu0
      %v4575 = vadd.f32 0.0, %v4574
      %4576 = vmatmul.f32.gmra.mxu0 %v4465
      %v4577 = vpop.f32.mrf.mxu0
      %v4578 = vadd.f32 0.0, %v4577
      %4579 = vdwg.mxu0
      %v4580 = vadd.f32 %v4337, %v4485
      %v4581 = vadd.f32 %v4338, %v4488
      %v4582 = vadd.f32 %v4339, %v4491
      %v4583 = vadd.f32 %v4340, %v4494
      %v4584 = vadd.f32 %v4341, %v4497
      %v4585 = vadd.f32 %v4342, %v4500
      %v4586 = vadd.f32 %v4343, %v4503
      %v4587 = vadd.f32 %v4344, %v4506
      %v4588 = vadd.f32 %v4345, %v4509
      %v4589 = vadd.f32 %v4346, %v4512
      %v4590 = vadd.f32 %v4347, %v4515
      %v4591 = vadd.f32 %v4348, %v4518
      %v4592 = vadd.f32 %v4349, %v4521
      %v4593 = vadd.f32 %v4350, %v4524
      %v4594 = vadd.f32 %v4351, %v4527
      %v4595 = vadd.f32 %v4352, %v4530
      %v4596 = vadd.f32 %v4353, %v4533
      %v4597 = vadd.f32 %v4354, %v4536
      %v4598 = vadd.f32 %v4355, %v4539
      %v4599 = vadd.f32 %v4356, %v4542
      %v4600 = vadd.f32 %v4357, %v4545
      %v4601 = vadd.f32 %v4358, %v4548
      %v4602 = vadd.f32 %v4359, %v4551
      %v4603 = vadd.f32 %v4360, %v4554
      %v4604 = vadd.f32 %v4361, %v4557
      %v4605 = vadd.f32 %v4362, %v4560
      %v4606 = vadd.f32 %v4363, %v4563
      %v4607 = vadd.f32 %v4364, %v4566
      %v4608 = vadd.f32 %v4365, %v4569
      %v4609 = vadd.f32 %v4366, %v4572
      %v4610 = vadd.f32 %v4367, %v4575
      %v4611 = vadd.f32 %v4368, %v4578
      %4612 = vst.msk [vmem:[#allocation3] sm:$0xff] %vm333, %v4580
      %4613 = vst.msk [vmem:[#allocation3 + $0x8] sm:$0xff] %vm333, %v4581
      %4614 = vst.msk [vmem:[#allocation3 + $0x10] sm:$0xff] %vm333, %v4582
      %4615 = vst.msk [vmem:[#allocation3 + $0x18] sm:$0xff] %vm333, %v4583
      %4616 = vst.msk [vmem:[#allocation3 + $0x20] sm:$0xff] %vm333, %v4584
      %4617 = vst.msk [vmem:[#allocation3 + $0x28] sm:$0xff] %vm333, %v4585
      %4618 = vst.msk [vmem:[#allocation3 + $0x30] sm:$0xff] %vm333, %v4586
      %4619 = vst.msk [vmem:[#allocation3 + $0x38] sm:$0xff] %vm333, %v4587
      %4620 = vst.msk [vmem:[#allocation3 + $0x40] sm:$0xff] %vm333, %v4588
      %4621 = vst.msk [vmem:[#allocation3 + $0x48] sm:$0xff] %vm333, %v4589
      %4622 = vst.msk [vmem:[#allocation3 + $0x50] sm:$0xff] %vm333, %v4590
      %4623 = vst.msk [vmem:[#allocation3 + $0x58] sm:$0xff] %vm333, %v4591
      %4624 = vst.msk [vmem:[#allocation3 + $0x60] sm:$0xff] %vm333, %v4592
      %4625 = vst.msk [vmem:[#allocation3 + $0x68] sm:$0xff] %vm333, %v4593
      %4626 = vst.msk [vmem:[#allocation3 + $0x70] sm:$0xff] %vm333, %v4594
      %4627 = vst.msk [vmem:[#allocation3 + $0x78] sm:$0xff] %vm333, %v4595
      %4628 = vst.msk [vmem:[#allocation3 + $0x80] sm:$0xff] %vm333, %v4596
      %4629 = vst.msk [vmem:[#allocation3 + $0x88] sm:$0xff] %vm333, %v4597
      %4630 = vst.msk [vmem:[#allocation3 + $0x90] sm:$0xff] %vm333, %v4598
      %4631 = vst.msk [vmem:[#allocation3 + $0x98] sm:$0xff] %vm333, %v4599
      %4632 = vst.msk [vmem:[#allocation3 + $0xa0] sm:$0xff] %vm333, %v4600
      %4633 = vst.msk [vmem:[#allocation3 + $0xa8] sm:$0xff] %vm333, %v4601
      %4634 = vst.msk [vmem:[#allocation3 + $0xb0] sm:$0xff] %vm333, %v4602
      %4635 = vst.msk [vmem:[#allocation3 + $0xb8] sm:$0xff] %vm333, %v4603
      %4636 = vst.msk [vmem:[#allocation3 + $0xc0] sm:$0xff] %vm333, %v4604
      %4637 = vst.msk [vmem:[#allocation3 + $0xc8] sm:$0xff] %vm333, %v4605
      %4638 = vst.msk [vmem:[#allocation3 + $0xd0] sm:$0xff] %vm333, %v4606
      %4639 = vst.msk [vmem:[#allocation3 + $0xd8] sm:$0xff] %vm333, %v4607
      %4640 = vst.msk [vmem:[#allocation3 + $0xe0] sm:$0xff] %vm333, %v4608
      %4641 = vst.msk [vmem:[#allocation3 + $0xe8] sm:$0xff] %vm333, %v4609
      %4642 = vst.msk [vmem:[#allocation3 + $0xf0] sm:$0xff] %vm333, %v4610
      %4643 = vst.msk [vmem:[#allocation3 + $0xf8] sm:$0xff] %vm333, %v4611
      %v4644 = vld [vmem:[#allocation4 + $0x2] sm:$0xff]
      %v4645 = vld [vmem:[#allocation4 + $0xa] sm:$0xff]
      %v4646 = vld [vmem:[#allocation4 + $0x1a] sm:$0xff]
      %v4647 = vld [vmem:[#allocation4 + $0x22] sm:$0xff]
      %v4648 = vld [vmem:[#allocation4 + $0x32] sm:$0xff]
      %v4649 = vld [vmem:[#allocation4 + $0x3a] sm:$0xff]
      %v4650 = vld [vmem:[#allocation4 + $0x4a] sm:$0xff]
      %v4651 = vld [vmem:[#allocation4 + $0x52] sm:$0xff]
      %v4652 = vld [vmem:[#allocation4 + $0x62] sm:$0xff]
      %v4653 = vld [vmem:[#allocation4 + $0x6a] sm:$0xff]
      %v4654 = vld [vmem:[#allocation4 + $0x7a] sm:$0xff]
      %v4655 = vld [vmem:[#allocation4 + $0x82] sm:$0xff]
      %v4656 = vld [vmem:[#allocation4 + $0x92] sm:$0xff]
      %v4657 = vld [vmem:[#allocation4 + $0x9a] sm:$0xff]
      %v4658 = vld [vmem:[#allocation4 + $0xaa] sm:$0xff]
      %v4659 = vld [vmem:[#allocation4 + $0xb2] sm:$0xff]
      %v4660 = vld [vmem:[#allocation4 + $0xc2] sm:$0xff]
      %v4661 = vld [vmem:[#allocation4 + $0xca] sm:$0xff]
      %v4662 = vld [vmem:[#allocation4 + $0xda] sm:$0xff]
      %v4663 = vld [vmem:[#allocation4 + $0xe2] sm:$0xff]
      %v4664 = vld [vmem:[#allocation4 + $0xf2] sm:$0xff]
      %v4665 = vld [vmem:[#allocation4 + $0xfa] sm:$0xff]
      %v4666 = vld [vmem:[#allocation4 + $0x10a] sm:$0xff]
      %v4667 = vld [vmem:[#allocation4 + $0x112] sm:$0xff]
      %v4668 = vld [vmem:[#allocation4 + $0x122] sm:$0xff]
      %v4669 = vld [vmem:[#allocation4 + $0x12a] sm:$0xff]
      %v4670 = vld [vmem:[#allocation4 + $0x13a] sm:$0xff]
      %v4671 = vld [vmem:[#allocation4 + $0x142] sm:$0xff]
      %v4672 = vld [vmem:[#allocation4 + $0x152] sm:$0xff]
      %v4673 = vld [vmem:[#allocation4 + $0x15a] sm:$0xff]
      %v4674 = vld [vmem:[#allocation4 + $0x16a] sm:$0xff]
      %v4675 = vld [vmem:[#allocation4 + $0x172] sm:$0xff]
      %v4676 = vld [vmem:[#allocation3] sm:$0xff]
      %v4677 = vld [vmem:[#allocation3 + $0x8] sm:$0xff]
      %v4678 = vld [vmem:[#allocation3 + $0x10] sm:$0xff]
      %v4679 = vld [vmem:[#allocation3 + $0x18] sm:$0xff]
      %v4680 = vld [vmem:[#allocation3 + $0x20] sm:$0xff]
      %v4681 = vld [vmem:[#allocation3 + $0x28] sm:$0xff]
      %v4682 = vld [vmem:[#allocation3 + $0x30] sm:$0xff]
      %v4683 = vld [vmem:[#allocation3 + $0x38] sm:$0xff]
      %v4684 = vld [vmem:[#allocation3 + $0x40] sm:$0xff]
      %v4685 = vld [vmem:[#allocation3 + $0x48] sm:$0xff]
      %v4686 = vld [vmem:[#allocation3 + $0x50] sm:$0xff]
      %v4687 = vld [vmem:[#allocation3 + $0x58] sm:$0xff]
      %v4688 = vld [vmem:[#allocation3 + $0x60] sm:$0xff]
      %v4689 = vld [vmem:[#allocation3 + $0x68] sm:$0xff]
      %v4690 = vld [vmem:[#allocation3 + $0x70] sm:$0xff]
      %v4691 = vld [vmem:[#allocation3 + $0x78] sm:$0xff]
      %v4692 = vld [vmem:[#allocation3 + $0x80] sm:$0xff]
      %v4693 = vld [vmem:[#allocation3 + $0x88] sm:$0xff]
      %v4694 = vld [vmem:[#allocation3 + $0x90] sm:$0xff]
      %v4695 = vld [vmem:[#allocation3 + $0x98] sm:$0xff]
      %v4696 = vld [vmem:[#allocation3 + $0xa0] sm:$0xff]
      %v4697 = vld [vmem:[#allocation3 + $0xa8] sm:$0xff]
      %v4698 = vld [vmem:[#allocation3 + $0xb0] sm:$0xff]
      %v4699 = vld [vmem:[#allocation3 + $0xb8] sm:$0xff]
      %v4700 = vld [vmem:[#allocation3 + $0xc0] sm:$0xff]
      %v4701 = vld [vmem:[#allocation3 + $0xc8] sm:$0xff]
      %v4702 = vld [vmem:[#allocation3 + $0xd0] sm:$0xff]
      %v4703 = vld [vmem:[#allocation3 + $0xd8] sm:$0xff]
      %v4704 = vld [vmem:[#allocation3 + $0xe0] sm:$0xff]
      %v4705 = vld [vmem:[#allocation3 + $0xe8] sm:$0xff]
      %v4706 = vld [vmem:[#allocation3 + $0xf0] sm:$0xff]
      %v4707 = vld [vmem:[#allocation3 + $0xf8] sm:$0xff]
      %s4708 = scalar_lea.vmem %s4, 16
      %v4709 = vld [vmem:[%s4708] sm:$0xff]
      %v4711 = vsel %vm3846, %v4644, 0
      %v4714 = vsel %vm3846, %v4645, 0
      %v4717 = vsel %vm3846, %v4646, 0
      %v4720 = vsel %vm3846, %v4647, 0
      %v4723 = vsel %vm3846, %v4648, 0
      %v4726 = vsel %vm3846, %v4649, 0
      %v4729 = vsel %vm3846, %v4650, 0
      %v4732 = vsel %vm3846, %v4651, 0
      %v4735 = vsel %vm3846, %v4652, 0
      %v4738 = vsel %vm3846, %v4653, 0
      %v4741 = vsel %vm3846, %v4654, 0
      %v4744 = vsel %vm3846, %v4655, 0
      %v4747 = vsel %vm3846, %v4656, 0
      %v4750 = vsel %vm3846, %v4657, 0
      %v4753 = vsel %vm3846, %v4658, 0
      %v4756 = vsel %vm3846, %v4659, 0
      %v4759 = vsel %vm3846, %v4660, 0
      %v4762 = vsel %vm3846, %v4661, 0
      %v4765 = vsel %vm3846, %v4662, 0
      %v4768 = vsel %vm3846, %v4663, 0
      %v4771 = vsel %vm3846, %v4664, 0
      %v4774 = vsel %vm3846, %v4665, 0
      %v4777 = vsel %vm3846, %v4666, 0
      %v4780 = vsel %vm3846, %v4667, 0
      %v4783 = vsel %vm3846, %v4668, 0
      %v4786 = vsel %vm3846, %v4669, 0
      %v4789 = vsel %vm3846, %v4670, 0
      %v4792 = vsel %vm3846, %v4671, 0
      %v4795 = vsel %vm3846, %v4672, 0
      %v4798 = vsel %vm3846, %v4673, 0
      %v4801 = vsel %vm3846, %v4674, 0
      %v4804 = vsel %vm3846, %v4675, 0
      %4806 = vmatpush.msra.mxu0 0.0
      %4807 = vmatpush.msra.mxu0 0.0
      %4808 = vmatpush.msra.mxu0 0.0
      %4809 = vmatpush.msra.mxu0 0.0
      %4810 = vmatpush.msra.mxu0 0.0
      %4811 = vmatpush.msra.mxu0 0.0
      %4812 = vmatpush.msra.mxu0 0.0
      %4813 = vmatpush.msra.mxu0 0.0
      %4814 = vmatpush.msra.mxu0 0.0
      %4815 = vmatpush.msra.mxu0 0.0
      %4816 = vmatpush.msra.mxu0 0.0
      %4817 = vmatpush.msra.mxu0 0.0
      %4818 = vmatpush.msra.mxu0 0.0
      %4819 = vmatpush.msra.mxu0 0.0
      %4820 = vmatpush.msra.mxu0 0.0
      %4821 = vmatpush.msra.mxu0 %v4709
      %4822 = vmatmul.f32.gmra.mxu0 %v4711
      %v4823 = vpop.f32.mrf.mxu0
      %v4824 = vadd.f32 0.0, %v4823
      %4825 = vmatmul.f32.gmra.mxu0 %v4714
      %v4826 = vpop.f32.mrf.mxu0
      %v4827 = vadd.f32 0.0, %v4826
      %4828 = vmatmul.f32.gmra.mxu0 %v4717
      %v4829 = vpop.f32.mrf.mxu0
      %v4830 = vadd.f32 0.0, %v4829
      %4831 = vmatmul.f32.gmra.mxu0 %v4720
      %v4832 = vpop.f32.mrf.mxu0
      %v4833 = vadd.f32 0.0, %v4832
      %4834 = vmatmul.f32.gmra.mxu0 %v4723
      %v4835 = vpop.f32.mrf.mxu0
      %v4836 = vadd.f32 0.0, %v4835
      %4837 = vmatmul.f32.gmra.mxu0 %v4726
      %v4838 = vpop.f32.mrf.mxu0
      %v4839 = vadd.f32 0.0, %v4838
      %4840 = vmatmul.f32.gmra.mxu0 %v4729
      %v4841 = vpop.f32.mrf.mxu0
      %v4842 = vadd.f32 0.0, %v4841
      %4843 = vmatmul.f32.gmra.mxu0 %v4732
      %v4844 = vpop.f32.mrf.mxu0
      %v4845 = vadd.f32 0.0, %v4844
      %4846 = vmatmul.f32.gmra.mxu0 %v4735
      %v4847 = vpop.f32.mrf.mxu0
      %v4848 = vadd.f32 0.0, %v4847
      %4849 = vmatmul.f32.gmra.mxu0 %v4738
      %v4850 = vpop.f32.mrf.mxu0
      %v4851 = vadd.f32 0.0, %v4850
      %4852 = vmatmul.f32.gmra.mxu0 %v4741
      %v4853 = vpop.f32.mrf.mxu0
      %v4854 = vadd.f32 0.0, %v4853
      %4855 = vmatmul.f32.gmra.mxu0 %v4744
      %v4856 = vpop.f32.mrf.mxu0
      %v4857 = vadd.f32 0.0, %v4856
      %4858 = vmatmul.f32.gmra.mxu0 %v4747
      %v4859 = vpop.f32.mrf.mxu0
      %v4860 = vadd.f32 0.0, %v4859
      %4861 = vmatmul.f32.gmra.mxu0 %v4750
      %v4862 = vpop.f32.mrf.mxu0
      %v4863 = vadd.f32 0.0, %v4862
      %4864 = vmatmul.f32.gmra.mxu0 %v4753
      %v4865 = vpop.f32.mrf.mxu0
      %v4866 = vadd.f32 0.0, %v4865
      %4867 = vmatmul.f32.gmra.mxu0 %v4756
      %v4868 = vpop.f32.mrf.mxu0
      %v4869 = vadd.f32 0.0, %v4868
      %4870 = vmatmul.f32.gmra.mxu0 %v4759
      %v4871 = vpop.f32.mrf.mxu0
      %v4872 = vadd.f32 0.0, %v4871
      %4873 = vmatmul.f32.gmra.mxu0 %v4762
      %v4874 = vpop.f32.mrf.mxu0
      %v4875 = vadd.f32 0.0, %v4874
      %4876 = vmatmul.f32.gmra.mxu0 %v4765
      %v4877 = vpop.f32.mrf.mxu0
      %v4878 = vadd.f32 0.0, %v4877
      %4879 = vmatmul.f32.gmra.mxu0 %v4768
      %v4880 = vpop.f32.mrf.mxu0
      %v4881 = vadd.f32 0.0, %v4880
      %4882 = vmatmul.f32.gmra.mxu0 %v4771
      %v4883 = vpop.f32.mrf.mxu0
      %v4884 = vadd.f32 0.0, %v4883
      %4885 = vmatmul.f32.gmra.mxu0 %v4774
      %v4886 = vpop.f32.mrf.mxu0
      %v4887 = vadd.f32 0.0, %v4886
      %4888 = vmatmul.f32.gmra.mxu0 %v4777
      %v4889 = vpop.f32.mrf.mxu0
      %v4890 = vadd.f32 0.0, %v4889
      %4891 = vmatmul.f32.gmra.mxu0 %v4780
      %v4892 = vpop.f32.mrf.mxu0
      %v4893 = vadd.f32 0.0, %v4892
      %4894 = vmatmul.f32.gmra.mxu0 %v4783
      %v4895 = vpop.f32.mrf.mxu0
      %v4896 = vadd.f32 0.0, %v4895
      %4897 = vmatmul.f32.gmra.mxu0 %v4786
      %v4898 = vpop.f32.mrf.mxu0
      %v4899 = vadd.f32 0.0, %v4898
      %4900 = vmatmul.f32.gmra.mxu0 %v4789
      %v4901 = vpop.f32.mrf.mxu0
      %v4902 = vadd.f32 0.0, %v4901
      %4903 = vmatmul.f32.gmra.mxu0 %v4792
      %v4904 = vpop.f32.mrf.mxu0
      %v4905 = vadd.f32 0.0, %v4904
      %4906 = vmatmul.f32.gmra.mxu0 %v4795
      %v4907 = vpop.f32.mrf.mxu0
      %v4908 = vadd.f32 0.0, %v4907
      %4909 = vmatmul.f32.gmra.mxu0 %v4798
      %v4910 = vpop.f32.mrf.mxu0
      %v4911 = vadd.f32 0.0, %v4910
      %4912 = vmatmul.f32.gmra.mxu0 %v4801
      %v4913 = vpop.f32.mrf.mxu0
      %v4914 = vadd.f32 0.0, %v4913
      %4915 = vmatmul.f32.gmra.mxu0 %v4804
      %v4916 = vpop.f32.mrf.mxu0
      %v4917 = vadd.f32 0.0, %v4916
      %4918 = vdwg.mxu0
      %v4919 = vadd.f32 %v4676, %v4824
      %v4920 = vadd.f32 %v4677, %v4827
      %v4921 = vadd.f32 %v4678, %v4830
      %v4922 = vadd.f32 %v4679, %v4833
      %v4923 = vadd.f32 %v4680, %v4836
      %v4924 = vadd.f32 %v4681, %v4839
      %v4925 = vadd.f32 %v4682, %v4842
      %v4926 = vadd.f32 %v4683, %v4845
      %v4927 = vadd.f32 %v4684, %v4848
      %v4928 = vadd.f32 %v4685, %v4851
      %v4929 = vadd.f32 %v4686, %v4854
      %v4930 = vadd.f32 %v4687, %v4857
      %v4931 = vadd.f32 %v4688, %v4860
      %v4932 = vadd.f32 %v4689, %v4863
      %v4933 = vadd.f32 %v4690, %v4866
      %v4934 = vadd.f32 %v4691, %v4869
      %v4935 = vadd.f32 %v4692, %v4872
      %v4936 = vadd.f32 %v4693, %v4875
      %v4937 = vadd.f32 %v4694, %v4878
      %v4938 = vadd.f32 %v4695, %v4881
      %v4939 = vadd.f32 %v4696, %v4884
      %v4940 = vadd.f32 %v4697, %v4887
      %v4941 = vadd.f32 %v4698, %v4890
      %v4942 = vadd.f32 %v4699, %v4893
      %v4943 = vadd.f32 %v4700, %v4896
      %v4944 = vadd.f32 %v4701, %v4899
      %v4945 = vadd.f32 %v4702, %v4902
      %v4946 = vadd.f32 %v4703, %v4905
      %v4947 = vadd.f32 %v4704, %v4908
      %v4948 = vadd.f32 %v4705, %v4911
      %v4949 = vadd.f32 %v4706, %v4914
      %v4950 = vadd.f32 %v4707, %v4917
      %4951 = vst.msk [vmem:[#allocation3] sm:$0xff] %vm333, %v4919
      %4952 = vst.msk [vmem:[#allocation3 + $0x8] sm:$0xff] %vm333, %v4920
      %4953 = vst.msk [vmem:[#allocation3 + $0x10] sm:$0xff] %vm333, %v4921
      %4954 = vst.msk [vmem:[#allocation3 + $0x18] sm:$0xff] %vm333, %v4922
      %4955 = vst.msk [vmem:[#allocation3 + $0x20] sm:$0xff] %vm333, %v4923
      %4956 = vst.msk [vmem:[#allocation3 + $0x28] sm:$0xff] %vm333, %v4924
      %4957 = vst.msk [vmem:[#allocation3 + $0x30] sm:$0xff] %vm333, %v4925
      %4958 = vst.msk [vmem:[#allocation3 + $0x38] sm:$0xff] %vm333, %v4926
      %4959 = vst.msk [vmem:[#allocation3 + $0x40] sm:$0xff] %vm333, %v4927
      %4960 = vst.msk [vmem:[#allocation3 + $0x48] sm:$0xff] %vm333, %v4928
      %4961 = vst.msk [vmem:[#allocation3 + $0x50] sm:$0xff] %vm333, %v4929
      %4962 = vst.msk [vmem:[#allocation3 + $0x58] sm:$0xff] %vm333, %v4930
      %4963 = vst.msk [vmem:[#allocation3 + $0x60] sm:$0xff] %vm333, %v4931
      %4964 = vst.msk [vmem:[#allocation3 + $0x68] sm:$0xff] %vm333, %v4932
      %4965 = vst.msk [vmem:[#allocation3 + $0x70] sm:$0xff] %vm333, %v4933
      %4966 = vst.msk [vmem:[#allocation3 + $0x78] sm:$0xff] %vm333, %v4934
      %4967 = vst.msk [vmem:[#allocation3 + $0x80] sm:$0xff] %vm333, %v4935
      %4968 = vst.msk [vmem:[#allocation3 + $0x88] sm:$0xff] %vm333, %v4936
      %4969 = vst.msk [vmem:[#allocation3 + $0x90] sm:$0xff] %vm333, %v4937
      %4970 = vst.msk [vmem:[#allocation3 + $0x98] sm:$0xff] %vm333, %v4938
      %4971 = vst.msk [vmem:[#allocation3 + $0xa0] sm:$0xff] %vm333, %v4939
      %4972 = vst.msk [vmem:[#allocation3 + $0xa8] sm:$0xff] %vm333, %v4940
      %4973 = vst.msk [vmem:[#allocation3 + $0xb0] sm:$0xff] %vm333, %v4941
      %4974 = vst.msk [vmem:[#allocation3 + $0xb8] sm:$0xff] %vm333, %v4942
      %4975 = vst.msk [vmem:[#allocation3 + $0xc0] sm:$0xff] %vm333, %v4943
      %4976 = vst.msk [vmem:[#allocation3 + $0xc8] sm:$0xff] %vm333, %v4944
      %4977 = vst.msk [vmem:[#allocation3 + $0xd0] sm:$0xff] %vm333, %v4945
      %4978 = vst.msk [vmem:[#allocation3 + $0xd8] sm:$0xff] %vm333, %v4946
      %4979 = vst.msk [vmem:[#allocation3 + $0xe0] sm:$0xff] %vm333, %v4947
      %4980 = vst.msk [vmem:[#allocation3 + $0xe8] sm:$0xff] %vm333, %v4948
      %4981 = vst.msk [vmem:[#allocation3 + $0xf0] sm:$0xff] %vm333, %v4949
      %4982 = vst.msk [vmem:[#allocation3 + $0xf8] sm:$0xff] %vm333, %v4950
      %v4983 = vld [vmem:[%s3902] sm:$0xff]
      %v4984 = vld [vmem:[%s3902 + $0x8] sm:$0xff]
      %v4985 = vld [vmem:[%s3902 + $0x18] sm:$0xff]
      %v4986 = vld [vmem:[%s3902 + $0x20] sm:$0xff]
      %v4987 = vld [vmem:[%s3902 + $0x30] sm:$0xff]
      %v4988 = vld [vmem:[%s3902 + $0x38] sm:$0xff]
      %v4989 = vld [vmem:[%s3902 + $0x48] sm:$0xff]
      %v4990 = vld [vmem:[%s3902 + $0x50] sm:$0xff]
      %v4991 = vld [vmem:[%s3902 + $0x60] sm:$0xff]
      %v4992 = vld [vmem:[%s3902 + $0x68] sm:$0xff]
      %v4993 = vld [vmem:[%s3902 + $0x78] sm:$0xff]
      %v4994 = vld [vmem:[%s3902 + $0x80] sm:$0xff]
      %v4995 = vld [vmem:[%s3902 + $0x90] sm:$0xff]
      %v4996 = vld [vmem:[%s3902 + $0x98] sm:$0xff]
      %v4997 = vld [vmem:[%s3902 + $0xa8] sm:$0xff]
      %v4998 = vld [vmem:[%s3902 + $0xb0] sm:$0xff]
      %v4999 = vld [vmem:[%s3902 + $0xc0] sm:$0xff]
      %v5000 = vld [vmem:[%s3902 + $0xc8] sm:$0xff]
      %v5001 = vld [vmem:[%s3902 + $0xd8] sm:$0xff]
      %v5002 = vld [vmem:[%s3902 + $0xe0] sm:$0xff]
      %v5003 = vld [vmem:[%s3902 + $0xf0] sm:$0xff]
      %v5004 = vld [vmem:[%s3902 + $0xf8] sm:$0xff]
      %v5005 = vld [vmem:[%s3902 + $0x108] sm:$0xff]
      %v5006 = vld [vmem:[%s3902 + $0x110] sm:$0xff]
      %v5007 = vld [vmem:[%s3902 + $0x120] sm:$0xff]
      %v5008 = vld [vmem:[%s3902 + $0x128] sm:$0xff]
      %v5009 = vld [vmem:[%s3902 + $0x138] sm:$0xff]
      %v5010 = vld [vmem:[%s3902 + $0x140] sm:$0xff]
      %v5011 = vld [vmem:[%s3902 + $0x150] sm:$0xff]
      %v5012 = vld [vmem:[%s3902 + $0x158] sm:$0xff]
      %v5013 = vld [vmem:[%s3902 + $0x168] sm:$0xff]
      %v5014 = vld [vmem:[%s3902 + $0x170] sm:$0xff]
      %v5015 = vld [vmem:[#allocation3] sm:$0xff]
      %v5016 = vld [vmem:[#allocation3 + $0x8] sm:$0xff]
      %v5017 = vld [vmem:[#allocation3 + $0x10] sm:$0xff]
      %v5018 = vld [vmem:[#allocation3 + $0x18] sm:$0xff]
      %v5019 = vld [vmem:[#allocation3 + $0x20] sm:$0xff]
      %v5020 = vld [vmem:[#allocation3 + $0x28] sm:$0xff]
      %v5021 = vld [vmem:[#allocation3 + $0x30] sm:$0xff]
      %v5022 = vld [vmem:[#allocation3 + $0x38] sm:$0xff]
      %v5023 = vld [vmem:[#allocation3 + $0x40] sm:$0xff]
      %v5024 = vld [vmem:[#allocation3 + $0x48] sm:$0xff]
      %v5025 = vld [vmem:[#allocation3 + $0x50] sm:$0xff]
      %v5026 = vld [vmem:[#allocation3 + $0x58] sm:$0xff]
      %v5027 = vld [vmem:[#allocation3 + $0x60] sm:$0xff]
      %v5028 = vld [vmem:[#allocation3 + $0x68] sm:$0xff]
      %v5029 = vld [vmem:[#allocation3 + $0x70] sm:$0xff]
      %v5030 = vld [vmem:[#allocation3 + $0x78] sm:$0xff]
      %v5031 = vld [vmem:[#allocation3 + $0x80] sm:$0xff]
      %v5032 = vld [vmem:[#allocation3 + $0x88] sm:$0xff]
      %v5033 = vld [vmem:[#allocation3 + $0x90] sm:$0xff]
      %v5034 = vld [vmem:[#allocation3 + $0x98] sm:$0xff]
      %v5035 = vld [vmem:[#allocation3 + $0xa0] sm:$0xff]
      %v5036 = vld [vmem:[#allocation3 + $0xa8] sm:$0xff]
      %v5037 = vld [vmem:[#allocation3 + $0xb0] sm:$0xff]
      %v5038 = vld [vmem:[#allocation3 + $0xb8] sm:$0xff]
      %v5039 = vld [vmem:[#allocation3 + $0xc0] sm:$0xff]
      %v5040 = vld [vmem:[#allocation3 + $0xc8] sm:$0xff]
      %v5041 = vld [vmem:[#allocation3 + $0xd0] sm:$0xff]
      %v5042 = vld [vmem:[#allocation3 + $0xd8] sm:$0xff]
      %v5043 = vld [vmem:[#allocation3 + $0xe0] sm:$0xff]
      %v5044 = vld [vmem:[#allocation3 + $0xe8] sm:$0xff]
      %v5045 = vld [vmem:[#allocation3 + $0xf0] sm:$0xff]
      %v5046 = vld [vmem:[#allocation3 + $0xf8] sm:$0xff]
      %s5047 = scalar_lea.vmem %s4, 24
      %v5048 = vld [vmem:[%s5047] sm:$0xff]
      %v5050 = vsel %vm3846, %v4983, 0
      %v5053 = vsel %vm3846, %v4984, 0
      %v5056 = vsel %vm3846, %v4985, 0
      %v5059 = vsel %vm3846, %v4986, 0
      %v5062 = vsel %vm3846, %v4987, 0
      %v5065 = vsel %vm3846, %v4988, 0
      %v5068 = vsel %vm3846, %v4989, 0
      %v5071 = vsel %vm3846, %v4990, 0
      %v5074 = vsel %vm3846, %v4991, 0
      %v5077 = vsel %vm3846, %v4992, 0
      %v5080 = vsel %vm3846, %v4993, 0
      %v5083 = vsel %vm3846, %v4994, 0
      %v5086 = vsel %vm3846, %v4995, 0
      %v5089 = vsel %vm3846, %v4996, 0
      %v5092 = vsel %vm3846, %v4997, 0
      %v5095 = vsel %vm3846, %v4998, 0
      %v5098 = vsel %vm3846, %v4999, 0
      %v5101 = vsel %vm3846, %v5000, 0
      %v5104 = vsel %vm3846, %v5001, 0
      %v5107 = vsel %vm3846, %v5002, 0
      %v5110 = vsel %vm3846, %v5003, 0
      %v5113 = vsel %vm3846, %v5004, 0
      %v5116 = vsel %vm3846, %v5005, 0
      %v5119 = vsel %vm3846, %v5006, 0
      %v5122 = vsel %vm3846, %v5007, 0
      %v5125 = vsel %vm3846, %v5008, 0
      %v5128 = vsel %vm3846, %v5009, 0
      %v5131 = vsel %vm3846, %v5010, 0
      %v5134 = vsel %vm3846, %v5011, 0
      %v5137 = vsel %vm3846, %v5012, 0
      %v5140 = vsel %vm3846, %v5013, 0
      %v5143 = vsel %vm3846, %v5014, 0
      %5145 = vmatpush.msra.mxu0 0.0
      %5146 = vmatpush.msra.mxu0 0.0
      %5147 = vmatpush.msra.mxu0 0.0
      %5148 = vmatpush.msra.mxu0 0.0
      %5149 = vmatpush.msra.mxu0 0.0
      %5150 = vmatpush.msra.mxu0 0.0
      %5151 = vmatpush.msra.mxu0 0.0
      %5152 = vmatpush.msra.mxu0 0.0
      %5153 = vmatpush.msra.mxu0 0.0
      %5154 = vmatpush.msra.mxu0 0.0
      %5155 = vmatpush.msra.mxu0 0.0
      %5156 = vmatpush.msra.mxu0 0.0
      %5157 = vmatpush.msra.mxu0 0.0
      %5158 = vmatpush.msra.mxu0 0.0
      %5159 = vmatpush.msra.mxu0 0.0
      %5160 = vmatpush.msra.mxu0 %v5048
      %5161 = vmatmul.f32.gmra.mxu0 %v5050
      %v5162 = vpop.f32.mrf.mxu0
      %v5163 = vadd.f32 0.0, %v5162
      %5164 = vmatmul.f32.gmra.mxu0 %v5053
      %v5165 = vpop.f32.mrf.mxu0
      %v5166 = vadd.f32 0.0, %v5165
      %5167 = vmatmul.f32.gmra.mxu0 %v5056
      %v5168 = vpop.f32.mrf.mxu0
      %v5169 = vadd.f32 0.0, %v5168
      %5170 = vmatmul.f32.gmra.mxu0 %v5059
      %v5171 = vpop.f32.mrf.mxu0
      %v5172 = vadd.f32 0.0, %v5171
      %5173 = vmatmul.f32.gmra.mxu0 %v5062
      %v5174 = vpop.f32.mrf.mxu0
      %v5175 = vadd.f32 0.0, %v5174
      %5176 = vmatmul.f32.gmra.mxu0 %v5065
      %v5177 = vpop.f32.mrf.mxu0
      %v5178 = vadd.f32 0.0, %v5177
      %5179 = vmatmul.f32.gmra.mxu0 %v5068
      %v5180 = vpop.f32.mrf.mxu0
      %v5181 = vadd.f32 0.0, %v5180
      %5182 = vmatmul.f32.gmra.mxu0 %v5071
      %v5183 = vpop.f32.mrf.mxu0
      %v5184 = vadd.f32 0.0, %v5183
      %5185 = vmatmul.f32.gmra.mxu0 %v5074
      %v5186 = vpop.f32.mrf.mxu0
      %v5187 = vadd.f32 0.0, %v5186
      %5188 = vmatmul.f32.gmra.mxu0 %v5077
      %v5189 = vpop.f32.mrf.mxu0
      %v5190 = vadd.f32 0.0, %v5189
      %5191 = vmatmul.f32.gmra.mxu0 %v5080
      %v5192 = vpop.f32.mrf.mxu0
      %v5193 = vadd.f32 0.0, %v5192
      %5194 = vmatmul.f32.gmra.mxu0 %v5083
      %v5195 = vpop.f32.mrf.mxu0
      %v5196 = vadd.f32 0.0, %v5195
      %5197 = vmatmul.f32.gmra.mxu0 %v5086
      %v5198 = vpop.f32.mrf.mxu0
      %v5199 = vadd.f32 0.0, %v5198
      %5200 = vmatmul.f32.gmra.mxu0 %v5089
      %v5201 = vpop.f32.mrf.mxu0
      %v5202 = vadd.f32 0.0, %v5201
      %5203 = vmatmul.f32.gmra.mxu0 %v5092
      %v5204 = vpop.f32.mrf.mxu0
      %v5205 = vadd.f32 0.0, %v5204
      %5206 = vmatmul.f32.gmra.mxu0 %v5095
      %v5207 = vpop.f32.mrf.mxu0
      %v5208 = vadd.f32 0.0, %v5207
      %5209 = vmatmul.f32.gmra.mxu0 %v5098
      %v5210 = vpop.f32.mrf.mxu0
      %v5211 = vadd.f32 0.0, %v5210
      %5212 = vmatmul.f32.gmra.mxu0 %v5101
      %v5213 = vpop.f32.mrf.mxu0
      %v5214 = vadd.f32 0.0, %v5213
      %5215 = vmatmul.f32.gmra.mxu0 %v5104
      %v5216 = vpop.f32.mrf.mxu0
      %v5217 = vadd.f32 0.0, %v5216
      %5218 = vmatmul.f32.gmra.mxu0 %v5107
      %v5219 = vpop.f32.mrf.mxu0
      %v5220 = vadd.f32 0.0, %v5219
      %5221 = vmatmul.f32.gmra.mxu0 %v5110
      %v5222 = vpop.f32.mrf.mxu0
      %v5223 = vadd.f32 0.0, %v5222
      %5224 = vmatmul.f32.gmra.mxu0 %v5113
      %v5225 = vpop.f32.mrf.mxu0
      %v5226 = vadd.f32 0.0, %v5225
      %5227 = vmatmul.f32.gmra.mxu0 %v5116
      %v5228 = vpop.f32.mrf.mxu0
      %v5229 = vadd.f32 0.0, %v5228
      %5230 = vmatmul.f32.gmra.mxu0 %v5119
      %v5231 = vpop.f32.mrf.mxu0
      %v5232 = vadd.f32 0.0, %v5231
      %5233 = vmatmul.f32.gmra.mxu0 %v5122
      %v5234 = vpop.f32.mrf.mxu0
      %v5235 = vadd.f32 0.0, %v5234
      %5236 = vmatmul.f32.gmra.mxu0 %v5125
      %v5237 = vpop.f32.mrf.mxu0
      %v5238 = vadd.f32 0.0, %v5237
      %5239 = vmatmul.f32.gmra.mxu0 %v5128
      %v5240 = vpop.f32.mrf.mxu0
      %v5241 = vadd.f32 0.0, %v5240
      %5242 = vmatmul.f32.gmra.mxu0 %v5131
      %v5243 = vpop.f32.mrf.mxu0
      %v5244 = vadd.f32 0.0, %v5243
      %5245 = vmatmul.f32.gmra.mxu0 %v5134
      %v5246 = vpop.f32.mrf.mxu0
      %v5247 = vadd.f32 0.0, %v5246
      %5248 = vmatmul.f32.gmra.mxu0 %v5137
      %v5249 = vpop.f32.mrf.mxu0
      %v5250 = vadd.f32 0.0, %v5249
      %5251 = vmatmul.f32.gmra.mxu0 %v5140
      %v5252 = vpop.f32.mrf.mxu0
      %v5253 = vadd.f32 0.0, %v5252
      %5254 = vmatmul.f32.gmra.mxu0 %v5143
      %v5255 = vpop.f32.mrf.mxu0
      %v5256 = vadd.f32 0.0, %v5255
      %5257 = vdwg.mxu0
      %v5258 = vadd.f32 %v5015, %v5163
      %v5259 = vadd.f32 %v5016, %v5166
      %v5260 = vadd.f32 %v5017, %v5169
      %v5261 = vadd.f32 %v5018, %v5172
      %v5262 = vadd.f32 %v5019, %v5175
      %v5263 = vadd.f32 %v5020, %v5178
      %v5264 = vadd.f32 %v5021, %v5181
      %v5265 = vadd.f32 %v5022, %v5184
      %v5266 = vadd.f32 %v5023, %v5187
      %v5267 = vadd.f32 %v5024, %v5190
      %v5268 = vadd.f32 %v5025, %v5193
      %v5269 = vadd.f32 %v5026, %v5196
      %v5270 = vadd.f32 %v5027, %v5199
      %v5271 = vadd.f32 %v5028, %v5202
      %v5272 = vadd.f32 %v5029, %v5205
      %v5273 = vadd.f32 %v5030, %v5208
      %v5274 = vadd.f32 %v5031, %v5211
      %v5275 = vadd.f32 %v5032, %v5214
      %v5276 = vadd.f32 %v5033, %v5217
      %v5277 = vadd.f32 %v5034, %v5220
      %v5278 = vadd.f32 %v5035, %v5223
      %v5279 = vadd.f32 %v5036, %v5226
      %v5280 = vadd.f32 %v5037, %v5229
      %v5281 = vadd.f32 %v5038, %v5232
      %v5282 = vadd.f32 %v5039, %v5235
      %v5283 = vadd.f32 %v5040, %v5238
      %v5284 = vadd.f32 %v5041, %v5241
      %v5285 = vadd.f32 %v5042, %v5244
      %v5286 = vadd.f32 %v5043, %v5247
      %v5287 = vadd.f32 %v5044, %v5250
      %v5288 = vadd.f32 %v5045, %v5253
      %v5289 = vadd.f32 %v5046, %v5256
      %5290 = vst.msk [vmem:[#allocation3] sm:$0xff] %vm333, %v5258
      %5291 = vst.msk [vmem:[#allocation3 + $0x8] sm:$0xff] %vm333, %v5259
      %5292 = vst.msk [vmem:[#allocation3 + $0x10] sm:$0xff] %vm333, %v5260
      %5293 = vst.msk [vmem:[#allocation3 + $0x18] sm:$0xff] %vm333, %v5261
      %5294 = vst.msk [vmem:[#allocation3 + $0x20] sm:$0xff] %vm333, %v5262
      %5295 = vst.msk [vmem:[#allocation3 + $0x28] sm:$0xff] %vm333, %v5263
      %5296 = vst.msk [vmem:[#allocation3 + $0x30] sm:$0xff] %vm333, %v5264
      %5297 = vst.msk [vmem:[#allocation3 + $0x38] sm:$0xff] %vm333, %v5265
      %5298 = vst.msk [vmem:[#allocation3 + $0x40] sm:$0xff] %vm333, %v5266
      %5299 = vst.msk [vmem:[#allocation3 + $0x48] sm:$0xff] %vm333, %v5267
      %5300 = vst.msk [vmem:[#allocation3 + $0x50] sm:$0xff] %vm333, %v5268
      %5301 = vst.msk [vmem:[#allocation3 + $0x58] sm:$0xff] %vm333, %v5269
      %5302 = vst.msk [vmem:[#allocation3 + $0x60] sm:$0xff] %vm333, %v5270
      %5303 = vst.msk [vmem:[#allocation3 + $0x68] sm:$0xff] %vm333, %v5271
      %5304 = vst.msk [vmem:[#allocation3 + $0x70] sm:$0xff] %vm333, %v5272
      %5305 = vst.msk [vmem:[#allocation3 + $0x78] sm:$0xff] %vm333, %v5273
      %5306 = vst.msk [vmem:[#allocation3 + $0x80] sm:$0xff] %vm333, %v5274
      %5307 = vst.msk [vmem:[#allocation3 + $0x88] sm:$0xff] %vm333, %v5275
      %5308 = vst.msk [vmem:[#allocation3 + $0x90] sm:$0xff] %vm333, %v5276
      %5309 = vst.msk [vmem:[#allocation3 + $0x98] sm:$0xff] %vm333, %v5277
      %5310 = vst.msk [vmem:[#allocation3 + $0xa0] sm:$0xff] %vm333, %v5278
      %5311 = vst.msk [vmem:[#allocation3 + $0xa8] sm:$0xff] %vm333, %v5279
      %5312 = vst.msk [vmem:[#allocation3 + $0xb0] sm:$0xff] %vm333, %v5280
      %5313 = vst.msk [vmem:[#allocation3 + $0xb8] sm:$0xff] %vm333, %v5281
      %5314 = vst.msk [vmem:[#allocation3 + $0xc0] sm:$0xff] %vm333, %v5282
      %5315 = vst.msk [vmem:[#allocation3 + $0xc8] sm:$0xff] %vm333, %v5283
      %5316 = vst.msk [vmem:[#allocation3 + $0xd0] sm:$0xff] %vm333, %v5284
      %5317 = vst.msk [vmem:[#allocation3 + $0xd8] sm:$0xff] %vm333, %v5285
      %5318 = vst.msk [vmem:[#allocation3 + $0xe0] sm:$0xff] %vm333, %v5286
      %5319 = vst.msk [vmem:[#allocation3 + $0xe8] sm:$0xff] %vm333, %v5287
      %5320 = vst.msk [vmem:[#allocation3 + $0xf0] sm:$0xff] %vm333, %v5288
      %5321 = vst.msk [vmem:[#allocation3 + $0xf8] sm:$0xff] %vm333, %v5289
      %v5322 = vld [vmem:[%s3902 + $0x1] sm:$0xff]
      %v5323 = vld [vmem:[%s3902 + $0x9] sm:$0xff]
      %v5324 = vld [vmem:[%s3902 + $0x19] sm:$0xff]
      %v5325 = vld [vmem:[%s3902 + $0x21] sm:$0xff]
      %v5326 = vld [vmem:[%s3902 + $0x31] sm:$0xff]
      %v5327 = vld [vmem:[%s3902 + $0x39] sm:$0xff]
      %v5328 = vld [vmem:[%s3902 + $0x49] sm:$0xff]
      %v5329 = vld [vmem:[%s3902 + $0x51] sm:$0xff]
      %v5330 = vld [vmem:[%s3902 + $0x61] sm:$0xff]
      %v5331 = vld [vmem:[%s3902 + $0x69] sm:$0xff]
      %v5332 = vld [vmem:[%s3902 + $0x79] sm:$0xff]
      %v5333 = vld [vmem:[%s3902 + $0x81] sm:$0xff]
      %v5334 = vld [vmem:[%s3902 + $0x91] sm:$0xff]
      %v5335 = vld [vmem:[%s3902 + $0x99] sm:$0xff]
      %v5336 = vld [vmem:[%s3902 + $0xa9] sm:$0xff]
      %v5337 = vld [vmem:[%s3902 + $0xb1] sm:$0xff]
      %v5338 = vld [vmem:[%s3902 + $0xc1] sm:$0xff]
      %v5339 = vld [vmem:[%s3902 + $0xc9] sm:$0xff]
      %v5340 = vld [vmem:[%s3902 + $0xd9] sm:$0xff]
      %v5341 = vld [vmem:[%s3902 + $0xe1] sm:$0xff]
      %v5342 = vld [vmem:[%s3902 + $0xf1] sm:$0xff]
      %v5343 = vld [vmem:[%s3902 + $0xf9] sm:$0xff]
      %v5344 = vld [vmem:[%s3902 + $0x109] sm:$0xff]
      %v5345 = vld [vmem:[%s3902 + $0x111] sm:$0xff]
      %v5346 = vld [vmem:[%s3902 + $0x121] sm:$0xff]
      %v5347 = vld [vmem:[%s3902 + $0x129] sm:$0xff]
      %v5348 = vld [vmem:[%s3902 + $0x139] sm:$0xff]
      %v5349 = vld [vmem:[%s3902 + $0x141] sm:$0xff]
      %v5350 = vld [vmem:[%s3902 + $0x151] sm:$0xff]
      %v5351 = vld [vmem:[%s3902 + $0x159] sm:$0xff]
      %v5352 = vld [vmem:[%s3902 + $0x169] sm:$0xff]
      %v5353 = vld [vmem:[%s3902 + $0x171] sm:$0xff]
      %v5354 = vld [vmem:[#allocation3] sm:$0xff]
      %v5355 = vld [vmem:[#allocation3 + $0x8] sm:$0xff]
      %v5356 = vld [vmem:[#allocation3 + $0x10] sm:$0xff]
      %v5357 = vld [vmem:[#allocation3 + $0x18] sm:$0xff]
      %v5358 = vld [vmem:[#allocation3 + $0x20] sm:$0xff]
      %v5359 = vld [vmem:[#allocation3 + $0x28] sm:$0xff]
      %v5360 = vld [vmem:[#allocation3 + $0x30] sm:$0xff]
      %v5361 = vld [vmem:[#allocation3 + $0x38] sm:$0xff]
      %v5362 = vld [vmem:[#allocation3 + $0x40] sm:$0xff]
      %v5363 = vld [vmem:[#allocation3 + $0x48] sm:$0xff]
      %v5364 = vld [vmem:[#allocation3 + $0x50] sm:$0xff]
      %v5365 = vld [vmem:[#allocation3 + $0x58] sm:$0xff]
      %v5366 = vld [vmem:[#allocation3 + $0x60] sm:$0xff]
      %v5367 = vld [vmem:[#allocation3 + $0x68] sm:$0xff]
      %v5368 = vld [vmem:[#allocation3 + $0x70] sm:$0xff]
      %v5369 = vld [vmem:[#allocation3 + $0x78] sm:$0xff]
      %v5370 = vld [vmem:[#allocation3 + $0x80] sm:$0xff]
      %v5371 = vld [vmem:[#allocation3 + $0x88] sm:$0xff]
      %v5372 = vld [vmem:[#allocation3 + $0x90] sm:$0xff]
      %v5373 = vld [vmem:[#allocation3 + $0x98] sm:$0xff]
      %v5374 = vld [vmem:[#allocation3 + $0xa0] sm:$0xff]
      %v5375 = vld [vmem:[#allocation3 + $0xa8] sm:$0xff]
      %v5376 = vld [vmem:[#allocation3 + $0xb0] sm:$0xff]
      %v5377 = vld [vmem:[#allocation3 + $0xb8] sm:$0xff]
      %v5378 = vld [vmem:[#allocation3 + $0xc0] sm:$0xff]
      %v5379 = vld [vmem:[#allocation3 + $0xc8] sm:$0xff]
      %v5380 = vld [vmem:[#allocation3 + $0xd0] sm:$0xff]
      %v5381 = vld [vmem:[#allocation3 + $0xd8] sm:$0xff]
      %v5382 = vld [vmem:[#allocation3 + $0xe0] sm:$0xff]
      %v5383 = vld [vmem:[#allocation3 + $0xe8] sm:$0xff]
      %v5384 = vld [vmem:[#allocation3 + $0xf0] sm:$0xff]
      %v5385 = vld [vmem:[#allocation3 + $0xf8] sm:$0xff]
      %s5386 = scalar_lea.vmem %s4, 32
      %v5387 = vld [vmem:[%s5386] sm:$0xff]
      %v5389 = vsel %vm3846, %v5322, 0
      %v5392 = vsel %vm3846, %v5323, 0
      %v5395 = vsel %vm3846, %v5324, 0
      %v5398 = vsel %vm3846, %v5325, 0
      %v5401 = vsel %vm3846, %v5326, 0
      %v5404 = vsel %vm3846, %v5327, 0
      %v5407 = vsel %vm3846, %v5328, 0
      %v5410 = vsel %vm3846, %v5329, 0
      %v5413 = vsel %vm3846, %v5330, 0
      %v5416 = vsel %vm3846, %v5331, 0
      %v5419 = vsel %vm3846, %v5332, 0
      %v5422 = vsel %vm3846, %v5333, 0
      %v5425 = vsel %vm3846, %v5334, 0
      %v5428 = vsel %vm3846, %v5335, 0
      %v5431 = vsel %vm3846, %v5336, 0
      %v5434 = vsel %vm3846, %v5337, 0
      %v5437 = vsel %vm3846, %v5338, 0
      %v5440 = vsel %vm3846, %v5339, 0
      %v5443 = vsel %vm3846, %v5340, 0
      %v5446 = vsel %vm3846, %v5341, 0
      %v5449 = vsel %vm3846, %v5342, 0
      %v5452 = vsel %vm3846, %v5343, 0
      %v5455 = vsel %vm3846, %v5344, 0
      %v5458 = vsel %vm3846, %v5345, 0
      %v5461 = vsel %vm3846, %v5346, 0
      %v5464 = vsel %vm3846, %v5347, 0
      %v5467 = vsel %vm3846, %v5348, 0
      %v5470 = vsel %vm3846, %v5349, 0
      %v5473 = vsel %vm3846, %v5350, 0
      %v5476 = vsel %vm3846, %v5351, 0
      %v5479 = vsel %vm3846, %v5352, 0
      %v5482 = vsel %vm3846, %v5353, 0
      %5484 = vmatpush.msra.mxu0 0.0
      %5485 = vmatpush.msra.mxu0 0.0
      %5486 = vmatpush.msra.mxu0 0.0
      %5487 = vmatpush.msra.mxu0 0.0
      %5488 = vmatpush.msra.mxu0 0.0
      %5489 = vmatpush.msra.mxu0 0.0
      %5490 = vmatpush.msra.mxu0 0.0
      %5491 = vmatpush.msra.mxu0 0.0
      %5492 = vmatpush.msra.mxu0 0.0
      %5493 = vmatpush.msra.mxu0 0.0
      %5494 = vmatpush.msra.mxu0 0.0
      %5495 = vmatpush.msra.mxu0 0.0
      %5496 = vmatpush.msra.mxu0 0.0
      %5497 = vmatpush.msra.mxu0 0.0
      %5498 = vmatpush.msra.mxu0 0.0
      %5499 = vmatpush.msra.mxu0 %v5387
      %5500 = vmatmul.f32.gmra.mxu0 %v5389
      %v5501 = vpop.f32.mrf.mxu0
      %v5502 = vadd.f32 0.0, %v5501
      %5503 = vmatmul.f32.gmra.mxu0 %v5392
      %v5504 = vpop.f32.mrf.mxu0
      %v5505 = vadd.f32 0.0, %v5504
      %5506 = vmatmul.f32.gmra.mxu0 %v5395
      %v5507 = vpop.f32.mrf.mxu0
      %v5508 = vadd.f32 0.0, %v5507
      %5509 = vmatmul.f32.gmra.mxu0 %v5398
      %v5510 = vpop.f32.mrf.mxu0
      %v5511 = vadd.f32 0.0, %v5510
      %5512 = vmatmul.f32.gmra.mxu0 %v5401
      %v5513 = vpop.f32.mrf.mxu0
      %v5514 = vadd.f32 0.0, %v5513
      %5515 = vmatmul.f32.gmra.mxu0 %v5404
      %v5516 = vpop.f32.mrf.mxu0
      %v5517 = vadd.f32 0.0, %v5516
      %5518 = vmatmul.f32.gmra.mxu0 %v5407
      %v5519 = vpop.f32.mrf.mxu0
      %v5520 = vadd.f32 0.0, %v5519
      %5521 = vmatmul.f32.gmra.mxu0 %v5410
      %v5522 = vpop.f32.mrf.mxu0
      %v5523 = vadd.f32 0.0, %v5522
      %5524 = vmatmul.f32.gmra.mxu0 %v5413
      %v5525 = vpop.f32.mrf.mxu0
      %v5526 = vadd.f32 0.0, %v5525
      %5527 = vmatmul.f32.gmra.mxu0 %v5416
      %v5528 = vpop.f32.mrf.mxu0
      %v5529 = vadd.f32 0.0, %v5528
      %5530 = vmatmul.f32.gmra.mxu0 %v5419
      %v5531 = vpop.f32.mrf.mxu0
      %v5532 = vadd.f32 0.0, %v5531
      %5533 = vmatmul.f32.gmra.mxu0 %v5422
      %v5534 = vpop.f32.mrf.mxu0
      %v5535 = vadd.f32 0.0, %v5534
      %5536 = vmatmul.f32.gmra.mxu0 %v5425
      %v5537 = vpop.f32.mrf.mxu0
      %v5538 = vadd.f32 0.0, %v5537
      %5539 = vmatmul.f32.gmra.mxu0 %v5428
      %v5540 = vpop.f32.mrf.mxu0
      %v5541 = vadd.f32 0.0, %v5540
      %5542 = vmatmul.f32.gmra.mxu0 %v5431
      %v5543 = vpop.f32.mrf.mxu0
      %v5544 = vadd.f32 0.0, %v5543
      %5545 = vmatmul.f32.gmra.mxu0 %v5434
      %v5546 = vpop.f32.mrf.mxu0
      %v5547 = vadd.f32 0.0, %v5546
      %5548 = vmatmul.f32.gmra.mxu0 %v5437
      %v5549 = vpop.f32.mrf.mxu0
      %v5550 = vadd.f32 0.0, %v5549
      %5551 = vmatmul.f32.gmra.mxu0 %v5440
      %v5552 = vpop.f32.mrf.mxu0
      %v5553 = vadd.f32 0.0, %v5552
      %5554 = vmatmul.f32.gmra.mxu0 %v5443
      %v5555 = vpop.f32.mrf.mxu0
      %v5556 = vadd.f32 0.0, %v5555
      %5557 = vmatmul.f32.gmra.mxu0 %v5446
      %v5558 = vpop.f32.mrf.mxu0
      %v5559 = vadd.f32 0.0, %v5558
      %5560 = vmatmul.f32.gmra.mxu0 %v5449
      %v5561 = vpop.f32.mrf.mxu0
      %v5562 = vadd.f32 0.0, %v5561
      %5563 = vmatmul.f32.gmra.mxu0 %v5452
      %v5564 = vpop.f32.mrf.mxu0
      %v5565 = vadd.f32 0.0, %v5564
      %5566 = vmatmul.f32.gmra.mxu0 %v5455
      %v5567 = vpop.f32.mrf.mxu0
      %v5568 = vadd.f32 0.0, %v5567
      %5569 = vmatmul.f32.gmra.mxu0 %v5458
      %v5570 = vpop.f32.mrf.mxu0
      %v5571 = vadd.f32 0.0, %v5570
      %5572 = vmatmul.f32.gmra.mxu0 %v5461
      %v5573 = vpop.f32.mrf.mxu0
      %v5574 = vadd.f32 0.0, %v5573
      %5575 = vmatmul.f32.gmra.mxu0 %v5464
      %v5576 = vpop.f32.mrf.mxu0
      %v5577 = vadd.f32 0.0, %v5576
      %5578 = vmatmul.f32.gmra.mxu0 %v5467
      %v5579 = vpop.f32.mrf.mxu0
      %v5580 = vadd.f32 0.0, %v5579
      %5581 = vmatmul.f32.gmra.mxu0 %v5470
      %v5582 = vpop.f32.mrf.mxu0
      %v5583 = vadd.f32 0.0, %v5582
      %5584 = vmatmul.f32.gmra.mxu0 %v5473
      %v5585 = vpop.f32.mrf.mxu0
      %v5586 = vadd.f32 0.0, %v5585
      %5587 = vmatmul.f32.gmra.mxu0 %v5476
      %v5588 = vpop.f32.mrf.mxu0
      %v5589 = vadd.f32 0.0, %v5588
      %5590 = vmatmul.f32.gmra.mxu0 %v5479
      %v5591 = vpop.f32.mrf.mxu0
      %v5592 = vadd.f32 0.0, %v5591
      %5593 = vmatmul.f32.gmra.mxu0 %v5482
      %v5594 = vpop.f32.mrf.mxu0
      %v5595 = vadd.f32 0.0, %v5594
      %5596 = vdwg.mxu0
      %v5597 = vadd.f32 %v5354, %v5502
      %v5598 = vadd.f32 %v5355, %v5505
      %v5599 = vadd.f32 %v5356, %v5508
      %v5600 = vadd.f32 %v5357, %v5511
      %v5601 = vadd.f32 %v5358, %v5514
      %v5602 = vadd.f32 %v5359, %v5517
      %v5603 = vadd.f32 %v5360, %v5520
      %v5604 = vadd.f32 %v5361, %v5523
      %v5605 = vadd.f32 %v5362, %v5526
      %v5606 = vadd.f32 %v5363, %v5529
      %v5607 = vadd.f32 %v5364, %v5532
      %v5608 = vadd.f32 %v5365, %v5535
      %v5609 = vadd.f32 %v5366, %v5538
      %v5610 = vadd.f32 %v5367, %v5541
      %v5611 = vadd.f32 %v5368, %v5544
      %v5612 = vadd.f32 %v5369, %v5547
      %v5613 = vadd.f32 %v5370, %v5550
      %v5614 = vadd.f32 %v5371, %v5553
      %v5615 = vadd.f32 %v5372, %v5556
      %v5616 = vadd.f32 %v5373, %v5559
      %v5617 = vadd.f32 %v5374, %v5562
      %v5618 = vadd.f32 %v5375, %v5565
      %v5619 = vadd.f32 %v5376, %v5568
      %v5620 = vadd.f32 %v5377, %v5571
      %v5621 = vadd.f32 %v5378, %v5574
      %v5622 = vadd.f32 %v5379, %v5577
      %v5623 = vadd.f32 %v5380, %v5580
      %v5624 = vadd.f32 %v5381, %v5583
      %v5625 = vadd.f32 %v5382, %v5586
      %v5626 = vadd.f32 %v5383, %v5589
      %v5627 = vadd.f32 %v5384, %v5592
      %v5628 = vadd.f32 %v5385, %v5595
      %5629 = vst.msk [vmem:[#allocation3] sm:$0xff] %vm333, %v5597
      %5630 = vst.msk [vmem:[#allocation3 + $0x8] sm:$0xff] %vm333, %v5598
      %5631 = vst.msk [vmem:[#allocation3 + $0x10] sm:$0xff] %vm333, %v5599
      %5632 = vst.msk [vmem:[#allocation3 + $0x18] sm:$0xff] %vm333, %v5600
      %5633 = vst.msk [vmem:[#allocation3 + $0x20] sm:$0xff] %vm333, %v5601
      %5634 = vst.msk [vmem:[#allocation3 + $0x28] sm:$0xff] %vm333, %v5602
      %5635 = vst.msk [vmem:[#allocation3 + $0x30] sm:$0xff] %vm333, %v5603
      %5636 = vst.msk [vmem:[#allocation3 + $0x38] sm:$0xff] %vm333, %v5604
      %5637 = vst.msk [vmem:[#allocation3 + $0x40] sm:$0xff] %vm333, %v5605
      %5638 = vst.msk [vmem:[#allocation3 + $0x48] sm:$0xff] %vm333, %v5606
      %5639 = vst.msk [vmem:[#allocation3 + $0x50] sm:$0xff] %vm333, %v5607
      %5640 = vst.msk [vmem:[#allocation3 + $0x58] sm:$0xff] %vm333, %v5608
      %5641 = vst.msk [vmem:[#allocation3 + $0x60] sm:$0xff] %vm333, %v5609
      %5642 = vst.msk [vmem:[#allocation3 + $0x68] sm:$0xff] %vm333, %v5610
      %5643 = vst.msk [vmem:[#allocation3 + $0x70] sm:$0xff] %vm333, %v5611
      %5644 = vst.msk [vmem:[#allocation3 + $0x78] sm:$0xff] %vm333, %v5612
      %5645 = vst.msk [vmem:[#allocation3 + $0x80] sm:$0xff] %vm333, %v5613
      %5646 = vst.msk [vmem:[#allocation3 + $0x88] sm:$0xff] %vm333, %v5614
      %5647 = vst.msk [vmem:[#allocation3 + $0x90] sm:$0xff] %vm333, %v5615
      %5648 = vst.msk [vmem:[#allocation3 + $0x98] sm:$0xff] %vm333, %v5616
      %5649 = vst.msk [vmem:[#allocation3 + $0xa0] sm:$0xff] %vm333, %v5617
      %5650 = vst.msk [vmem:[#allocation3 + $0xa8] sm:$0xff] %vm333, %v5618
      %5651 = vst.msk [vmem:[#allocation3 + $0xb0] sm:$0xff] %vm333, %v5619
      %5652 = vst.msk [vmem:[#allocation3 + $0xb8] sm:$0xff] %vm333, %v5620
      %5653 = vst.msk [vmem:[#allocation3 + $0xc0] sm:$0xff] %vm333, %v5621
      %5654 = vst.msk [vmem:[#allocation3 + $0xc8] sm:$0xff] %vm333, %v5622
      %5655 = vst.msk [vmem:[#allocation3 + $0xd0] sm:$0xff] %vm333, %v5623
      %5656 = vst.msk [vmem:[#allocation3 + $0xd8] sm:$0xff] %vm333, %v5624
      %5657 = vst.msk [vmem:[#allocation3 + $0xe0] sm:$0xff] %vm333, %v5625
      %5658 = vst.msk [vmem:[#allocation3 + $0xe8] sm:$0xff] %vm333, %v5626
      %5659 = vst.msk [vmem:[#allocation3 + $0xf0] sm:$0xff] %vm333, %v5627
      %5660 = vst.msk [vmem:[#allocation3 + $0xf8] sm:$0xff] %vm333, %v5628
      %v5661 = vld [vmem:[%s3902 + $0x2] sm:$0xff]
      %v5662 = vld [vmem:[%s3902 + $0xa] sm:$0xff]
      %v5663 = vld [vmem:[%s3902 + $0x1a] sm:$0xff]
      %v5664 = vld [vmem:[%s3902 + $0x22] sm:$0xff]
      %v5665 = vld [vmem:[%s3902 + $0x32] sm:$0xff]
      %v5666 = vld [vmem:[%s3902 + $0x3a] sm:$0xff]
      %v5667 = vld [vmem:[%s3902 + $0x4a] sm:$0xff]
      %v5668 = vld [vmem:[%s3902 + $0x52] sm:$0xff]
      %v5669 = vld [vmem:[%s3902 + $0x62] sm:$0xff]
      %v5670 = vld [vmem:[%s3902 + $0x6a] sm:$0xff]
      %v5671 = vld [vmem:[%s3902 + $0x7a] sm:$0xff]
      %v5672 = vld [vmem:[%s3902 + $0x82] sm:$0xff]
      %v5673 = vld [vmem:[%s3902 + $0x92] sm:$0xff]
      %v5674 = vld [vmem:[%s3902 + $0x9a] sm:$0xff]
      %v5675 = vld [vmem:[%s3902 + $0xaa] sm:$0xff]
      %v5676 = vld [vmem:[%s3902 + $0xb2] sm:$0xff]
      %v5677 = vld [vmem:[%s3902 + $0xc2] sm:$0xff]
      %v5678 = vld [vmem:[%s3902 + $0xca] sm:$0xff]
      %v5679 = vld [vmem:[%s3902 + $0xda] sm:$0xff]
      %v5680 = vld [vmem:[%s3902 + $0xe2] sm:$0xff]
      %v5681 = vld [vmem:[%s3902 + $0xf2] sm:$0xff]
      %v5682 = vld [vmem:[%s3902 + $0xfa] sm:$0xff]
      %v5683 = vld [vmem:[%s3902 + $0x10a] sm:$0xff]
      %v5684 = vld [vmem:[%s3902 + $0x112] sm:$0xff]
      %v5685 = vld [vmem:[%s3902 + $0x122] sm:$0xff]
      %v5686 = vld [vmem:[%s3902 + $0x12a] sm:$0xff]
      %v5687 = vld [vmem:[%s3902 + $0x13a] sm:$0xff]
      %v5688 = vld [vmem:[%s3902 + $0x142] sm:$0xff]
      %v5689 = vld [vmem:[%s3902 + $0x152] sm:$0xff]
      %v5690 = vld [vmem:[%s3902 + $0x15a] sm:$0xff]
      %v5691 = vld [vmem:[%s3902 + $0x16a] sm:$0xff]
      %v5692 = vld [vmem:[%s3902 + $0x172] sm:$0xff]
      %v5693 = vld [vmem:[#allocation3] sm:$0xff]
      %v5694 = vld [vmem:[#allocation3 + $0x8] sm:$0xff]
      %v5695 = vld [vmem:[#allocation3 + $0x10] sm:$0xff]
      %v5696 = vld [vmem:[#allocation3 + $0x18] sm:$0xff]
      %v5697 = vld [vmem:[#allocation3 + $0x20] sm:$0xff]
      %v5698 = vld [vmem:[#allocation3 + $0x28] sm:$0xff]
      %v5699 = vld [vmem:[#allocation3 + $0x30] sm:$0xff]
      %v5700 = vld [vmem:[#allocation3 + $0x38] sm:$0xff]
      %v5701 = vld [vmem:[#allocation3 + $0x40] sm:$0xff]
      %v5702 = vld [vmem:[#allocation3 + $0x48] sm:$0xff]
      %v5703 = vld [vmem:[#allocation3 + $0x50] sm:$0xff]
      %v5704 = vld [vmem:[#allocation3 + $0x58] sm:$0xff]
      %v5705 = vld [vmem:[#allocation3 + $0x60] sm:$0xff]
      %v5706 = vld [vmem:[#allocation3 + $0x68] sm:$0xff]
      %v5707 = vld [vmem:[#allocation3 + $0x70] sm:$0xff]
      %v5708 = vld [vmem:[#allocation3 + $0x78] sm:$0xff]
      %v5709 = vld [vmem:[#allocation3 + $0x80] sm:$0xff]
      %v5710 = vld [vmem:[#allocation3 + $0x88] sm:$0xff]
      %v5711 = vld [vmem:[#allocation3 + $0x90] sm:$0xff]
      %v5712 = vld [vmem:[#allocation3 + $0x98] sm:$0xff]
      %v5713 = vld [vmem:[#allocation3 + $0xa0] sm:$0xff]
      %v5714 = vld [vmem:[#allocation3 + $0xa8] sm:$0xff]
      %v5715 = vld [vmem:[#allocation3 + $0xb0] sm:$0xff]
      %v5716 = vld [vmem:[#allocation3 + $0xb8] sm:$0xff]
      %v5717 = vld [vmem:[#allocation3 + $0xc0] sm:$0xff]
      %v5718 = vld [vmem:[#allocation3 + $0xc8] sm:$0xff]
      %v5719 = vld [vmem:[#allocation3 + $0xd0] sm:$0xff]
      %v5720 = vld [vmem:[#allocation3 + $0xd8] sm:$0xff]
      %v5721 = vld [vmem:[#allocation3 + $0xe0] sm:$0xff]
      %v5722 = vld [vmem:[#allocation3 + $0xe8] sm:$0xff]
      %v5723 = vld [vmem:[#allocation3 + $0xf0] sm:$0xff]
      %v5724 = vld [vmem:[#allocation3 + $0xf8] sm:$0xff]
      %s5725 = scalar_lea.vmem %s4, 40
      %v5726 = vld [vmem:[%s5725] sm:$0xff]
      %v5728 = vsel %vm3846, %v5661, 0
      %v5731 = vsel %vm3846, %v5662, 0
      %v5734 = vsel %vm3846, %v5663, 0
      %v5737 = vsel %vm3846, %v5664, 0
      %v5740 = vsel %vm3846, %v5665, 0
      %v5743 = vsel %vm3846, %v5666, 0
      %v5746 = vsel %vm3846, %v5667, 0
      %v5749 = vsel %vm3846, %v5668, 0
      %v5752 = vsel %vm3846, %v5669, 0
      %v5755 = vsel %vm3846, %v5670, 0
      %v5758 = vsel %vm3846, %v5671, 0
      %v5761 = vsel %vm3846, %v5672, 0
      %v5764 = vsel %vm3846, %v5673, 0
      %v5767 = vsel %vm3846, %v5674, 0
      %v5770 = vsel %vm3846, %v5675, 0
      %v5773 = vsel %vm3846, %v5676, 0
      %v5776 = vsel %vm3846, %v5677, 0
      %v5779 = vsel %vm3846, %v5678, 0
      %v5782 = vsel %vm3846, %v5679, 0
      %v5785 = vsel %vm3846, %v5680, 0
      %v5788 = vsel %vm3846, %v5681, 0
      %v5791 = vsel %vm3846, %v5682, 0
      %v5794 = vsel %vm3846, %v5683, 0
      %v5797 = vsel %vm3846, %v5684, 0
      %v5800 = vsel %vm3846, %v5685, 0
      %v5803 = vsel %vm3846, %v5686, 0
      %v5806 = vsel %vm3846, %v5687, 0
      %v5809 = vsel %vm3846, %v5688, 0
      %v5812 = vsel %vm3846, %v5689, 0
      %v5815 = vsel %vm3846, %v5690, 0
      %v5818 = vsel %vm3846, %v5691, 0
      %v5821 = vsel %vm3846, %v5692, 0
      %5823 = vmatpush.msra.mxu0 0.0
      %5824 = vmatpush.msra.mxu0 0.0
      %5825 = vmatpush.msra.mxu0 0.0
      %5826 = vmatpush.msra.mxu0 0.0
      %5827 = vmatpush.msra.mxu0 0.0
      %5828 = vmatpush.msra.mxu0 0.0
      %5829 = vmatpush.msra.mxu0 0.0
      %5830 = vmatpush.msra.mxu0 0.0
      %5831 = vmatpush.msra.mxu0 0.0
      %5832 = vmatpush.msra.mxu0 0.0
      %5833 = vmatpush.msra.mxu0 0.0
      %5834 = vmatpush.msra.mxu0 0.0
      %5835 = vmatpush.msra.mxu0 0.0
      %5836 = vmatpush.msra.mxu0 0.0
      %5837 = vmatpush.msra.mxu0 0.0
      %5838 = vmatpush.msra.mxu0 %v5726
      %5839 = vmatmul.f32.gmra.mxu0 %v5728
      %v5840 = vpop.f32.mrf.mxu0
      %v5841 = vadd.f32 0.0, %v5840
      %5842 = vmatmul.f32.gmra.mxu0 %v5731
      %v5843 = vpop.f32.mrf.mxu0
      %v5844 = vadd.f32 0.0, %v5843
      %5845 = vmatmul.f32.gmra.mxu0 %v5734
      %v5846 = vpop.f32.mrf.mxu0
      %v5847 = vadd.f32 0.0, %v5846
      %5848 = vmatmul.f32.gmra.mxu0 %v5737
      %v5849 = vpop.f32.mrf.mxu0
      %v5850 = vadd.f32 0.0, %v5849
      %5851 = vmatmul.f32.gmra.mxu0 %v5740
      %v5852 = vpop.f32.mrf.mxu0
      %v5853 = vadd.f32 0.0, %v5852
      %5854 = vmatmul.f32.gmra.mxu0 %v5743
      %v5855 = vpop.f32.mrf.mxu0
      %v5856 = vadd.f32 0.0, %v5855
      %5857 = vmatmul.f32.gmra.mxu0 %v5746
      %v5858 = vpop.f32.mrf.mxu0
      %v5859 = vadd.f32 0.0, %v5858
      %5860 = vmatmul.f32.gmra.mxu0 %v5749
      %v5861 = vpop.f32.mrf.mxu0
      %v5862 = vadd.f32 0.0, %v5861
      %5863 = vmatmul.f32.gmra.mxu0 %v5752
      %v5864 = vpop.f32.mrf.mxu0
      %v5865 = vadd.f32 0.0, %v5864
      %5866 = vmatmul.f32.gmra.mxu0 %v5755
      %v5867 = vpop.f32.mrf.mxu0
      %v5868 = vadd.f32 0.0, %v5867
      %5869 = vmatmul.f32.gmra.mxu0 %v5758
      %v5870 = vpop.f32.mrf.mxu0
      %v5871 = vadd.f32 0.0, %v5870
      %5872 = vmatmul.f32.gmra.mxu0 %v5761
      %v5873 = vpop.f32.mrf.mxu0
      %v5874 = vadd.f32 0.0, %v5873
      %5875 = vmatmul.f32.gmra.mxu0 %v5764
      %v5876 = vpop.f32.mrf.mxu0
      %v5877 = vadd.f32 0.0, %v5876
      %5878 = vmatmul.f32.gmra.mxu0 %v5767
      %v5879 = vpop.f32.mrf.mxu0
      %v5880 = vadd.f32 0.0, %v5879
      %5881 = vmatmul.f32.gmra.mxu0 %v5770
      %v5882 = vpop.f32.mrf.mxu0
      %v5883 = vadd.f32 0.0, %v5882
      %5884 = vmatmul.f32.gmra.mxu0 %v5773
      %v5885 = vpop.f32.mrf.mxu0
      %v5886 = vadd.f32 0.0, %v5885
      %5887 = vmatmul.f32.gmra.mxu0 %v5776
      %v5888 = vpop.f32.mrf.mxu0
      %v5889 = vadd.f32 0.0, %v5888
      %5890 = vmatmul.f32.gmra.mxu0 %v5779
      %v5891 = vpop.f32.mrf.mxu0
      %v5892 = vadd.f32 0.0, %v5891
      %5893 = vmatmul.f32.gmra.mxu0 %v5782
      %v5894 = vpop.f32.mrf.mxu0
      %v5895 = vadd.f32 0.0, %v5894
      %5896 = vmatmul.f32.gmra.mxu0 %v5785
      %v5897 = vpop.f32.mrf.mxu0
      %v5898 = vadd.f32 0.0, %v5897
      %5899 = vmatmul.f32.gmra.mxu0 %v5788
      %v5900 = vpop.f32.mrf.mxu0
      %v5901 = vadd.f32 0.0, %v5900
      %5902 = vmatmul.f32.gmra.mxu0 %v5791
      %v5903 = vpop.f32.mrf.mxu0
      %v5904 = vadd.f32 0.0, %v5903
      %5905 = vmatmul.f32.gmra.mxu0 %v5794
      %v5906 = vpop.f32.mrf.mxu0
      %v5907 = vadd.f32 0.0, %v5906
      %5908 = vmatmul.f32.gmra.mxu0 %v5797
      %v5909 = vpop.f32.mrf.mxu0
      %v5910 = vadd.f32 0.0, %v5909
      %5911 = vmatmul.f32.gmra.mxu0 %v5800
      %v5912 = vpop.f32.mrf.mxu0
      %v5913 = vadd.f32 0.0, %v5912
      %5914 = vmatmul.f32.gmra.mxu0 %v5803
      %v5915 = vpop.f32.mrf.mxu0
      %v5916 = vadd.f32 0.0, %v5915
      %5917 = vmatmul.f32.gmra.mxu0 %v5806
      %v5918 = vpop.f32.mrf.mxu0
      %v5919 = vadd.f32 0.0, %v5918
      %5920 = vmatmul.f32.gmra.mxu0 %v5809
      %v5921 = vpop.f32.mrf.mxu0
      %v5922 = vadd.f32 0.0, %v5921
      %5923 = vmatmul.f32.gmra.mxu0 %v5812
      %v5924 = vpop.f32.mrf.mxu0
      %v5925 = vadd.f32 0.0, %v5924
      %5926 = vmatmul.f32.gmra.mxu0 %v5815
      %v5927 = vpop.f32.mrf.mxu0
      %v5928 = vadd.f32 0.0, %v5927
      %5929 = vmatmul.f32.gmra.mxu0 %v5818
      %v5930 = vpop.f32.mrf.mxu0
      %v5931 = vadd.f32 0.0, %v5930
      %5932 = vmatmul.f32.gmra.mxu0 %v5821
      %v5933 = vpop.f32.mrf.mxu0
      %v5934 = vadd.f32 0.0, %v5933
      %5935 = vdwg.mxu0
      %v5936 = vadd.f32 %v5693, %v5841
      %v5937 = vadd.f32 %v5694, %v5844
      %v5938 = vadd.f32 %v5695, %v5847
      %v5939 = vadd.f32 %v5696, %v5850
      %v5940 = vadd.f32 %v5697, %v5853
      %v5941 = vadd.f32 %v5698, %v5856
      %v5942 = vadd.f32 %v5699, %v5859
      %v5943 = vadd.f32 %v5700, %v5862
      %v5944 = vadd.f32 %v5701, %v5865
      %v5945 = vadd.f32 %v5702, %v5868
      %v5946 = vadd.f32 %v5703, %v5871
      %v5947 = vadd.f32 %v5704, %v5874
      %v5948 = vadd.f32 %v5705, %v5877
      %v5949 = vadd.f32 %v5706, %v5880
      %v5950 = vadd.f32 %v5707, %v5883
      %v5951 = vadd.f32 %v5708, %v5886
      %v5952 = vadd.f32 %v5709, %v5889
      %v5953 = vadd.f32 %v5710, %v5892
      %v5954 = vadd.f32 %v5711, %v5895
      %v5955 = vadd.f32 %v5712, %v5898
      %v5956 = vadd.f32 %v5713, %v5901
      %v5957 = vadd.f32 %v5714, %v5904
      %v5958 = vadd.f32 %v5715, %v5907
      %v5959 = vadd.f32 %v5716, %v5910
      %v5960 = vadd.f32 %v5717, %v5913
      %v5961 = vadd.f32 %v5718, %v5916
      %v5962 = vadd.f32 %v5719, %v5919
      %v5963 = vadd.f32 %v5720, %v5922
      %v5964 = vadd.f32 %v5721, %v5925
      %v5965 = vadd.f32 %v5722, %v5928
      %v5966 = vadd.f32 %v5723, %v5931
      %v5967 = vadd.f32 %v5724, %v5934
      %5968 = vst.msk [vmem:[#allocation3] sm:$0xff] %vm333, %v5936
      %5969 = vst.msk [vmem:[#allocation3 + $0x8] sm:$0xff] %vm333, %v5937
      %5970 = vst.msk [vmem:[#allocation3 + $0x10] sm:$0xff] %vm333, %v5938
      %5971 = vst.msk [vmem:[#allocation3 + $0x18] sm:$0xff] %vm333, %v5939
      %5972 = vst.msk [vmem:[#allocation3 + $0x20] sm:$0xff] %vm333, %v5940
      %5973 = vst.msk [vmem:[#allocation3 + $0x28] sm:$0xff] %vm333, %v5941
      %5974 = vst.msk [vmem:[#allocation3 + $0x30] sm:$0xff] %vm333, %v5942
      %5975 = vst.msk [vmem:[#allocation3 + $0x38] sm:$0xff] %vm333, %v5943
      %5976 = vst.msk [vmem:[#allocation3 + $0x40] sm:$0xff] %vm333, %v5944
      %5977 = vst.msk [vmem:[#allocation3 + $0x48] sm:$0xff] %vm333, %v5945
      %5978 = vst.msk [vmem:[#allocation3 + $0x50] sm:$0xff] %vm333, %v5946
      %5979 = vst.msk [vmem:[#allocation3 + $0x58] sm:$0xff] %vm333, %v5947
      %5980 = vst.msk [vmem:[#allocation3 + $0x60] sm:$0xff] %vm333, %v5948
      %5981 = vst.msk [vmem:[#allocation3 + $0x68] sm:$0xff] %vm333, %v5949
      %5982 = vst.msk [vmem:[#allocation3 + $0x70] sm:$0xff] %vm333, %v5950
      %5983 = vst.msk [vmem:[#allocation3 + $0x78] sm:$0xff] %vm333, %v5951
      %5984 = vst.msk [vmem:[#allocation3 + $0x80] sm:$0xff] %vm333, %v5952
      %5985 = vst.msk [vmem:[#allocation3 + $0x88] sm:$0xff] %vm333, %v5953
      %5986 = vst.msk [vmem:[#allocation3 + $0x90] sm:$0xff] %vm333, %v5954
      %5987 = vst.msk [vmem:[#allocation3 + $0x98] sm:$0xff] %vm333, %v5955
      %5988 = vst.msk [vmem:[#allocation3 + $0xa0] sm:$0xff] %vm333, %v5956
      %5989 = vst.msk [vmem:[#allocation3 + $0xa8] sm:$0xff] %vm333, %v5957
      %5990 = vst.msk [vmem:[#allocation3 + $0xb0] sm:$0xff] %vm333, %v5958
      %5991 = vst.msk [vmem:[#allocation3 + $0xb8] sm:$0xff] %vm333, %v5959
      %5992 = vst.msk [vmem:[#allocation3 + $0xc0] sm:$0xff] %vm333, %v5960
      %5993 = vst.msk [vmem:[#allocation3 + $0xc8] sm:$0xff] %vm333, %v5961
      %5994 = vst.msk [vmem:[#allocation3 + $0xd0] sm:$0xff] %vm333, %v5962
      %5995 = vst.msk [vmem:[#allocation3 + $0xd8] sm:$0xff] %vm333, %v5963
      %5996 = vst.msk [vmem:[#allocation3 + $0xe0] sm:$0xff] %vm333, %v5964
      %5997 = vst.msk [vmem:[#allocation3 + $0xe8] sm:$0xff] %vm333, %v5965
      %5998 = vst.msk [vmem:[#allocation3 + $0xf0] sm:$0xff] %vm333, %v5966
      %5999 = vst.msk [vmem:[#allocation3 + $0xf8] sm:$0xff] %vm333, %v5967
      %s6000 = scalar_lea.vmem [#allocation4], 48
      %v6001 = vld [vmem:[%s6000] sm:$0xff]
      %v6002 = vld [vmem:[%s6000 + $0x8] sm:$0xff]
      %v6003 = vld [vmem:[%s6000 + $0x18] sm:$0xff]
      %v6004 = vld [vmem:[%s6000 + $0x20] sm:$0xff]
      %v6005 = vld [vmem:[%s6000 + $0x30] sm:$0xff]
      %v6006 = vld [vmem:[%s6000 + $0x38] sm:$0xff]
      %v6007 = vld [vmem:[%s6000 + $0x48] sm:$0xff]
      %v6008 = vld [vmem:[%s6000 + $0x50] sm:$0xff]
      %v6009 = vld [vmem:[%s6000 + $0x60] sm:$0xff]
      %v6010 = vld [vmem:[%s6000 + $0x68] sm:$0xff]
      %v6011 = vld [vmem:[%s6000 + $0x78] sm:$0xff]
      %v6012 = vld [vmem:[%s6000 + $0x80] sm:$0xff]
      %v6013 = vld [vmem:[%s6000 + $0x90] sm:$0xff]
      %v6014 = vld [vmem:[%s6000 + $0x98] sm:$0xff]
      %v6015 = vld [vmem:[%s6000 + $0xa8] sm:$0xff]
      %v6016 = vld [vmem:[%s6000 + $0xb0] sm:$0xff]
      %v6017 = vld [vmem:[%s6000 + $0xc0] sm:$0xff]
      %v6018 = vld [vmem:[%s6000 + $0xc8] sm:$0xff]
      %v6019 = vld [vmem:[%s6000 + $0xd8] sm:$0xff]
      %v6020 = vld [vmem:[%s6000 + $0xe0] sm:$0xff]
      %v6021 = vld [vmem:[%s6000 + $0xf0] sm:$0xff]
      %v6022 = vld [vmem:[%s6000 + $0xf8] sm:$0xff]
      %v6023 = vld [vmem:[%s6000 + $0x108] sm:$0xff]
      %v6024 = vld [vmem:[%s6000 + $0x110] sm:$0xff]
      %v6025 = vld [vmem:[%s6000 + $0x120] sm:$0xff]
      %v6026 = vld [vmem:[%s6000 + $0x128] sm:$0xff]
      %v6027 = vld [vmem:[%s6000 + $0x138] sm:$0xff]
      %v6028 = vld [vmem:[%s6000 + $0x140] sm:$0xff]
      %v6029 = vld [vmem:[%s6000 + $0x150] sm:$0xff]
      %v6030 = vld [vmem:[%s6000 + $0x158] sm:$0xff]
      %v6031 = vld [vmem:[%s6000 + $0x168] sm:$0xff]
      %v6032 = vld [vmem:[%s6000 + $0x170] sm:$0xff]
      %v6033 = vld [vmem:[#allocation3] sm:$0xff]
      %v6034 = vld [vmem:[#allocation3 + $0x8] sm:$0xff]
      %v6035 = vld [vmem:[#allocation3 + $0x10] sm:$0xff]
      %v6036 = vld [vmem:[#allocation3 + $0x18] sm:$0xff]
      %v6037 = vld [vmem:[#allocation3 + $0x20] sm:$0xff]
      %v6038 = vld [vmem:[#allocation3 + $0x28] sm:$0xff]
      %v6039 = vld [vmem:[#allocation3 + $0x30] sm:$0xff]
      %v6040 = vld [vmem:[#allocation3 + $0x38] sm:$0xff]
      %v6041 = vld [vmem:[#allocation3 + $0x40] sm:$0xff]
      %v6042 = vld [vmem:[#allocation3 + $0x48] sm:$0xff]
      %v6043 = vld [vmem:[#allocation3 + $0x50] sm:$0xff]
      %v6044 = vld [vmem:[#allocation3 + $0x58] sm:$0xff]
      %v6045 = vld [vmem:[#allocation3 + $0x60] sm:$0xff]
      %v6046 = vld [vmem:[#allocation3 + $0x68] sm:$0xff]
      %v6047 = vld [vmem:[#allocation3 + $0x70] sm:$0xff]
      %v6048 = vld [vmem:[#allocation3 + $0x78] sm:$0xff]
      %v6049 = vld [vmem:[#allocation3 + $0x80] sm:$0xff]
      %v6050 = vld [vmem:[#allocation3 + $0x88] sm:$0xff]
      %v6051 = vld [vmem:[#allocation3 + $0x90] sm:$0xff]
      %v6052 = vld [vmem:[#allocation3 + $0x98] sm:$0xff]
      %v6053 = vld [vmem:[#allocation3 + $0xa0] sm:$0xff]
      %v6054 = vld [vmem:[#allocation3 + $0xa8] sm:$0xff]
      %v6055 = vld [vmem:[#allocation3 + $0xb0] sm:$0xff]
      %v6056 = vld [vmem:[#allocation3 + $0xb8] sm:$0xff]
      %v6057 = vld [vmem:[#allocation3 + $0xc0] sm:$0xff]
      %v6058 = vld [vmem:[#allocation3 + $0xc8] sm:$0xff]
      %v6059 = vld [vmem:[#allocation3 + $0xd0] sm:$0xff]
      %v6060 = vld [vmem:[#allocation3 + $0xd8] sm:$0xff]
      %v6061 = vld [vmem:[#allocation3 + $0xe0] sm:$0xff]
      %v6062 = vld [vmem:[#allocation3 + $0xe8] sm:$0xff]
      %v6063 = vld [vmem:[#allocation3 + $0xf0] sm:$0xff]
      %v6064 = vld [vmem:[#allocation3 + $0xf8] sm:$0xff]
      %s6065 = scalar_lea.vmem %s4, 48
      %v6066 = vld [vmem:[%s6065] sm:$0xff]
      %v6068 = vsel %vm3846, %v6001, 0
      %v6071 = vsel %vm3846, %v6002, 0
      %v6074 = vsel %vm3846, %v6003, 0
      %v6077 = vsel %vm3846, %v6004, 0
      %v6080 = vsel %vm3846, %v6005, 0
      %v6083 = vsel %vm3846, %v6006, 0
      %v6086 = vsel %vm3846, %v6007, 0
      %v6089 = vsel %vm3846, %v6008, 0
      %v6092 = vsel %vm3846, %v6009, 0
      %v6095 = vsel %vm3846, %v6010, 0
      %v6098 = vsel %vm3846, %v6011, 0
      %v6101 = vsel %vm3846, %v6012, 0
      %v6104 = vsel %vm3846, %v6013, 0
      %v6107 = vsel %vm3846, %v6014, 0
      %v6110 = vsel %vm3846, %v6015, 0
      %v6113 = vsel %vm3846, %v6016, 0
      %v6116 = vsel %vm3846, %v6017, 0
      %v6119 = vsel %vm3846, %v6018, 0
      %v6122 = vsel %vm3846, %v6019, 0
      %v6125 = vsel %vm3846, %v6020, 0
      %v6128 = vsel %vm3846, %v6021, 0
      %v6131 = vsel %vm3846, %v6022, 0
      %v6134 = vsel %vm3846, %v6023, 0
      %v6137 = vsel %vm3846, %v6024, 0
      %v6140 = vsel %vm3846, %v6025, 0
      %v6143 = vsel %vm3846, %v6026, 0
      %v6146 = vsel %vm3846, %v6027, 0
      %v6149 = vsel %vm3846, %v6028, 0
      %v6152 = vsel %vm3846, %v6029, 0
      %v6155 = vsel %vm3846, %v6030, 0
      %v6158 = vsel %vm3846, %v6031, 0
      %v6161 = vsel %vm3846, %v6032, 0
      %6163 = vmatpush.msra.mxu0 0.0
      %6164 = vmatpush.msra.mxu0 0.0
      %6165 = vmatpush.msra.mxu0 0.0
      %6166 = vmatpush.msra.mxu0 0.0
      %6167 = vmatpush.msra.mxu0 0.0
      %6168 = vmatpush.msra.mxu0 0.0
      %6169 = vmatpush.msra.mxu0 0.0
      %6170 = vmatpush.msra.mxu0 0.0
      %6171 = vmatpush.msra.mxu0 0.0
      %6172 = vmatpush.msra.mxu0 0.0
      %6173 = vmatpush.msra.mxu0 0.0
      %6174 = vmatpush.msra.mxu0 0.0
      %6175 = vmatpush.msra.mxu0 0.0
      %6176 = vmatpush.msra.mxu0 0.0
      %6177 = vmatpush.msra.mxu0 0.0
      %6178 = vmatpush.msra.mxu0 %v6066
      %6179 = vmatmul.f32.gmra.mxu0 %v6068
      %v6180 = vpop.f32.mrf.mxu0
      %v6181 = vadd.f32 0.0, %v6180
      %6182 = vmatmul.f32.gmra.mxu0 %v6071
      %v6183 = vpop.f32.mrf.mxu0
      %v6184 = vadd.f32 0.0, %v6183
      %6185 = vmatmul.f32.gmra.mxu0 %v6074
      %v6186 = vpop.f32.mrf.mxu0
      %v6187 = vadd.f32 0.0, %v6186
      %6188 = vmatmul.f32.gmra.mxu0 %v6077
      %v6189 = vpop.f32.mrf.mxu0
      %v6190 = vadd.f32 0.0, %v6189
      %6191 = vmatmul.f32.gmra.mxu0 %v6080
      %v6192 = vpop.f32.mrf.mxu0
      %v6193 = vadd.f32 0.0, %v6192
      %6194 = vmatmul.f32.gmra.mxu0 %v6083
      %v6195 = vpop.f32.mrf.mxu0
      %v6196 = vadd.f32 0.0, %v6195
      %6197 = vmatmul.f32.gmra.mxu0 %v6086
      %v6198 = vpop.f32.mrf.mxu0
      %v6199 = vadd.f32 0.0, %v6198
      %6200 = vmatmul.f32.gmra.mxu0 %v6089
      %v6201 = vpop.f32.mrf.mxu0
      %v6202 = vadd.f32 0.0, %v6201
      %6203 = vmatmul.f32.gmra.mxu0 %v6092
      %v6204 = vpop.f32.mrf.mxu0
      %v6205 = vadd.f32 0.0, %v6204
      %6206 = vmatmul.f32.gmra.mxu0 %v6095
      %v6207 = vpop.f32.mrf.mxu0
      %v6208 = vadd.f32 0.0, %v6207
      %6209 = vmatmul.f32.gmra.mxu0 %v6098
      %v6210 = vpop.f32.mrf.mxu0
      %v6211 = vadd.f32 0.0, %v6210
      %6212 = vmatmul.f32.gmra.mxu0 %v6101
      %v6213 = vpop.f32.mrf.mxu0
      %v6214 = vadd.f32 0.0, %v6213
      %6215 = vmatmul.f32.gmra.mxu0 %v6104
      %v6216 = vpop.f32.mrf.mxu0
      %v6217 = vadd.f32 0.0, %v6216
      %6218 = vmatmul.f32.gmra.mxu0 %v6107
      %v6219 = vpop.f32.mrf.mxu0
      %v6220 = vadd.f32 0.0, %v6219
      %6221 = vmatmul.f32.gmra.mxu0 %v6110
      %v6222 = vpop.f32.mrf.mxu0
      %v6223 = vadd.f32 0.0, %v6222
      %6224 = vmatmul.f32.gmra.mxu0 %v6113
      %v6225 = vpop.f32.mrf.mxu0
      %v6226 = vadd.f32 0.0, %v6225
      %6227 = vmatmul.f32.gmra.mxu0 %v6116
      %v6228 = vpop.f32.mrf.mxu0
      %v6229 = vadd.f32 0.0, %v6228
      %6230 = vmatmul.f32.gmra.mxu0 %v6119
      %v6231 = vpop.f32.mrf.mxu0
      %v6232 = vadd.f32 0.0, %v6231
      %6233 = vmatmul.f32.gmra.mxu0 %v6122
      %v6234 = vpop.f32.mrf.mxu0
      %v6235 = vadd.f32 0.0, %v6234
      %6236 = vmatmul.f32.gmra.mxu0 %v6125
      %v6237 = vpop.f32.mrf.mxu0
      %v6238 = vadd.f32 0.0, %v6237
      %6239 = vmatmul.f32.gmra.mxu0 %v6128
      %v6240 = vpop.f32.mrf.mxu0
      %v6241 = vadd.f32 0.0, %v6240
      %6242 = vmatmul.f32.gmra.mxu0 %v6131
      %v6243 = vpop.f32.mrf.mxu0
      %v6244 = vadd.f32 0.0, %v6243
      %6245 = vmatmul.f32.gmra.mxu0 %v6134
      %v6246 = vpop.f32.mrf.mxu0
      %v6247 = vadd.f32 0.0, %v6246
      %6248 = vmatmul.f32.gmra.mxu0 %v6137
      %v6249 = vpop.f32.mrf.mxu0
      %v6250 = vadd.f32 0.0, %v6249
      %6251 = vmatmul.f32.gmra.mxu0 %v6140
      %v6252 = vpop.f32.mrf.mxu0
      %v6253 = vadd.f32 0.0, %v6252
      %6254 = vmatmul.f32.gmra.mxu0 %v6143
      %v6255 = vpop.f32.mrf.mxu0
      %v6256 = vadd.f32 0.0, %v6255
      %6257 = vmatmul.f32.gmra.mxu0 %v6146
      %v6258 = vpop.f32.mrf.mxu0
      %v6259 = vadd.f32 0.0, %v6258
      %6260 = vmatmul.f32.gmra.mxu0 %v6149
      %v6261 = vpop.f32.mrf.mxu0
      %v6262 = vadd.f32 0.0, %v6261
      %6263 = vmatmul.f32.gmra.mxu0 %v6152
      %v6264 = vpop.f32.mrf.mxu0
      %v6265 = vadd.f32 0.0, %v6264
      %6266 = vmatmul.f32.gmra.mxu0 %v6155
      %v6267 = vpop.f32.mrf.mxu0
      %v6268 = vadd.f32 0.0, %v6267
      %6269 = vmatmul.f32.gmra.mxu0 %v6158
      %v6270 = vpop.f32.mrf.mxu0
      %v6271 = vadd.f32 0.0, %v6270
      %6272 = vmatmul.f32.gmra.mxu0 %v6161
      %v6273 = vpop.f32.mrf.mxu0
      %v6274 = vadd.f32 0.0, %v6273
      %6275 = vdwg.mxu0
      %v6276 = vadd.f32 %v6033, %v6181
      %v6277 = vadd.f32 %v6034, %v6184
      %v6278 = vadd.f32 %v6035, %v6187
      %v6279 = vadd.f32 %v6036, %v6190
      %v6280 = vadd.f32 %v6037, %v6193
      %v6281 = vadd.f32 %v6038, %v6196
      %v6282 = vadd.f32 %v6039, %v6199
      %v6283 = vadd.f32 %v6040, %v6202
      %v6284 = vadd.f32 %v6041, %v6205
      %v6285 = vadd.f32 %v6042, %v6208
      %v6286 = vadd.f32 %v6043, %v6211
      %v6287 = vadd.f32 %v6044, %v6214
      %v6288 = vadd.f32 %v6045, %v6217
      %v6289 = vadd.f32 %v6046, %v6220
      %v6290 = vadd.f32 %v6047, %v6223
      %v6291 = vadd.f32 %v6048, %v6226
      %v6292 = vadd.f32 %v6049, %v6229
      %v6293 = vadd.f32 %v6050, %v6232
      %v6294 = vadd.f32 %v6051, %v6235
      %v6295 = vadd.f32 %v6052, %v6238
      %v6296 = vadd.f32 %v6053, %v6241
      %v6297 = vadd.f32 %v6054, %v6244
      %v6298 = vadd.f32 %v6055, %v6247
      %v6299 = vadd.f32 %v6056, %v6250
      %v6300 = vadd.f32 %v6057, %v6253
      %v6301 = vadd.f32 %v6058, %v6256
      %v6302 = vadd.f32 %v6059, %v6259
      %v6303 = vadd.f32 %v6060, %v6262
      %v6304 = vadd.f32 %v6061, %v6265
      %v6305 = vadd.f32 %v6062, %v6268
      %v6306 = vadd.f32 %v6063, %v6271
      %v6307 = vadd.f32 %v6064, %v6274
      %6308 = vst.msk [vmem:[#allocation3] sm:$0xff] %vm333, %v6276
      %6309 = vst.msk [vmem:[#allocation3 + $0x8] sm:$0xff] %vm333, %v6277
      %6310 = vst.msk [vmem:[#allocation3 + $0x10] sm:$0xff] %vm333, %v6278
      %6311 = vst.msk [vmem:[#allocation3 + $0x18] sm:$0xff] %vm333, %v6279
      %6312 = vst.msk [vmem:[#allocation3 + $0x20] sm:$0xff] %vm333, %v6280
      %6313 = vst.msk [vmem:[#allocation3 + $0x28] sm:$0xff] %vm333, %v6281
      %6314 = vst.msk [vmem:[#allocation3 + $0x30] sm:$0xff] %vm333, %v6282
      %6315 = vst.msk [vmem:[#allocation3 + $0x38] sm:$0xff] %vm333, %v6283
      %6316 = vst.msk [vmem:[#allocation3 + $0x40] sm:$0xff] %vm333, %v6284
      %6317 = vst.msk [vmem:[#allocation3 + $0x48] sm:$0xff] %vm333, %v6285
      %6318 = vst.msk [vmem:[#allocation3 + $0x50] sm:$0xff] %vm333, %v6286
      %6319 = vst.msk [vmem:[#allocation3 + $0x58] sm:$0xff] %vm333, %v6287
      %6320 = vst.msk [vmem:[#allocation3 + $0x60] sm:$0xff] %vm333, %v6288
      %6321 = vst.msk [vmem:[#allocation3 + $0x68] sm:$0xff] %vm333, %v6289
      %6322 = vst.msk [vmem:[#allocation3 + $0x70] sm:$0xff] %vm333, %v6290
      %6323 = vst.msk [vmem:[#allocation3 + $0x78] sm:$0xff] %vm333, %v6291
      %6324 = vst.msk [vmem:[#allocation3 + $0x80] sm:$0xff] %vm333, %v6292
      %6325 = vst.msk [vmem:[#allocation3 + $0x88] sm:$0xff] %vm333, %v6293
      %6326 = vst.msk [vmem:[#allocation3 + $0x90] sm:$0xff] %vm333, %v6294
      %6327 = vst.msk [vmem:[#allocation3 + $0x98] sm:$0xff] %vm333, %v6295
      %6328 = vst.msk [vmem:[#allocation3 + $0xa0] sm:$0xff] %vm333, %v6296
      %6329 = vst.msk [vmem:[#allocation3 + $0xa8] sm:$0xff] %vm333, %v6297
      %6330 = vst.msk [vmem:[#allocation3 + $0xb0] sm:$0xff] %vm333, %v6298
      %6331 = vst.msk [vmem:[#allocation3 + $0xb8] sm:$0xff] %vm333, %v6299
      %6332 = vst.msk [vmem:[#allocation3 + $0xc0] sm:$0xff] %vm333, %v6300
      %6333 = vst.msk [vmem:[#allocation3 + $0xc8] sm:$0xff] %vm333, %v6301
      %6334 = vst.msk [vmem:[#allocation3 + $0xd0] sm:$0xff] %vm333, %v6302
      %6335 = vst.msk [vmem:[#allocation3 + $0xd8] sm:$0xff] %vm333, %v6303
      %6336 = vst.msk [vmem:[#allocation3 + $0xe0] sm:$0xff] %vm333, %v6304
      %6337 = vst.msk [vmem:[#allocation3 + $0xe8] sm:$0xff] %vm333, %v6305
      %6338 = vst.msk [vmem:[#allocation3 + $0xf0] sm:$0xff] %vm333, %v6306
      %6339 = vst.msk [vmem:[#allocation3 + $0xf8] sm:$0xff] %vm333, %v6307
      %v6340 = vld [vmem:[%s6000 + $0x1] sm:$0xff]
      %v6341 = vld [vmem:[%s6000 + $0x9] sm:$0xff]
      %v6342 = vld [vmem:[%s6000 + $0x19] sm:$0xff]
      %v6343 = vld [vmem:[%s6000 + $0x21] sm:$0xff]
      %v6344 = vld [vmem:[%s6000 + $0x31] sm:$0xff]
      %v6345 = vld [vmem:[%s6000 + $0x39] sm:$0xff]
      %v6346 = vld [vmem:[%s6000 + $0x49] sm:$0xff]
      %v6347 = vld [vmem:[%s6000 + $0x51] sm:$0xff]
      %v6348 = vld [vmem:[%s6000 + $0x61] sm:$0xff]
      %v6349 = vld [vmem:[%s6000 + $0x69] sm:$0xff]
      %v6350 = vld [vmem:[%s6000 + $0x79] sm:$0xff]
      %v6351 = vld [vmem:[%s6000 + $0x81] sm:$0xff]
      %v6352 = vld [vmem:[%s6000 + $0x91] sm:$0xff]
      %v6353 = vld [vmem:[%s6000 + $0x99] sm:$0xff]
      %v6354 = vld [vmem:[%s6000 + $0xa9] sm:$0xff]
      %v6355 = vld [vmem:[%s6000 + $0xb1] sm:$0xff]
      %v6356 = vld [vmem:[%s6000 + $0xc1] sm:$0xff]
      %v6357 = vld [vmem:[%s6000 + $0xc9] sm:$0xff]
      %v6358 = vld [vmem:[%s6000 + $0xd9] sm:$0xff]
      %v6359 = vld [vmem:[%s6000 + $0xe1] sm:$0xff]
      %v6360 = vld [vmem:[%s6000 + $0xf1] sm:$0xff]
      %v6361 = vld [vmem:[%s6000 + $0xf9] sm:$0xff]
      %v6362 = vld [vmem:[%s6000 + $0x109] sm:$0xff]
      %v6363 = vld [vmem:[%s6000 + $0x111] sm:$0xff]
      %v6364 = vld [vmem:[%s6000 + $0x121] sm:$0xff]
      %v6365 = vld [vmem:[%s6000 + $0x129] sm:$0xff]
      %v6366 = vld [vmem:[%s6000 + $0x139] sm:$0xff]
      %v6367 = vld [vmem:[%s6000 + $0x141] sm:$0xff]
      %v6368 = vld [vmem:[%s6000 + $0x151] sm:$0xff]
      %v6369 = vld [vmem:[%s6000 + $0x159] sm:$0xff]
      %v6370 = vld [vmem:[%s6000 + $0x169] sm:$0xff]
      %v6371 = vld [vmem:[%s6000 + $0x171] sm:$0xff]
      %v6372 = vld [vmem:[#allocation3] sm:$0xff]
      %v6373 = vld [vmem:[#allocation3 + $0x8] sm:$0xff]
      %v6374 = vld [vmem:[#allocation3 + $0x10] sm:$0xff]
      %v6375 = vld [vmem:[#allocation3 + $0x18] sm:$0xff]
      %v6376 = vld [vmem:[#allocation3 + $0x20] sm:$0xff]
      %v6377 = vld [vmem:[#allocation3 + $0x28] sm:$0xff]
      %v6378 = vld [vmem:[#allocation3 + $0x30] sm:$0xff]
      %v6379 = vld [vmem:[#allocation3 + $0x38] sm:$0xff]
      %v6380 = vld [vmem:[#allocation3 + $0x40] sm:$0xff]
      %v6381 = vld [vmem:[#allocation3 + $0x48] sm:$0xff]
      %v6382 = vld [vmem:[#allocation3 + $0x50] sm:$0xff]
      %v6383 = vld [vmem:[#allocation3 + $0x58] sm:$0xff]
      %v6384 = vld [vmem:[#allocation3 + $0x60] sm:$0xff]
      %v6385 = vld [vmem:[#allocation3 + $0x68] sm:$0xff]
      %v6386 = vld [vmem:[#allocation3 + $0x70] sm:$0xff]
      %v6387 = vld [vmem:[#allocation3 + $0x78] sm:$0xff]
      %v6388 = vld [vmem:[#allocation3 + $0x80] sm:$0xff]
      %v6389 = vld [vmem:[#allocation3 + $0x88] sm:$0xff]
      %v6390 = vld [vmem:[#allocation3 + $0x90] sm:$0xff]
      %v6391 = vld [vmem:[#allocation3 + $0x98] sm:$0xff]
      %v6392 = vld [vmem:[#allocation3 + $0xa0] sm:$0xff]
      %v6393 = vld [vmem:[#allocation3 + $0xa8] sm:$0xff]
      %v6394 = vld [vmem:[#allocation3 + $0xb0] sm:$0xff]
      %v6395 = vld [vmem:[#allocation3 + $0xb8] sm:$0xff]
      %v6396 = vld [vmem:[#allocation3 + $0xc0] sm:$0xff]
      %v6397 = vld [vmem:[#allocation3 + $0xc8] sm:$0xff]
      %v6398 = vld [vmem:[#allocation3 + $0xd0] sm:$0xff]
      %v6399 = vld [vmem:[#allocation3 + $0xd8] sm:$0xff]
      %v6400 = vld [vmem:[#allocation3 + $0xe0] sm:$0xff]
      %v6401 = vld [vmem:[#allocation3 + $0xe8] sm:$0xff]
      %v6402 = vld [vmem:[#allocation3 + $0xf0] sm:$0xff]
      %v6403 = vld [vmem:[#allocation3 + $0xf8] sm:$0xff]
      %s6404 = scalar_lea.vmem %s4, 56
      %v6405 = vld [vmem:[%s6404] sm:$0xff]
      %v6407 = vsel %vm3846, %v6340, 0
      %v6410 = vsel %vm3846, %v6341, 0
      %v6413 = vsel %vm3846, %v6342, 0
      %v6416 = vsel %vm3846, %v6343, 0
      %v6419 = vsel %vm3846, %v6344, 0
      %v6422 = vsel %vm3846, %v6345, 0
      %v6425 = vsel %vm3846, %v6346, 0
      %v6428 = vsel %vm3846, %v6347, 0
      %v6431 = vsel %vm3846, %v6348, 0
      %v6434 = vsel %vm3846, %v6349, 0
      %v6437 = vsel %vm3846, %v6350, 0
      %v6440 = vsel %vm3846, %v6351, 0
      %v6443 = vsel %vm3846, %v6352, 0
      %v6446 = vsel %vm3846, %v6353, 0
      %v6449 = vsel %vm3846, %v6354, 0
      %v6452 = vsel %vm3846, %v6355, 0
      %v6455 = vsel %vm3846, %v6356, 0
      %v6458 = vsel %vm3846, %v6357, 0
      %v6461 = vsel %vm3846, %v6358, 0
      %v6464 = vsel %vm3846, %v6359, 0
      %v6467 = vsel %vm3846, %v6360, 0
      %v6470 = vsel %vm3846, %v6361, 0
      %v6473 = vsel %vm3846, %v6362, 0
      %v6476 = vsel %vm3846, %v6363, 0
      %v6479 = vsel %vm3846, %v6364, 0
      %v6482 = vsel %vm3846, %v6365, 0
      %v6485 = vsel %vm3846, %v6366, 0
      %v6488 = vsel %vm3846, %v6367, 0
      %v6491 = vsel %vm3846, %v6368, 0
      %v6494 = vsel %vm3846, %v6369, 0
      %v6497 = vsel %vm3846, %v6370, 0
      %v6500 = vsel %vm3846, %v6371, 0
      %6502 = vmatpush.msra.mxu0 0.0
      %6503 = vmatpush.msra.mxu0 0.0
      %6504 = vmatpush.msra.mxu0 0.0
      %6505 = vmatpush.msra.mxu0 0.0
      %6506 = vmatpush.msra.mxu0 0.0
      %6507 = vmatpush.msra.mxu0 0.0
      %6508 = vmatpush.msra.mxu0 0.0
      %6509 = vmatpush.msra.mxu0 0.0
      %6510 = vmatpush.msra.mxu0 0.0
      %6511 = vmatpush.msra.mxu0 0.0
      %6512 = vmatpush.msra.mxu0 0.0
      %6513 = vmatpush.msra.mxu0 0.0
      %6514 = vmatpush.msra.mxu0 0.0
      %6515 = vmatpush.msra.mxu0 0.0
      %6516 = vmatpush.msra.mxu0 0.0
      %6517 = vmatpush.msra.mxu0 %v6405
      %6518 = vmatmul.f32.gmra.mxu0 %v6407
      %v6519 = vpop.f32.mrf.mxu0
      %v6520 = vadd.f32 0.0, %v6519
      %6521 = vmatmul.f32.gmra.mxu0 %v6410
      %v6522 = vpop.f32.mrf.mxu0
      %v6523 = vadd.f32 0.0, %v6522
      %6524 = vmatmul.f32.gmra.mxu0 %v6413
      %v6525 = vpop.f32.mrf.mxu0
      %v6526 = vadd.f32 0.0, %v6525
      %6527 = vmatmul.f32.gmra.mxu0 %v6416
      %v6528 = vpop.f32.mrf.mxu0
      %v6529 = vadd.f32 0.0, %v6528
      %6530 = vmatmul.f32.gmra.mxu0 %v6419
      %v6531 = vpop.f32.mrf.mxu0
      %v6532 = vadd.f32 0.0, %v6531
      %6533 = vmatmul.f32.gmra.mxu0 %v6422
      %v6534 = vpop.f32.mrf.mxu0
      %v6535 = vadd.f32 0.0, %v6534
      %6536 = vmatmul.f32.gmra.mxu0 %v6425
      %v6537 = vpop.f32.mrf.mxu0
      %v6538 = vadd.f32 0.0, %v6537
      %6539 = vmatmul.f32.gmra.mxu0 %v6428
      %v6540 = vpop.f32.mrf.mxu0
      %v6541 = vadd.f32 0.0, %v6540
      %6542 = vmatmul.f32.gmra.mxu0 %v6431
      %v6543 = vpop.f32.mrf.mxu0
      %v6544 = vadd.f32 0.0, %v6543
      %6545 = vmatmul.f32.gmra.mxu0 %v6434
      %v6546 = vpop.f32.mrf.mxu0
      %v6547 = vadd.f32 0.0, %v6546
      %6548 = vmatmul.f32.gmra.mxu0 %v6437
      %v6549 = vpop.f32.mrf.mxu0
      %v6550 = vadd.f32 0.0, %v6549
      %6551 = vmatmul.f32.gmra.mxu0 %v6440
      %v6552 = vpop.f32.mrf.mxu0
      %v6553 = vadd.f32 0.0, %v6552
      %6554 = vmatmul.f32.gmra.mxu0 %v6443
      %v6555 = vpop.f32.mrf.mxu0
      %v6556 = vadd.f32 0.0, %v6555
      %6557 = vmatmul.f32.gmra.mxu0 %v6446
      %v6558 = vpop.f32.mrf.mxu0
      %v6559 = vadd.f32 0.0, %v6558
      %6560 = vmatmul.f32.gmra.mxu0 %v6449
      %v6561 = vpop.f32.mrf.mxu0
      %v6562 = vadd.f32 0.0, %v6561
      %6563 = vmatmul.f32.gmra.mxu0 %v6452
      %v6564 = vpop.f32.mrf.mxu0
      %v6565 = vadd.f32 0.0, %v6564
      %6566 = vmatmul.f32.gmra.mxu0 %v6455
      %v6567 = vpop.f32.mrf.mxu0
      %v6568 = vadd.f32 0.0, %v6567
      %6569 = vmatmul.f32.gmra.mxu0 %v6458
      %v6570 = vpop.f32.mrf.mxu0
      %v6571 = vadd.f32 0.0, %v6570
      %6572 = vmatmul.f32.gmra.mxu0 %v6461
      %v6573 = vpop.f32.mrf.mxu0
      %v6574 = vadd.f32 0.0, %v6573
      %6575 = vmatmul.f32.gmra.mxu0 %v6464
      %v6576 = vpop.f32.mrf.mxu0
      %v6577 = vadd.f32 0.0, %v6576
      %6578 = vmatmul.f32.gmra.mxu0 %v6467
      %v6579 = vpop.f32.mrf.mxu0
      %v6580 = vadd.f32 0.0, %v6579
      %6581 = vmatmul.f32.gmra.mxu0 %v6470
      %v6582 = vpop.f32.mrf.mxu0
      %v6583 = vadd.f32 0.0, %v6582
      %6584 = vmatmul.f32.gmra.mxu0 %v6473
      %v6585 = vpop.f32.mrf.mxu0
      %v6586 = vadd.f32 0.0, %v6585
      %6587 = vmatmul.f32.gmra.mxu0 %v6476
      %v6588 = vpop.f32.mrf.mxu0
      %v6589 = vadd.f32 0.0, %v6588
      %6590 = vmatmul.f32.gmra.mxu0 %v6479
      %v6591 = vpop.f32.mrf.mxu0
      %v6592 = vadd.f32 0.0, %v6591
      %6593 = vmatmul.f32.gmra.mxu0 %v6482
      %v6594 = vpop.f32.mrf.mxu0
      %v6595 = vadd.f32 0.0, %v6594
      %6596 = vmatmul.f32.gmra.mxu0 %v6485
      %v6597 = vpop.f32.mrf.mxu0
      %v6598 = vadd.f32 0.0, %v6597
      %6599 = vmatmul.f32.gmra.mxu0 %v6488
      %v6600 = vpop.f32.mrf.mxu0
      %v6601 = vadd.f32 0.0, %v6600
      %6602 = vmatmul.f32.gmra.mxu0 %v6491
      %v6603 = vpop.f32.mrf.mxu0
      %v6604 = vadd.f32 0.0, %v6603
      %6605 = vmatmul.f32.gmra.mxu0 %v6494
      %v6606 = vpop.f32.mrf.mxu0
      %v6607 = vadd.f32 0.0, %v6606
      %6608 = vmatmul.f32.gmra.mxu0 %v6497
      %v6609 = vpop.f32.mrf.mxu0
      %v6610 = vadd.f32 0.0, %v6609
      %6611 = vmatmul.f32.gmra.mxu0 %v6500
      %v6612 = vpop.f32.mrf.mxu0
      %v6613 = vadd.f32 0.0, %v6612
      %6614 = vdwg.mxu0
      %v6615 = vadd.f32 %v6372, %v6520
      %v6616 = vadd.f32 %v6373, %v6523
      %v6617 = vadd.f32 %v6374, %v6526
      %v6618 = vadd.f32 %v6375, %v6529
      %v6619 = vadd.f32 %v6376, %v6532
      %v6620 = vadd.f32 %v6377, %v6535
      %v6621 = vadd.f32 %v6378, %v6538
      %v6622 = vadd.f32 %v6379, %v6541
      %v6623 = vadd.f32 %v6380, %v6544
      %v6624 = vadd.f32 %v6381, %v6547
      %v6625 = vadd.f32 %v6382, %v6550
      %v6626 = vadd.f32 %v6383, %v6553
      %v6627 = vadd.f32 %v6384, %v6556
      %v6628 = vadd.f32 %v6385, %v6559
      %v6629 = vadd.f32 %v6386, %v6562
      %v6630 = vadd.f32 %v6387, %v6565
      %v6631 = vadd.f32 %v6388, %v6568
      %v6632 = vadd.f32 %v6389, %v6571
      %v6633 = vadd.f32 %v6390, %v6574
      %v6634 = vadd.f32 %v6391, %v6577
      %v6635 = vadd.f32 %v6392, %v6580
      %v6636 = vadd.f32 %v6393, %v6583
      %v6637 = vadd.f32 %v6394, %v6586
      %v6638 = vadd.f32 %v6395, %v6589
      %v6639 = vadd.f32 %v6396, %v6592
      %v6640 = vadd.f32 %v6397, %v6595
      %v6641 = vadd.f32 %v6398, %v6598
      %v6642 = vadd.f32 %v6399, %v6601
      %v6643 = vadd.f32 %v6400, %v6604
      %v6644 = vadd.f32 %v6401, %v6607
      %v6645 = vadd.f32 %v6402, %v6610
      %v6646 = vadd.f32 %v6403, %v6613
      %6647 = vst.msk [vmem:[#allocation3] sm:$0xff] %vm333, %v6615
      %6648 = vst.msk [vmem:[#allocation3 + $0x8] sm:$0xff] %vm333, %v6616
      %6649 = vst.msk [vmem:[#allocation3 + $0x10] sm:$0xff] %vm333, %v6617
      %6650 = vst.msk [vmem:[#allocation3 + $0x18] sm:$0xff] %vm333, %v6618
      %6651 = vst.msk [vmem:[#allocation3 + $0x20] sm:$0xff] %vm333, %v6619
      %6652 = vst.msk [vmem:[#allocation3 + $0x28] sm:$0xff] %vm333, %v6620
      %6653 = vst.msk [vmem:[#allocation3 + $0x30] sm:$0xff] %vm333, %v6621
      %6654 = vst.msk [vmem:[#allocation3 + $0x38] sm:$0xff] %vm333, %v6622
      %6655 = vst.msk [vmem:[#allocation3 + $0x40] sm:$0xff] %vm333, %v6623
      %6656 = vst.msk [vmem:[#allocation3 + $0x48] sm:$0xff] %vm333, %v6624
      %6657 = vst.msk [vmem:[#allocation3 + $0x50] sm:$0xff] %vm333, %v6625
      %6658 = vst.msk [vmem:[#allocation3 + $0x58] sm:$0xff] %vm333, %v6626
      %6659 = vst.msk [vmem:[#allocation3 + $0x60] sm:$0xff] %vm333, %v6627
      %6660 = vst.msk [vmem:[#allocation3 + $0x68] sm:$0xff] %vm333, %v6628
      %6661 = vst.msk [vmem:[#allocation3 + $0x70] sm:$0xff] %vm333, %v6629
      %6662 = vst.msk [vmem:[#allocation3 + $0x78] sm:$0xff] %vm333, %v6630
      %6663 = vst.msk [vmem:[#allocation3 + $0x80] sm:$0xff] %vm333, %v6631
      %6664 = vst.msk [vmem:[#allocation3 + $0x88] sm:$0xff] %vm333, %v6632
      %6665 = vst.msk [vmem:[#allocation3 + $0x90] sm:$0xff] %vm333, %v6633
      %6666 = vst.msk [vmem:[#allocation3 + $0x98] sm:$0xff] %vm333, %v6634
      %6667 = vst.msk [vmem:[#allocation3 + $0xa0] sm:$0xff] %vm333, %v6635
      %6668 = vst.msk [vmem:[#allocation3 + $0xa8] sm:$0xff] %vm333, %v6636
      %6669 = vst.msk [vmem:[#allocation3 + $0xb0] sm:$0xff] %vm333, %v6637
      %6670 = vst.msk [vmem:[#allocation3 + $0xb8] sm:$0xff] %vm333, %v6638
      %6671 = vst.msk [vmem:[#allocation3 + $0xc0] sm:$0xff] %vm333, %v6639
      %6672 = vst.msk [vmem:[#allocation3 + $0xc8] sm:$0xff] %vm333, %v6640
      %6673 = vst.msk [vmem:[#allocation3 + $0xd0] sm:$0xff] %vm333, %v6641
      %6674 = vst.msk [vmem:[#allocation3 + $0xd8] sm:$0xff] %vm333, %v6642
      %6675 = vst.msk [vmem:[#allocation3 + $0xe0] sm:$0xff] %vm333, %v6643
      %6676 = vst.msk [vmem:[#allocation3 + $0xe8] sm:$0xff] %vm333, %v6644
      %6677 = vst.msk [vmem:[#allocation3 + $0xf0] sm:$0xff] %vm333, %v6645
      %6678 = vst.msk [vmem:[#allocation3 + $0xf8] sm:$0xff] %vm333, %v6646
      %v6679 = vld [vmem:[%s6000 + $0x2] sm:$0xff]
      %v6680 = vld [vmem:[%s6000 + $0xa] sm:$0xff]
      %v6681 = vld [vmem:[%s6000 + $0x1a] sm:$0xff]
      %v6682 = vld [vmem:[%s6000 + $0x22] sm:$0xff]
      %v6683 = vld [vmem:[%s6000 + $0x32] sm:$0xff]
      %v6684 = vld [vmem:[%s6000 + $0x3a] sm:$0xff]
      %v6685 = vld [vmem:[%s6000 + $0x4a] sm:$0xff]
      %v6686 = vld [vmem:[%s6000 + $0x52] sm:$0xff]
      %v6687 = vld [vmem:[%s6000 + $0x62] sm:$0xff]
      %v6688 = vld [vmem:[%s6000 + $0x6a] sm:$0xff]
      %v6689 = vld [vmem:[%s6000 + $0x7a] sm:$0xff]
      %v6690 = vld [vmem:[%s6000 + $0x82] sm:$0xff]
      %v6691 = vld [vmem:[%s6000 + $0x92] sm:$0xff]
      %v6692 = vld [vmem:[%s6000 + $0x9a] sm:$0xff]
      %v6693 = vld [vmem:[%s6000 + $0xaa] sm:$0xff]
      %v6694 = vld [vmem:[%s6000 + $0xb2] sm:$0xff]
      %v6695 = vld [vmem:[%s6000 + $0xc2] sm:$0xff]
      %v6696 = vld [vmem:[%s6000 + $0xca] sm:$0xff]
      %v6697 = vld [vmem:[%s6000 + $0xda] sm:$0xff]
      %v6698 = vld [vmem:[%s6000 + $0xe2] sm:$0xff]
      %v6699 = vld [vmem:[%s6000 + $0xf2] sm:$0xff]
      %v6700 = vld [vmem:[%s6000 + $0xfa] sm:$0xff]
      %v6701 = vld [vmem:[%s6000 + $0x10a] sm:$0xff]
      %v6702 = vld [vmem:[%s6000 + $0x112] sm:$0xff]
      %v6703 = vld [vmem:[%s6000 + $0x122] sm:$0xff]
      %v6704 = vld [vmem:[%s6000 + $0x12a] sm:$0xff]
      %v6705 = vld [vmem:[%s6000 + $0x13a] sm:$0xff]
      %v6706 = vld [vmem:[%s6000 + $0x142] sm:$0xff]
      %v6707 = vld [vmem:[%s6000 + $0x152] sm:$0xff]
      %v6708 = vld [vmem:[%s6000 + $0x15a] sm:$0xff]
      %v6709 = vld [vmem:[%s6000 + $0x16a] sm:$0xff]
      %v6710 = vld [vmem:[%s6000 + $0x172] sm:$0xff]
      %v6711 = vld [vmem:[#allocation3] sm:$0xff]
      %v6712 = vld [vmem:[#allocation3 + $0x8] sm:$0xff]
      %v6713 = vld [vmem:[#allocation3 + $0x10] sm:$0xff]
      %v6714 = vld [vmem:[#allocation3 + $0x18] sm:$0xff]
      %v6715 = vld [vmem:[#allocation3 + $0x20] sm:$0xff]
      %v6716 = vld [vmem:[#allocation3 + $0x28] sm:$0xff]
      %v6717 = vld [vmem:[#allocation3 + $0x30] sm:$0xff]
      %v6718 = vld [vmem:[#allocation3 + $0x38] sm:$0xff]
      %v6719 = vld [vmem:[#allocation3 + $0x40] sm:$0xff]
      %v6720 = vld [vmem:[#allocation3 + $0x48] sm:$0xff]
      %v6721 = vld [vmem:[#allocation3 + $0x50] sm:$0xff]
      %v6722 = vld [vmem:[#allocation3 + $0x58] sm:$0xff]
      %v6723 = vld [vmem:[#allocation3 + $0x60] sm:$0xff]
      %v6724 = vld [vmem:[#allocation3 + $0x68] sm:$0xff]
      %v6725 = vld [vmem:[#allocation3 + $0x70] sm:$0xff]
      %v6726 = vld [vmem:[#allocation3 + $0x78] sm:$0xff]
      %v6727 = vld [vmem:[#allocation3 + $0x80] sm:$0xff]
      %v6728 = vld [vmem:[#allocation3 + $0x88] sm:$0xff]
      %v6729 = vld [vmem:[#allocation3 + $0x90] sm:$0xff]
      %v6730 = vld [vmem:[#allocation3 + $0x98] sm:$0xff]
      %v6731 = vld [vmem:[#allocation3 + $0xa0] sm:$0xff]
      %v6732 = vld [vmem:[#allocation3 + $0xa8] sm:$0xff]
      %v6733 = vld [vmem:[#allocation3 + $0xb0] sm:$0xff]
      %v6734 = vld [vmem:[#allocation3 + $0xb8] sm:$0xff]
      %v6735 = vld [vmem:[#allocation3 + $0xc0] sm:$0xff]
      %v6736 = vld [vmem:[#allocation3 + $0xc8] sm:$0xff]
      %v6737 = vld [vmem:[#allocation3 + $0xd0] sm:$0xff]
      %v6738 = vld [vmem:[#allocation3 + $0xd8] sm:$0xff]
      %v6739 = vld [vmem:[#allocation3 + $0xe0] sm:$0xff]
      %v6740 = vld [vmem:[#allocation3 + $0xe8] sm:$0xff]
      %v6741 = vld [vmem:[#allocation3 + $0xf0] sm:$0xff]
      %v6742 = vld [vmem:[#allocation3 + $0xf8] sm:$0xff]
      %s6743 = scalar_lea.vmem %s4, 64
      %v6744 = vld [vmem:[%s6743] sm:$0xff]
      %v6746 = vsel %vm3846, %v6679, 0
      %v6749 = vsel %vm3846, %v6680, 0
      %v6752 = vsel %vm3846, %v6681, 0
      %v6755 = vsel %vm3846, %v6682, 0
      %v6758 = vsel %vm3846, %v6683, 0
      %v6761 = vsel %vm3846, %v6684, 0
      %v6764 = vsel %vm3846, %v6685, 0
      %v6767 = vsel %vm3846, %v6686, 0
      %v6770 = vsel %vm3846, %v6687, 0
      %v6773 = vsel %vm3846, %v6688, 0
      %v6776 = vsel %vm3846, %v6689, 0
      %v6779 = vsel %vm3846, %v6690, 0
      %v6782 = vsel %vm3846, %v6691, 0
      %v6785 = vsel %vm3846, %v6692, 0
      %v6788 = vsel %vm3846, %v6693, 0
      %v6791 = vsel %vm3846, %v6694, 0
      %v6794 = vsel %vm3846, %v6695, 0
      %v6797 = vsel %vm3846, %v6696, 0
      %v6800 = vsel %vm3846, %v6697, 0
      %v6803 = vsel %vm3846, %v6698, 0
      %v6806 = vsel %vm3846, %v6699, 0
      %v6809 = vsel %vm3846, %v6700, 0
      %v6812 = vsel %vm3846, %v6701, 0
      %v6815 = vsel %vm3846, %v6702, 0
      %v6818 = vsel %vm3846, %v6703, 0
      %v6821 = vsel %vm3846, %v6704, 0
      %v6824 = vsel %vm3846, %v6705, 0
      %v6827 = vsel %vm3846, %v6706, 0
      %v6830 = vsel %vm3846, %v6707, 0
      %v6833 = vsel %vm3846, %v6708, 0
      %v6836 = vsel %vm3846, %v6709, 0
      %v6839 = vsel %vm3846, %v6710, 0
      %6841 = vmatpush.msra.mxu0 0.0
      %6842 = vmatpush.msra.mxu0 0.0
      %6843 = vmatpush.msra.mxu0 0.0
      %6844 = vmatpush.msra.mxu0 0.0
      %6845 = vmatpush.msra.mxu0 0.0
      %6846 = vmatpush.msra.mxu0 0.0
      %6847 = vmatpush.msra.mxu0 0.0
      %6848 = vmatpush.msra.mxu0 0.0
      %6849 = vmatpush.msra.mxu0 0.0
      %6850 = vmatpush.msra.mxu0 0.0
      %6851 = vmatpush.msra.mxu0 0.0
      %6852 = vmatpush.msra.mxu0 0.0
      %6853 = vmatpush.msra.mxu0 0.0
      %6854 = vmatpush.msra.mxu0 0.0
      %6855 = vmatpush.msra.mxu0 0.0
      %6856 = vmatpush.msra.mxu0 %v6744
      %6857 = vmatmul.f32.gmra.mxu0 %v6746
      %v6858 = vpop.f32.mrf.mxu0
      %v6859 = vadd.f32 0.0, %v6858
      %6860 = vmatmul.f32.gmra.mxu0 %v6749
      %v6861 = vpop.f32.mrf.mxu0
      %v6862 = vadd.f32 0.0, %v6861
      %6863 = vmatmul.f32.gmra.mxu0 %v6752
      %v6864 = vpop.f32.mrf.mxu0
      %v6865 = vadd.f32 0.0, %v6864
      %6866 = vmatmul.f32.gmra.mxu0 %v6755
      %v6867 = vpop.f32.mrf.mxu0
      %v6868 = vadd.f32 0.0, %v6867
      %6869 = vmatmul.f32.gmra.mxu0 %v6758
      %v6870 = vpop.f32.mrf.mxu0
      %v6871 = vadd.f32 0.0, %v6870
      %6872 = vmatmul.f32.gmra.mxu0 %v6761
      %v6873 = vpop.f32.mrf.mxu0
      %v6874 = vadd.f32 0.0, %v6873
      %6875 = vmatmul.f32.gmra.mxu0 %v6764
      %v6876 = vpop.f32.mrf.mxu0
      %v6877 = vadd.f32 0.0, %v6876
      %6878 = vmatmul.f32.gmra.mxu0 %v6767
      %v6879 = vpop.f32.mrf.mxu0
      %v6880 = vadd.f32 0.0, %v6879
      %6881 = vmatmul.f32.gmra.mxu0 %v6770
      %v6882 = vpop.f32.mrf.mxu0
      %v6883 = vadd.f32 0.0, %v6882
      %6884 = vmatmul.f32.gmra.mxu0 %v6773
      %v6885 = vpop.f32.mrf.mxu0
      %v6886 = vadd.f32 0.0, %v6885
      %6887 = vmatmul.f32.gmra.mxu0 %v6776
      %v6888 = vpop.f32.mrf.mxu0
      %v6889 = vadd.f32 0.0, %v6888
      %6890 = vmatmul.f32.gmra.mxu0 %v6779
      %v6891 = vpop.f32.mrf.mxu0
      %v6892 = vadd.f32 0.0, %v6891
      %6893 = vmatmul.f32.gmra.mxu0 %v6782
      %v6894 = vpop.f32.mrf.mxu0
      %v6895 = vadd.f32 0.0, %v6894
      %6896 = vmatmul.f32.gmra.mxu0 %v6785
      %v6897 = vpop.f32.mrf.mxu0
      %v6898 = vadd.f32 0.0, %v6897
      %6899 = vmatmul.f32.gmra.mxu0 %v6788
      %v6900 = vpop.f32.mrf.mxu0
      %v6901 = vadd.f32 0.0, %v6900
      %6902 = vmatmul.f32.gmra.mxu0 %v6791
      %v6903 = vpop.f32.mrf.mxu0
      %v6904 = vadd.f32 0.0, %v6903
      %6905 = vmatmul.f32.gmra.mxu0 %v6794
      %v6906 = vpop.f32.mrf.mxu0
      %v6907 = vadd.f32 0.0, %v6906
      %6908 = vmatmul.f32.gmra.mxu0 %v6797
      %v6909 = vpop.f32.mrf.mxu0
      %v6910 = vadd.f32 0.0, %v6909
      %6911 = vmatmul.f32.gmra.mxu0 %v6800
      %v6912 = vpop.f32.mrf.mxu0
      %v6913 = vadd.f32 0.0, %v6912
      %6914 = vmatmul.f32.gmra.mxu0 %v6803
      %v6915 = vpop.f32.mrf.mxu0
      %v6916 = vadd.f32 0.0, %v6915
      %6917 = vmatmul.f32.gmra.mxu0 %v6806
      %v6918 = vpop.f32.mrf.mxu0
      %v6919 = vadd.f32 0.0, %v6918
      %6920 = vmatmul.f32.gmra.mxu0 %v6809
      %v6921 = vpop.f32.mrf.mxu0
      %v6922 = vadd.f32 0.0, %v6921
      %6923 = vmatmul.f32.gmra.mxu0 %v6812
      %v6924 = vpop.f32.mrf.mxu0
      %v6925 = vadd.f32 0.0, %v6924
      %6926 = vmatmul.f32.gmra.mxu0 %v6815
      %v6927 = vpop.f32.mrf.mxu0
      %v6928 = vadd.f32 0.0, %v6927
      %6929 = vmatmul.f32.gmra.mxu0 %v6818
      %v6930 = vpop.f32.mrf.mxu0
      %v6931 = vadd.f32 0.0, %v6930
      %6932 = vmatmul.f32.gmra.mxu0 %v6821
      %v6933 = vpop.f32.mrf.mxu0
      %v6934 = vadd.f32 0.0, %v6933
      %6935 = vmatmul.f32.gmra.mxu0 %v6824
      %v6936 = vpop.f32.mrf.mxu0
      %v6937 = vadd.f32 0.0, %v6936
      %6938 = vmatmul.f32.gmra.mxu0 %v6827
      %v6939 = vpop.f32.mrf.mxu0
      %v6940 = vadd.f32 0.0, %v6939
      %6941 = vmatmul.f32.gmra.mxu0 %v6830
      %v6942 = vpop.f32.mrf.mxu0
      %v6943 = vadd.f32 0.0, %v6942
      %6944 = vmatmul.f32.gmra.mxu0 %v6833
      %v6945 = vpop.f32.mrf.mxu0
      %v6946 = vadd.f32 0.0, %v6945
      %6947 = vmatmul.f32.gmra.mxu0 %v6836
      %v6948 = vpop.f32.mrf.mxu0
      %v6949 = vadd.f32 0.0, %v6948
      %6950 = vmatmul.f32.gmra.mxu0 %v6839
      %v6951 = vpop.f32.mrf.mxu0
      %v6952 = vadd.f32 0.0, %v6951
      %6953 = vdwg.mxu0
      %v6954 = vadd.f32 %v6711, %v6859
      %v6955 = vadd.f32 %v6712, %v6862
      %v6956 = vadd.f32 %v6713, %v6865
      %v6957 = vadd.f32 %v6714, %v6868
      %v6958 = vadd.f32 %v6715, %v6871
      %v6959 = vadd.f32 %v6716, %v6874
      %v6960 = vadd.f32 %v6717, %v6877
      %v6961 = vadd.f32 %v6718, %v6880
      %v6962 = vadd.f32 %v6719, %v6883
      %v6963 = vadd.f32 %v6720, %v6886
      %v6964 = vadd.f32 %v6721, %v6889
      %v6965 = vadd.f32 %v6722, %v6892
      %v6966 = vadd.f32 %v6723, %v6895
      %v6967 = vadd.f32 %v6724, %v6898
      %v6968 = vadd.f32 %v6725, %v6901
      %v6969 = vadd.f32 %v6726, %v6904
      %v6970 = vadd.f32 %v6727, %v6907
      %v6971 = vadd.f32 %v6728, %v6910
      %v6972 = vadd.f32 %v6729, %v6913
      %v6973 = vadd.f32 %v6730, %v6916
      %v6974 = vadd.f32 %v6731, %v6919
      %v6975 = vadd.f32 %v6732, %v6922
      %v6976 = vadd.f32 %v6733, %v6925
      %v6977 = vadd.f32 %v6734, %v6928
      %v6978 = vadd.f32 %v6735, %v6931
      %v6979 = vadd.f32 %v6736, %v6934
      %v6980 = vadd.f32 %v6737, %v6937
      %v6981 = vadd.f32 %v6738, %v6940
      %v6982 = vadd.f32 %v6739, %v6943
      %v6983 = vadd.f32 %v6740, %v6946
      %v6984 = vadd.f32 %v6741, %v6949
      %v6985 = vadd.f32 %v6742, %v6952
      %6986 = vst.msk [vmem:[#allocation3] sm:$0xff] %vm333, %v6954
      %6987 = vst.msk [vmem:[#allocation3 + $0x8] sm:$0xff] %vm333, %v6955
      %6988 = vst.msk [vmem:[#allocation3 + $0x10] sm:$0xff] %vm333, %v6956
      %6989 = vst.msk [vmem:[#allocation3 + $0x18] sm:$0xff] %vm333, %v6957
      %6990 = vst.msk [vmem:[#allocation3 + $0x20] sm:$0xff] %vm333, %v6958
      %6991 = vst.msk [vmem:[#allocation3 + $0x28] sm:$0xff] %vm333, %v6959
      %6992 = vst.msk [vmem:[#allocation3 + $0x30] sm:$0xff] %vm333, %v6960
      %6993 = vst.msk [vmem:[#allocation3 + $0x38] sm:$0xff] %vm333, %v6961
      %6994 = vst.msk [vmem:[#allocation3 + $0x40] sm:$0xff] %vm333, %v6962
      %6995 = vst.msk [vmem:[#allocation3 + $0x48] sm:$0xff] %vm333, %v6963
      %6996 = vst.msk [vmem:[#allocation3 + $0x50] sm:$0xff] %vm333, %v6964
      %6997 = vst.msk [vmem:[#allocation3 + $0x58] sm:$0xff] %vm333, %v6965
      %6998 = vst.msk [vmem:[#allocation3 + $0x60] sm:$0xff] %vm333, %v6966
      %6999 = vst.msk [vmem:[#allocation3 + $0x68] sm:$0xff] %vm333, %v6967
      %7000 = vst.msk [vmem:[#allocation3 + $0x70] sm:$0xff] %vm333, %v6968
      %7001 = vst.msk [vmem:[#allocation3 + $0x78] sm:$0xff] %vm333, %v6969
      %7002 = vst.msk [vmem:[#allocation3 + $0x80] sm:$0xff] %vm333, %v6970
      %7003 = vst.msk [vmem:[#allocation3 + $0x88] sm:$0xff] %vm333, %v6971
      %7004 = vst.msk [vmem:[#allocation3 + $0x90] sm:$0xff] %vm333, %v6972
      %7005 = vst.msk [vmem:[#allocation3 + $0x98] sm:$0xff] %vm333, %v6973
      %7006 = vst.msk [vmem:[#allocation3 + $0xa0] sm:$0xff] %vm333, %v6974
      %7007 = vst.msk [vmem:[#allocation3 + $0xa8] sm:$0xff] %vm333, %v6975
      %7008 = vst.msk [vmem:[#allocation3 + $0xb0] sm:$0xff] %vm333, %v6976
      %7009 = vst.msk [vmem:[#allocation3 + $0xb8] sm:$0xff] %vm333, %v6977
      %7010 = vst.msk [vmem:[#allocation3 + $0xc0] sm:$0xff] %vm333, %v6978
      %7011 = vst.msk [vmem:[#allocation3 + $0xc8] sm:$0xff] %vm333, %v6979
      %7012 = vst.msk [vmem:[#allocation3 + $0xd0] sm:$0xff] %vm333, %v6980
      %7013 = vst.msk [vmem:[#allocation3 + $0xd8] sm:$0xff] %vm333, %v6981
      %7014 = vst.msk [vmem:[#allocation3 + $0xe0] sm:$0xff] %vm333, %v6982
      %7015 = vst.msk [vmem:[#allocation3 + $0xe8] sm:$0xff] %vm333, %v6983
      %7016 = vst.msk [vmem:[#allocation3 + $0xf0] sm:$0xff] %vm333, %v6984
      %7017 = vst.msk [vmem:[#allocation3 + $0xf8] sm:$0xff] %vm333, %v6985
      %v7018 = vld [vmem:[#allocation3] sm:$0xff]
      %v7019 = vld [vmem:[#allocation3 + $0x8] sm:$0xff]
      %v7020 = vld [vmem:[#allocation3 + $0x10] sm:$0xff]
      %v7021 = vld [vmem:[#allocation3 + $0x18] sm:$0xff]
      %v7022 = vld [vmem:[#allocation3 + $0x20] sm:$0xff]
      %v7023 = vld [vmem:[#allocation3 + $0x28] sm:$0xff]
      %v7024 = vld [vmem:[#allocation3 + $0x30] sm:$0xff]
      %v7025 = vld [vmem:[#allocation3 + $0x38] sm:$0xff]
      %v7026 = vld [vmem:[#allocation3 + $0x40] sm:$0xff]
      %v7027 = vld [vmem:[#allocation3 + $0x48] sm:$0xff]
      %v7028 = vld [vmem:[#allocation3 + $0x50] sm:$0xff]
      %v7029 = vld [vmem:[#allocation3 + $0x58] sm:$0xff]
      %v7030 = vld [vmem:[#allocation3 + $0x60] sm:$0xff]
      %v7031 = vld [vmem:[#allocation3 + $0x68] sm:$0xff]
      %v7032 = vld [vmem:[#allocation3 + $0x70] sm:$0xff]
      %v7033 = vld [vmem:[#allocation3 + $0x78] sm:$0xff]
      %v7034 = vld [vmem:[#allocation3 + $0x80] sm:$0xff]
      %v7035 = vld [vmem:[#allocation3 + $0x88] sm:$0xff]
      %v7036 = vld [vmem:[#allocation3 + $0x90] sm:$0xff]
      %v7037 = vld [vmem:[#allocation3 + $0x98] sm:$0xff]
      %v7038 = vld [vmem:[#allocation3 + $0xa0] sm:$0xff]
      %v7039 = vld [vmem:[#allocation3 + $0xa8] sm:$0xff]
      %v7040 = vld [vmem:[#allocation3 + $0xb0] sm:$0xff]
      %v7041 = vld [vmem:[#allocation3 + $0xb8] sm:$0xff]
      %v7042 = vld [vmem:[#allocation3 + $0xc0] sm:$0xff]
      %v7043 = vld [vmem:[#allocation3 + $0xc8] sm:$0xff]
      %v7044 = vld [vmem:[#allocation3 + $0xd0] sm:$0xff]
      %v7045 = vld [vmem:[#allocation3 + $0xd8] sm:$0xff]
      %v7046 = vld [vmem:[#allocation3 + $0xe0] sm:$0xff]
      %v7047 = vld [vmem:[#allocation3 + $0xe8] sm:$0xff]
      %v7048 = vld [vmem:[#allocation3 + $0xf0] sm:$0xff]
      %v7049 = vld [vmem:[#allocation3 + $0xf8] sm:$0xff]
      %v7050 = vld [vmem:[%s5] sm:$0xf]
      %v7051 = vld [vmem:[%s6] sm:$0x1]
      %v7053 = vperm.slane %v7051, 0
      %v7056 = vsel %vm333, %v7018, 0
      %v7059 = vsel %vm333, %v7019, 0
      %v7062 = vsel %vm333, %v7020, 0
      %v7065 = vsel %vm333, %v7021, 0
      %v7068 = vsel %vm333, %v7022, 0
      %v7071 = vsel %vm333, %v7023, 0
      %v7074 = vsel %vm333, %v7024, 0
      %v7077 = vsel %vm333, %v7025, 0
      %v7080 = vsel %vm333, %v7026, 0
      %v7083 = vsel %vm333, %v7027, 0
      %v7086 = vsel %vm333, %v7028, 0
      %v7089 = vsel %vm333, %v7029, 0
      %v7092 = vsel %vm333, %v7030, 0
      %v7095 = vsel %vm333, %v7031, 0
      %v7098 = vsel %vm333, %v7032, 0
      %v7101 = vsel %vm333, %v7033, 0
      %v7104 = vsel %vm333, %v7034, 0
      %v7107 = vsel %vm333, %v7035, 0
      %v7110 = vsel %vm333, %v7036, 0
      %v7113 = vsel %vm333, %v7037, 0
      %v7116 = vsel %vm333, %v7038, 0
      %v7119 = vsel %vm333, %v7039, 0
      %v7122 = vsel %vm333, %v7040, 0
      %v7125 = vsel %vm333, %v7041, 0
      %v7128 = vsel %vm333, %v7042, 0
      %v7131 = vsel %vm333, %v7043, 0
      %v7134 = vsel %vm333, %v7044, 0
      %v7137 = vsel %vm333, %v7045, 0
      %v7140 = vsel %vm333, %v7046, 0
      %v7143 = vsel %vm333, %v7047, 0
      %v7146 = vsel %vm333, %v7048, 0
      %v7149 = vsel %vm333, %v7049, 0
      %v7152 = vsel %vm647, %v7050, 0
      %7154 = vmatpush.msra.mxu0 0.0
      %7155 = vmatpush.msra.mxu0 0.0
      %7156 = vmatpush.msra.mxu0 0.0
      %7157 = vmatpush.msra.mxu0 0.0
      %7158 = vmatpush.msra.mxu0 0.0
      %7159 = vmatpush.msra.mxu0 0.0
      %7160 = vmatpush.msra.mxu0 0.0
      %7161 = vmatpush.msra.mxu0 0.0
      %7162 = vmatpush.msra.mxu0 0.0
      %7163 = vmatpush.msra.mxu0 0.0
      %7164 = vmatpush.msra.mxu0 0.0
      %7165 = vmatpush.msra.mxu0 0.0
      %7166 = vmatpush.msra.mxu0 0.0
      %7167 = vmatpush.msra.mxu0 0.0
      %7168 = vmatpush.msra.mxu0 0.0
      %7169 = vmatpush.msra.mxu0 %v7152
      %7170 = vmatmul.f32.gmra.mxu0 %v7056
      %v7171 = vpop.f32.mrf.mxu0
      %v7172 = vadd.f32 %v7053, %v7171
      %7173 = vmatmul.f32.gmra.mxu0 %v7059
      %v7174 = vpop.f32.mrf.mxu0
      %v7175 = vadd.f32 %v7053, %v7174
      %7176 = vmatmul.f32.gmra.mxu0 %v7062
      %v7177 = vpop.f32.mrf.mxu0
      %v7178 = vadd.f32 %v7053, %v7177
      %7179 = vmatmul.f32.gmra.mxu0 %v7065
      %v7180 = vpop.f32.mrf.mxu0
      %v7181 = vadd.f32 %v7053, %v7180
      %7182 = vmatmul.f32.gmra.mxu0 %v7068
      %v7183 = vpop.f32.mrf.mxu0
      %v7184 = vadd.f32 %v7053, %v7183
      %7185 = vmatmul.f32.gmra.mxu0 %v7071
      %v7186 = vpop.f32.mrf.mxu0
      %v7187 = vadd.f32 %v7053, %v7186
      %7188 = vmatmul.f32.gmra.mxu0 %v7074
      %v7189 = vpop.f32.mrf.mxu0
      %v7190 = vadd.f32 %v7053, %v7189
      %7191 = vmatmul.f32.gmra.mxu0 %v7077
      %v7192 = vpop.f32.mrf.mxu0
      %v7193 = vadd.f32 %v7053, %v7192
      %7194 = vmatmul.f32.gmra.mxu0 %v7080
      %v7195 = vpop.f32.mrf.mxu0
      %v7196 = vadd.f32 %v7053, %v7195
      %7197 = vmatmul.f32.gmra.mxu0 %v7083
      %v7198 = vpop.f32.mrf.mxu0
      %v7199 = vadd.f32 %v7053, %v7198
      %7200 = vmatmul.f32.gmra.mxu0 %v7086
      %v7201 = vpop.f32.mrf.mxu0
      %v7202 = vadd.f32 %v7053, %v7201
      %7203 = vmatmul.f32.gmra.mxu0 %v7089
      %v7204 = vpop.f32.mrf.mxu0
      %v7205 = vadd.f32 %v7053, %v7204
      %7206 = vmatmul.f32.gmra.mxu0 %v7092
      %v7207 = vpop.f32.mrf.mxu0
      %v7208 = vadd.f32 %v7053, %v7207
      %7209 = vmatmul.f32.gmra.mxu0 %v7095
      %v7210 = vpop.f32.mrf.mxu0
      %v7211 = vadd.f32 %v7053, %v7210
      %7212 = vmatmul.f32.gmra.mxu0 %v7098
      %v7213 = vpop.f32.mrf.mxu0
      %v7214 = vadd.f32 %v7053, %v7213
      %7215 = vmatmul.f32.gmra.mxu0 %v7101
      %v7216 = vpop.f32.mrf.mxu0
      %v7217 = vadd.f32 %v7053, %v7216
      %7218 = vmatmul.f32.gmra.mxu0 %v7104
      %v7219 = vpop.f32.mrf.mxu0
      %v7220 = vadd.f32 %v7053, %v7219
      %7221 = vmatmul.f32.gmra.mxu0 %v7107
      %v7222 = vpop.f32.mrf.mxu0
      %v7223 = vadd.f32 %v7053, %v7222
      %7224 = vmatmul.f32.gmra.mxu0 %v7110
      %v7225 = vpop.f32.mrf.mxu0
      %v7226 = vadd.f32 %v7053, %v7225
      %7227 = vmatmul.f32.gmra.mxu0 %v7113
      %v7228 = vpop.f32.mrf.mxu0
      %v7229 = vadd.f32 %v7053, %v7228
      %7230 = vmatmul.f32.gmra.mxu0 %v7116
      %v7231 = vpop.f32.mrf.mxu0
      %v7232 = vadd.f32 %v7053, %v7231
      %7233 = vmatmul.f32.gmra.mxu0 %v7119
      %v7234 = vpop.f32.mrf.mxu0
      %v7235 = vadd.f32 %v7053, %v7234
      %7236 = vmatmul.f32.gmra.mxu0 %v7122
      %v7237 = vpop.f32.mrf.mxu0
      %v7238 = vadd.f32 %v7053, %v7237
      %7239 = vmatmul.f32.gmra.mxu0 %v7125
      %v7240 = vpop.f32.mrf.mxu0
      %v7241 = vadd.f32 %v7053, %v7240
      %7242 = vmatmul.f32.gmra.mxu0 %v7128
      %v7243 = vpop.f32.mrf.mxu0
      %v7244 = vadd.f32 %v7053, %v7243
      %7245 = vmatmul.f32.gmra.mxu0 %v7131
      %v7246 = vpop.f32.mrf.mxu0
      %v7247 = vadd.f32 %v7053, %v7246
      %7248 = vmatmul.f32.gmra.mxu0 %v7134
      %v7249 = vpop.f32.mrf.mxu0
      %v7250 = vadd.f32 %v7053, %v7249
      %7251 = vmatmul.f32.gmra.mxu0 %v7137
      %v7252 = vpop.f32.mrf.mxu0
      %v7253 = vadd.f32 %v7053, %v7252
      %7254 = vmatmul.f32.gmra.mxu0 %v7140
      %v7255 = vpop.f32.mrf.mxu0
      %v7256 = vadd.f32 %v7053, %v7255
      %7257 = vmatmul.f32.gmra.mxu0 %v7143
      %v7258 = vpop.f32.mrf.mxu0
      %v7259 = vadd.f32 %v7053, %v7258
      %7260 = vmatmul.f32.gmra.mxu0 %v7146
      %v7261 = vpop.f32.mrf.mxu0
      %v7262 = vadd.f32 %v7053, %v7261
      %7263 = vmatmul.f32.gmra.mxu0 %v7149
      %v7264 = vpop.f32.mrf.mxu0
      %v7265 = vadd.f32 %v7053, %v7264
      %7266 = vdwg.mxu0
      %v7267 = vld [vmem:[%s327] sm:$0xff]
      %v7268 = vld [vmem:[%s327 + $0x8] sm:$0xff]
      %v7269 = vld [vmem:[%s327 + $0x10] sm:$0xff]
      %v7270 = vld [vmem:[%s327 + $0x18] sm:$0xff]
      %v7271 = vld [vmem:[%s327 + $0x20] sm:$0xff]
      %v7272 = vld [vmem:[%s327 + $0x28] sm:$0xff]
      %v7273 = vld [vmem:[%s327 + $0x30] sm:$0xff]
      %v7274 = vld [vmem:[%s327 + $0x38] sm:$0xff]
      %v7275 = vld [vmem:[%s327 + $0x40] sm:$0xff]
      %v7276 = vld [vmem:[%s327 + $0x48] sm:$0xff]
      %v7277 = vld [vmem:[%s327 + $0x50] sm:$0xff]
      %v7278 = vld [vmem:[%s327 + $0x58] sm:$0xff]
      %v7279 = vld [vmem:[%s327 + $0x60] sm:$0xff]
      %v7280 = vld [vmem:[%s327 + $0x68] sm:$0xff]
      %v7281 = vld [vmem:[%s327 + $0x70] sm:$0xff]
      %v7282 = vld [vmem:[%s327 + $0x78] sm:$0xff]
      %v7283 = vld [vmem:[%s327 + $0x80] sm:$0xff]
      %v7284 = vld [vmem:[%s327 + $0x88] sm:$0xff]
      %v7285 = vld [vmem:[%s327 + $0x90] sm:$0xff]
      %v7286 = vld [vmem:[%s327 + $0x98] sm:$0xff]
      %v7287 = vld [vmem:[%s327 + $0xa0] sm:$0xff]
      %v7288 = vld [vmem:[%s327 + $0xa8] sm:$0xff]
      %v7289 = vld [vmem:[%s327 + $0xb0] sm:$0xff]
      %v7290 = vld [vmem:[%s327 + $0xb8] sm:$0xff]
      %v7291 = vld [vmem:[%s327 + $0xc0] sm:$0xff]
      %v7292 = vld [vmem:[%s327 + $0xc8] sm:$0xff]
      %v7293 = vld [vmem:[%s327 + $0xd0] sm:$0xff]
      %v7294 = vld [vmem:[%s327 + $0xd8] sm:$0xff]
      %v7295 = vld [vmem:[%s327 + $0xe0] sm:$0xff]
      %v7296 = vld [vmem:[%s327 + $0xe8] sm:$0xff]
      %v7297 = vld [vmem:[%s327 + $0xf0] sm:$0xff]
      %v7298 = vld [vmem:[%s327 + $0xf8] sm:$0xff]
      %v7299 = vld [vmem:[%s7] sm:$0xf]
      %v7300 = vld [vmem:[%s8] sm:$0x1]
      %v7302 = vperm.slane %v7300, 0
      %v7305 = vsel %vm333, %v7267, 0
      %v7308 = vsel %vm333, %v7268, 0
      %v7311 = vsel %vm333, %v7269, 0
      %v7314 = vsel %vm333, %v7270, 0
      %v7317 = vsel %vm333, %v7271, 0
      %v7320 = vsel %vm333, %v7272, 0
      %v7323 = vsel %vm333, %v7273, 0
      %v7326 = vsel %vm333, %v7274, 0
      %v7329 = vsel %vm333, %v7275, 0
      %v7332 = vsel %vm333, %v7276, 0
      %v7335 = vsel %vm333, %v7277, 0
      %v7338 = vsel %vm333, %v7278, 0
      %v7341 = vsel %vm333, %v7279, 0
      %v7344 = vsel %vm333, %v7280, 0
      %v7347 = vsel %vm333, %v7281, 0
      %v7350 = vsel %vm333, %v7282, 0
      %v7353 = vsel %vm333, %v7283, 0
      %v7356 = vsel %vm333, %v7284, 0
      %v7359 = vsel %vm333, %v7285, 0
      %v7362 = vsel %vm333, %v7286, 0
      %v7365 = vsel %vm333, %v7287, 0
      %v7368 = vsel %vm333, %v7288, 0
      %v7371 = vsel %vm333, %v7289, 0
      %v7374 = vsel %vm333, %v7290, 0
      %v7377 = vsel %vm333, %v7291, 0
      %v7380 = vsel %vm333, %v7292, 0
      %v7383 = vsel %vm333, %v7293, 0
      %v7386 = vsel %vm333, %v7294, 0
      %v7389 = vsel %vm333, %v7295, 0
      %v7392 = vsel %vm333, %v7296, 0
      %v7395 = vsel %vm333, %v7297, 0
      %v7398 = vsel %vm333, %v7298, 0
      %v7401 = vsel %vm647, %v7299, 0
      %7403 = vmatpush.msra.mxu0 0.0
      %7404 = vmatpush.msra.mxu0 0.0
      %7405 = vmatpush.msra.mxu0 0.0
      %7406 = vmatpush.msra.mxu0 0.0
      %7407 = vmatpush.msra.mxu0 0.0
      %7408 = vmatpush.msra.mxu0 0.0
      %7409 = vmatpush.msra.mxu0 0.0
      %7410 = vmatpush.msra.mxu0 0.0
      %7411 = vmatpush.msra.mxu0 0.0
      %7412 = vmatpush.msra.mxu0 0.0
      %7413 = vmatpush.msra.mxu0 0.0
      %7414 = vmatpush.msra.mxu0 0.0
      %7415 = vmatpush.msra.mxu0 0.0
      %7416 = vmatpush.msra.mxu0 0.0
      %7417 = vmatpush.msra.mxu0 0.0
      %7418 = vmatpush.msra.mxu0 %v7401
      %7419 = vmatmul.f32.gmra.mxu0 %v7305
      %v7420 = vpop.f32.mrf.mxu0
      %v7421 = vadd.f32 %v7302, %v7420
      %7422 = vmatmul.f32.gmra.mxu0 %v7308
      %v7423 = vpop.f32.mrf.mxu0
      %v7424 = vadd.f32 %v7302, %v7423
      %7425 = vmatmul.f32.gmra.mxu0 %v7311
      %v7426 = vpop.f32.mrf.mxu0
      %v7427 = vadd.f32 %v7302, %v7426
      %7428 = vmatmul.f32.gmra.mxu0 %v7314
      %v7429 = vpop.f32.mrf.mxu0
      %v7430 = vadd.f32 %v7302, %v7429
      %7431 = vmatmul.f32.gmra.mxu0 %v7317
      %v7432 = vpop.f32.mrf.mxu0
      %v7433 = vadd.f32 %v7302, %v7432
      %7434 = vmatmul.f32.gmra.mxu0 %v7320
      %v7435 = vpop.f32.mrf.mxu0
      %v7436 = vadd.f32 %v7302, %v7435
      %7437 = vmatmul.f32.gmra.mxu0 %v7323
      %v7438 = vpop.f32.mrf.mxu0
      %v7439 = vadd.f32 %v7302, %v7438
      %7440 = vmatmul.f32.gmra.mxu0 %v7326
      %v7441 = vpop.f32.mrf.mxu0
      %v7442 = vadd.f32 %v7302, %v7441
      %7443 = vmatmul.f32.gmra.mxu0 %v7329
      %v7444 = vpop.f32.mrf.mxu0
      %v7445 = vadd.f32 %v7302, %v7444
      %7446 = vmatmul.f32.gmra.mxu0 %v7332
      %v7447 = vpop.f32.mrf.mxu0
      %v7448 = vadd.f32 %v7302, %v7447
      %7449 = vmatmul.f32.gmra.mxu0 %v7335
      %v7450 = vpop.f32.mrf.mxu0
      %v7451 = vadd.f32 %v7302, %v7450
      %7452 = vmatmul.f32.gmra.mxu0 %v7338
      %v7453 = vpop.f32.mrf.mxu0
      %v7454 = vadd.f32 %v7302, %v7453
      %7455 = vmatmul.f32.gmra.mxu0 %v7341
      %v7456 = vpop.f32.mrf.mxu0
      %v7457 = vadd.f32 %v7302, %v7456
      %7458 = vmatmul.f32.gmra.mxu0 %v7344
      %v7459 = vpop.f32.mrf.mxu0
      %v7460 = vadd.f32 %v7302, %v7459
      %7461 = vmatmul.f32.gmra.mxu0 %v7347
      %v7462 = vpop.f32.mrf.mxu0
      %v7463 = vadd.f32 %v7302, %v7462
      %7464 = vmatmul.f32.gmra.mxu0 %v7350
      %v7465 = vpop.f32.mrf.mxu0
      %v7466 = vadd.f32 %v7302, %v7465
      %7467 = vmatmul.f32.gmra.mxu0 %v7353
      %v7468 = vpop.f32.mrf.mxu0
      %v7469 = vadd.f32 %v7302, %v7468
      %7470 = vmatmul.f32.gmra.mxu0 %v7356
      %v7471 = vpop.f32.mrf.mxu0
      %v7472 = vadd.f32 %v7302, %v7471
      %7473 = vmatmul.f32.gmra.mxu0 %v7359
      %v7474 = vpop.f32.mrf.mxu0
      %v7475 = vadd.f32 %v7302, %v7474
      %7476 = vmatmul.f32.gmra.mxu0 %v7362
      %v7477 = vpop.f32.mrf.mxu0
      %v7478 = vadd.f32 %v7302, %v7477
      %7479 = vmatmul.f32.gmra.mxu0 %v7365
      %v7480 = vpop.f32.mrf.mxu0
      %v7481 = vadd.f32 %v7302, %v7480
      %7482 = vmatmul.f32.gmra.mxu0 %v7368
      %v7483 = vpop.f32.mrf.mxu0
      %v7484 = vadd.f32 %v7302, %v7483
      %7485 = vmatmul.f32.gmra.mxu0 %v7371
      %v7486 = vpop.f32.mrf.mxu0
      %v7487 = vadd.f32 %v7302, %v7486
      %7488 = vmatmul.f32.gmra.mxu0 %v7374
      %v7489 = vpop.f32.mrf.mxu0
      %v7490 = vadd.f32 %v7302, %v7489
      %7491 = vmatmul.f32.gmra.mxu0 %v7377
      %v7492 = vpop.f32.mrf.mxu0
      %v7493 = vadd.f32 %v7302, %v7492
      %7494 = vmatmul.f32.gmra.mxu0 %v7380
      %v7495 = vpop.f32.mrf.mxu0
      %v7496 = vadd.f32 %v7302, %v7495
      %7497 = vmatmul.f32.gmra.mxu0 %v7383
      %v7498 = vpop.f32.mrf.mxu0
      %v7499 = vadd.f32 %v7302, %v7498
      %7500 = vmatmul.f32.gmra.mxu0 %v7386
      %v7501 = vpop.f32.mrf.mxu0
      %v7502 = vadd.f32 %v7302, %v7501
      %7503 = vmatmul.f32.gmra.mxu0 %v7389
      %v7504 = vpop.f32.mrf.mxu0
      %v7505 = vadd.f32 %v7302, %v7504
      %7506 = vmatmul.f32.gmra.mxu0 %v7392
      %v7507 = vpop.f32.mrf.mxu0
      %v7508 = vadd.f32 %v7302, %v7507
      %7509 = vmatmul.f32.gmra.mxu0 %v7395
      %v7510 = vpop.f32.mrf.mxu0
      %v7511 = vadd.f32 %v7302, %v7510
      %7512 = vmatmul.f32.gmra.mxu0 %v7398
      %v7513 = vpop.f32.mrf.mxu0
      %v7514 = vadd.f32 %v7302, %v7513
      %7515 = vdwg.mxu0
      %v7516 = vadd.f32 %v7172, %v7421
      %v7517 = vadd.f32 %v7175, %v7424
      %v7518 = vadd.f32 %v7178, %v7427
      %v7519 = vadd.f32 %v7181, %v7430
      %v7520 = vadd.f32 %v7184, %v7433
      %v7521 = vadd.f32 %v7187, %v7436
      %v7522 = vadd.f32 %v7190, %v7439
      %v7523 = vadd.f32 %v7193, %v7442
      %v7524 = vadd.f32 %v7196, %v7445
      %v7525 = vadd.f32 %v7199, %v7448
      %v7526 = vadd.f32 %v7202, %v7451
      %v7527 = vadd.f32 %v7205, %v7454
      %v7528 = vadd.f32 %v7208, %v7457
      %v7529 = vadd.f32 %v7211, %v7460
      %v7530 = vadd.f32 %v7214, %v7463
      %v7531 = vadd.f32 %v7217, %v7466
      %v7532 = vadd.f32 %v7220, %v7469
      %v7533 = vadd.f32 %v7223, %v7472
      %v7534 = vadd.f32 %v7226, %v7475
      %v7535 = vadd.f32 %v7229, %v7478
      %v7536 = vadd.f32 %v7232, %v7481
      %v7537 = vadd.f32 %v7235, %v7484
      %v7538 = vadd.f32 %v7238, %v7487
      %v7539 = vadd.f32 %v7241, %v7490
      %v7540 = vadd.f32 %v7244, %v7493
      %v7541 = vadd.f32 %v7247, %v7496
      %v7542 = vadd.f32 %v7250, %v7499
      %v7543 = vadd.f32 %v7253, %v7502
      %v7544 = vadd.f32 %v7256, %v7505
      %v7545 = vadd.f32 %v7259, %v7508
      %v7546 = vadd.f32 %v7262, %v7511
      %v7547 = vadd.f32 %v7265, %v7514
      %v7548 = vmax.f32 %v7516, 0.0
      %v7549 = vmax.f32 %v7517, 0.0
      %v7550 = vmax.f32 %v7518, 0.0
      %v7551 = vmax.f32 %v7519, 0.0
      %v7552 = vmax.f32 %v7520, 0.0
      %v7553 = vmax.f32 %v7521, 0.0
      %v7554 = vmax.f32 %v7522, 0.0
      %v7555 = vmax.f32 %v7523, 0.0
      %v7556 = vmax.f32 %v7524, 0.0
      %v7557 = vmax.f32 %v7525, 0.0
      %v7558 = vmax.f32 %v7526, 0.0
      %v7559 = vmax.f32 %v7527, 0.0
      %v7560 = vmax.f32 %v7528, 0.0
      %v7561 = vmax.f32 %v7529, 0.0
      %v7562 = vmax.f32 %v7530, 0.0
      %v7563 = vmax.f32 %v7531, 0.0
      %v7564 = vmax.f32 %v7532, 0.0
      %v7565 = vmax.f32 %v7533, 0.0
      %v7566 = vmax.f32 %v7534, 0.0
      %v7567 = vmax.f32 %v7535, 0.0
      %v7568 = vmax.f32 %v7536, 0.0
      %v7569 = vmax.f32 %v7537, 0.0
      %v7570 = vmax.f32 %v7538, 0.0
      %v7571 = vmax.f32 %v7539, 0.0
      %v7572 = vmax.f32 %v7540, 0.0
      %v7573 = vmax.f32 %v7541, 0.0
      %v7574 = vmax.f32 %v7542, 0.0
      %v7575 = vmax.f32 %v7543, 0.0
      %v7576 = vmax.f32 %v7544, 0.0
      %v7577 = vmax.f32 %v7545, 0.0
      %v7578 = vmax.f32 %v7546, 0.0
      %v7579 = vmax.f32 %v7547, 0.0
      %7580 = vst.msk [vmem:[%s332] sm:$0xff] %vm3846, %v7548
      %7581 = vst.msk [vmem:[%s332 + $0x8] sm:$0xff] %vm3846, %v7549
      %7582 = vst.msk [vmem:[%s332 + $0x10] sm:$0xff] %vm3846, %v7550
      %7583 = vst.msk [vmem:[%s332 + $0x18] sm:$0xff] %vm3846, %v7551
      %7584 = vst.msk [vmem:[%s332 + $0x20] sm:$0xff] %vm3846, %v7552
      %7585 = vst.msk [vmem:[%s332 + $0x28] sm:$0xff] %vm3846, %v7553
      %7586 = vst.msk [vmem:[%s332 + $0x30] sm:$0xff] %vm3846, %v7554
      %7587 = vst.msk [vmem:[%s332 + $0x38] sm:$0xff] %vm3846, %v7555
      %7588 = vst.msk [vmem:[%s332 + $0x40] sm:$0xff] %vm3846, %v7556
      %7589 = vst.msk [vmem:[%s332 + $0x48] sm:$0xff] %vm3846, %v7557
      %7590 = vst.msk [vmem:[%s332 + $0x50] sm:$0xff] %vm3846, %v7558
      %7591 = vst.msk [vmem:[%s332 + $0x58] sm:$0xff] %vm3846, %v7559
      %7592 = vst.msk [vmem:[%s332 + $0x60] sm:$0xff] %vm3846, %v7560
      %7593 = vst.msk [vmem:[%s332 + $0x68] sm:$0xff] %vm3846, %v7561
      %7594 = vst.msk [vmem:[%s332 + $0x70] sm:$0xff] %vm3846, %v7562
      %7595 = vst.msk [vmem:[%s332 + $0x78] sm:$0xff] %vm3846, %v7563
      %7596 = vst.msk [vmem:[%s332 + $0x80] sm:$0xff] %vm3846, %v7564
      %7597 = vst.msk [vmem:[%s332 + $0x88] sm:$0xff] %vm3846, %v7565
      %7598 = vst.msk [vmem:[%s332 + $0x90] sm:$0xff] %vm3846, %v7566
      %7599 = vst.msk [vmem:[%s332 + $0x98] sm:$0xff] %vm3846, %v7567
      %7600 = vst.msk [vmem:[%s332 + $0xa0] sm:$0xff] %vm3846, %v7568
      %7601 = vst.msk [vmem:[%s332 + $0xa8] sm:$0xff] %vm3846, %v7569
      %7602 = vst.msk [vmem:[%s332 + $0xb0] sm:$0xff] %vm3846, %v7570
      %7603 = vst.msk [vmem:[%s332 + $0xb8] sm:$0xff] %vm3846, %v7571
      %7604 = vst.msk [vmem:[%s332 + $0xc0] sm:$0xff] %vm3846, %v7572
      %7605 = vst.msk [vmem:[%s332 + $0xc8] sm:$0xff] %vm3846, %v7573
      %7606 = vst.msk [vmem:[%s332 + $0xd0] sm:$0xff] %vm3846, %v7574
      %7607 = vst.msk [vmem:[%s332 + $0xd8] sm:$0xff] %vm3846, %v7575
      %7608 = vst.msk [vmem:[%s332 + $0xe0] sm:$0xff] %vm3846, %v7576
      %7609 = vst.msk [vmem:[%s332 + $0xe8] sm:$0xff] %vm3846, %v7577
      %7610 = vst.msk [vmem:[%s332 + $0xf0] sm:$0xff] %vm3846, %v7578
      %7611 = vst.msk [vmem:[%s332 + $0xf8] sm:$0xff] %vm3846, %v7579
      %p7612 = scmp.lt.s32.totalorder %s20, 1
      %s7613 = scalar_select %p7612, %s20, 1
      %s7614 = smul.addr %s7613, 32
      %s7615 = smul.addr %s7614, 8
      %s7616 = scalar_lea.vmem %s9, %s7615
      // Predicated region
      $region57: #{tpu_custom_call.1} parent=55 // pred_check
        %p7617 = pneg %p232
      $region58: #{tpu_custom_call.1} parent=55 // pred_check_branch
        %7619 = sbr.rel (%p7617) target = $region60
      $region59: #{tpu_custom_call.1} parent=55 // pred_region
        _
      $region60: #{tpu_custom_call.1} parent=55 // pred_fallthru
        _
    $region56: #{tpu_custom_call.1} parent=5 // pred_fallthru
      _
    %p7620 = scmp.le.s32.totalorder 2, %s15
    // Predicated region
    $region61: #{tpu_custom_call.1} parent=5 // pred_check
      %p7621 = pneg %p7620
    $region62: #{tpu_custom_call.1} parent=5 // pred_check_branch
      %7623 = sbr.rel (%p7621) target = $region64
    $region63: #{tpu_custom_call.1} parent=5 // pred_region
      %s7624 = ssub.s32 %s15, 2
      // Predicated region
      $region65: #{tpu_custom_call.1} parent=63 // pred_check
        %p7625 = pneg %p238
      $region66: #{tpu_custom_call.1} parent=63 // pred_check_branch
        %7627 = sbr.rel (%p7625) target = $region68
      $region67: #{tpu_custom_call.1} parent=63 // pred_region
        %p7628 = scmp.lt.s32.totalorder %s21, 1
        %s7629 = scalar_select %p7628, %s21, 1
        %s7630 = smul.addr %s7629, 32
        %s7631 = smul.addr %s7630, 8
        %s7632 = scalar_lea.vmem %s9, %s7631
      $region68: #{tpu_custom_call.1} parent=63 // pred_fallthru
        _
    $region64: #{tpu_custom_call.1} parent=5 // pred_fallthru
      _
  $region6: #{tpu_custom_call.1} parent=0 // loop_footer
    %s19 = sadd.s32 1, %s15
  $region7: #{tpu_custom_call.1} parent=0 // loop_footer_branch
    %14 = sbr.rel target = $region3
  $region8: #{tpu_custom_call.1} parent=0 // loop_exit
    _

</llo_original>
